<compile_context>
chip_gen: v7x
topology: tpu7x:2x2x1
jax: 0.10.0
libtpu: 0.0.40
codegen_flags: <defaults>
</compile_context>

<pallas_src>
import numpy as np
import jax
import jax.numpy as jnp
from jax import lax
from jax.experimental import pallas as pl
from jax.experimental.pallas import tpu as pltpu

# ---- small config (scaled-down analogue of the original constants) ----------
EMB_DIM = 32       # original: 256
LSTM_HIDDEN = 32   # original: 768
LSTM_LAYERS = 3    # original: 3
NUM_MELS = 16      # original: 40
WINDOW = 16        # original: 80
STRIDE = 8         # original: 40
T_FRAMES = 40      # mel time length -> num_windows = (40-16)//8 + 1 = 4


# ----------------------------- parameters ------------------------------------
def init_params(key):
    """Deterministic synthetic parameters, shapes follow nn.LSTM / nn.Linear."""
    params = {"lstm": [], "proj": None}
    k = 1.0 / np.sqrt(LSTM_HIDDEN)
    for l in range(LSTM_LAYERS):
        in_dim = NUM_MELS if l == 0 else LSTM_HIDDEN
        key, k1, k2, k3, k4 = jax.random.split(key, 5)
        w_ih = jax.random.uniform(k1, (4 * LSTM_HIDDEN, in_dim), jnp.float32, -k, k)
        w_hh = jax.random.uniform(k2, (4 * LSTM_HIDDEN, LSTM_HIDDEN), jnp.float32, -k, k)
        b_ih = jax.random.uniform(k3, (4 * LSTM_HIDDEN,), jnp.float32, -k, k)
        b_hh = jax.random.uniform(k4, (4 * LSTM_HIDDEN,), jnp.float32, -k, k)
        params["lstm"].append((w_ih, w_hh, b_ih, b_hh))
    key, k1, k2 = jax.random.split(key, 3)
    w_p = jax.random.uniform(k1, (EMB_DIM, LSTM_HIDDEN), jnp.float32, -k, k)
    b_p = jax.random.uniform(k2, (EMB_DIM,), jnp.float32, -k, k)
    params["proj"] = (w_p, b_p)
    return params


# ------------------------------ glue: unfold ----------------------------------
def unfold_time_major(mel):
    """torch: mel.unfold(1, window, stride).permute(1, 2, 0) -> (nw, window, mels).
    Returns the time-major transpose (window, nw, mels)."""
    num_mels, t = mel.shape
    n_win = (t - WINDOW) // STRIDE + 1
    idx = jnp.arange(n_win)[:, None] * STRIDE + jnp.arange(WINDOW)[None, :]
    frames = mel[:, idx]                                # (num_mels, n_win, window)
    batch_first = jnp.transpose(frames, (1, 2, 0))      # (n_win, window, num_mels)
    time_major = jnp.transpose(batch_first, (1, 0, 2))  # (window, n_win, num_mels)
    return time_major, n_win


# ------------------------------ pallas kernel ---------------------------------
def make_kernel(num_layers, hidden, seq_len, b_pad, n_valid):
    H = hidden

    def kernel(*refs):
        n_in = 1 + 3 * num_layers + 2
        x_ref = refs[0]                           # (seq*b_pad, num_mels)  flattened, row = t*b_pad + b
        layer_refs = refs[1:1 + 3 * num_layers]   # per layer: w_ihT (in,4H), w_hhT (H,4H), bias (1,4H)
        wproj_ref = refs[1 + 3 * num_layers]      # (H, emb)
        bproj_ref = refs[2 + 3 * num_layers]      # (1, emb)
        out_ref = refs[n_in]                      # (1, emb)
        gates_scr, seq_scr = refs[n_in + 1:]      # (seq*b_pad, 4H), (seq*b_pad, H)

        h_top = None
        for l in range(num_layers):
            w_ih = layer_refs[3 * l][...]         # (in_l, 4H)
            w_hh = layer_refs[3 * l + 1][...]     # (H, 4H)
            bias = layer_refs[3 * l + 2][...]     # (1, 4H)

            # Input-to-hidden gates for the whole sequence: one big matmul,
            # no recurrent dependency; bias broadcast once per layer.
            x_in = x_ref[...] if l == 0 else seq_scr[...]       # (seq*b_pad, in_l)
            gates_scr[...] = (
                jnp.dot(x_in, w_ih, preferred_element_type=jnp.float32) + bias
            )

            def step(t, carry, l=l, w_hh=w_hh):
                h, c = carry                                     # (b_pad, H) each, in vregs
                base = pl.multiple_of(t * b_pad, b_pad)
                gates = gates_scr[pl.ds(base, b_pad), :] + jnp.dot(
                    h, w_hh, preferred_element_type=jnp.float32
                )                                                # (b_pad, 4H)
                # Activations on the full (b_pad, 4H) tile; slice the results.
                # PyTorch LSTM gate order along 4H: i, f, g, o
                sig = jax.nn.sigmoid(gates)
                th = jnp.tanh(gates)
                i_g = sig[:, 0:H]
                f_g = sig[:, H:2 * H]
                g_g = th[:, 2 * H:3 * H]
                o_g = sig[:, 3 * H:4 * H]
                c_new = f_g * c + i_g * g_g
                h_new = o_g * jnp.tanh(c_new)
                if l < num_layers - 1:                           # top layer needs only final h
                    seq_scr[pl.ds(base, b_pad), :] = h_new
                return (h_new, c_new)

            h0 = jnp.zeros((b_pad, H), jnp.float32)
            c0 = jnp.zeros((b_pad, H), jnp.float32)
            h_top, _ = lax.fori_loop(0, seq_len, step, (h0, c0), unroll=True)

        # x[:, -1, :] == final-timestep hidden state of the top layer
        proj = (
            jnp.dot(h_top, wproj_ref[...], preferred_element_type=jnp.float32)
            + bproj_ref[...]
        )                                                        # (b_pad, emb)
        inv_norm = lax.rsqrt(jnp.sum(proj * proj, axis=1, keepdims=True))
        xn = proj * inv_norm                                     # L2-normalized rows
        row = lax.broadcasted_iota(jnp.int32, (b_pad, 1), 0)
        xn = jnp.where(row < n_valid, xn, 0.0)                   # drop padded windows
        out_ref[...] = jnp.sum(xn, axis=0, keepdims=True) * (1.0 / n_valid)

    return kernel


def speaker_encoder_pallas(mel, params):
    mels_tm, n_win = unfold_time_major(mel)        # (window, n_win, num_mels)
    H = LSTM_HIDDEN
    seq = WINDOW
    b_pad = ((n_win + 7) // 8) * 8                 # pad window dim to full sublane groups

    padded = jnp.pad(mels_tm, ((0, 0), (0, b_pad - n_win), (0, 0)))
    x_flat = padded.reshape(seq * b_pad, NUM_MELS)  # row = t*b_pad + b

    flat_inputs = [x_flat]
    for (w_ih, w_hh, b_ih, b_hh) in params["lstm"]:
        flat_inputs.append(jnp.transpose(w_ih))               # (in_l, 4H)
        flat_inputs.append(jnp.transpose(w_hh))               # (H, 4H)
        flat_inputs.append((b_ih + b_hh).reshape(1, 4 * H))   # (1, 4H)
    w_p, b_p = params["proj"]
    flat_inputs.append(jnp.transpose(w_p))                    # (H, emb)
    flat_inputs.append(b_p.reshape(1, EMB_DIM))               # (1, emb)
    n_in = len(flat_inputs)

    out = pl.pallas_call(
        make_kernel(LSTM_LAYERS, H, seq, b_pad, n_win),
        out_shape=jax.ShapeDtypeStruct((1, EMB_DIM), jnp.float32),
        in_specs=[pl.BlockSpec(memory_space=pltpu.MemorySpace.VMEM)] * n_in,
        out_specs=pl.BlockSpec(memory_space=pltpu.MemorySpace.VMEM),
        scratch_shapes=[
            pltpu.VMEM((seq * b_pad, 4 * H), jnp.float32),    # precomputed x@W_ih gates
            pltpu.VMEM((seq * b_pad, H), jnp.float32),        # per-layer output sequence
        ],
    )(*flat_inputs)
    return out[0]                                             # (emb_dim,)


# --------------------------- pure-JAX reference --------------------------------
def speaker_encoder_ref(mel, params):
    time_major, n_win = unfold_time_major(mel)
    x = jnp.transpose(time_major, (1, 0, 2))  # (n_win, window, num_mels) batch-first
    H = LSTM_HIDDEN
    for (w_ih, w_hh, b_ih, b_hh) in params["lstm"]:
        h = jnp.zeros((x.shape[0], H), jnp.float32)
        c = jnp.zeros((x.shape[0], H), jnp.float32)
        outs = []
        for t in range(x.shape[1]):
            gates = x[:, t, :] @ w_ih.T + h @ w_hh.T + b_ih + b_hh
            i_g = jax.nn.sigmoid(gates[:, 0:H])
            f_g = jax.nn.sigmoid(gates[:, H:2 * H])
            g_g = jnp.tanh(gates[:, 2 * H:3 * H])
            o_g = jax.nn.sigmoid(gates[:, 3 * H:4 * H])
            c = f_g * c + i_g * g_g
            h = o_g * jnp.tanh(c)
            outs.append(h)
        x = jnp.stack(outs, axis=1)
    last = x[:, -1, :]
    w_p, b_p = params["proj"]
    p = last @ w_p.T + b_p
    p = p / jnp.linalg.norm(p, axis=1, keepdims=True)
    return p.sum(0) / p.shape[0]


# ----------------------------------- main --------------------------------------
if __name__ == "__main__":
    key = jax.random.PRNGKey(0)
    key_p, key_x = jax.random.split(key)
    params = init_params(key_p)
    mel = jax.random.normal(key_x, (NUM_MELS, T_FRAMES), jnp.float32)

    out = speaker_encoder_pallas(mel, params)
    out = jax.block_until_ready(out)

    ref = jax.block_until_ready(speaker_encoder_ref(mel, params))
    np.testing.assert_allclose(np.asarray(out), np.asarray(ref), rtol=5e-2, atol=5e-3)

    print("KERNEL_OK")
</pallas_src>

<mosaic_0001>
module attributes {stable_mosaic.version = 11 : i64} {
  func.func @kernel(%arg0: memref<128x16xf32, #tpu.memory_space<vmem>>, %arg1: memref<16x128xf32, #tpu.memory_space<vmem>>, %arg2: memref<32x128xf32, #tpu.memory_space<vmem>>, %arg3: memref<1x128xf32, #tpu.memory_space<vmem>>, %arg4: memref<32x128xf32, #tpu.memory_space<vmem>>, %arg5: memref<32x128xf32, #tpu.memory_space<vmem>>, %arg6: memref<1x128xf32, #tpu.memory_space<vmem>>, %arg7: memref<32x128xf32, #tpu.memory_space<vmem>>, %arg8: memref<32x128xf32, #tpu.memory_space<vmem>>, %arg9: memref<1x128xf32, #tpu.memory_space<vmem>>, %arg10: memref<32x32xf32, #tpu.memory_space<vmem>>, %arg11: memref<1x32xf32, #tpu.memory_space<vmem>>, %arg12: memref<1x32xf32, #tpu.memory_space<vmem>>, %arg13: memref<128x128xf32, #tpu.memory_space<vmem>>, %arg14: memref<128x32xf32, #tpu.memory_space<vmem>>) attributes {dimension_semantics = [], scalar_prefetch = 0 : i64, scratch_operands = 2 : i64, tpu.core_type = #tpu.core_type<tc>} {
    %c0 = arith.constant 0 : index
    %c0_0 = arith.constant 0 : index
    %0 = vector.load %arg1[%c0, %c0_0] : memref<16x128xf32, #tpu.memory_space<vmem>>, vector<16x128xf32>
    %c0_1 = arith.constant 0 : index
    %c0_2 = arith.constant 0 : index
    %1 = vector.load %arg2[%c0_1, %c0_2] : memref<32x128xf32, #tpu.memory_space<vmem>>, vector<32x128xf32>
    %c0_3 = arith.constant 0 : index
    %c0_4 = arith.constant 0 : index
    %2 = vector.load %arg3[%c0_3, %c0_4] : memref<1x128xf32, #tpu.memory_space<vmem>>, vector<1x128xf32>
    %c0_5 = arith.constant 0 : index
    %c0_6 = arith.constant 0 : index
    %3 = vector.load %arg0[%c0_5, %c0_6] : memref<128x16xf32, #tpu.memory_space<vmem>>, vector<128x16xf32>
    %cst = arith.constant dense<0.000000e+00> : vector<128x128xf32>
    %4 = tpu.matmul %3, %0, %cst {dimension_numbers = #tpu.dot_dimension_numbers<[1], [0], [0], [1], [0, 0, 1, 1], [], []>} : vector<128x16xf32>, vector<16x128xf32>, vector<128x128xf32> -> vector<128x128xf32>
    %5 = vector.broadcast %2 : vector<1x128xf32> to vector<128x128xf32>
    %6 = arith.addf %4, %5 : vector<128x128xf32>
    %c0_7 = arith.constant 0 : index
    %c0_8 = arith.constant 0 : index
    %7 = vector.load %arg13[%c0_7, %c0_8] : memref<128x128xf32, #tpu.memory_space<vmem>>, vector<128x128xf32>
    tpu.vector_store %arg13[%c0_7, %c0_8], %6 {strides = array<i32>} : memref<128x128xf32, #tpu.memory_space<vmem>>, vector<128x128xf32>,
    %cst_9 = arith.constant 0.000000e+00 : f32
    %8 = vector.broadcast %cst_9 : f32 to vector<8x32xf32>
    %cst_10 = arith.constant 0.000000e+00 : f32
    %9 = vector.broadcast %cst_10 : f32 to vector<8x32xf32>
    %c0_i32 = arith.constant 0 : i32
    %c8_i32 = arith.constant 8 : i32
    %10 = arith.muli %c0_i32, %c8_i32 : i32
    %11 = tpu.assume_multiple %10, 8 : i32
    %12 = arith.index_cast %11 : i32 to index
    %c0_11 = arith.constant 0 : index
    %13 = vector.load %arg13[%12, %c0_11] : memref<128x128xf32, #tpu.memory_space<vmem>>, vector<8x128xf32>
    %cst_12 = arith.constant dense<0.000000e+00> : vector<8x128xf32>
    %14 = tpu.matmul %8, %1, %cst_12 {dimension_numbers = #tpu.dot_dimension_numbers<[1], [0], [0], [1], [0, 0, 1, 1], [], []>} : vector<8x32xf32>, vector<32x128xf32>, vector<8x128xf32> -> vector<8x128xf32>
    %15 = arith.addf %13, %14 : vector<8x128xf32>
    %16 = arith.negf %15 : vector<8x128xf32>
    %17 = math.exp %16 : vector<8x128xf32>
    %cst_13 = arith.constant 1.000000e+00 : f32
    %18 = vector.broadcast %cst_13 : f32 to vector<8x128xf32>
    %19 = arith.addf %18, %17 : vector<8x128xf32>
    %20 = arith.divf %18, %19 : vector<8x128xf32>
    %21 = math.tanh %15 : vector<8x128xf32>
    %22 = vector.extract_strided_slice %20 {offsets = [0, 0], sizes = [8, 32], strides = [1, 1]} : vector<8x128xf32> to vector<8x32xf32>
    %23 = vector.extract_strided_slice %20 {offsets = [0, 32], sizes = [8, 32], strides = [1, 1]} : vector<8x128xf32> to vector<8x32xf32>
    %24 = vector.extract_strided_slice %21 {offsets = [0, 64], sizes = [8, 32], strides = [1, 1]} : vector<8x128xf32> to vector<8x32xf32>
    %25 = vector.extract_strided_slice %20 {offsets = [0, 96], sizes = [8, 32], strides = [1, 1]} : vector<8x128xf32> to vector<8x32xf32>
    %26 = arith.mulf %23, %9 : vector<8x32xf32>
    %27 = arith.mulf %22, %24 : vector<8x32xf32>
    %28 = arith.addf %26, %27 : vector<8x32xf32>
    %29 = math.tanh %28 : vector<8x32xf32>
    %30 = arith.mulf %25, %29 : vector<8x32xf32>
    %31 = arith.index_cast %11 : i32 to index
    %c0_14 = arith.constant 0 : index
    %32 = vector.load %arg14[%31, %c0_14] : memref<128x32xf32, #tpu.memory_space<vmem>>, vector<8x32xf32>
    tpu.vector_store %arg14[%31, %c0_14], %30 {strides = array<i32>} : memref<128x32xf32, #tpu.memory_space<vmem>>, vector<8x32xf32>,
    %c1_i32 = arith.constant 1 : i32
    %c8_i32_15 = arith.constant 8 : i32
    %33 = arith.muli %c1_i32, %c8_i32_15 : i32
    %34 = tpu.assume_multiple %33, 8 : i32
    %35 = arith.index_cast %34 : i32 to index
    %c0_16 = arith.constant 0 : index
    %36 = vector.load %arg13[%35, %c0_16] : memref<128x128xf32, #tpu.memory_space<vmem>>, vector<8x128xf32>
    %cst_17 = arith.constant dense<0.000000e+00> : vector<8x128xf32>
    %37 = tpu.matmul %30, %1, %cst_17 {dimension_numbers = #tpu.dot_dimension_numbers<[1], [0], [0], [1], [0, 0, 1, 1], [], []>} : vector<8x32xf32>, vector<32x128xf32>, vector<8x128xf32> -> vector<8x128xf32>
    %38 = arith.addf %36, %37 : vector<8x128xf32>
    %39 = arith.negf %38 : vector<8x128xf32>
    %40 = math.exp %39 : vector<8x128xf32>
    %cst_18 = arith.constant 1.000000e+00 : f32
    %41 = vector.broadcast %cst_18 : f32 to vector<8x128xf32>
    %42 = arith.addf %41, %40 : vector<8x128xf32>
    %43 = arith.divf %41, %42 : vector<8x128xf32>
    %44 = math.tanh %38 : vector<8x128xf32>
    %45 = vector.extract_strided_slice %43 {offsets = [0, 0], sizes = [8, 32], strides = [1, 1]} : vector<8x128xf32> to vector<8x32xf32>
    %46 = vector.extract_strided_slice %43 {offsets = [0, 32], sizes = [8, 32], strides = [1, 1]} : vector<8x128xf32> to vector<8x32xf32>
    %47 = vector.extract_strided_slice %44 {offsets = [0, 64], sizes = [8, 32], strides = [1, 1]} : vector<8x128xf32> to vector<8x32xf32>
    %48 = vector.extract_strided_slice %43 {offsets = [0, 96], sizes = [8, 32], strides = [1, 1]} : vector<8x128xf32> to vector<8x32xf32>
    %49 = arith.mulf %46, %28 : vector<8x32xf32>
    %50 = arith.mulf %45, %47 : vector<8x32xf32>
    %51 = arith.addf %49, %50 : vector<8x32xf32>
    %52 = math.tanh %51 : vector<8x32xf32>
    %53 = arith.mulf %48, %52 : vector<8x32xf32>
    %54 = arith.index_cast %34 : i32 to index
    %c0_19 = arith.constant 0 : index
    %55 = vector.load %arg14[%54, %c0_19] : memref<128x32xf32, #tpu.memory_space<vmem>>, vector<8x32xf32>
    tpu.vector_store %arg14[%54, %c0_19], %53 {strides = array<i32>} : memref<128x32xf32, #tpu.memory_space<vmem>>, vector<8x32xf32>,
    %c2_i32 = arith.constant 2 : i32
    %c8_i32_20 = arith.constant 8 : i32
    %56 = arith.muli %c2_i32, %c8_i32_20 : i32
    %57 = tpu.assume_multiple %56, 8 : i32
    %58 = arith.index_cast %57 : i32 to index
    %c0_21 = arith.constant 0 : index
    %59 = vector.load %arg13[%58, %c0_21] : memref<128x128xf32, #tpu.memory_space<vmem>>, vector<8x128xf32>
    %cst_22 = arith.constant dense<0.000000e+00> : vector<8x128xf32>
    %60 = tpu.matmul %53, %1, %cst_22 {dimension_numbers = #tpu.dot_dimension_numbers<[1], [0], [0], [1], [0, 0, 1, 1], [], []>} : vector<8x32xf32>, vector<32x128xf32>, vector<8x128xf32> -> vector<8x128xf32>
    %61 = arith.addf %59, %60 : vector<8x128xf32>
    %62 = arith.negf %61 : vector<8x128xf32>
    %63 = math.exp %62 : vector<8x128xf32>
    %cst_23 = arith.constant 1.000000e+00 : f32
    %64 = vector.broadcast %cst_23 : f32 to vector<8x128xf32>
    %65 = arith.addf %64, %63 : vector<8x128xf32>
    %66 = arith.divf %64, %65 : vector<8x128xf32>
    %67 = math.tanh %61 : vector<8x128xf32>
    %68 = vector.extract_strided_slice %66 {offsets = [0, 0], sizes = [8, 32], strides = [1, 1]} : vector<8x128xf32> to vector<8x32xf32>
    %69 = vector.extract_strided_slice %66 {offsets = [0, 32], sizes = [8, 32], strides = [1, 1]} : vector<8x128xf32> to vector<8x32xf32>
    %70 = vector.extract_strided_slice %67 {offsets = [0, 64], sizes = [8, 32], strides = [1, 1]} : vector<8x128xf32> to vector<8x32xf32>
    %71 = vector.extract_strided_slice %66 {offsets = [0, 96], sizes = [8, 32], strides = [1, 1]} : vector<8x128xf32> to vector<8x32xf32>
    %72 = arith.mulf %69, %51 : vector<8x32xf32>
    %73 = arith.mulf %68, %70 : vector<8x32xf32>
    %74 = arith.addf %72, %73 : vector<8x32xf32>
    %75 = math.tanh %74 : vector<8x32xf32>
    %76 = arith.mulf %71, %75 : vector<8x32xf32>
    %77 = arith.index_cast %57 : i32 to index
    %c0_24 = arith.constant 0 : index
    %78 = vector.load %arg14[%77, %c0_24] : memref<128x32xf32, #tpu.memory_space<vmem>>, vector<8x32xf32>
    tpu.vector_store %arg14[%77, %c0_24], %76 {strides = array<i32>} : memref<128x32xf32, #tpu.memory_space<vmem>>, vector<8x32xf32>,
    %c3_i32 = arith.constant 3 : i32
    %c8_i32_25 = arith.constant 8 : i32
    %79 = arith.muli %c3_i32, %c8_i32_25 : i32
    %80 = tpu.assume_multiple %79, 8 : i32
    %81 = arith.index_cast %80 : i32 to index
    %c0_26 = arith.constant 0 : index
    %82 = vector.load %arg13[%81, %c0_26] : memref<128x128xf32, #tpu.memory_space<vmem>>, vector<8x128xf32>
    %cst_27 = arith.constant dense<0.000000e+00> : vector<8x128xf32>
    %83 = tpu.matmul %76, %1, %cst_27 {dimension_numbers = #tpu.dot_dimension_numbers<[1], [0], [0], [1], [0, 0, 1, 1], [], []>} : vector<8x32xf32>, vector<32x128xf32>, vector<8x128xf32> -> vector<8x128xf32>
    %84 = arith.addf %82, %83 : vector<8x128xf32>
    %85 = arith.negf %84 : vector<8x128xf32>
    %86 = math.exp %85 : vector<8x128xf32>
    %cst_28 = arith.constant 1.000000e+00 : f32
    %87 = vector.broadcast %cst_28 : f32 to vector<8x128xf32>
    %88 = arith.addf %87, %86 : vector<8x128xf32>
    %89 = arith.divf %87, %88 : vector<8x128xf32>
    %90 = math.tanh %84 : vector<8x128xf32>
    %91 = vector.extract_strided_slice %89 {offsets = [0, 0], sizes = [8, 32], strides = [1, 1]} : vector<8x128xf32> to vector<8x32xf32>
    %92 = vector.extract_strided_slice %89 {offsets = [0, 32], sizes = [8, 32], strides = [1, 1]} : vector<8x128xf32> to vector<8x32xf32>
    %93 = vector.extract_strided_slice %90 {offsets = [0, 64], sizes = [8, 32], strides = [1, 1]} : vector<8x128xf32> to vector<8x32xf32>
    %94 = vector.extract_strided_slice %89 {offsets = [0, 96], sizes = [8, 32], strides = [1, 1]} : vector<8x128xf32> to vector<8x32xf32>
    %95 = arith.mulf %92, %74 : vector<8x32xf32>
    %96 = arith.mulf %91, %93 : vector<8x32xf32>
    %97 = arith.addf %95, %96 : vector<8x32xf32>
    %98 = math.tanh %97 : vector<8x32xf32>
    %99 = arith.mulf %94, %98 : vector<8x32xf32>
    %100 = arith.index_cast %80 : i32 to index
    %c0_29 = arith.constant 0 : index
    %101 = vector.load %arg14[%100, %c0_29] : memref<128x32xf32, #tpu.memory_space<vmem>>, vector<8x32xf32>
    tpu.vector_store %arg14[%100, %c0_29], %99 {strides = array<i32>} : memref<128x32xf32, #tpu.memory_space<vmem>>, vector<8x32xf32>,
    %c4_i32 = arith.constant 4 : i32
    %c8_i32_30 = arith.constant 8 : i32
    %102 = arith.muli %c4_i32, %c8_i32_30 : i32
    %103 = tpu.assume_multiple %102, 8 : i32
    %104 = arith.index_cast %103 : i32 to index
    %c0_31 = arith.constant 0 : index
    %105 = vector.load %arg13[%104, %c0_31] : memref<128x128xf32, #tpu.memory_space<vmem>>, vector<8x128xf32>
    %cst_32 = arith.constant dense<0.000000e+00> : vector<8x128xf32>
    %106 = tpu.matmul %99, %1, %cst_32 {dimension_numbers = #tpu.dot_dimension_numbers<[1], [0], [0], [1], [0, 0, 1, 1], [], []>} : vector<8x32xf32>, vector<32x128xf32>, vector<8x128xf32> -> vector<8x128xf32>
    %107 = arith.addf %105, %106 : vector<8x128xf32>
    %108 = arith.negf %107 : vector<8x128xf32>
    %109 = math.exp %108 : vector<8x128xf32>
    %cst_33 = arith.constant 1.000000e+00 : f32
    %110 = vector.broadcast %cst_33 : f32 to vector<8x128xf32>
    %111 = arith.addf %110, %109 : vector<8x128xf32>
    %112 = arith.divf %110, %111 : vector<8x128xf32>
    %113 = math.tanh %107 : vector<8x128xf32>
    %114 = vector.extract_strided_slice %112 {offsets = [0, 0], sizes = [8, 32], strides = [1, 1]} : vector<8x128xf32> to vector<8x32xf32>
    %115 = vector.extract_strided_slice %112 {offsets = [0, 32], sizes = [8, 32], strides = [1, 1]} : vector<8x128xf32> to vector<8x32xf32>
    %116 = vector.extract_strided_slice %113 {offsets = [0, 64], sizes = [8, 32], strides = [1, 1]} : vector<8x128xf32> to vector<8x32xf32>
    %117 = vector.extract_strided_slice %112 {offsets = [0, 96], sizes = [8, 32], strides = [1, 1]} : vector<8x128xf32> to vector<8x32xf32>
    %118 = arith.mulf %115, %97 : vector<8x32xf32>
    %119 = arith.mulf %114, %116 : vector<8x32xf32>
    %120 = arith.addf %118, %119 : vector<8x32xf32>
    %121 = math.tanh %120 : vector<8x32xf32>
    %122 = arith.mulf %117, %121 : vector<8x32xf32>
    %123 = arith.index_cast %103 : i32 to index
    %c0_34 = arith.constant 0 : index
    %124 = vector.load %arg14[%123, %c0_34] : memref<128x32xf32, #tpu.memory_space<vmem>>, vector<8x32xf32>
    tpu.vector_store %arg14[%123, %c0_34], %122 {strides = array<i32>} : memref<128x32xf32, #tpu.memory_space<vmem>>, vector<8x32xf32>,
    %c5_i32 = arith.constant 5 : i32
    %c8_i32_35 = arith.constant 8 : i32
    %125 = arith.muli %c5_i32, %c8_i32_35 : i32
    %126 = tpu.assume_multiple %125, 8 : i32
    %127 = arith.index_cast %126 : i32 to index
    %c0_36 = arith.constant 0 : index
    %128 = vector.load %arg13[%127, %c0_36] : memref<128x128xf32, #tpu.memory_space<vmem>>, vector<8x128xf32>
    %cst_37 = arith.constant dense<0.000000e+00> : vector<8x128xf32>
    %129 = tpu.matmul %122, %1, %cst_37 {dimension_numbers = #tpu.dot_dimension_numbers<[1], [0], [0], [1], [0, 0, 1, 1], [], []>} : vector<8x32xf32>, vector<32x128xf32>, vector<8x128xf32> -> vector<8x128xf32>
    %130 = arith.addf %128, %129 : vector<8x128xf32>
    %131 = arith.negf %130 : vector<8x128xf32>
    %132 = math.exp %131 : vector<8x128xf32>
    %cst_38 = arith.constant 1.000000e+00 : f32
    %133 = vector.broadcast %cst_38 : f32 to vector<8x128xf32>
    %134 = arith.addf %133, %132 : vector<8x128xf32>
    %135 = arith.divf %133, %134 : vector<8x128xf32>
    %136 = math.tanh %130 : vector<8x128xf32>
    %137 = vector.extract_strided_slice %135 {offsets = [0, 0], sizes = [8, 32], strides = [1, 1]} : vector<8x128xf32> to vector<8x32xf32>
    %138 = vector.extract_strided_slice %135 {offsets = [0, 32], sizes = [8, 32], strides = [1, 1]} : vector<8x128xf32> to vector<8x32xf32>
    %139 = vector.extract_strided_slice %136 {offsets = [0, 64], sizes = [8, 32], strides = [1, 1]} : vector<8x128xf32> to vector<8x32xf32>
    %140 = vector.extract_strided_slice %135 {offsets = [0, 96], sizes = [8, 32], strides = [1, 1]} : vector<8x128xf32> to vector<8x32xf32>
    %141 = arith.mulf %138, %120 : vector<8x32xf32>
    %142 = arith.mulf %137, %139 : vector<8x32xf32>
    %143 = arith.addf %141, %142 : vector<8x32xf32>
    %144 = math.tanh %143 : vector<8x32xf32>
    %145 = arith.mulf %140, %144 : vector<8x32xf32>
    %146 = arith.index_cast %126 : i32 to index
    %c0_39 = arith.constant 0 : index
    %147 = vector.load %arg14[%146, %c0_39] : memref<128x32xf32, #tpu.memory_space<vmem>>, vector<8x32xf32>
    tpu.vector_store %arg14[%146, %c0_39], %145 {strides = array<i32>} : memref<128x32xf32, #tpu.memory_space<vmem>>, vector<8x32xf32>,
    %c6_i32 = arith.constant 6 : i32
    %c8_i32_40 = arith.constant 8 : i32
    %148 = arith.muli %c6_i32, %c8_i32_40 : i32
    %149 = tpu.assume_multiple %148, 8 : i32
    %150 = arith.index_cast %149 : i32 to index
    %c0_41 = arith.constant 0 : index
    %151 = vector.load %arg13[%150, %c0_41] : memref<128x128xf32, #tpu.memory_space<vmem>>, vector<8x128xf32>
    %cst_42 = arith.constant dense<0.000000e+00> : vector<8x128xf32>
    %152 = tpu.matmul %145, %1, %cst_42 {dimension_numbers = #tpu.dot_dimension_numbers<[1], [0], [0], [1], [0, 0, 1, 1], [], []>} : vector<8x32xf32>, vector<32x128xf32>, vector<8x128xf32> -> vector<8x128xf32>
    %153 = arith.addf %151, %152 : vector<8x128xf32>
    %154 = arith.negf %153 : vector<8x128xf32>
    %155 = math.exp %154 : vector<8x128xf32>
    %cst_43 = arith.constant 1.000000e+00 : f32
    %156 = vector.broadcast %cst_43 : f32 to vector<8x128xf32>
    %157 = arith.addf %156, %155 : vector<8x128xf32>
    %158 = arith.divf %156, %157 : vector<8x128xf32>
    %159 = math.tanh %153 : vector<8x128xf32>
    %160 = vector.extract_strided_slice %158 {offsets = [0, 0], sizes = [8, 32], strides = [1, 1]} : vector<8x128xf32> to vector<8x32xf32>
    %161 = vector.extract_strided_slice %158 {offsets = [0, 32], sizes = [8, 32], strides = [1, 1]} : vector<8x128xf32> to vector<8x32xf32>
    %162 = vector.extract_strided_slice %159 {offsets = [0, 64], sizes = [8, 32], strides = [1, 1]} : vector<8x128xf32> to vector<8x32xf32>
    %163 = vector.extract_strided_slice %158 {offsets = [0, 96], sizes = [8, 32], strides = [1, 1]} : vector<8x128xf32> to vector<8x32xf32>
    %164 = arith.mulf %161, %143 : vector<8x32xf32>
    %165 = arith.mulf %160, %162 : vector<8x32xf32>
    %166 = arith.addf %164, %165 : vector<8x32xf32>
    %167 = math.tanh %166 : vector<8x32xf32>
    %168 = arith.mulf %163, %167 : vector<8x32xf32>
    %169 = arith.index_cast %149 : i32 to index
    %c0_44 = arith.constant 0 : index
    %170 = vector.load %arg14[%169, %c0_44] : memref<128x32xf32, #tpu.memory_space<vmem>>, vector<8x32xf32>
    tpu.vector_store %arg14[%169, %c0_44], %168 {strides = array<i32>} : memref<128x32xf32, #tpu.memory_space<vmem>>, vector<8x32xf32>,
    %c7_i32 = arith.constant 7 : i32
    %c8_i32_45 = arith.constant 8 : i32
    %171 = arith.muli %c7_i32, %c8_i32_45 : i32
    %172 = tpu.assume_multiple %171, 8 : i32
    %173 = arith.index_cast %172 : i32 to index
    %c0_46 = arith.constant 0 : index
    %174 = vector.load %arg13[%173, %c0_46] : memref<128x128xf32, #tpu.memory_space<vmem>>, vector<8x128xf32>
    %cst_47 = arith.constant dense<0.000000e+00> : vector<8x128xf32>
    %175 = tpu.matmul %168, %1, %cst_47 {dimension_numbers = #tpu.dot_dimension_numbers<[1], [0], [0], [1], [0, 0, 1, 1], [], []>} : vector<8x32xf32>, vector<32x128xf32>, vector<8x128xf32> -> vector<8x128xf32>
    %176 = arith.addf %174, %175 : vector<8x128xf32>
    %177 = arith.negf %176 : vector<8x128xf32>
    %178 = math.exp %177 : vector<8x128xf32>
    %cst_48 = arith.constant 1.000000e+00 : f32
    %179 = vector.broadcast %cst_48 : f32 to vector<8x128xf32>
    %180 = arith.addf %179, %178 : vector<8x128xf32>
    %181 = arith.divf %179, %180 : vector<8x128xf32>
    %182 = math.tanh %176 : vector<8x128xf32>
    %183 = vector.extract_strided_slice %181 {offsets = [0, 0], sizes = [8, 32], strides = [1, 1]} : vector<8x128xf32> to vector<8x32xf32>
    %184 = vector.extract_strided_slice %181 {offsets = [0, 32], sizes = [8, 32], strides = [1, 1]} : vector<8x128xf32> to vector<8x32xf32>
    %185 = vector.extract_strided_slice %182 {offsets = [0, 64], sizes = [8, 32], strides = [1, 1]} : vector<8x128xf32> to vector<8x32xf32>
    %186 = vector.extract_strided_slice %181 {offsets = [0, 96], sizes = [8, 32], strides = [1, 1]} : vector<8x128xf32> to vector<8x32xf32>
    %187 = arith.mulf %184, %166 : vector<8x32xf32>
    %188 = arith.mulf %183, %185 : vector<8x32xf32>
    %189 = arith.addf %187, %188 : vector<8x32xf32>
    %190 = math.tanh %189 : vector<8x32xf32>
    %191 = arith.mulf %186, %190 : vector<8x32xf32>
    %192 = arith.index_cast %172 : i32 to index
    %c0_49 = arith.constant 0 : index
    %193 = vector.load %arg14[%192, %c0_49] : memref<128x32xf32, #tpu.memory_space<vmem>>, vector<8x32xf32>
    tpu.vector_store %arg14[%192, %c0_49], %191 {strides = array<i32>} : memref<128x32xf32, #tpu.memory_space<vmem>>, vector<8x32xf32>,
    %c8_i32_50 = arith.constant 8 : i32
    %c8_i32_51 = arith.constant 8 : i32
    %194 = arith.muli %c8_i32_50, %c8_i32_51 : i32
    %195 = tpu.assume_multiple %194, 8 : i32
    %196 = arith.index_cast %195 : i32 to index
    %c0_52 = arith.constant 0 : index
    %197 = vector.load %arg13[%196, %c0_52] : memref<128x128xf32, #tpu.memory_space<vmem>>, vector<8x128xf32>
    %cst_53 = arith.constant dense<0.000000e+00> : vector<8x128xf32>
    %198 = tpu.matmul %191, %1, %cst_53 {dimension_numbers = #tpu.dot_dimension_numbers<[1], [0], [0], [1], [0, 0, 1, 1], [], []>} : vector<8x32xf32>, vector<32x128xf32>, vector<8x128xf32> -> vector<8x128xf32>
    %199 = arith.addf %197, %198 : vector<8x128xf32>
    %200 = arith.negf %199 : vector<8x128xf32>
    %201 = math.exp %200 : vector<8x128xf32>
    %cst_54 = arith.constant 1.000000e+00 : f32
    %202 = vector.broadcast %cst_54 : f32 to vector<8x128xf32>
    %203 = arith.addf %202, %201 : vector<8x128xf32>
    %204 = arith.divf %202, %203 : vector<8x128xf32>
    %205 = math.tanh %199 : vector<8x128xf32>
    %206 = vector.extract_strided_slice %204 {offsets = [0, 0], sizes = [8, 32], strides = [1, 1]} : vector<8x128xf32> to vector<8x32xf32>
    %207 = vector.extract_strided_slice %204 {offsets = [0, 32], sizes = [8, 32], strides = [1, 1]} : vector<8x128xf32> to vector<8x32xf32>
    %208 = vector.extract_strided_slice %205 {offsets = [0, 64], sizes = [8, 32], strides = [1, 1]} : vector<8x128xf32> to vector<8x32xf32>
    %209 = vector.extract_strided_slice %204 {offsets = [0, 96], sizes = [8, 32], strides = [1, 1]} : vector<8x128xf32> to vector<8x32xf32>
    %210 = arith.mulf %207, %189 : vector<8x32xf32>
    %211 = arith.mulf %206, %208 : vector<8x32xf32>
    %212 = arith.addf %210, %211 : vector<8x32xf32>
    %213 = math.tanh %212 : vector<8x32xf32>
    %214 = arith.mulf %209, %213 : vector<8x32xf32>
    %215 = arith.index_cast %195 : i32 to index
    %c0_55 = arith.constant 0 : index
    %216 = vector.load %arg14[%215, %c0_55] : memref<128x32xf32, #tpu.memory_space<vmem>>, vector<8x32xf32>
    tpu.vector_store %arg14[%215, %c0_55], %214 {strides = array<i32>} : memref<128x32xf32, #tpu.memory_space<vmem>>, vector<8x32xf32>,
    %c9_i32 = arith.constant 9 : i32
    %c8_i32_56 = arith.constant 8 : i32
    %217 = arith.muli %c9_i32, %c8_i32_56 : i32
    %218 = tpu.assume_multiple %217, 8 : i32
    %219 = arith.index_cast %218 : i32 to index
    %c0_57 = arith.constant 0 : index
    %220 = vector.load %arg13[%219, %c0_57] : memref<128x128xf32, #tpu.memory_space<vmem>>, vector<8x128xf32>
    %cst_58 = arith.constant dense<0.000000e+00> : vector<8x128xf32>
    %221 = tpu.matmul %214, %1, %cst_58 {dimension_numbers = #tpu.dot_dimension_numbers<[1], [0], [0], [1], [0, 0, 1, 1], [], []>} : vector<8x32xf32>, vector<32x128xf32>, vector<8x128xf32> -> vector<8x128xf32>
    %222 = arith.addf %220, %221 : vector<8x128xf32>
    %223 = arith.negf %222 : vector<8x128xf32>
    %224 = math.exp %223 : vector<8x128xf32>
    %cst_59 = arith.constant 1.000000e+00 : f32
    %225 = vector.broadcast %cst_59 : f32 to vector<8x128xf32>
    %226 = arith.addf %225, %224 : vector<8x128xf32>
    %227 = arith.divf %225, %226 : vector<8x128xf32>
    %228 = math.tanh %222 : vector<8x128xf32>
    %229 = vector.extract_strided_slice %227 {offsets = [0, 0], sizes = [8, 32], strides = [1, 1]} : vector<8x128xf32> to vector<8x32xf32>
    %230 = vector.extract_strided_slice %227 {offsets = [0, 32], sizes = [8, 32], strides = [1, 1]} : vector<8x128xf32> to vector<8x32xf32>
    %231 = vector.extract_strided_slice %228 {offsets = [0, 64], sizes = [8, 32], strides = [1, 1]} : vector<8x128xf32> to vector<8x32xf32>
    %232 = vector.extract_strided_slice %227 {offsets = [0, 96], sizes = [8, 32], strides = [1, 1]} : vector<8x128xf32> to vector<8x32xf32>
    %233 = arith.mulf %230, %212 : vector<8x32xf32>
    %234 = arith.mulf %229, %231 : vector<8x32xf32>
    %235 = arith.addf %233, %234 : vector<8x32xf32>
    %236 = math.tanh %235 : vector<8x32xf32>
    %237 = arith.mulf %232, %236 : vector<8x32xf32>
    %238 = arith.index_cast %218 : i32 to index
    %c0_60 = arith.constant 0 : index
    %239 = vector.load %arg14[%238, %c0_60] : memref<128x32xf32, #tpu.memory_space<vmem>>, vector<8x32xf32>
    tpu.vector_store %arg14[%238, %c0_60], %237 {strides = array<i32>} : memref<128x32xf32, #tpu.memory_space<vmem>>, vector<8x32xf32>,
    %c10_i32 = arith.constant 10 : i32
    %c8_i32_61 = arith.constant 8 : i32
    %240 = arith.muli %c10_i32, %c8_i32_61 : i32
    %241 = tpu.assume_multiple %240, 8 : i32
    %242 = arith.index_cast %241 : i32 to index
    %c0_62 = arith.constant 0 : index
    %243 = vector.load %arg13[%242, %c0_62] : memref<128x128xf32, #tpu.memory_space<vmem>>, vector<8x128xf32>
    %cst_63 = arith.constant dense<0.000000e+00> : vector<8x128xf32>
    %244 = tpu.matmul %237, %1, %cst_63 {dimension_numbers = #tpu.dot_dimension_numbers<[1], [0], [0], [1], [0, 0, 1, 1], [], []>} : vector<8x32xf32>, vector<32x128xf32>, vector<8x128xf32> -> vector<8x128xf32>
    %245 = arith.addf %243, %244 : vector<8x128xf32>
    %246 = arith.negf %245 : vector<8x128xf32>
    %247 = math.exp %246 : vector<8x128xf32>
    %cst_64 = arith.constant 1.000000e+00 : f32
    %248 = vector.broadcast %cst_64 : f32 to vector<8x128xf32>
    %249 = arith.addf %248, %247 : vector<8x128xf32>
    %250 = arith.divf %248, %249 : vector<8x128xf32>
    %251 = math.tanh %245 : vector<8x128xf32>
    %252 = vector.extract_strided_slice %250 {offsets = [0, 0], sizes = [8, 32], strides = [1, 1]} : vector<8x128xf32> to vector<8x32xf32>
    %253 = vector.extract_strided_slice %250 {offsets = [0, 32], sizes = [8, 32], strides = [1, 1]} : vector<8x128xf32> to vector<8x32xf32>
    %254 = vector.extract_strided_slice %251 {offsets = [0, 64], sizes = [8, 32], strides = [1, 1]} : vector<8x128xf32> to vector<8x32xf32>
    %255 = vector.extract_strided_slice %250 {offsets = [0, 96], sizes = [8, 32], strides = [1, 1]} : vector<8x128xf32> to vector<8x32xf32>
    %256 = arith.mulf %253, %235 : vector<8x32xf32>
    %257 = arith.mulf %252, %254 : vector<8x32xf32>
    %258 = arith.addf %256, %257 : vector<8x32xf32>
    %259 = math.tanh %258 : vector<8x32xf32>
    %260 = arith.mulf %255, %259 : vector<8x32xf32>
    %261 = arith.index_cast %241 : i32 to index
    %c0_65 = arith.constant 0 : index
    %262 = vector.load %arg14[%261, %c0_65] : memref<128x32xf32, #tpu.memory_space<vmem>>, vector<8x32xf32>
    tpu.vector_store %arg14[%261, %c0_65], %260 {strides = array<i32>} : memref<128x32xf32, #tpu.memory_space<vmem>>, vector<8x32xf32>,
    %c11_i32 = arith.constant 11 : i32
    %c8_i32_66 = arith.constant 8 : i32
    %263 = arith.muli %c11_i32, %c8_i32_66 : i32
    %264 = tpu.assume_multiple %263, 8 : i32
    %265 = arith.index_cast %264 : i32 to index
    %c0_67 = arith.constant 0 : index
    %266 = vector.load %arg13[%265, %c0_67] : memref<128x128xf32, #tpu.memory_space<vmem>>, vector<8x128xf32>
    %cst_68 = arith.constant dense<0.000000e+00> : vector<8x128xf32>
    %267 = tpu.matmul %260, %1, %cst_68 {dimension_numbers = #tpu.dot_dimension_numbers<[1], [0], [0], [1], [0, 0, 1, 1], [], []>} : vector<8x32xf32>, vector<32x128xf32>, vector<8x128xf32> -> vector<8x128xf32>
    %268 = arith.addf %266, %267 : vector<8x128xf32>
    %269 = arith.negf %268 : vector<8x128xf32>
    %270 = math.exp %269 : vector<8x128xf32>
    %cst_69 = arith.constant 1.000000e+00 : f32
    %271 = vector.broadcast %cst_69 : f32 to vector<8x128xf32>
    %272 = arith.addf %271, %270 : vector<8x128xf32>
    %273 = arith.divf %271, %272 : vector<8x128xf32>
    %274 = math.tanh %268 : vector<8x128xf32>
    %275 = vector.extract_strided_slice %273 {offsets = [0, 0], sizes = [8, 32], strides = [1, 1]} : vector<8x128xf32> to vector<8x32xf32>
    %276 = vector.extract_strided_slice %273 {offsets = [0, 32], sizes = [8, 32], strides = [1, 1]} : vector<8x128xf32> to vector<8x32xf32>
    %277 = vector.extract_strided_slice %274 {offsets = [0, 64], sizes = [8, 32], strides = [1, 1]} : vector<8x128xf32> to vector<8x32xf32>
    %278 = vector.extract_strided_slice %273 {offsets = [0, 96], sizes = [8, 32], strides = [1, 1]} : vector<8x128xf32> to vector<8x32xf32>
    %279 = arith.mulf %276, %258 : vector<8x32xf32>
    %280 = arith.mulf %275, %277 : vector<8x32xf32>
    %281 = arith.addf %279, %280 : vector<8x32xf32>
    %282 = math.tanh %281 : vector<8x32xf32>
    %283 = arith.mulf %278, %282 : vector<8x32xf32>
    %284 = arith.index_cast %264 : i32 to index
    %c0_70 = arith.constant 0 : index
    %285 = vector.load %arg14[%284, %c0_70] : memref<128x32xf32, #tpu.memory_space<vmem>>, vector<8x32xf32>
    tpu.vector_store %arg14[%284, %c0_70], %283 {strides = array<i32>} : memref<128x32xf32, #tpu.memory_space<vmem>>, vector<8x32xf32>,
    %c12_i32 = arith.constant 12 : i32
    %c8_i32_71 = arith.constant 8 : i32
    %286 = arith.muli %c12_i32, %c8_i32_71 : i32
    %287 = tpu.assume_multiple %286, 8 : i32
    %288 = arith.index_cast %287 : i32 to index
    %c0_72 = arith.constant 0 : index
    %289 = vector.load %arg13[%288, %c0_72] : memref<128x128xf32, #tpu.memory_space<vmem>>, vector<8x128xf32>
    %cst_73 = arith.constant dense<0.000000e+00> : vector<8x128xf32>
    %290 = tpu.matmul %283, %1, %cst_73 {dimension_numbers = #tpu.dot_dimension_numbers<[1], [0], [0], [1], [0, 0, 1, 1], [], []>} : vector<8x32xf32>, vector<32x128xf32>, vector<8x128xf32> -> vector<8x128xf32>
    %291 = arith.addf %289, %290 : vector<8x128xf32>
    %292 = arith.negf %291 : vector<8x128xf32>
    %293 = math.exp %292 : vector<8x128xf32>
    %cst_74 = arith.constant 1.000000e+00 : f32
    %294 = vector.broadcast %cst_74 : f32 to vector<8x128xf32>
    %295 = arith.addf %294, %293 : vector<8x128xf32>
    %296 = arith.divf %294, %295 : vector<8x128xf32>
    %297 = math.tanh %291 : vector<8x128xf32>
    %298 = vector.extract_strided_slice %296 {offsets = [0, 0], sizes = [8, 32], strides = [1, 1]} : vector<8x128xf32> to vector<8x32xf32>
    %299 = vector.extract_strided_slice %296 {offsets = [0, 32], sizes = [8, 32], strides = [1, 1]} : vector<8x128xf32> to vector<8x32xf32>
    %300 = vector.extract_strided_slice %297 {offsets = [0, 64], sizes = [8, 32], strides = [1, 1]} : vector<8x128xf32> to vector<8x32xf32>
    %301 = vector.extract_strided_slice %296 {offsets = [0, 96], sizes = [8, 32], strides = [1, 1]} : vector<8x128xf32> to vector<8x32xf32>
    %302 = arith.mulf %299, %281 : vector<8x32xf32>
    %303 = arith.mulf %298, %300 : vector<8x32xf32>
    %304 = arith.addf %302, %303 : vector<8x32xf32>
    %305 = math.tanh %304 : vector<8x32xf32>
    %306 = arith.mulf %301, %305 : vector<8x32xf32>
    %307 = arith.index_cast %287 : i32 to index
    %c0_75 = arith.constant 0 : index
    %308 = vector.load %arg14[%307, %c0_75] : memref<128x32xf32, #tpu.memory_space<vmem>>, vector<8x32xf32>
    tpu.vector_store %arg14[%307, %c0_75], %306 {strides = array<i32>} : memref<128x32xf32, #tpu.memory_space<vmem>>, vector<8x32xf32>,
    %c13_i32 = arith.constant 13 : i32
    %c8_i32_76 = arith.constant 8 : i32
    %309 = arith.muli %c13_i32, %c8_i32_76 : i32
    %310 = tpu.assume_multiple %309, 8 : i32
    %311 = arith.index_cast %310 : i32 to index
    %c0_77 = arith.constant 0 : index
    %312 = vector.load %arg13[%311, %c0_77] : memref<128x128xf32, #tpu.memory_space<vmem>>, vector<8x128xf32>
    %cst_78 = arith.constant dense<0.000000e+00> : vector<8x128xf32>
    %313 = tpu.matmul %306, %1, %cst_78 {dimension_numbers = #tpu.dot_dimension_numbers<[1], [0], [0], [1], [0, 0, 1, 1], [], []>} : vector<8x32xf32>, vector<32x128xf32>, vector<8x128xf32> -> vector<8x128xf32>
    %314 = arith.addf %312, %313 : vector<8x128xf32>
    %315 = arith.negf %314 : vector<8x128xf32>
    %316 = math.exp %315 : vector<8x128xf32>
    %cst_79 = arith.constant 1.000000e+00 : f32
    %317 = vector.broadcast %cst_79 : f32 to vector<8x128xf32>
    %318 = arith.addf %317, %316 : vector<8x128xf32>
    %319 = arith.divf %317, %318 : vector<8x128xf32>
    %320 = math.tanh %314 : vector<8x128xf32>
    %321 = vector.extract_strided_slice %319 {offsets = [0, 0], sizes = [8, 32], strides = [1, 1]} : vector<8x128xf32> to vector<8x32xf32>
    %322 = vector.extract_strided_slice %319 {offsets = [0, 32], sizes = [8, 32], strides = [1, 1]} : vector<8x128xf32> to vector<8x32xf32>
    %323 = vector.extract_strided_slice %320 {offsets = [0, 64], sizes = [8, 32], strides = [1, 1]} : vector<8x128xf32> to vector<8x32xf32>
    %324 = vector.extract_strided_slice %319 {offsets = [0, 96], sizes = [8, 32], strides = [1, 1]} : vector<8x128xf32> to vector<8x32xf32>
    %325 = arith.mulf %322, %304 : vector<8x32xf32>
    %326 = arith.mulf %321, %323 : vector<8x32xf32>
    %327 = arith.addf %325, %326 : vector<8x32xf32>
    %328 = math.tanh %327 : vector<8x32xf32>
    %329 = arith.mulf %324, %328 : vector<8x32xf32>
    %330 = arith.index_cast %310 : i32 to index
    %c0_80 = arith.constant 0 : index
    %331 = vector.load %arg14[%330, %c0_80] : memref<128x32xf32, #tpu.memory_space<vmem>>, vector<8x32xf32>
    tpu.vector_store %arg14[%330, %c0_80], %329 {strides = array<i32>} : memref<128x32xf32, #tpu.memory_space<vmem>>, vector<8x32xf32>,
    %c14_i32 = arith.constant 14 : i32
    %c8_i32_81 = arith.constant 8 : i32
    %332 = arith.muli %c14_i32, %c8_i32_81 : i32
    %333 = tpu.assume_multiple %332, 8 : i32
    %334 = arith.index_cast %333 : i32 to index
    %c0_82 = arith.constant 0 : index
    %335 = vector.load %arg13[%334, %c0_82] : memref<128x128xf32, #tpu.memory_space<vmem>>, vector<8x128xf32>
    %cst_83 = arith.constant dense<0.000000e+00> : vector<8x128xf32>
    %336 = tpu.matmul %329, %1, %cst_83 {dimension_numbers = #tpu.dot_dimension_numbers<[1], [0], [0], [1], [0, 0, 1, 1], [], []>} : vector<8x32xf32>, vector<32x128xf32>, vector<8x128xf32> -> vector<8x128xf32>
    %337 = arith.addf %335, %336 : vector<8x128xf32>
    %338 = arith.negf %337 : vector<8x128xf32>
    %339 = math.exp %338 : vector<8x128xf32>
    %cst_84 = arith.constant 1.000000e+00 : f32
    %340 = vector.broadcast %cst_84 : f32 to vector<8x128xf32>
    %341 = arith.addf %340, %339 : vector<8x128xf32>
    %342 = arith.divf %340, %341 : vector<8x128xf32>
    %343 = math.tanh %337 : vector<8x128xf32>
    %344 = vector.extract_strided_slice %342 {offsets = [0, 0], sizes = [8, 32], strides = [1, 1]} : vector<8x128xf32> to vector<8x32xf32>
    %345 = vector.extract_strided_slice %342 {offsets = [0, 32], sizes = [8, 32], strides = [1, 1]} : vector<8x128xf32> to vector<8x32xf32>
    %346 = vector.extract_strided_slice %343 {offsets = [0, 64], sizes = [8, 32], strides = [1, 1]} : vector<8x128xf32> to vector<8x32xf32>
    %347 = vector.extract_strided_slice %342 {offsets = [0, 96], sizes = [8, 32], strides = [1, 1]} : vector<8x128xf32> to vector<8x32xf32>
    %348 = arith.mulf %345, %327 : vector<8x32xf32>
    %349 = arith.mulf %344, %346 : vector<8x32xf32>
    %350 = arith.addf %348, %349 : vector<8x32xf32>
    %351 = math.tanh %350 : vector<8x32xf32>
    %352 = arith.mulf %347, %351 : vector<8x32xf32>
    %353 = arith.index_cast %333 : i32 to index
    %c0_85 = arith.constant 0 : index
    %354 = vector.load %arg14[%353, %c0_85] : memref<128x32xf32, #tpu.memory_space<vmem>>, vector<8x32xf32>
    tpu.vector_store %arg14[%353, %c0_85], %352 {strides = array<i32>} : memref<128x32xf32, #tpu.memory_space<vmem>>, vector<8x32xf32>,
    %c15_i32 = arith.constant 15 : i32
    %c8_i32_86 = arith.constant 8 : i32
    %355 = arith.muli %c15_i32, %c8_i32_86 : i32
    %356 = tpu.assume_multiple %355, 8 : i32
    %357 = arith.index_cast %356 : i32 to index
    %c0_87 = arith.constant 0 : index
    %358 = vector.load %arg13[%357, %c0_87] : memref<128x128xf32, #tpu.memory_space<vmem>>, vector<8x128xf32>
    %cst_88 = arith.constant dense<0.000000e+00> : vector<8x128xf32>
    %359 = tpu.matmul %352, %1, %cst_88 {dimension_numbers = #tpu.dot_dimension_numbers<[1], [0], [0], [1], [0, 0, 1, 1], [], []>} : vector<8x32xf32>, vector<32x128xf32>, vector<8x128xf32> -> vector<8x128xf32>
    %360 = arith.addf %358, %359 : vector<8x128xf32>
    %361 = arith.negf %360 : vector<8x128xf32>
    %362 = math.exp %361 : vector<8x128xf32>
    %cst_89 = arith.constant 1.000000e+00 : f32
    %363 = vector.broadcast %cst_89 : f32 to vector<8x128xf32>
    %364 = arith.addf %363, %362 : vector<8x128xf32>
    %365 = arith.divf %363, %364 : vector<8x128xf32>
    %366 = math.tanh %360 : vector<8x128xf32>
    %367 = vector.extract_strided_slice %365 {offsets = [0, 0], sizes = [8, 32], strides = [1, 1]} : vector<8x128xf32> to vector<8x32xf32>
    %368 = vector.extract_strided_slice %365 {offsets = [0, 32], sizes = [8, 32], strides = [1, 1]} : vector<8x128xf32> to vector<8x32xf32>
    %369 = vector.extract_strided_slice %366 {offsets = [0, 64], sizes = [8, 32], strides = [1, 1]} : vector<8x128xf32> to vector<8x32xf32>
    %370 = vector.extract_strided_slice %365 {offsets = [0, 96], sizes = [8, 32], strides = [1, 1]} : vector<8x128xf32> to vector<8x32xf32>
    %371 = arith.mulf %368, %350 : vector<8x32xf32>
    %372 = arith.mulf %367, %369 : vector<8x32xf32>
    %373 = arith.addf %371, %372 : vector<8x32xf32>
    %374 = math.tanh %373 : vector<8x32xf32>
    %375 = arith.mulf %370, %374 : vector<8x32xf32>
    %376 = arith.index_cast %356 : i32 to index
    %c0_90 = arith.constant 0 : index
    %377 = vector.load %arg14[%376, %c0_90] : memref<128x32xf32, #tpu.memory_space<vmem>>, vector<8x32xf32>
    tpu.vector_store %arg14[%376, %c0_90], %375 {strides = array<i32>} : memref<128x32xf32, #tpu.memory_space<vmem>>, vector<8x32xf32>,
    %c16_i32 = arith.constant 16 : i32
    %c0_91 = arith.constant 0 : index
    %c0_92 = arith.constant 0 : index
    %378 = vector.load %arg4[%c0_91, %c0_92] : memref<32x128xf32, #tpu.memory_space<vmem>>, vector<32x128xf32>
    %c0_93 = arith.constant 0 : index
    %c0_94 = arith.constant 0 : index
    %379 = vector.load %arg5[%c0_93, %c0_94] : memref<32x128xf32, #tpu.memory_space<vmem>>, vector<32x128xf32>
    %c0_95 = arith.constant 0 : index
    %c0_96 = arith.constant 0 : index
    %380 = vector.load %arg6[%c0_95, %c0_96] : memref<1x128xf32, #tpu.memory_space<vmem>>, vector<1x128xf32>
    %c0_97 = arith.constant 0 : index
    %c0_98 = arith.constant 0 : index
    %381 = vector.load %arg14[%c0_97, %c0_98] : memref<128x32xf32, #tpu.memory_space<vmem>>, vector<128x32xf32>
    %cst_99 = arith.constant dense<0.000000e+00> : vector<128x128xf32>
    %382 = tpu.matmul %381, %378, %cst_99 {dimension_numbers = #tpu.dot_dimension_numbers<[1], [0], [0], [1], [0, 0, 1, 1], [], []>} : vector<128x32xf32>, vector<32x128xf32>, vector<128x128xf32> -> vector<128x128xf32>
    %383 = vector.broadcast %380 : vector<1x128xf32> to vector<128x128xf32>
    %384 = arith.addf %382, %383 : vector<128x128xf32>
    %c0_100 = arith.constant 0 : index
    %c0_101 = arith.constant 0 : index
    %385 = vector.load %arg13[%c0_100, %c0_101] : memref<128x128xf32, #tpu.memory_space<vmem>>, vector<128x128xf32>
    tpu.vector_store %arg13[%c0_100, %c0_101], %384 {strides = array<i32>} : memref<128x128xf32, #tpu.memory_space<vmem>>, vector<128x128xf32>,
    %cst_102 = arith.constant 0.000000e+00 : f32
    %386 = vector.broadcast %cst_102 : f32 to vector<8x32xf32>
    %cst_103 = arith.constant 0.000000e+00 : f32
    %387 = vector.broadcast %cst_103 : f32 to vector<8x32xf32>
    %c0_i32_104 = arith.constant 0 : i32
    %c8_i32_105 = arith.constant 8 : i32
    %388 = arith.muli %c0_i32_104, %c8_i32_105 : i32
    %389 = tpu.assume_multiple %388, 8 : i32
    %390 = arith.index_cast %389 : i32 to index
    %c0_106 = arith.constant 0 : index
    %391 = vector.load %arg13[%390, %c0_106] : memref<128x128xf32, #tpu.memory_space<vmem>>, vector<8x128xf32>
    %cst_107 = arith.constant dense<0.000000e+00> : vector<8x128xf32>
    %392 = tpu.matmul %386, %379, %cst_107 {dimension_numbers = #tpu.dot_dimension_numbers<[1], [0], [0], [1], [0, 0, 1, 1], [], []>} : vector<8x32xf32>, vector<32x128xf32>, vector<8x128xf32> -> vector<8x128xf32>
    %393 = arith.addf %391, %392 : vector<8x128xf32>
    %394 = arith.negf %393 : vector<8x128xf32>
    %395 = math.exp %394 : vector<8x128xf32>
    %cst_108 = arith.constant 1.000000e+00 : f32
    %396 = vector.broadcast %cst_108 : f32 to vector<8x128xf32>
    %397 = arith.addf %396, %395 : vector<8x128xf32>
    %398 = arith.divf %396, %397 : vector<8x128xf32>
    %399 = math.tanh %393 : vector<8x128xf32>
    %400 = vector.extract_strided_slice %398 {offsets = [0, 0], sizes = [8, 32], strides = [1, 1]} : vector<8x128xf32> to vector<8x32xf32>
    %401 = vector.extract_strided_slice %398 {offsets = [0, 32], sizes = [8, 32], strides = [1, 1]} : vector<8x128xf32> to vector<8x32xf32>
    %402 = vector.extract_strided_slice %399 {offsets = [0, 64], sizes = [8, 32], strides = [1, 1]} : vector<8x128xf32> to vector<8x32xf32>
    %403 = vector.extract_strided_slice %398 {offsets = [0, 96], sizes = [8, 32], strides = [1, 1]} : vector<8x128xf32> to vector<8x32xf32>
    %404 = arith.mulf %401, %387 : vector<8x32xf32>
    %405 = arith.mulf %400, %402 : vector<8x32xf32>
    %406 = arith.addf %404, %405 : vector<8x32xf32>
    %407 = math.tanh %406 : vector<8x32xf32>
    %408 = arith.mulf %403, %407 : vector<8x32xf32>
    %409 = arith.index_cast %389 : i32 to index
    %c0_109 = arith.constant 0 : index
    %410 = vector.load %arg14[%409, %c0_109] : memref<128x32xf32, #tpu.memory_space<vmem>>, vector<8x32xf32>
    tpu.vector_store %arg14[%409, %c0_109], %408 {strides = array<i32>} : memref<128x32xf32, #tpu.memory_space<vmem>>, vector<8x32xf32>,
    %c1_i32_110 = arith.constant 1 : i32
    %c8_i32_111 = arith.constant 8 : i32
    %411 = arith.muli %c1_i32_110, %c8_i32_111 : i32
    %412 = tpu.assume_multiple %411, 8 : i32
    %413 = arith.index_cast %412 : i32 to index
    %c0_112 = arith.constant 0 : index
    %414 = vector.load %arg13[%413, %c0_112] : memref<128x128xf32, #tpu.memory_space<vmem>>, vector<8x128xf32>
    %cst_113 = arith.constant dense<0.000000e+00> : vector<8x128xf32>
    %415 = tpu.matmul %408, %379, %cst_113 {dimension_numbers = #tpu.dot_dimension_numbers<[1], [0], [0], [1], [0, 0, 1, 1], [], []>} : vector<8x32xf32>, vector<32x128xf32>, vector<8x128xf32> -> vector<8x128xf32>
    %416 = arith.addf %414, %415 : vector<8x128xf32>
    %417 = arith.negf %416 : vector<8x128xf32>
    %418 = math.exp %417 : vector<8x128xf32>
    %cst_114 = arith.constant 1.000000e+00 : f32
    %419 = vector.broadcast %cst_114 : f32 to vector<8x128xf32>
    %420 = arith.addf %419, %418 : vector<8x128xf32>
    %421 = arith.divf %419, %420 : vector<8x128xf32>
    %422 = math.tanh %416 : vector<8x128xf32>
    %423 = vector.extract_strided_slice %421 {offsets = [0, 0], sizes = [8, 32], strides = [1, 1]} : vector<8x128xf32> to vector<8x32xf32>
    %424 = vector.extract_strided_slice %421 {offsets = [0, 32], sizes = [8, 32], strides = [1, 1]} : vector<8x128xf32> to vector<8x32xf32>
    %425 = vector.extract_strided_slice %422 {offsets = [0, 64], sizes = [8, 32], strides = [1, 1]} : vector<8x128xf32> to vector<8x32xf32>
    %426 = vector.extract_strided_slice %421 {offsets = [0, 96], sizes = [8, 32], strides = [1, 1]} : vector<8x128xf32> to vector<8x32xf32>
    %427 = arith.mulf %424, %406 : vector<8x32xf32>
    %428 = arith.mulf %423, %425 : vector<8x32xf32>
    %429 = arith.addf %427, %428 : vector<8x32xf32>
    %430 = math.tanh %429 : vector<8x32xf32>
    %431 = arith.mulf %426, %430 : vector<8x32xf32>
    %432 = arith.index_cast %412 : i32 to index
    %c0_115 = arith.constant 0 : index
    %433 = vector.load %arg14[%432, %c0_115] : memref<128x32xf32, #tpu.memory_space<vmem>>, vector<8x32xf32>
    tpu.vector_store %arg14[%432, %c0_115], %431 {strides = array<i32>} : memref<128x32xf32, #tpu.memory_space<vmem>>, vector<8x32xf32>,
    %c2_i32_116 = arith.constant 2 : i32
    %c8_i32_117 = arith.constant 8 : i32
    %434 = arith.muli %c2_i32_116, %c8_i32_117 : i32
    %435 = tpu.assume_multiple %434, 8 : i32
    %436 = arith.index_cast %435 : i32 to index
    %c0_118 = arith.constant 0 : index
    %437 = vector.load %arg13[%436, %c0_118] : memref<128x128xf32, #tpu.memory_space<vmem>>, vector<8x128xf32>
    %cst_119 = arith.constant dense<0.000000e+00> : vector<8x128xf32>
    %438 = tpu.matmul %431, %379, %cst_119 {dimension_numbers = #tpu.dot_dimension_numbers<[1], [0], [0], [1], [0, 0, 1, 1], [], []>} : vector<8x32xf32>, vector<32x128xf32>, vector<8x128xf32> -> vector<8x128xf32>
    %439 = arith.addf %437, %438 : vector<8x128xf32>
    %440 = arith.negf %439 : vector<8x128xf32>
    %441 = math.exp %440 : vector<8x128xf32>
    %cst_120 = arith.constant 1.000000e+00 : f32
    %442 = vector.broadcast %cst_120 : f32 to vector<8x128xf32>
    %443 = arith.addf %442, %441 : vector<8x128xf32>
    %444 = arith.divf %442, %443 : vector<8x128xf32>
    %445 = math.tanh %439 : vector<8x128xf32>
    %446 = vector.extract_strided_slice %444 {offsets = [0, 0], sizes = [8, 32], strides = [1, 1]} : vector<8x128xf32> to vector<8x32xf32>
    %447 = vector.extract_strided_slice %444 {offsets = [0, 32], sizes = [8, 32], strides = [1, 1]} : vector<8x128xf32> to vector<8x32xf32>
    %448 = vector.extract_strided_slice %445 {offsets = [0, 64], sizes = [8, 32], strides = [1, 1]} : vector<8x128xf32> to vector<8x32xf32>
    %449 = vector.extract_strided_slice %444 {offsets = [0, 96], sizes = [8, 32], strides = [1, 1]} : vector<8x128xf32> to vector<8x32xf32>
    %450 = arith.mulf %447, %429 : vector<8x32xf32>
    %451 = arith.mulf %446, %448 : vector<8x32xf32>
    %452 = arith.addf %450, %451 : vector<8x32xf32>
    %453 = math.tanh %452 : vector<8x32xf32>
    %454 = arith.mulf %449, %453 : vector<8x32xf32>
    %455 = arith.index_cast %435 : i32 to index
    %c0_121 = arith.constant 0 : index
    %456 = vector.load %arg14[%455, %c0_121] : memref<128x32xf32, #tpu.memory_space<vmem>>, vector<8x32xf32>
    tpu.vector_store %arg14[%455, %c0_121], %454 {strides = array<i32>} : memref<128x32xf32, #tpu.memory_space<vmem>>, vector<8x32xf32>,
    %c3_i32_122 = arith.constant 3 : i32
    %c8_i32_123 = arith.constant 8 : i32
    %457 = arith.muli %c3_i32_122, %c8_i32_123 : i32
    %458 = tpu.assume_multiple %457, 8 : i32
    %459 = arith.index_cast %458 : i32 to index
    %c0_124 = arith.constant 0 : index
    %460 = vector.load %arg13[%459, %c0_124] : memref<128x128xf32, #tpu.memory_space<vmem>>, vector<8x128xf32>
    %cst_125 = arith.constant dense<0.000000e+00> : vector<8x128xf32>
    %461 = tpu.matmul %454, %379, %cst_125 {dimension_numbers = #tpu.dot_dimension_numbers<[1], [0], [0], [1], [0, 0, 1, 1], [], []>} : vector<8x32xf32>, vector<32x128xf32>, vector<8x128xf32> -> vector<8x128xf32>
    %462 = arith.addf %460, %461 : vector<8x128xf32>
    %463 = arith.negf %462 : vector<8x128xf32>
    %464 = math.exp %463 : vector<8x128xf32>
    %cst_126 = arith.constant 1.000000e+00 : f32
    %465 = vector.broadcast %cst_126 : f32 to vector<8x128xf32>
    %466 = arith.addf %465, %464 : vector<8x128xf32>
    %467 = arith.divf %465, %466 : vector<8x128xf32>
    %468 = math.tanh %462 : vector<8x128xf32>
    %469 = vector.extract_strided_slice %467 {offsets = [0, 0], sizes = [8, 32], strides = [1, 1]} : vector<8x128xf32> to vector<8x32xf32>
    %470 = vector.extract_strided_slice %467 {offsets = [0, 32], sizes = [8, 32], strides = [1, 1]} : vector<8x128xf32> to vector<8x32xf32>
    %471 = vector.extract_strided_slice %468 {offsets = [0, 64], sizes = [8, 32], strides = [1, 1]} : vector<8x128xf32> to vector<8x32xf32>
    %472 = vector.extract_strided_slice %467 {offsets = [0, 96], sizes = [8, 32], strides = [1, 1]} : vector<8x128xf32> to vector<8x32xf32>
    %473 = arith.mulf %470, %452 : vector<8x32xf32>
    %474 = arith.mulf %469, %471 : vector<8x32xf32>
    %475 = arith.addf %473, %474 : vector<8x32xf32>
    %476 = math.tanh %475 : vector<8x32xf32>
    %477 = arith.mulf %472, %476 : vector<8x32xf32>
    %478 = arith.index_cast %458 : i32 to index
    %c0_127 = arith.constant 0 : index
    %479 = vector.load %arg14[%478, %c0_127] : memref<128x32xf32, #tpu.memory_space<vmem>>, vector<8x32xf32>
    tpu.vector_store %arg14[%478, %c0_127], %477 {strides = array<i32>} : memref<128x32xf32, #tpu.memory_space<vmem>>, vector<8x32xf32>,
    %c4_i32_128 = arith.constant 4 : i32
    %c8_i32_129 = arith.constant 8 : i32
    %480 = arith.muli %c4_i32_128, %c8_i32_129 : i32
    %481 = tpu.assume_multiple %480, 8 : i32
    %482 = arith.index_cast %481 : i32 to index
    %c0_130 = arith.constant 0 : index
    %483 = vector.load %arg13[%482, %c0_130] : memref<128x128xf32, #tpu.memory_space<vmem>>, vector<8x128xf32>
    %cst_131 = arith.constant dense<0.000000e+00> : vector<8x128xf32>
    %484 = tpu.matmul %477, %379, %cst_131 {dimension_numbers = #tpu.dot_dimension_numbers<[1], [0], [0], [1], [0, 0, 1, 1], [], []>} : vector<8x32xf32>, vector<32x128xf32>, vector<8x128xf32> -> vector<8x128xf32>
    %485 = arith.addf %483, %484 : vector<8x128xf32>
    %486 = arith.negf %485 : vector<8x128xf32>
    %487 = math.exp %486 : vector<8x128xf32>
    %cst_132 = arith.constant 1.000000e+00 : f32
    %488 = vector.broadcast %cst_132 : f32 to vector<8x128xf32>
    %489 = arith.addf %488, %487 : vector<8x128xf32>
    %490 = arith.divf %488, %489 : vector<8x128xf32>
    %491 = math.tanh %485 : vector<8x128xf32>
    %492 = vector.extract_strided_slice %490 {offsets = [0, 0], sizes = [8, 32], strides = [1, 1]} : vector<8x128xf32> to vector<8x32xf32>
    %493 = vector.extract_strided_slice %490 {offsets = [0, 32], sizes = [8, 32], strides = [1, 1]} : vector<8x128xf32> to vector<8x32xf32>
    %494 = vector.extract_strided_slice %491 {offsets = [0, 64], sizes = [8, 32], strides = [1, 1]} : vector<8x128xf32> to vector<8x32xf32>
    %495 = vector.extract_strided_slice %490 {offsets = [0, 96], sizes = [8, 32], strides = [1, 1]} : vector<8x128xf32> to vector<8x32xf32>
    %496 = arith.mulf %493, %475 : vector<8x32xf32>
    %497 = arith.mulf %492, %494 : vector<8x32xf32>
    %498 = arith.addf %496, %497 : vector<8x32xf32>
    %499 = math.tanh %498 : vector<8x32xf32>
    %500 = arith.mulf %495, %499 : vector<8x32xf32>
    %501 = arith.index_cast %481 : i32 to index
    %c0_133 = arith.constant 0 : index
    %502 = vector.load %arg14[%501, %c0_133] : memref<128x32xf32, #tpu.memory_space<vmem>>, vector<8x32xf32>
    tpu.vector_store %arg14[%501, %c0_133], %500 {strides = array<i32>} : memref<128x32xf32, #tpu.memory_space<vmem>>, vector<8x32xf32>,
    %c5_i32_134 = arith.constant 5 : i32
    %c8_i32_135 = arith.constant 8 : i32
    %503 = arith.muli %c5_i32_134, %c8_i32_135 : i32
    %504 = tpu.assume_multiple %503, 8 : i32
    %505 = arith.index_cast %504 : i32 to index
    %c0_136 = arith.constant 0 : index
    %506 = vector.load %arg13[%505, %c0_136] : memref<128x128xf32, #tpu.memory_space<vmem>>, vector<8x128xf32>
    %cst_137 = arith.constant dense<0.000000e+00> : vector<8x128xf32>
    %507 = tpu.matmul %500, %379, %cst_137 {dimension_numbers = #tpu.dot_dimension_numbers<[1], [0], [0], [1], [0, 0, 1, 1], [], []>} : vector<8x32xf32>, vector<32x128xf32>, vector<8x128xf32> -> vector<8x128xf32>
    %508 = arith.addf %506, %507 : vector<8x128xf32>
    %509 = arith.negf %508 : vector<8x128xf32>
    %510 = math.exp %509 : vector<8x128xf32>
    %cst_138 = arith.constant 1.000000e+00 : f32
    %511 = vector.broadcast %cst_138 : f32 to vector<8x128xf32>
    %512 = arith.addf %511, %510 : vector<8x128xf32>
    %513 = arith.divf %511, %512 : vector<8x128xf32>
    %514 = math.tanh %508 : vector<8x128xf32>
    %515 = vector.extract_strided_slice %513 {offsets = [0, 0], sizes = [8, 32], strides = [1, 1]} : vector<8x128xf32> to vector<8x32xf32>
    %516 = vector.extract_strided_slice %513 {offsets = [0, 32], sizes = [8, 32], strides = [1, 1]} : vector<8x128xf32> to vector<8x32xf32>
    %517 = vector.extract_strided_slice %514 {offsets = [0, 64], sizes = [8, 32], strides = [1, 1]} : vector<8x128xf32> to vector<8x32xf32>
    %518 = vector.extract_strided_slice %513 {offsets = [0, 96], sizes = [8, 32], strides = [1, 1]} : vector<8x128xf32> to vector<8x32xf32>
    %519 = arith.mulf %516, %498 : vector<8x32xf32>
    %520 = arith.mulf %515, %517 : vector<8x32xf32>
    %521 = arith.addf %519, %520 : vector<8x32xf32>
    %522 = math.tanh %521 : vector<8x32xf32>
    %523 = arith.mulf %518, %522 : vector<8x32xf32>
    %524 = arith.index_cast %504 : i32 to index
    %c0_139 = arith.constant 0 : index
    %525 = vector.load %arg14[%524, %c0_139] : memref<128x32xf32, #tpu.memory_space<vmem>>, vector<8x32xf32>
    tpu.vector_store %arg14[%524, %c0_139], %523 {strides = array<i32>} : memref<128x32xf32, #tpu.memory_space<vmem>>, vector<8x32xf32>,
    %c6_i32_140 = arith.constant 6 : i32
    %c8_i32_141 = arith.constant 8 : i32
    %526 = arith.muli %c6_i32_140, %c8_i32_141 : i32
    %527 = tpu.assume_multiple %526, 8 : i32
    %528 = arith.index_cast %527 : i32 to index
    %c0_142 = arith.constant 0 : index
    %529 = vector.load %arg13[%528, %c0_142] : memref<128x128xf32, #tpu.memory_space<vmem>>, vector<8x128xf32>
    %cst_143 = arith.constant dense<0.000000e+00> : vector<8x128xf32>
    %530 = tpu.matmul %523, %379, %cst_143 {dimension_numbers = #tpu.dot_dimension_numbers<[1], [0], [0], [1], [0, 0, 1, 1], [], []>} : vector<8x32xf32>, vector<32x128xf32>, vector<8x128xf32> -> vector<8x128xf32>
    %531 = arith.addf %529, %530 : vector<8x128xf32>
    %532 = arith.negf %531 : vector<8x128xf32>
    %533 = math.exp %532 : vector<8x128xf32>
    %cst_144 = arith.constant 1.000000e+00 : f32
    %534 = vector.broadcast %cst_144 : f32 to vector<8x128xf32>
    %535 = arith.addf %534, %533 : vector<8x128xf32>
    %536 = arith.divf %534, %535 : vector<8x128xf32>
    %537 = math.tanh %531 : vector<8x128xf32>
    %538 = vector.extract_strided_slice %536 {offsets = [0, 0], sizes = [8, 32], strides = [1, 1]} : vector<8x128xf32> to vector<8x32xf32>
    %539 = vector.extract_strided_slice %536 {offsets = [0, 32], sizes = [8, 32], strides = [1, 1]} : vector<8x128xf32> to vector<8x32xf32>
    %540 = vector.extract_strided_slice %537 {offsets = [0, 64], sizes = [8, 32], strides = [1, 1]} : vector<8x128xf32> to vector<8x32xf32>
    %541 = vector.extract_strided_slice %536 {offsets = [0, 96], sizes = [8, 32], strides = [1, 1]} : vector<8x128xf32> to vector<8x32xf32>
    %542 = arith.mulf %539, %521 : vector<8x32xf32>
    %543 = arith.mulf %538, %540 : vector<8x32xf32>
    %544 = arith.addf %542, %543 : vector<8x32xf32>
    %545 = math.tanh %544 : vector<8x32xf32>
    %546 = arith.mulf %541, %545 : vector<8x32xf32>
    %547 = arith.index_cast %527 : i32 to index
    %c0_145 = arith.constant 0 : index
    %548 = vector.load %arg14[%547, %c0_145] : memref<128x32xf32, #tpu.memory_space<vmem>>, vector<8x32xf32>
    tpu.vector_store %arg14[%547, %c0_145], %546 {strides = array<i32>} : memref<128x32xf32, #tpu.memory_space<vmem>>, vector<8x32xf32>,
    %c7_i32_146 = arith.constant 7 : i32
    %c8_i32_147 = arith.constant 8 : i32
    %549 = arith.muli %c7_i32_146, %c8_i32_147 : i32
    %550 = tpu.assume_multiple %549, 8 : i32
    %551 = arith.index_cast %550 : i32 to index
    %c0_148 = arith.constant 0 : index
    %552 = vector.load %arg13[%551, %c0_148] : memref<128x128xf32, #tpu.memory_space<vmem>>, vector<8x128xf32>
    %cst_149 = arith.constant dense<0.000000e+00> : vector<8x128xf32>
    %553 = tpu.matmul %546, %379, %cst_149 {dimension_numbers = #tpu.dot_dimension_numbers<[1], [0], [0], [1], [0, 0, 1, 1], [], []>} : vector<8x32xf32>, vector<32x128xf32>, vector<8x128xf32> -> vector<8x128xf32>
    %554 = arith.addf %552, %553 : vector<8x128xf32>
    %555 = arith.negf %554 : vector<8x128xf32>
    %556 = math.exp %555 : vector<8x128xf32>
    %cst_150 = arith.constant 1.000000e+00 : f32
    %557 = vector.broadcast %cst_150 : f32 to vector<8x128xf32>
    %558 = arith.addf %557, %556 : vector<8x128xf32>
    %559 = arith.divf %557, %558 : vector<8x128xf32>
    %560 = math.tanh %554 : vector<8x128xf32>
    %561 = vector.extract_strided_slice %559 {offsets = [0, 0], sizes = [8, 32], strides = [1, 1]} : vector<8x128xf32> to vector<8x32xf32>
    %562 = vector.extract_strided_slice %559 {offsets = [0, 32], sizes = [8, 32], strides = [1, 1]} : vector<8x128xf32> to vector<8x32xf32>
    %563 = vector.extract_strided_slice %560 {offsets = [0, 64], sizes = [8, 32], strides = [1, 1]} : vector<8x128xf32> to vector<8x32xf32>
    %564 = vector.extract_strided_slice %559 {offsets = [0, 96], sizes = [8, 32], strides = [1, 1]} : vector<8x128xf32> to vector<8x32xf32>
    %565 = arith.mulf %562, %544 : vector<8x32xf32>
    %566 = arith.mulf %561, %563 : vector<8x32xf32>
    %567 = arith.addf %565, %566 : vector<8x32xf32>
    %568 = math.tanh %567 : vector<8x32xf32>
    %569 = arith.mulf %564, %568 : vector<8x32xf32>
    %570 = arith.index_cast %550 : i32 to index
    %c0_151 = arith.constant 0 : index
    %571 = vector.load %arg14[%570, %c0_151] : memref<128x32xf32, #tpu.memory_space<vmem>>, vector<8x32xf32>
    tpu.vector_store %arg14[%570, %c0_151], %569 {strides = array<i32>} : memref<128x32xf32, #tpu.memory_space<vmem>>, vector<8x32xf32>,
    %c8_i32_152 = arith.constant 8 : i32
    %c8_i32_153 = arith.constant 8 : i32
    %572 = arith.muli %c8_i32_152, %c8_i32_153 : i32
    %573 = tpu.assume_multiple %572, 8 : i32
    %574 = arith.index_cast %573 : i32 to index
    %c0_154 = arith.constant 0 : index
    %575 = vector.load %arg13[%574, %c0_154] : memref<128x128xf32, #tpu.memory_space<vmem>>, vector<8x128xf32>
    %cst_155 = arith.constant dense<0.000000e+00> : vector<8x128xf32>
    %576 = tpu.matmul %569, %379, %cst_155 {dimension_numbers = #tpu.dot_dimension_numbers<[1], [0], [0], [1], [0, 0, 1, 1], [], []>} : vector<8x32xf32>, vector<32x128xf32>, vector<8x128xf32> -> vector<8x128xf32>
    %577 = arith.addf %575, %576 : vector<8x128xf32>
    %578 = arith.negf %577 : vector<8x128xf32>
    %579 = math.exp %578 : vector<8x128xf32>
    %cst_156 = arith.constant 1.000000e+00 : f32
    %580 = vector.broadcast %cst_156 : f32 to vector<8x128xf32>
    %581 = arith.addf %580, %579 : vector<8x128xf32>
    %582 = arith.divf %580, %581 : vector<8x128xf32>
    %583 = math.tanh %577 : vector<8x128xf32>
    %584 = vector.extract_strided_slice %582 {offsets = [0, 0], sizes = [8, 32], strides = [1, 1]} : vector<8x128xf32> to vector<8x32xf32>
    %585 = vector.extract_strided_slice %582 {offsets = [0, 32], sizes = [8, 32], strides = [1, 1]} : vector<8x128xf32> to vector<8x32xf32>
    %586 = vector.extract_strided_slice %583 {offsets = [0, 64], sizes = [8, 32], strides = [1, 1]} : vector<8x128xf32> to vector<8x32xf32>
    %587 = vector.extract_strided_slice %582 {offsets = [0, 96], sizes = [8, 32], strides = [1, 1]} : vector<8x128xf32> to vector<8x32xf32>
    %588 = arith.mulf %585, %567 : vector<8x32xf32>
    %589 = arith.mulf %584, %586 : vector<8x32xf32>
    %590 = arith.addf %588, %589 : vector<8x32xf32>
    %591 = math.tanh %590 : vector<8x32xf32>
    %592 = arith.mulf %587, %591 : vector<8x32xf32>
    %593 = arith.index_cast %573 : i32 to index
    %c0_157 = arith.constant 0 : index
    %594 = vector.load %arg14[%593, %c0_157] : memref<128x32xf32, #tpu.memory_space<vmem>>, vector<8x32xf32>
    tpu.vector_store %arg14[%593, %c0_157], %592 {strides = array<i32>} : memref<128x32xf32, #tpu.memory_space<vmem>>, vector<8x32xf32>,
    %c9_i32_158 = arith.constant 9 : i32
    %c8_i32_159 = arith.constant 8 : i32
    %595 = arith.muli %c9_i32_158, %c8_i32_159 : i32
    %596 = tpu.assume_multiple %595, 8 : i32
    %597 = arith.index_cast %596 : i32 to index
    %c0_160 = arith.constant 0 : index
    %598 = vector.load %arg13[%597, %c0_160] : memref<128x128xf32, #tpu.memory_space<vmem>>, vector<8x128xf32>
    %cst_161 = arith.constant dense<0.000000e+00> : vector<8x128xf32>
    %599 = tpu.matmul %592, %379, %cst_161 {dimension_numbers = #tpu.dot_dimension_numbers<[1], [0], [0], [1], [0, 0, 1, 1], [], []>} : vector<8x32xf32>, vector<32x128xf32>, vector<8x128xf32> -> vector<8x128xf32>
    %600 = arith.addf %598, %599 : vector<8x128xf32>
    %601 = arith.negf %600 : vector<8x128xf32>
    %602 = math.exp %601 : vector<8x128xf32>
    %cst_162 = arith.constant 1.000000e+00 : f32
    %603 = vector.broadcast %cst_162 : f32 to vector<8x128xf32>
    %604 = arith.addf %603, %602 : vector<8x128xf32>
    %605 = arith.divf %603, %604 : vector<8x128xf32>
    %606 = math.tanh %600 : vector<8x128xf32>
    %607 = vector.extract_strided_slice %605 {offsets = [0, 0], sizes = [8, 32], strides = [1, 1]} : vector<8x128xf32> to vector<8x32xf32>
    %608 = vector.extract_strided_slice %605 {offsets = [0, 32], sizes = [8, 32], strides = [1, 1]} : vector<8x128xf32> to vector<8x32xf32>
    %609 = vector.extract_strided_slice %606 {offsets = [0, 64], sizes = [8, 32], strides = [1, 1]} : vector<8x128xf32> to vector<8x32xf32>
    %610 = vector.extract_strided_slice %605 {offsets = [0, 96], sizes = [8, 32], strides = [1, 1]} : vector<8x128xf32> to vector<8x32xf32>
    %611 = arith.mulf %608, %590 : vector<8x32xf32>
    %612 = arith.mulf %607, %609 : vector<8x32xf32>
    %613 = arith.addf %611, %612 : vector<8x32xf32>
    %614 = math.tanh %613 : vector<8x32xf32>
    %615 = arith.mulf %610, %614 : vector<8x32xf32>
    %616 = arith.index_cast %596 : i32 to index
    %c0_163 = arith.constant 0 : index
    %617 = vector.load %arg14[%616, %c0_163] : memref<128x32xf32, #tpu.memory_space<vmem>>, vector<8x32xf32>
    tpu.vector_store %arg14[%616, %c0_163], %615 {strides = array<i32>} : memref<128x32xf32, #tpu.memory_space<vmem>>, vector<8x32xf32>,
    %c10_i32_164 = arith.constant 10 : i32
    %c8_i32_165 = arith.constant 8 : i32
    %618 = arith.muli %c10_i32_164, %c8_i32_165 : i32
    %619 = tpu.assume_multiple %618, 8 : i32
    %620 = arith.index_cast %619 : i32 to index
    %c0_166 = arith.constant 0 : index
    %621 = vector.load %arg13[%620, %c0_166] : memref<128x128xf32, #tpu.memory_space<vmem>>, vector<8x128xf32>
    %cst_167 = arith.constant dense<0.000000e+00> : vector<8x128xf32>
    %622 = tpu.matmul %615, %379, %cst_167 {dimension_numbers = #tpu.dot_dimension_numbers<[1], [0], [0], [1], [0, 0, 1, 1], [], []>} : vector<8x32xf32>, vector<32x128xf32>, vector<8x128xf32> -> vector<8x128xf32>
    %623 = arith.addf %621, %622 : vector<8x128xf32>
    %624 = arith.negf %623 : vector<8x128xf32>
    %625 = math.exp %624 : vector<8x128xf32>
    %cst_168 = arith.constant 1.000000e+00 : f32
    %626 = vector.broadcast %cst_168 : f32 to vector<8x128xf32>
    %627 = arith.addf %626, %625 : vector<8x128xf32>
    %628 = arith.divf %626, %627 : vector<8x128xf32>
    %629 = math.tanh %623 : vector<8x128xf32>
    %630 = vector.extract_strided_slice %628 {offsets = [0, 0], sizes = [8, 32], strides = [1, 1]} : vector<8x128xf32> to vector<8x32xf32>
    %631 = vector.extract_strided_slice %628 {offsets = [0, 32], sizes = [8, 32], strides = [1, 1]} : vector<8x128xf32> to vector<8x32xf32>
    %632 = vector.extract_strided_slice %629 {offsets = [0, 64], sizes = [8, 32], strides = [1, 1]} : vector<8x128xf32> to vector<8x32xf32>
    %633 = vector.extract_strided_slice %628 {offsets = [0, 96], sizes = [8, 32], strides = [1, 1]} : vector<8x128xf32> to vector<8x32xf32>
    %634 = arith.mulf %631, %613 : vector<8x32xf32>
    %635 = arith.mulf %630, %632 : vector<8x32xf32>
    %636 = arith.addf %634, %635 : vector<8x32xf32>
    %637 = math.tanh %636 : vector<8x32xf32>
    %638 = arith.mulf %633, %637 : vector<8x32xf32>
    %639 = arith.index_cast %619 : i32 to index
    %c0_169 = arith.constant 0 : index
    %640 = vector.load %arg14[%639, %c0_169] : memref<128x32xf32, #tpu.memory_space<vmem>>, vector<8x32xf32>
    tpu.vector_store %arg14[%639, %c0_169], %638 {strides = array<i32>} : memref<128x32xf32, #tpu.memory_space<vmem>>, vector<8x32xf32>,
    %c11_i32_170 = arith.constant 11 : i32
    %c8_i32_171 = arith.constant 8 : i32
    %641 = arith.muli %c11_i32_170, %c8_i32_171 : i32
    %642 = tpu.assume_multiple %641, 8 : i32
    %643 = arith.index_cast %642 : i32 to index
    %c0_172 = arith.constant 0 : index
    %644 = vector.load %arg13[%643, %c0_172] : memref<128x128xf32, #tpu.memory_space<vmem>>, vector<8x128xf32>
    %cst_173 = arith.constant dense<0.000000e+00> : vector<8x128xf32>
    %645 = tpu.matmul %638, %379, %cst_173 {dimension_numbers = #tpu.dot_dimension_numbers<[1], [0], [0], [1], [0, 0, 1, 1], [], []>} : vector<8x32xf32>, vector<32x128xf32>, vector<8x128xf32> -> vector<8x128xf32>
    %646 = arith.addf %644, %645 : vector<8x128xf32>
    %647 = arith.negf %646 : vector<8x128xf32>
    %648 = math.exp %647 : vector<8x128xf32>
    %cst_174 = arith.constant 1.000000e+00 : f32
    %649 = vector.broadcast %cst_174 : f32 to vector<8x128xf32>
    %650 = arith.addf %649, %648 : vector<8x128xf32>
    %651 = arith.divf %649, %650 : vector<8x128xf32>
    %652 = math.tanh %646 : vector<8x128xf32>
    %653 = vector.extract_strided_slice %651 {offsets = [0, 0], sizes = [8, 32], strides = [1, 1]} : vector<8x128xf32> to vector<8x32xf32>
    %654 = vector.extract_strided_slice %651 {offsets = [0, 32], sizes = [8, 32], strides = [1, 1]} : vector<8x128xf32> to vector<8x32xf32>
    %655 = vector.extract_strided_slice %652 {offsets = [0, 64], sizes = [8, 32], strides = [1, 1]} : vector<8x128xf32> to vector<8x32xf32>
    %656 = vector.extract_strided_slice %651 {offsets = [0, 96], sizes = [8, 32], strides = [1, 1]} : vector<8x128xf32> to vector<8x32xf32>
    %657 = arith.mulf %654, %636 : vector<8x32xf32>
    %658 = arith.mulf %653, %655 : vector<8x32xf32>
    %659 = arith.addf %657, %658 : vector<8x32xf32>
    %660 = math.tanh %659 : vector<8x32xf32>
    %661 = arith.mulf %656, %660 : vector<8x32xf32>
    %662 = arith.index_cast %642 : i32 to index
    %c0_175 = arith.constant 0 : index
    %663 = vector.load %arg14[%662, %c0_175] : memref<128x32xf32, #tpu.memory_space<vmem>>, vector<8x32xf32>
    tpu.vector_store %arg14[%662, %c0_175], %661 {strides = array<i32>} : memref<128x32xf32, #tpu.memory_space<vmem>>, vector<8x32xf32>,
    %c12_i32_176 = arith.constant 12 : i32
    %c8_i32_177 = arith.constant 8 : i32
    %664 = arith.muli %c12_i32_176, %c8_i32_177 : i32
    %665 = tpu.assume_multiple %664, 8 : i32
    %666 = arith.index_cast %665 : i32 to index
    %c0_178 = arith.constant 0 : index
    %667 = vector.load %arg13[%666, %c0_178] : memref<128x128xf32, #tpu.memory_space<vmem>>, vector<8x128xf32>
    %cst_179 = arith.constant dense<0.000000e+00> : vector<8x128xf32>
    %668 = tpu.matmul %661, %379, %cst_179 {dimension_numbers = #tpu.dot_dimension_numbers<[1], [0], [0], [1], [0, 0, 1, 1], [], []>} : vector<8x32xf32>, vector<32x128xf32>, vector<8x128xf32> -> vector<8x128xf32>
    %669 = arith.addf %667, %668 : vector<8x128xf32>
    %670 = arith.negf %669 : vector<8x128xf32>
    %671 = math.exp %670 : vector<8x128xf32>
    %cst_180 = arith.constant 1.000000e+00 : f32
    %672 = vector.broadcast %cst_180 : f32 to vector<8x128xf32>
    %673 = arith.addf %672, %671 : vector<8x128xf32>
    %674 = arith.divf %672, %673 : vector<8x128xf32>
    %675 = math.tanh %669 : vector<8x128xf32>
    %676 = vector.extract_strided_slice %674 {offsets = [0, 0], sizes = [8, 32], strides = [1, 1]} : vector<8x128xf32> to vector<8x32xf32>
    %677 = vector.extract_strided_slice %674 {offsets = [0, 32], sizes = [8, 32], strides = [1, 1]} : vector<8x128xf32> to vector<8x32xf32>
    %678 = vector.extract_strided_slice %675 {offsets = [0, 64], sizes = [8, 32], strides = [1, 1]} : vector<8x128xf32> to vector<8x32xf32>
    %679 = vector.extract_strided_slice %674 {offsets = [0, 96], sizes = [8, 32], strides = [1, 1]} : vector<8x128xf32> to vector<8x32xf32>
    %680 = arith.mulf %677, %659 : vector<8x32xf32>
    %681 = arith.mulf %676, %678 : vector<8x32xf32>
    %682 = arith.addf %680, %681 : vector<8x32xf32>
    %683 = math.tanh %682 : vector<8x32xf32>
    %684 = arith.mulf %679, %683 : vector<8x32xf32>
    %685 = arith.index_cast %665 : i32 to index
    %c0_181 = arith.constant 0 : index
    %686 = vector.load %arg14[%685, %c0_181] : memref<128x32xf32, #tpu.memory_space<vmem>>, vector<8x32xf32>
    tpu.vector_store %arg14[%685, %c0_181], %684 {strides = array<i32>} : memref<128x32xf32, #tpu.memory_space<vmem>>, vector<8x32xf32>,
    %c13_i32_182 = arith.constant 13 : i32
    %c8_i32_183 = arith.constant 8 : i32
    %687 = arith.muli %c13_i32_182, %c8_i32_183 : i32
    %688 = tpu.assume_multiple %687, 8 : i32
    %689 = arith.index_cast %688 : i32 to index
    %c0_184 = arith.constant 0 : index
    %690 = vector.load %arg13[%689, %c0_184] : memref<128x128xf32, #tpu.memory_space<vmem>>, vector<8x128xf32>
    %cst_185 = arith.constant dense<0.000000e+00> : vector<8x128xf32>
    %691 = tpu.matmul %684, %379, %cst_185 {dimension_numbers = #tpu.dot_dimension_numbers<[1], [0], [0], [1], [0, 0, 1, 1], [], []>} : vector<8x32xf32>, vector<32x128xf32>, vector<8x128xf32> -> vector<8x128xf32>
    %692 = arith.addf %690, %691 : vector<8x128xf32>
    %693 = arith.negf %692 : vector<8x128xf32>
    %694 = math.exp %693 : vector<8x128xf32>
    %cst_186 = arith.constant 1.000000e+00 : f32
    %695 = vector.broadcast %cst_186 : f32 to vector<8x128xf32>
    %696 = arith.addf %695, %694 : vector<8x128xf32>
    %697 = arith.divf %695, %696 : vector<8x128xf32>
    %698 = math.tanh %692 : vector<8x128xf32>
    %699 = vector.extract_strided_slice %697 {offsets = [0, 0], sizes = [8, 32], strides = [1, 1]} : vector<8x128xf32> to vector<8x32xf32>
    %700 = vector.extract_strided_slice %697 {offsets = [0, 32], sizes = [8, 32], strides = [1, 1]} : vector<8x128xf32> to vector<8x32xf32>
    %701 = vector.extract_strided_slice %698 {offsets = [0, 64], sizes = [8, 32], strides = [1, 1]} : vector<8x128xf32> to vector<8x32xf32>
    %702 = vector.extract_strided_slice %697 {offsets = [0, 96], sizes = [8, 32], strides = [1, 1]} : vector<8x128xf32> to vector<8x32xf32>
    %703 = arith.mulf %700, %682 : vector<8x32xf32>
    %704 = arith.mulf %699, %701 : vector<8x32xf32>
    %705 = arith.addf %703, %704 : vector<8x32xf32>
    %706 = math.tanh %705 : vector<8x32xf32>
    %707 = arith.mulf %702, %706 : vector<8x32xf32>
    %708 = arith.index_cast %688 : i32 to index
    %c0_187 = arith.constant 0 : index
    %709 = vector.load %arg14[%708, %c0_187] : memref<128x32xf32, #tpu.memory_space<vmem>>, vector<8x32xf32>
    tpu.vector_store %arg14[%708, %c0_187], %707 {strides = array<i32>} : memref<128x32xf32, #tpu.memory_space<vmem>>, vector<8x32xf32>,
    %c14_i32_188 = arith.constant 14 : i32
    %c8_i32_189 = arith.constant 8 : i32
    %710 = arith.muli %c14_i32_188, %c8_i32_189 : i32
    %711 = tpu.assume_multiple %710, 8 : i32
    %712 = arith.index_cast %711 : i32 to index
    %c0_190 = arith.constant 0 : index
    %713 = vector.load %arg13[%712, %c0_190] : memref<128x128xf32, #tpu.memory_space<vmem>>, vector<8x128xf32>
    %cst_191 = arith.constant dense<0.000000e+00> : vector<8x128xf32>
    %714 = tpu.matmul %707, %379, %cst_191 {dimension_numbers = #tpu.dot_dimension_numbers<[1], [0], [0], [1], [0, 0, 1, 1], [], []>} : vector<8x32xf32>, vector<32x128xf32>, vector<8x128xf32> -> vector<8x128xf32>
    %715 = arith.addf %713, %714 : vector<8x128xf32>
    %716 = arith.negf %715 : vector<8x128xf32>
    %717 = math.exp %716 : vector<8x128xf32>
    %cst_192 = arith.constant 1.000000e+00 : f32
    %718 = vector.broadcast %cst_192 : f32 to vector<8x128xf32>
    %719 = arith.addf %718, %717 : vector<8x128xf32>
    %720 = arith.divf %718, %719 : vector<8x128xf32>
    %721 = math.tanh %715 : vector<8x128xf32>
    %722 = vector.extract_strided_slice %720 {offsets = [0, 0], sizes = [8, 32], strides = [1, 1]} : vector<8x128xf32> to vector<8x32xf32>
    %723 = vector.extract_strided_slice %720 {offsets = [0, 32], sizes = [8, 32], strides = [1, 1]} : vector<8x128xf32> to vector<8x32xf32>
    %724 = vector.extract_strided_slice %721 {offsets = [0, 64], sizes = [8, 32], strides = [1, 1]} : vector<8x128xf32> to vector<8x32xf32>
    %725 = vector.extract_strided_slice %720 {offsets = [0, 96], sizes = [8, 32], strides = [1, 1]} : vector<8x128xf32> to vector<8x32xf32>
    %726 = arith.mulf %723, %705 : vector<8x32xf32>
    %727 = arith.mulf %722, %724 : vector<8x32xf32>
    %728 = arith.addf %726, %727 : vector<8x32xf32>
    %729 = math.tanh %728 : vector<8x32xf32>
    %730 = arith.mulf %725, %729 : vector<8x32xf32>
    %731 = arith.index_cast %711 : i32 to index
    %c0_193 = arith.constant 0 : index
    %732 = vector.load %arg14[%731, %c0_193] : memref<128x32xf32, #tpu.memory_space<vmem>>, vector<8x32xf32>
    tpu.vector_store %arg14[%731, %c0_193], %730 {strides = array<i32>} : memref<128x32xf32, #tpu.memory_space<vmem>>, vector<8x32xf32>,
    %c15_i32_194 = arith.constant 15 : i32
    %c8_i32_195 = arith.constant 8 : i32
    %733 = arith.muli %c15_i32_194, %c8_i32_195 : i32
    %734 = tpu.assume_multiple %733, 8 : i32
    %735 = arith.index_cast %734 : i32 to index
    %c0_196 = arith.constant 0 : index
    %736 = vector.load %arg13[%735, %c0_196] : memref<128x128xf32, #tpu.memory_space<vmem>>, vector<8x128xf32>
    %cst_197 = arith.constant dense<0.000000e+00> : vector<8x128xf32>
    %737 = tpu.matmul %730, %379, %cst_197 {dimension_numbers = #tpu.dot_dimension_numbers<[1], [0], [0], [1], [0, 0, 1, 1], [], []>} : vector<8x32xf32>, vector<32x128xf32>, vector<8x128xf32> -> vector<8x128xf32>
    %738 = arith.addf %736, %737 : vector<8x128xf32>
    %739 = arith.negf %738 : vector<8x128xf32>
    %740 = math.exp %739 : vector<8x128xf32>
    %cst_198 = arith.constant 1.000000e+00 : f32
    %741 = vector.broadcast %cst_198 : f32 to vector<8x128xf32>
    %742 = arith.addf %741, %740 : vector<8x128xf32>
    %743 = arith.divf %741, %742 : vector<8x128xf32>
    %744 = math.tanh %738 : vector<8x128xf32>
    %745 = vector.extract_strided_slice %743 {offsets = [0, 0], sizes = [8, 32], strides = [1, 1]} : vector<8x128xf32> to vector<8x32xf32>
    %746 = vector.extract_strided_slice %743 {offsets = [0, 32], sizes = [8, 32], strides = [1, 1]} : vector<8x128xf32> to vector<8x32xf32>
    %747 = vector.extract_strided_slice %744 {offsets = [0, 64], sizes = [8, 32], strides = [1, 1]} : vector<8x128xf32> to vector<8x32xf32>
    %748 = vector.extract_strided_slice %743 {offsets = [0, 96], sizes = [8, 32], strides = [1, 1]} : vector<8x128xf32> to vector<8x32xf32>
    %749 = arith.mulf %746, %728 : vector<8x32xf32>
    %750 = arith.mulf %745, %747 : vector<8x32xf32>
    %751 = arith.addf %749, %750 : vector<8x32xf32>
    %752 = math.tanh %751 : vector<8x32xf32>
    %753 = arith.mulf %748, %752 : vector<8x32xf32>
    %754 = arith.index_cast %734 : i32 to index
    %c0_199 = arith.constant 0 : index
    %755 = vector.load %arg14[%754, %c0_199] : memref<128x32xf32, #tpu.memory_space<vmem>>, vector<8x32xf32>
    tpu.vector_store %arg14[%754, %c0_199], %753 {strides = array<i32>} : memref<128x32xf32, #tpu.memory_space<vmem>>, vector<8x32xf32>,
    %c16_i32_200 = arith.constant 16 : i32
    %c0_201 = arith.constant 0 : index
    %c0_202 = arith.constant 0 : index
    %756 = vector.load %arg7[%c0_201, %c0_202] : memref<32x128xf32, #tpu.memory_space<vmem>>, vector<32x128xf32>
    %c0_203 = arith.constant 0 : index
    %c0_204 = arith.constant 0 : index
    %757 = vector.load %arg8[%c0_203, %c0_204] : memref<32x128xf32, #tpu.memory_space<vmem>>, vector<32x128xf32>
    %c0_205 = arith.constant 0 : index
    %c0_206 = arith.constant 0 : index
    %758 = vector.load %arg9[%c0_205, %c0_206] : memref<1x128xf32, #tpu.memory_space<vmem>>, vector<1x128xf32>
    %c0_207 = arith.constant 0 : index
    %c0_208 = arith.constant 0 : index
    %759 = vector.load %arg14[%c0_207, %c0_208] : memref<128x32xf32, #tpu.memory_space<vmem>>, vector<128x32xf32>
    %cst_209 = arith.constant dense<0.000000e+00> : vector<128x128xf32>
    %760 = tpu.matmul %759, %756, %cst_209 {dimension_numbers = #tpu.dot_dimension_numbers<[1], [0], [0], [1], [0, 0, 1, 1], [], []>} : vector<128x32xf32>, vector<32x128xf32>, vector<128x128xf32> -> vector<128x128xf32>
    %761 = vector.broadcast %758 : vector<1x128xf32> to vector<128x128xf32>
    %762 = arith.addf %760, %761 : vector<128x128xf32>
    %c0_210 = arith.constant 0 : index
    %c0_211 = arith.constant 0 : index
    %763 = vector.load %arg13[%c0_210, %c0_211] : memref<128x128xf32, #tpu.memory_space<vmem>>, vector<128x128xf32>
    tpu.vector_store %arg13[%c0_210, %c0_211], %762 {strides = array<i32>} : memref<128x128xf32, #tpu.memory_space<vmem>>, vector<128x128xf32>,
    %cst_212 = arith.constant 0.000000e+00 : f32
    %764 = vector.broadcast %cst_212 : f32 to vector<8x32xf32>
    %cst_213 = arith.constant 0.000000e+00 : f32
    %765 = vector.broadcast %cst_213 : f32 to vector<8x32xf32>
    %c0_i32_214 = arith.constant 0 : i32
    %c8_i32_215 = arith.constant 8 : i32
    %766 = arith.muli %c0_i32_214, %c8_i32_215 : i32
    %767 = tpu.assume_multiple %766, 8 : i32
    %768 = arith.index_cast %767 : i32 to index
    %c0_216 = arith.constant 0 : index
    %769 = vector.load %arg13[%768, %c0_216] : memref<128x128xf32, #tpu.memory_space<vmem>>, vector<8x128xf32>
    %cst_217 = arith.constant dense<0.000000e+00> : vector<8x128xf32>
    %770 = tpu.matmul %764, %757, %cst_217 {dimension_numbers = #tpu.dot_dimension_numbers<[1], [0], [0], [1], [0, 0, 1, 1], [], []>} : vector<8x32xf32>, vector<32x128xf32>, vector<8x128xf32> -> vector<8x128xf32>
    %771 = arith.addf %769, %770 : vector<8x128xf32>
    %772 = arith.negf %771 : vector<8x128xf32>
    %773 = math.exp %772 : vector<8x128xf32>
    %cst_218 = arith.constant 1.000000e+00 : f32
    %774 = vector.broadcast %cst_218 : f32 to vector<8x128xf32>
    %775 = arith.addf %774, %773 : vector<8x128xf32>
    %776 = arith.divf %774, %775 : vector<8x128xf32>
    %777 = math.tanh %771 : vector<8x128xf32>
    %778 = vector.extract_strided_slice %776 {offsets = [0, 0], sizes = [8, 32], strides = [1, 1]} : vector<8x128xf32> to vector<8x32xf32>
    %779 = vector.extract_strided_slice %776 {offsets = [0, 32], sizes = [8, 32], strides = [1, 1]} : vector<8x128xf32> to vector<8x32xf32>
    %780 = vector.extract_strided_slice %777 {offsets = [0, 64], sizes = [8, 32], strides = [1, 1]} : vector<8x128xf32> to vector<8x32xf32>
    %781 = vector.extract_strided_slice %776 {offsets = [0, 96], sizes = [8, 32], strides = [1, 1]} : vector<8x128xf32> to vector<8x32xf32>
    %782 = arith.mulf %779, %765 : vector<8x32xf32>
    %783 = arith.mulf %778, %780 : vector<8x32xf32>
    %784 = arith.addf %782, %783 : vector<8x32xf32>
    %785 = math.tanh %784 : vector<8x32xf32>
    %786 = arith.mulf %781, %785 : vector<8x32xf32>
    %c1_i32_219 = arith.constant 1 : i32
    %c8_i32_220 = arith.constant 8 : i32
    %787 = arith.muli %c1_i32_219, %c8_i32_220 : i32
    %788 = tpu.assume_multiple %787, 8 : i32
    %789 = arith.index_cast %788 : i32 to index
    %c0_221 = arith.constant 0 : index
    %790 = vector.load %arg13[%789, %c0_221] : memref<128x128xf32, #tpu.memory_space<vmem>>, vector<8x128xf32>
    %cst_222 = arith.constant dense<0.000000e+00> : vector<8x128xf32>
    %791 = tpu.matmul %786, %757, %cst_222 {dimension_numbers = #tpu.dot_dimension_numbers<[1], [0], [0], [1], [0, 0, 1, 1], [], []>} : vector<8x32xf32>, vector<32x128xf32>, vector<8x128xf32> -> vector<8x128xf32>
    %792 = arith.addf %790, %791 : vector<8x128xf32>
    %793 = arith.negf %792 : vector<8x128xf32>
    %794 = math.exp %793 : vector<8x128xf32>
    %cst_223 = arith.constant 1.000000e+00 : f32
    %795 = vector.broadcast %cst_223 : f32 to vector<8x128xf32>
    %796 = arith.addf %795, %794 : vector<8x128xf32>
    %797 = arith.divf %795, %796 : vector<8x128xf32>
    %798 = math.tanh %792 : vector<8x128xf32>
    %799 = vector.extract_strided_slice %797 {offsets = [0, 0], sizes = [8, 32], strides = [1, 1]} : vector<8x128xf32> to vector<8x32xf32>
    %800 = vector.extract_strided_slice %797 {offsets = [0, 32], sizes = [8, 32], strides = [1, 1]} : vector<8x128xf32> to vector<8x32xf32>
    %801 = vector.extract_strided_slice %798 {offsets = [0, 64], sizes = [8, 32], strides = [1, 1]} : vector<8x128xf32> to vector<8x32xf32>
    %802 = vector.extract_strided_slice %797 {offsets = [0, 96], sizes = [8, 32], strides = [1, 1]} : vector<8x128xf32> to vector<8x32xf32>
    %803 = arith.mulf %800, %784 : vector<8x32xf32>
    %804 = arith.mulf %799, %801 : vector<8x32xf32>
    %805 = arith.addf %803, %804 : vector<8x32xf32>
    %806 = math.tanh %805 : vector<8x32xf32>
    %807 = arith.mulf %802, %806 : vector<8x32xf32>
    %c2_i32_224 = arith.constant 2 : i32
    %c8_i32_225 = arith.constant 8 : i32
    %808 = arith.muli %c2_i32_224, %c8_i32_225 : i32
    %809 = tpu.assume_multiple %808, 8 : i32
    %810 = arith.index_cast %809 : i32 to index
    %c0_226 = arith.constant 0 : index
    %811 = vector.load %arg13[%810, %c0_226] : memref<128x128xf32, #tpu.memory_space<vmem>>, vector<8x128xf32>
    %cst_227 = arith.constant dense<0.000000e+00> : vector<8x128xf32>
    %812 = tpu.matmul %807, %757, %cst_227 {dimension_numbers = #tpu.dot_dimension_numbers<[1], [0], [0], [1], [0, 0, 1, 1], [], []>} : vector<8x32xf32>, vector<32x128xf32>, vector<8x128xf32> -> vector<8x128xf32>
    %813 = arith.addf %811, %812 : vector<8x128xf32>
    %814 = arith.negf %813 : vector<8x128xf32>
    %815 = math.exp %814 : vector<8x128xf32>
    %cst_228 = arith.constant 1.000000e+00 : f32
    %816 = vector.broadcast %cst_228 : f32 to vector<8x128xf32>
    %817 = arith.addf %816, %815 : vector<8x128xf32>
    %818 = arith.divf %816, %817 : vector<8x128xf32>
    %819 = math.tanh %813 : vector<8x128xf32>
    %820 = vector.extract_strided_slice %818 {offsets = [0, 0], sizes = [8, 32], strides = [1, 1]} : vector<8x128xf32> to vector<8x32xf32>
    %821 = vector.extract_strided_slice %818 {offsets = [0, 32], sizes = [8, 32], strides = [1, 1]} : vector<8x128xf32> to vector<8x32xf32>
    %822 = vector.extract_strided_slice %819 {offsets = [0, 64], sizes = [8, 32], strides = [1, 1]} : vector<8x128xf32> to vector<8x32xf32>
    %823 = vector.extract_strided_slice %818 {offsets = [0, 96], sizes = [8, 32], strides = [1, 1]} : vector<8x128xf32> to vector<8x32xf32>
    %824 = arith.mulf %821, %805 : vector<8x32xf32>
    %825 = arith.mulf %820, %822 : vector<8x32xf32>
    %826 = arith.addf %824, %825 : vector<8x32xf32>
    %827 = math.tanh %826 : vector<8x32xf32>
    %828 = arith.mulf %823, %827 : vector<8x32xf32>
    %c3_i32_229 = arith.constant 3 : i32
    %c8_i32_230 = arith.constant 8 : i32
    %829 = arith.muli %c3_i32_229, %c8_i32_230 : i32
    %830 = tpu.assume_multiple %829, 8 : i32
    %831 = arith.index_cast %830 : i32 to index
    %c0_231 = arith.constant 0 : index
    %832 = vector.load %arg13[%831, %c0_231] : memref<128x128xf32, #tpu.memory_space<vmem>>, vector<8x128xf32>
    %cst_232 = arith.constant dense<0.000000e+00> : vector<8x128xf32>
    %833 = tpu.matmul %828, %757, %cst_232 {dimension_numbers = #tpu.dot_dimension_numbers<[1], [0], [0], [1], [0, 0, 1, 1], [], []>} : vector<8x32xf32>, vector<32x128xf32>, vector<8x128xf32> -> vector<8x128xf32>
    %834 = arith.addf %832, %833 : vector<8x128xf32>
    %835 = arith.negf %834 : vector<8x128xf32>
    %836 = math.exp %835 : vector<8x128xf32>
    %cst_233 = arith.constant 1.000000e+00 : f32
    %837 = vector.broadcast %cst_233 : f32 to vector<8x128xf32>
    %838 = arith.addf %837, %836 : vector<8x128xf32>
    %839 = arith.divf %837, %838 : vector<8x128xf32>
    %840 = math.tanh %834 : vector<8x128xf32>
    %841 = vector.extract_strided_slice %839 {offsets = [0, 0], sizes = [8, 32], strides = [1, 1]} : vector<8x128xf32> to vector<8x32xf32>
    %842 = vector.extract_strided_slice %839 {offsets = [0, 32], sizes = [8, 32], strides = [1, 1]} : vector<8x128xf32> to vector<8x32xf32>
    %843 = vector.extract_strided_slice %840 {offsets = [0, 64], sizes = [8, 32], strides = [1, 1]} : vector<8x128xf32> to vector<8x32xf32>
    %844 = vector.extract_strided_slice %839 {offsets = [0, 96], sizes = [8, 32], strides = [1, 1]} : vector<8x128xf32> to vector<8x32xf32>
    %845 = arith.mulf %842, %826 : vector<8x32xf32>
    %846 = arith.mulf %841, %843 : vector<8x32xf32>
    %847 = arith.addf %845, %846 : vector<8x32xf32>
    %848 = math.tanh %847 : vector<8x32xf32>
    %849 = arith.mulf %844, %848 : vector<8x32xf32>
    %c4_i32_234 = arith.constant 4 : i32
    %c8_i32_235 = arith.constant 8 : i32
    %850 = arith.muli %c4_i32_234, %c8_i32_235 : i32
    %851 = tpu.assume_multiple %850, 8 : i32
    %852 = arith.index_cast %851 : i32 to index
    %c0_236 = arith.constant 0 : index
    %853 = vector.load %arg13[%852, %c0_236] : memref<128x128xf32, #tpu.memory_space<vmem>>, vector<8x128xf32>
    %cst_237 = arith.constant dense<0.000000e+00> : vector<8x128xf32>
    %854 = tpu.matmul %849, %757, %cst_237 {dimension_numbers = #tpu.dot_dimension_numbers<[1], [0], [0], [1], [0, 0, 1, 1], [], []>} : vector<8x32xf32>, vector<32x128xf32>, vector<8x128xf32> -> vector<8x128xf32>
    %855 = arith.addf %853, %854 : vector<8x128xf32>
    %856 = arith.negf %855 : vector<8x128xf32>
    %857 = math.exp %856 : vector<8x128xf32>
    %cst_238 = arith.constant 1.000000e+00 : f32
    %858 = vector.broadcast %cst_238 : f32 to vector<8x128xf32>
    %859 = arith.addf %858, %857 : vector<8x128xf32>
    %860 = arith.divf %858, %859 : vector<8x128xf32>
    %861 = math.tanh %855 : vector<8x128xf32>
    %862 = vector.extract_strided_slice %860 {offsets = [0, 0], sizes = [8, 32], strides = [1, 1]} : vector<8x128xf32> to vector<8x32xf32>
    %863 = vector.extract_strided_slice %860 {offsets = [0, 32], sizes = [8, 32], strides = [1, 1]} : vector<8x128xf32> to vector<8x32xf32>
    %864 = vector.extract_strided_slice %861 {offsets = [0, 64], sizes = [8, 32], strides = [1, 1]} : vector<8x128xf32> to vector<8x32xf32>
    %865 = vector.extract_strided_slice %860 {offsets = [0, 96], sizes = [8, 32], strides = [1, 1]} : vector<8x128xf32> to vector<8x32xf32>
    %866 = arith.mulf %863, %847 : vector<8x32xf32>
    %867 = arith.mulf %862, %864 : vector<8x32xf32>
    %868 = arith.addf %866, %867 : vector<8x32xf32>
    %869 = math.tanh %868 : vector<8x32xf32>
    %870 = arith.mulf %865, %869 : vector<8x32xf32>
    %c5_i32_239 = arith.constant 5 : i32
    %c8_i32_240 = arith.constant 8 : i32
    %871 = arith.muli %c5_i32_239, %c8_i32_240 : i32
    %872 = tpu.assume_multiple %871, 8 : i32
    %873 = arith.index_cast %872 : i32 to index
    %c0_241 = arith.constant 0 : index
    %874 = vector.load %arg13[%873, %c0_241] : memref<128x128xf32, #tpu.memory_space<vmem>>, vector<8x128xf32>
    %cst_242 = arith.constant dense<0.000000e+00> : vector<8x128xf32>
    %875 = tpu.matmul %870, %757, %cst_242 {dimension_numbers = #tpu.dot_dimension_numbers<[1], [0], [0], [1], [0, 0, 1, 1], [], []>} : vector<8x32xf32>, vector<32x128xf32>, vector<8x128xf32> -> vector<8x128xf32>
    %876 = arith.addf %874, %875 : vector<8x128xf32>
    %877 = arith.negf %876 : vector<8x128xf32>
    %878 = math.exp %877 : vector<8x128xf32>
    %cst_243 = arith.constant 1.000000e+00 : f32
    %879 = vector.broadcast %cst_243 : f32 to vector<8x128xf32>
    %880 = arith.addf %879, %878 : vector<8x128xf32>
    %881 = arith.divf %879, %880 : vector<8x128xf32>
    %882 = math.tanh %876 : vector<8x128xf32>
    %883 = vector.extract_strided_slice %881 {offsets = [0, 0], sizes = [8, 32], strides = [1, 1]} : vector<8x128xf32> to vector<8x32xf32>
    %884 = vector.extract_strided_slice %881 {offsets = [0, 32], sizes = [8, 32], strides = [1, 1]} : vector<8x128xf32> to vector<8x32xf32>
    %885 = vector.extract_strided_slice %882 {offsets = [0, 64], sizes = [8, 32], strides = [1, 1]} : vector<8x128xf32> to vector<8x32xf32>
    %886 = vector.extract_strided_slice %881 {offsets = [0, 96], sizes = [8, 32], strides = [1, 1]} : vector<8x128xf32> to vector<8x32xf32>
    %887 = arith.mulf %884, %868 : vector<8x32xf32>
    %888 = arith.mulf %883, %885 : vector<8x32xf32>
    %889 = arith.addf %887, %888 : vector<8x32xf32>
    %890 = math.tanh %889 : vector<8x32xf32>
    %891 = arith.mulf %886, %890 : vector<8x32xf32>
    %c6_i32_244 = arith.constant 6 : i32
    %c8_i32_245 = arith.constant 8 : i32
    %892 = arith.muli %c6_i32_244, %c8_i32_245 : i32
    %893 = tpu.assume_multiple %892, 8 : i32
    %894 = arith.index_cast %893 : i32 to index
    %c0_246 = arith.constant 0 : index
    %895 = vector.load %arg13[%894, %c0_246] : memref<128x128xf32, #tpu.memory_space<vmem>>, vector<8x128xf32>
    %cst_247 = arith.constant dense<0.000000e+00> : vector<8x128xf32>
    %896 = tpu.matmul %891, %757, %cst_247 {dimension_numbers = #tpu.dot_dimension_numbers<[1], [0], [0], [1], [0, 0, 1, 1], [], []>} : vector<8x32xf32>, vector<32x128xf32>, vector<8x128xf32> -> vector<8x128xf32>
    %897 = arith.addf %895, %896 : vector<8x128xf32>
    %898 = arith.negf %897 : vector<8x128xf32>
    %899 = math.exp %898 : vector<8x128xf32>
    %cst_248 = arith.constant 1.000000e+00 : f32
    %900 = vector.broadcast %cst_248 : f32 to vector<8x128xf32>
    %901 = arith.addf %900, %899 : vector<8x128xf32>
    %902 = arith.divf %900, %901 : vector<8x128xf32>
    %903 = math.tanh %897 : vector<8x128xf32>
    %904 = vector.extract_strided_slice %902 {offsets = [0, 0], sizes = [8, 32], strides = [1, 1]} : vector<8x128xf32> to vector<8x32xf32>
    %905 = vector.extract_strided_slice %902 {offsets = [0, 32], sizes = [8, 32], strides = [1, 1]} : vector<8x128xf32> to vector<8x32xf32>
    %906 = vector.extract_strided_slice %903 {offsets = [0, 64], sizes = [8, 32], strides = [1, 1]} : vector<8x128xf32> to vector<8x32xf32>
    %907 = vector.extract_strided_slice %902 {offsets = [0, 96], sizes = [8, 32], strides = [1, 1]} : vector<8x128xf32> to vector<8x32xf32>
    %908 = arith.mulf %905, %889 : vector<8x32xf32>
    %909 = arith.mulf %904, %906 : vector<8x32xf32>
    %910 = arith.addf %908, %909 : vector<8x32xf32>
    %911 = math.tanh %910 : vector<8x32xf32>
    %912 = arith.mulf %907, %911 : vector<8x32xf32>
    %c7_i32_249 = arith.constant 7 : i32
    %c8_i32_250 = arith.constant 8 : i32
    %913 = arith.muli %c7_i32_249, %c8_i32_250 : i32
    %914 = tpu.assume_multiple %913, 8 : i32
    %915 = arith.index_cast %914 : i32 to index
    %c0_251 = arith.constant 0 : index
    %916 = vector.load %arg13[%915, %c0_251] : memref<128x128xf32, #tpu.memory_space<vmem>>, vector<8x128xf32>
    %cst_252 = arith.constant dense<0.000000e+00> : vector<8x128xf32>
    %917 = tpu.matmul %912, %757, %cst_252 {dimension_numbers = #tpu.dot_dimension_numbers<[1], [0], [0], [1], [0, 0, 1, 1], [], []>} : vector<8x32xf32>, vector<32x128xf32>, vector<8x128xf32> -> vector<8x128xf32>
    %918 = arith.addf %916, %917 : vector<8x128xf32>
    %919 = arith.negf %918 : vector<8x128xf32>
    %920 = math.exp %919 : vector<8x128xf32>
    %cst_253 = arith.constant 1.000000e+00 : f32
    %921 = vector.broadcast %cst_253 : f32 to vector<8x128xf32>
    %922 = arith.addf %921, %920 : vector<8x128xf32>
    %923 = arith.divf %921, %922 : vector<8x128xf32>
    %924 = math.tanh %918 : vector<8x128xf32>
    %925 = vector.extract_strided_slice %923 {offsets = [0, 0], sizes = [8, 32], strides = [1, 1]} : vector<8x128xf32> to vector<8x32xf32>
    %926 = vector.extract_strided_slice %923 {offsets = [0, 32], sizes = [8, 32], strides = [1, 1]} : vector<8x128xf32> to vector<8x32xf32>
    %927 = vector.extract_strided_slice %924 {offsets = [0, 64], sizes = [8, 32], strides = [1, 1]} : vector<8x128xf32> to vector<8x32xf32>
    %928 = vector.extract_strided_slice %923 {offsets = [0, 96], sizes = [8, 32], strides = [1, 1]} : vector<8x128xf32> to vector<8x32xf32>
    %929 = arith.mulf %926, %910 : vector<8x32xf32>
    %930 = arith.mulf %925, %927 : vector<8x32xf32>
    %931 = arith.addf %929, %930 : vector<8x32xf32>
    %932 = math.tanh %931 : vector<8x32xf32>
    %933 = arith.mulf %928, %932 : vector<8x32xf32>
    %c8_i32_254 = arith.constant 8 : i32
    %c8_i32_255 = arith.constant 8 : i32
    %934 = arith.muli %c8_i32_254, %c8_i32_255 : i32
    %935 = tpu.assume_multiple %934, 8 : i32
    %936 = arith.index_cast %935 : i32 to index
    %c0_256 = arith.constant 0 : index
    %937 = vector.load %arg13[%936, %c0_256] : memref<128x128xf32, #tpu.memory_space<vmem>>, vector<8x128xf32>
    %cst_257 = arith.constant dense<0.000000e+00> : vector<8x128xf32>
    %938 = tpu.matmul %933, %757, %cst_257 {dimension_numbers = #tpu.dot_dimension_numbers<[1], [0], [0], [1], [0, 0, 1, 1], [], []>} : vector<8x32xf32>, vector<32x128xf32>, vector<8x128xf32> -> vector<8x128xf32>
    %939 = arith.addf %937, %938 : vector<8x128xf32>
    %940 = arith.negf %939 : vector<8x128xf32>
    %941 = math.exp %940 : vector<8x128xf32>
    %cst_258 = arith.constant 1.000000e+00 : f32
    %942 = vector.broadcast %cst_258 : f32 to vector<8x128xf32>
    %943 = arith.addf %942, %941 : vector<8x128xf32>
    %944 = arith.divf %942, %943 : vector<8x128xf32>
    %945 = math.tanh %939 : vector<8x128xf32>
    %946 = vector.extract_strided_slice %944 {offsets = [0, 0], sizes = [8, 32], strides = [1, 1]} : vector<8x128xf32> to vector<8x32xf32>
    %947 = vector.extract_strided_slice %944 {offsets = [0, 32], sizes = [8, 32], strides = [1, 1]} : vector<8x128xf32> to vector<8x32xf32>
    %948 = vector.extract_strided_slice %945 {offsets = [0, 64], sizes = [8, 32], strides = [1, 1]} : vector<8x128xf32> to vector<8x32xf32>
    %949 = vector.extract_strided_slice %944 {offsets = [0, 96], sizes = [8, 32], strides = [1, 1]} : vector<8x128xf32> to vector<8x32xf32>
    %950 = arith.mulf %947, %931 : vector<8x32xf32>
    %951 = arith.mulf %946, %948 : vector<8x32xf32>
    %952 = arith.addf %950, %951 : vector<8x32xf32>
    %953 = math.tanh %952 : vector<8x32xf32>
    %954 = arith.mulf %949, %953 : vector<8x32xf32>
    %c9_i32_259 = arith.constant 9 : i32
    %c8_i32_260 = arith.constant 8 : i32
    %955 = arith.muli %c9_i32_259, %c8_i32_260 : i32
    %956 = tpu.assume_multiple %955, 8 : i32
    %957 = arith.index_cast %956 : i32 to index
    %c0_261 = arith.constant 0 : index
    %958 = vector.load %arg13[%957, %c0_261] : memref<128x128xf32, #tpu.memory_space<vmem>>, vector<8x128xf32>
    %cst_262 = arith.constant dense<0.000000e+00> : vector<8x128xf32>
    %959 = tpu.matmul %954, %757, %cst_262 {dimension_numbers = #tpu.dot_dimension_numbers<[1], [0], [0], [1], [0, 0, 1, 1], [], []>} : vector<8x32xf32>, vector<32x128xf32>, vector<8x128xf32> -> vector<8x128xf32>
    %960 = arith.addf %958, %959 : vector<8x128xf32>
    %961 = arith.negf %960 : vector<8x128xf32>
    %962 = math.exp %961 : vector<8x128xf32>
    %cst_263 = arith.constant 1.000000e+00 : f32
    %963 = vector.broadcast %cst_263 : f32 to vector<8x128xf32>
    %964 = arith.addf %963, %962 : vector<8x128xf32>
    %965 = arith.divf %963, %964 : vector<8x128xf32>
    %966 = math.tanh %960 : vector<8x128xf32>
    %967 = vector.extract_strided_slice %965 {offsets = [0, 0], sizes = [8, 32], strides = [1, 1]} : vector<8x128xf32> to vector<8x32xf32>
    %968 = vector.extract_strided_slice %965 {offsets = [0, 32], sizes = [8, 32], strides = [1, 1]} : vector<8x128xf32> to vector<8x32xf32>
    %969 = vector.extract_strided_slice %966 {offsets = [0, 64], sizes = [8, 32], strides = [1, 1]} : vector<8x128xf32> to vector<8x32xf32>
    %970 = vector.extract_strided_slice %965 {offsets = [0, 96], sizes = [8, 32], strides = [1, 1]} : vector<8x128xf32> to vector<8x32xf32>
    %971 = arith.mulf %968, %952 : vector<8x32xf32>
    %972 = arith.mulf %967, %969 : vector<8x32xf32>
    %973 = arith.addf %971, %972 : vector<8x32xf32>
    %974 = math.tanh %973 : vector<8x32xf32>
    %975 = arith.mulf %970, %974 : vector<8x32xf32>
    %c10_i32_264 = arith.constant 10 : i32
    %c8_i32_265 = arith.constant 8 : i32
    %976 = arith.muli %c10_i32_264, %c8_i32_265 : i32
    %977 = tpu.assume_multiple %976, 8 : i32
    %978 = arith.index_cast %977 : i32 to index
    %c0_266 = arith.constant 0 : index
    %979 = vector.load %arg13[%978, %c0_266] : memref<128x128xf32, #tpu.memory_space<vmem>>, vector<8x128xf32>
    %cst_267 = arith.constant dense<0.000000e+00> : vector<8x128xf32>
    %980 = tpu.matmul %975, %757, %cst_267 {dimension_numbers = #tpu.dot_dimension_numbers<[1], [0], [0], [1], [0, 0, 1, 1], [], []>} : vector<8x32xf32>, vector<32x128xf32>, vector<8x128xf32> -> vector<8x128xf32>
    %981 = arith.addf %979, %980 : vector<8x128xf32>
    %982 = arith.negf %981 : vector<8x128xf32>
    %983 = math.exp %982 : vector<8x128xf32>
    %cst_268 = arith.constant 1.000000e+00 : f32
    %984 = vector.broadcast %cst_268 : f32 to vector<8x128xf32>
    %985 = arith.addf %984, %983 : vector<8x128xf32>
    %986 = arith.divf %984, %985 : vector<8x128xf32>
    %987 = math.tanh %981 : vector<8x128xf32>
    %988 = vector.extract_strided_slice %986 {offsets = [0, 0], sizes = [8, 32], strides = [1, 1]} : vector<8x128xf32> to vector<8x32xf32>
    %989 = vector.extract_strided_slice %986 {offsets = [0, 32], sizes = [8, 32], strides = [1, 1]} : vector<8x128xf32> to vector<8x32xf32>
    %990 = vector.extract_strided_slice %987 {offsets = [0, 64], sizes = [8, 32], strides = [1, 1]} : vector<8x128xf32> to vector<8x32xf32>
    %991 = vector.extract_strided_slice %986 {offsets = [0, 96], sizes = [8, 32], strides = [1, 1]} : vector<8x128xf32> to vector<8x32xf32>
    %992 = arith.mulf %989, %973 : vector<8x32xf32>
    %993 = arith.mulf %988, %990 : vector<8x32xf32>
    %994 = arith.addf %992, %993 : vector<8x32xf32>
    %995 = math.tanh %994 : vector<8x32xf32>
    %996 = arith.mulf %991, %995 : vector<8x32xf32>
    %c11_i32_269 = arith.constant 11 : i32
    %c8_i32_270 = arith.constant 8 : i32
    %997 = arith.muli %c11_i32_269, %c8_i32_270 : i32
    %998 = tpu.assume_multiple %997, 8 : i32
    %999 = arith.index_cast %998 : i32 to index
    %c0_271 = arith.constant 0 : index
    %1000 = vector.load %arg13[%999, %c0_271] : memref<128x128xf32, #tpu.memory_space<vmem>>, vector<8x128xf32>
    %cst_272 = arith.constant dense<0.000000e+00> : vector<8x128xf32>
    %1001 = tpu.matmul %996, %757, %cst_272 {dimension_numbers = #tpu.dot_dimension_numbers<[1], [0], [0], [1], [0, 0, 1, 1], [], []>} : vector<8x32xf32>, vector<32x128xf32>, vector<8x128xf32> -> vector<8x128xf32>
    %1002 = arith.addf %1000, %1001 : vector<8x128xf32>
    %1003 = arith.negf %1002 : vector<8x128xf32>
    %1004 = math.exp %1003 : vector<8x128xf32>
    %cst_273 = arith.constant 1.000000e+00 : f32
    %1005 = vector.broadcast %cst_273 : f32 to vector<8x128xf32>
    %1006 = arith.addf %1005, %1004 : vector<8x128xf32>
    %1007 = arith.divf %1005, %1006 : vector<8x128xf32>
    %1008 = math.tanh %1002 : vector<8x128xf32>
    %1009 = vector.extract_strided_slice %1007 {offsets = [0, 0], sizes = [8, 32], strides = [1, 1]} : vector<8x128xf32> to vector<8x32xf32>
    %1010 = vector.extract_strided_slice %1007 {offsets = [0, 32], sizes = [8, 32], strides = [1, 1]} : vector<8x128xf32> to vector<8x32xf32>
    %1011 = vector.extract_strided_slice %1008 {offsets = [0, 64], sizes = [8, 32], strides = [1, 1]} : vector<8x128xf32> to vector<8x32xf32>
    %1012 = vector.extract_strided_slice %1007 {offsets = [0, 96], sizes = [8, 32], strides = [1, 1]} : vector<8x128xf32> to vector<8x32xf32>
    %1013 = arith.mulf %1010, %994 : vector<8x32xf32>
    %1014 = arith.mulf %1009, %1011 : vector<8x32xf32>
    %1015 = arith.addf %1013, %1014 : vector<8x32xf32>
    %1016 = math.tanh %1015 : vector<8x32xf32>
    %1017 = arith.mulf %1012, %1016 : vector<8x32xf32>
    %c12_i32_274 = arith.constant 12 : i32
    %c8_i32_275 = arith.constant 8 : i32
    %1018 = arith.muli %c12_i32_274, %c8_i32_275 : i32
    %1019 = tpu.assume_multiple %1018, 8 : i32
    %1020 = arith.index_cast %1019 : i32 to index
    %c0_276 = arith.constant 0 : index
    %1021 = vector.load %arg13[%1020, %c0_276] : memref<128x128xf32, #tpu.memory_space<vmem>>, vector<8x128xf32>
    %cst_277 = arith.constant dense<0.000000e+00> : vector<8x128xf32>
    %1022 = tpu.matmul %1017, %757, %cst_277 {dimension_numbers = #tpu.dot_dimension_numbers<[1], [0], [0], [1], [0, 0, 1, 1], [], []>} : vector<8x32xf32>, vector<32x128xf32>, vector<8x128xf32> -> vector<8x128xf32>
    %1023 = arith.addf %1021, %1022 : vector<8x128xf32>
    %1024 = arith.negf %1023 : vector<8x128xf32>
    %1025 = math.exp %1024 : vector<8x128xf32>
    %cst_278 = arith.constant 1.000000e+00 : f32
    %1026 = vector.broadcast %cst_278 : f32 to vector<8x128xf32>
    %1027 = arith.addf %1026, %1025 : vector<8x128xf32>
    %1028 = arith.divf %1026, %1027 : vector<8x128xf32>
    %1029 = math.tanh %1023 : vector<8x128xf32>
    %1030 = vector.extract_strided_slice %1028 {offsets = [0, 0], sizes = [8, 32], strides = [1, 1]} : vector<8x128xf32> to vector<8x32xf32>
    %1031 = vector.extract_strided_slice %1028 {offsets = [0, 32], sizes = [8, 32], strides = [1, 1]} : vector<8x128xf32> to vector<8x32xf32>
    %1032 = vector.extract_strided_slice %1029 {offsets = [0, 64], sizes = [8, 32], strides = [1, 1]} : vector<8x128xf32> to vector<8x32xf32>
    %1033 = vector.extract_strided_slice %1028 {offsets = [0, 96], sizes = [8, 32], strides = [1, 1]} : vector<8x128xf32> to vector<8x32xf32>
    %1034 = arith.mulf %1031, %1015 : vector<8x32xf32>
    %1035 = arith.mulf %1030, %1032 : vector<8x32xf32>
    %1036 = arith.addf %1034, %1035 : vector<8x32xf32>
    %1037 = math.tanh %1036 : vector<8x32xf32>
    %1038 = arith.mulf %1033, %1037 : vector<8x32xf32>
    %c13_i32_279 = arith.constant 13 : i32
    %c8_i32_280 = arith.constant 8 : i32
    %1039 = arith.muli %c13_i32_279, %c8_i32_280 : i32
    %1040 = tpu.assume_multiple %1039, 8 : i32
    %1041 = arith.index_cast %1040 : i32 to index
    %c0_281 = arith.constant 0 : index
    %1042 = vector.load %arg13[%1041, %c0_281] : memref<128x128xf32, #tpu.memory_space<vmem>>, vector<8x128xf32>
    %cst_282 = arith.constant dense<0.000000e+00> : vector<8x128xf32>
    %1043 = tpu.matmul %1038, %757, %cst_282 {dimension_numbers = #tpu.dot_dimension_numbers<[1], [0], [0], [1], [0, 0, 1, 1], [], []>} : vector<8x32xf32>, vector<32x128xf32>, vector<8x128xf32> -> vector<8x128xf32>
    %1044 = arith.addf %1042, %1043 : vector<8x128xf32>
    %1045 = arith.negf %1044 : vector<8x128xf32>
    %1046 = math.exp %1045 : vector<8x128xf32>
    %cst_283 = arith.constant 1.000000e+00 : f32
    %1047 = vector.broadcast %cst_283 : f32 to vector<8x128xf32>
    %1048 = arith.addf %1047, %1046 : vector<8x128xf32>
    %1049 = arith.divf %1047, %1048 : vector<8x128xf32>
    %1050 = math.tanh %1044 : vector<8x128xf32>
    %1051 = vector.extract_strided_slice %1049 {offsets = [0, 0], sizes = [8, 32], strides = [1, 1]} : vector<8x128xf32> to vector<8x32xf32>
    %1052 = vector.extract_strided_slice %1049 {offsets = [0, 32], sizes = [8, 32], strides = [1, 1]} : vector<8x128xf32> to vector<8x32xf32>
    %1053 = vector.extract_strided_slice %1050 {offsets = [0, 64], sizes = [8, 32], strides = [1, 1]} : vector<8x128xf32> to vector<8x32xf32>
    %1054 = vector.extract_strided_slice %1049 {offsets = [0, 96], sizes = [8, 32], strides = [1, 1]} : vector<8x128xf32> to vector<8x32xf32>
    %1055 = arith.mulf %1052, %1036 : vector<8x32xf32>
    %1056 = arith.mulf %1051, %1053 : vector<8x32xf32>
    %1057 = arith.addf %1055, %1056 : vector<8x32xf32>
    %1058 = math.tanh %1057 : vector<8x32xf32>
    %1059 = arith.mulf %1054, %1058 : vector<8x32xf32>
    %c14_i32_284 = arith.constant 14 : i32
    %c8_i32_285 = arith.constant 8 : i32
    %1060 = arith.muli %c14_i32_284, %c8_i32_285 : i32
    %1061 = tpu.assume_multiple %1060, 8 : i32
    %1062 = arith.index_cast %1061 : i32 to index
    %c0_286 = arith.constant 0 : index
    %1063 = vector.load %arg13[%1062, %c0_286] : memref<128x128xf32, #tpu.memory_space<vmem>>, vector<8x128xf32>
    %cst_287 = arith.constant dense<0.000000e+00> : vector<8x128xf32>
    %1064 = tpu.matmul %1059, %757, %cst_287 {dimension_numbers = #tpu.dot_dimension_numbers<[1], [0], [0], [1], [0, 0, 1, 1], [], []>} : vector<8x32xf32>, vector<32x128xf32>, vector<8x128xf32> -> vector<8x128xf32>
    %1065 = arith.addf %1063, %1064 : vector<8x128xf32>
    %1066 = arith.negf %1065 : vector<8x128xf32>
    %1067 = math.exp %1066 : vector<8x128xf32>
    %cst_288 = arith.constant 1.000000e+00 : f32
    %1068 = vector.broadcast %cst_288 : f32 to vector<8x128xf32>
    %1069 = arith.addf %1068, %1067 : vector<8x128xf32>
    %1070 = arith.divf %1068, %1069 : vector<8x128xf32>
    %1071 = math.tanh %1065 : vector<8x128xf32>
    %1072 = vector.extract_strided_slice %1070 {offsets = [0, 0], sizes = [8, 32], strides = [1, 1]} : vector<8x128xf32> to vector<8x32xf32>
    %1073 = vector.extract_strided_slice %1070 {offsets = [0, 32], sizes = [8, 32], strides = [1, 1]} : vector<8x128xf32> to vector<8x32xf32>
    %1074 = vector.extract_strided_slice %1071 {offsets = [0, 64], sizes = [8, 32], strides = [1, 1]} : vector<8x128xf32> to vector<8x32xf32>
    %1075 = vector.extract_strided_slice %1070 {offsets = [0, 96], sizes = [8, 32], strides = [1, 1]} : vector<8x128xf32> to vector<8x32xf32>
    %1076 = arith.mulf %1073, %1057 : vector<8x32xf32>
    %1077 = arith.mulf %1072, %1074 : vector<8x32xf32>
    %1078 = arith.addf %1076, %1077 : vector<8x32xf32>
    %1079 = math.tanh %1078 : vector<8x32xf32>
    %1080 = arith.mulf %1075, %1079 : vector<8x32xf32>
    %c15_i32_289 = arith.constant 15 : i32
    %c8_i32_290 = arith.constant 8 : i32
    %1081 = arith.muli %c15_i32_289, %c8_i32_290 : i32
    %1082 = tpu.assume_multiple %1081, 8 : i32
    %1083 = arith.index_cast %1082 : i32 to index
    %c0_291 = arith.constant 0 : index
    %1084 = vector.load %arg13[%1083, %c0_291] : memref<128x128xf32, #tpu.memory_space<vmem>>, vector<8x128xf32>
    %cst_292 = arith.constant dense<0.000000e+00> : vector<8x128xf32>
    %1085 = tpu.matmul %1080, %757, %cst_292 {dimension_numbers = #tpu.dot_dimension_numbers<[1], [0], [0], [1], [0, 0, 1, 1], [], []>} : vector<8x32xf32>, vector<32x128xf32>, vector<8x128xf32> -> vector<8x128xf32>
    %1086 = arith.addf %1084, %1085 : vector<8x128xf32>
    %1087 = arith.negf %1086 : vector<8x128xf32>
    %1088 = math.exp %1087 : vector<8x128xf32>
    %cst_293 = arith.constant 1.000000e+00 : f32
    %1089 = vector.broadcast %cst_293 : f32 to vector<8x128xf32>
    %1090 = arith.addf %1089, %1088 : vector<8x128xf32>
    %1091 = arith.divf %1089, %1090 : vector<8x128xf32>
    %1092 = math.tanh %1086 : vector<8x128xf32>
    %1093 = vector.extract_strided_slice %1091 {offsets = [0, 0], sizes = [8, 32], strides = [1, 1]} : vector<8x128xf32> to vector<8x32xf32>
    %1094 = vector.extract_strided_slice %1091 {offsets = [0, 32], sizes = [8, 32], strides = [1, 1]} : vector<8x128xf32> to vector<8x32xf32>
    %1095 = vector.extract_strided_slice %1092 {offsets = [0, 64], sizes = [8, 32], strides = [1, 1]} : vector<8x128xf32> to vector<8x32xf32>
    %1096 = vector.extract_strided_slice %1091 {offsets = [0, 96], sizes = [8, 32], strides = [1, 1]} : vector<8x128xf32> to vector<8x32xf32>
    %1097 = arith.mulf %1094, %1078 : vector<8x32xf32>
    %1098 = arith.mulf %1093, %1095 : vector<8x32xf32>
    %1099 = arith.addf %1097, %1098 : vector<8x32xf32>
    %1100 = math.tanh %1099 : vector<8x32xf32>
    %1101 = arith.mulf %1096, %1100 : vector<8x32xf32>
    %c16_i32_294 = arith.constant 16 : i32
    %c0_295 = arith.constant 0 : index
    %c0_296 = arith.constant 0 : index
    %1102 = vector.load %arg10[%c0_295, %c0_296] : memref<32x32xf32, #tpu.memory_space<vmem>>, vector<32x32xf32>
    %cst_297 = arith.constant dense<0.000000e+00> : vector<8x32xf32>
    %1103 = tpu.matmul %1101, %1102, %cst_297 {dimension_numbers = #tpu.dot_dimension_numbers<[1], [0], [0], [1], [0, 0, 1, 1], [], []>} : vector<8x32xf32>, vector<32x32xf32>, vector<8x32xf32> -> vector<8x32xf32>
    %c0_298 = arith.constant 0 : index
    %c0_299 = arith.constant 0 : index
    %1104 = vector.load %arg11[%c0_298, %c0_299] : memref<1x32xf32, #tpu.memory_space<vmem>>, vector<1x32xf32>
    %1105 = vector.broadcast %1104 : vector<1x32xf32> to vector<8x32xf32>
    %1106 = arith.addf %1103, %1105 : vector<8x32xf32>
    %1107 = arith.mulf %1106, %1106 : vector<8x32xf32>
    %cst_300 = arith.constant dense<0.000000e+00> : vector<8xf32>
    %1108 = vector.multi_reduction <add>, %1107, %cst_300 [1] : vector<8x32xf32> to vector<8xf32>
    %1109 = vector.shape_cast %1108 : vector<8xf32> to vector<8x1xf32>
    %1110 = math.rsqrt %1109 : vector<8x1xf32>
    %1111 = vector.broadcast %1110 : vector<8x1xf32> to vector<8x32xf32>
    %1112 = arith.mulf %1106, %1111 : vector<8x32xf32>
    %1113 = tpu.iota {dimensions = array<i32: 0>} : vector<8x1xi32>
    %c4_i32_301 = arith.constant 4 : i32
    %1114 = vector.broadcast %c4_i32_301 : i32 to vector<8x1xi32>
    %1115 = arith.cmpi slt, %1113, %1114 : vector<8x1xi32>
    %cst_302 = arith.constant 0.000000e+00 : f32
    %1116 = vector.shape_cast %1115 : vector<8x1xi1> to vector<8x1xi1>
    %1117 = vector.broadcast %1116 : vector<8x1xi1> to vector<8x32xi1>
    %1118 = vector.broadcast %cst_302 : f32 to vector<8x32xf32>
    %1119 = arith.select %1117, %1112, %1118 : vector<8x32xi1>, vector<8x32xf32>
    %cst_303 = arith.constant dense<0.000000e+00> : vector<32xf32>
    %1120 = vector.multi_reduction <add>, %1119, %cst_303 [0] : vector<8x32xf32> to vector<32xf32>
    %1121 = vector.shape_cast %1120 : vector<32xf32> to vector<1x32xf32>
    %cst_304 = arith.constant 2.500000e-01 : f32
    %1122 = vector.broadcast %cst_304 : f32 to vector<1x32xf32>
    %1123 = arith.mulf %1121, %1122 : vector<1x32xf32>
    %c0_305 = arith.constant 0 : index
    %c0_306 = arith.constant 0 : index
    %1124 = vector.load %arg12[%c0_305, %c0_306] : memref<1x32xf32, #tpu.memory_space<vmem>>, vector<1x32xf32>
    tpu.vector_store %arg12[%c0_305, %c0_306], %1123 {strides = array<i32>} : memref<1x32xf32, #tpu.memory_space<vmem>>, vector<1x32xf32>,
    return
  }
}

</mosaic_0001>

<llo_original>
// kernel: tpu_custom_call.1
$region0: #{tpu_custom_call.1}
  #allocation0 [shape = 'u32[]', space=smem, size = 0x4, offset = 0x4, fixed_abs, tag = 'smem constant byte address 0x4 - core index']
  #allocation1 [shape = 'u32[144,128]{1,0:T(1,128)}', space=vmem, size = 0x12000, scoped, tag = 'internal scratch']
  #allocation2 [shape = 'f32[128,128]{1,0:T(8,128)}', space=vmem, size = 0x10000, scoped, tag = 'scratch operand']
  #allocation3 [shape = 'f32[128,32]{1,0:T(8,128)}', space=vmem, size = 0x10000, scoped, tag = 'scratch operand']
  %s0 = inlined_call_operand.vmem [shape: f32[128,16], index: 0, kind: input, shape index: {}]
  %s1 = inlined_call_operand.hbm [shape: f32[16,128], index: 1, kind: input, shape index: {}]
  %s2 = inlined_call_operand.vmem [shape: f32[32,128], index: 2, kind: input, shape index: {}]
  %s3 = inlined_call_operand.vmem [shape: f32[1,128], index: 3, kind: input, shape index: {}]
  %s4 = inlined_call_operand.vmem [shape: f32[32,128], index: 4, kind: input, shape index: {}]
  %s5 = inlined_call_operand.vmem [shape: f32[32,128], index: 5, kind: input, shape index: {}]
  %s6 = inlined_call_operand.vmem [shape: f32[1,128], index: 6, kind: input, shape index: {}]
  %s7 = inlined_call_operand.vmem [shape: f32[32,128], index: 7, kind: input, shape index: {}]
  %s8 = inlined_call_operand.vmem [shape: f32[32,128], index: 8, kind: input, shape index: {}]
  %s9 = inlined_call_operand.vmem [shape: f32[1,128], index: 9, kind: input, shape index: {}]
  %s10 = inlined_call_operand.hbm [shape: f32[32,32], index: 10, kind: input, shape index: {}]
  %s11 = inlined_call_operand.vmem [shape: f32[1,32], index: 11, kind: input, shape index: {}]
  %s12 = inlined_call_operand.hbm [shape: f32[1,32], index: 12, kind: output, shape index: {}]
  %s13 = sld [smem:[#allocation0]]
  $region66: #{tpu_custom_call.1} parent=0
    _
  %s15 = ssub.s32 1, %s13
  %s16 = scalar_select 0, %s15, %s13
  $region1: #{tpu_custom_call.1} parent=0
    #allocation4 [shape = 'u8[8192]{0}', space=vmem, size = 0x2000, scoped, tag = 'input window, operand 1, single buffered']
    #allocation5 [shape = 's32[1]{0}', space=sflag, size = 0x4, scoped, tag = 'scoped memory for tpu_custom_call.1']
    #allocation6 [shape = 's32[1]{0}', space=sflag, size = 0x4, scoped, tag = 'scoped memory for tpu_custom_call.1']
    #allocation7 [shape = 'u8[16384]{0}', space=vmem, size = 0x4000, scoped, tag = 'input window, operand 10, single buffered']
    #allocation8 [shape = 's32[1]{0}', space=sflag, size = 0x4, scoped, tag = 'scoped memory for tpu_custom_call.1']
    #allocation9 [shape = 'u8[512]{0}', space=vmem, size = 0x400, scoped, tag = 'output window, operand 0, single buffered']
    %17 = vsyncpa [#allocation5], 0
    %18 = vsyncpa [#allocation8], 0
    %19 = vsyncpa [#allocation6], 0
    // Predicated region
    $region2: #{tpu_custom_call.1} parent=1 // pred_check
      _
    $region3: #{tpu_custom_call.1} parent=1 // pred_check_branch
      %21 = sbr.rel (0) target = $region5
    $region4: #{tpu_custom_call.1} parent=1 // pred_region
      _
    $region5: #{tpu_custom_call.1} parent=1 // pred_fallthru
      _
    // Predicated region
    $region6: #{tpu_custom_call.1} parent=1 // pred_check
      _
    $region7: #{tpu_custom_call.1} parent=1 // pred_check_branch
      %23 = sbr.rel (0) target = $region9
    $region8: #{tpu_custom_call.1} parent=1 // pred_region
      %s25 = ssub.s32 256, 256
      %26 = vsyncadd [#allocation5], %s25
      %s27 = sshll.u32 [#allocation4], 4
      %s28 = int_to_ptr.vmem [resolvable:$true] %s27
      %33 = dma.hbm_to_vmem [thread:$0]  %s1, 256, %s28, [#allocation5], 128, 128, 8
    $region9: #{tpu_custom_call.1} parent=1 // pred_fallthru
      _
    // Predicated region
    $region10: #{tpu_custom_call.1} parent=1 // pred_check
      _
    $region11: #{tpu_custom_call.1} parent=1 // pred_check_branch
      %35 = sbr.rel (0) target = $region13
    $region12: #{tpu_custom_call.1} parent=1 // pred_region
      _
    $region13: #{tpu_custom_call.1} parent=1 // pred_fallthru
      _
    // Predicated region
    $region14: #{tpu_custom_call.1} parent=1 // pred_check
      _
    $region15: #{tpu_custom_call.1} parent=1 // pred_check_branch
      %37 = sbr.rel (0) target = $region17
    $region16: #{tpu_custom_call.1} parent=1 // pred_region
      _
    $region17: #{tpu_custom_call.1} parent=1 // pred_fallthru
      _
    // Predicated region
    $region18: #{tpu_custom_call.1} parent=1 // pred_check
      _
    $region19: #{tpu_custom_call.1} parent=1 // pred_check_branch
      %39 = sbr.rel (0) target = $region21
    $region20: #{tpu_custom_call.1} parent=1 // pred_region
      _
    $region21: #{tpu_custom_call.1} parent=1 // pred_fallthru
      _
    // Predicated region
    $region22: #{tpu_custom_call.1} parent=1 // pred_check
      _
    $region23: #{tpu_custom_call.1} parent=1 // pred_check_branch
      %41 = sbr.rel (0) target = $region25
    $region24: #{tpu_custom_call.1} parent=1 // pred_region
      _
    $region25: #{tpu_custom_call.1} parent=1 // pred_fallthru
      _
    // Predicated region
    $region26: #{tpu_custom_call.1} parent=1 // pred_check
      _
    $region27: #{tpu_custom_call.1} parent=1 // pred_check_branch
      %43 = sbr.rel (0) target = $region29
    $region28: #{tpu_custom_call.1} parent=1 // pred_region
      _
    $region29: #{tpu_custom_call.1} parent=1 // pred_fallthru
      _
    // Predicated region
    $region30: #{tpu_custom_call.1} parent=1 // pred_check
      _
    $region31: #{tpu_custom_call.1} parent=1 // pred_check_branch
      %45 = sbr.rel (0) target = $region33
    $region32: #{tpu_custom_call.1} parent=1 // pred_region
      _
    $region33: #{tpu_custom_call.1} parent=1 // pred_fallthru
      _
    // Predicated region
    $region34: #{tpu_custom_call.1} parent=1 // pred_check
      _
    $region35: #{tpu_custom_call.1} parent=1 // pred_check_branch
      %47 = sbr.rel (0) target = $region37
    $region36: #{tpu_custom_call.1} parent=1 // pred_region
      _
    $region37: #{tpu_custom_call.1} parent=1 // pred_fallthru
      _
    // Predicated region
    $region38: #{tpu_custom_call.1} parent=1 // pred_check
      _
    $region39: #{tpu_custom_call.1} parent=1 // pred_check_branch
      %49 = sbr.rel (0) target = $region41
    $region40: #{tpu_custom_call.1} parent=1 // pred_region
      _
    $region41: #{tpu_custom_call.1} parent=1 // pred_fallthru
      _
    // Predicated region
    $region42: #{tpu_custom_call.1} parent=1 // pred_check
      _
    $region43: #{tpu_custom_call.1} parent=1 // pred_check_branch
      %51 = sbr.rel (0) target = $region45
    $region44: #{tpu_custom_call.1} parent=1 // pred_region
      %s53 = ssub.s32 512, 512
      %54 = vsyncadd [#allocation8], %s53
      %s55 = sshll.u32 [#allocation7], 4
      %s56 = int_to_ptr.vmem [resolvable:$true] %s55
      %61 = dma.hbm_to_vmem [thread:$0]  %s10, 512, %s56, [#allocation8], 128, 128, 8
    $region45: #{tpu_custom_call.1} parent=1 // pred_fallthru
      _
    // Predicated region
    $region46: #{tpu_custom_call.1} parent=1 // pred_check
      _
    $region47: #{tpu_custom_call.1} parent=1 // pred_check_branch
      %63 = sbr.rel (0) target = $region49
    $region48: #{tpu_custom_call.1} parent=1 // pred_region
      _
    $region49: #{tpu_custom_call.1} parent=1 // pred_fallthru
      _
    // Predicated region
    $region50: #{tpu_custom_call.1} parent=1 // pred_check
      _
    $region51: #{tpu_custom_call.1} parent=1 // pred_check_branch
      %65 = sbr.rel (0) target = $region53
    $region52: #{tpu_custom_call.1} parent=1 // pred_region
      %66 = dma.done [#allocation5], 256
    $region53: #{tpu_custom_call.1} parent=1 // pred_fallthru
      _
    // Predicated region
    $region54: #{tpu_custom_call.1} parent=1 // pred_check
      _
    $region55: #{tpu_custom_call.1} parent=1 // pred_check_branch
      %68 = sbr.rel (0) target = $region57
    $region56: #{tpu_custom_call.1} parent=1 // pred_region
      %69 = dma.done [#allocation8], 512
    $region57: #{tpu_custom_call.1} parent=1 // pred_fallthru
      _
    %v70 = vld [vmem:[#allocation4] sm:$0xff]
    %v71 = vld [vmem:[#allocation4 + $0x8] sm:$0xff]
    %v72 = vld [vmem:[%s2] sm:$0xff]
    %v73 = vld [vmem:[%s2 + $0x8] sm:$0xff]
    %v74 = vld [vmem:[%s2 + $0x10] sm:$0xff]
    %v75 = vld [vmem:[%s2 + $0x18] sm:$0xff]
    %v76 = vld [vmem:[%s3] sm:$0x1]
    %v77 = vld [vmem:[%s0] sm:$0xff]
    %v78 = vld [vmem:[%s0 + $0x8] sm:$0xff]
    %v79 = vld [vmem:[%s0 + $0x10] sm:$0xff]
    %v80 = vld [vmem:[%s0 + $0x18] sm:$0xff]
    %v81 = vld [vmem:[%s0 + $0x20] sm:$0xff]
    %v82 = vld [vmem:[%s0 + $0x28] sm:$0xff]
    %v83 = vld [vmem:[%s0 + $0x30] sm:$0xff]
    %v84 = vld [vmem:[%s0 + $0x38] sm:$0xff]
    %v85 = vld [vmem:[%s0 + $0x40] sm:$0xff]
    %v86 = vld [vmem:[%s0 + $0x48] sm:$0xff]
    %v87 = vld [vmem:[%s0 + $0x50] sm:$0xff]
    %v88 = vld [vmem:[%s0 + $0x58] sm:$0xff]
    %v89 = vld [vmem:[%s0 + $0x60] sm:$0xff]
    %v90 = vld [vmem:[%s0 + $0x68] sm:$0xff]
    %v91 = vld [vmem:[%s0 + $0x70] sm:$0xff]
    %v92 = vld [vmem:[%s0 + $0x78] sm:$0xff]
    %v94 = vlaneseq
    %v95 = vshrl.u32 %v94, 7
    %v96 = vsub.s32 0, %v95
    %v97 = vrot.slane %v76, %v96
    %vm99 = vcmask 130048
    %v101 = vsel %vm99, %v77, 0
    %v104 = vsel %vm99, %v78, 0
    %v107 = vsel %vm99, %v79, 0
    %v110 = vsel %vm99, %v80, 0
    %v113 = vsel %vm99, %v81, 0
    %v116 = vsel %vm99, %v82, 0
    %v119 = vsel %vm99, %v83, 0
    %v122 = vsel %vm99, %v84, 0
    %v125 = vsel %vm99, %v85, 0
    %v128 = vsel %vm99, %v86, 0
    %v131 = vsel %vm99, %v87, 0
    %v134 = vsel %vm99, %v88, 0
    %v137 = vsel %vm99, %v89, 0
    %v140 = vsel %vm99, %v90, 0
    %v143 = vsel %vm99, %v91, 0
    %v146 = vsel %vm99, %v92, 0
    %148 = vmatprep.subr.mxu0 0.0
    %149 = vmatpush1.msra.mxu0 %v70
    %150 = vmatprep.subr.mxu0 0.0
    %151 = vmatpush1.msra.mxu0 %v71
    %152 = vmatprep.subr.mxu0 0.0
    %153 = vmatpush1.msra.mxu0 0.0
    %154 = vmatprep.subr.mxu0 0.0
    %155 = vmatpush1.msra.mxu0 0.0
    %156 = vmatprep.subr.mxu0 0.0
    %157 = vmatpush1.msra.mxu0 0.0
    %158 = vmatprep.subr.mxu0 0.0
    %159 = vmatpush1.msra.mxu0 0.0
    %160 = vmatprep.subr.mxu0 0.0
    %161 = vmatpush1.msra.mxu0 0.0
    %162 = vmatprep.subr.mxu0 0.0
    %163 = vmatpush1.msra.mxu0 0.0
    %164 = vmatprep.subr.mxu0 0.0
    %165 = vmatpush1.msra.mxu0 0.0
    %166 = vmatprep.subr.mxu0 0.0
    %167 = vmatpush1.msra.mxu0 0.0
    %168 = vmatprep.subr.mxu0 0.0
    %169 = vmatpush1.msra.mxu0 0.0
    %170 = vmatprep.subr.mxu0 0.0
    %171 = vmatpush1.msra.mxu0 0.0
    %172 = vmatprep.subr.mxu0 0.0
    %173 = vmatpush1.msra.mxu0 0.0
    %174 = vmatprep.subr.mxu0 0.0
    %175 = vmatpush1.msra.mxu0 0.0
    %176 = vmatprep.subr.mxu0 0.0
    %177 = vmatpush1.msra.mxu0 0.0
    %178 = vmatprep.subr.mxu0 0.0
    %179 = vmatpush1.msra.mxu0 0.0
    %180 = vmatprep.subr.mxu0 0.0
    %181 = vmatpush1.msra.mxu0 0.0
    %182 = vmatprep.subr.mxu0 0.0
    %183 = vmatpush1.msra.mxu0 0.0
    %184 = vmatprep.subr.mxu0 0.0
    %185 = vmatpush1.msra.mxu0 0.0
    %186 = vmatprep.subr.mxu0 0.0
    %187 = vmatpush1.msra.mxu0 0.0
    %188 = vmatprep.subr.mxu0 0.0
    %189 = vmatpush1.msra.mxu0 0.0
    %190 = vmatprep.subr.mxu0 0.0
    %191 = vmatpush1.msra.mxu0 0.0
    %192 = vmatprep.subr.mxu0 0.0
    %193 = vmatpush1.msra.mxu0 0.0
    %194 = vmatprep.subr.mxu0 0.0
    %195 = vmatpush1.msra.mxu0 0.0
    %196 = vmatprep.subr.mxu0 0.0
    %197 = vmatpush1.msra.mxu0 0.0
    %198 = vmatprep.subr.mxu0 0.0
    %199 = vmatpush1.msra.mxu0 0.0
    %200 = vmatprep.subr.mxu0 0.0
    %201 = vmatpush1.msra.mxu0 0.0
    %202 = vmatprep.subr.mxu0 0.0
    %203 = vmatpush1.msra.mxu0 0.0
    %204 = vmatprep.subr.mxu0 0.0
    %205 = vmatpush1.msra.mxu0 0.0
    %206 = vmatprep.subr.mxu0 0.0
    %207 = vmatpush1.msra.mxu0 0.0
    %208 = vmatprep.subr.mxu0 0.0
    %209 = vmatpush1.msra.mxu0 0.0
    %210 = vmatprep.subr.mxu0 0.0
    %211 = vmatpush1.msra.mxu0 0.0
    %212 = vmatprep.mubr.f32.mxu0 0.0
    %213 = vmatmul.mubr.f32.gmra.mrb[0].mxu0 %v101
    %v214 = vpop.f32.mrb[0].mxu0
    %v215 = vadd.f32 %v97, %v214
    %v216 = vpop.f32.mrb[0].mxu0
    %217 = vmatprep.mubr.f32.mxu0 0.0
    %218 = vmatmul.mubr.f32.gmra.mrb[0].mxu0 %v104
    %v219 = vpop.f32.mrb[0].mxu0
    %v220 = vadd.f32 %v97, %v219
    %v221 = vpop.f32.mrb[0].mxu0
    %222 = vmatprep.mubr.f32.mxu0 0.0
    %223 = vmatmul.mubr.f32.gmra.mrb[0].mxu0 %v107
    %v224 = vpop.f32.mrb[0].mxu0
    %v225 = vadd.f32 %v97, %v224
    %v226 = vpop.f32.mrb[0].mxu0
    %227 = vmatprep.mubr.f32.mxu0 0.0
    %228 = vmatmul.mubr.f32.gmra.mrb[0].mxu0 %v110
    %v229 = vpop.f32.mrb[0].mxu0
    %v230 = vadd.f32 %v97, %v229
    %v231 = vpop.f32.mrb[0].mxu0
    %232 = vmatprep.mubr.f32.mxu0 0.0
    %233 = vmatmul.mubr.f32.gmra.mrb[0].mxu0 %v113
    %v234 = vpop.f32.mrb[0].mxu0
    %v235 = vadd.f32 %v97, %v234
    %v236 = vpop.f32.mrb[0].mxu0
    %237 = vmatprep.mubr.f32.mxu0 0.0
    %238 = vmatmul.mubr.f32.gmra.mrb[0].mxu0 %v116
    %v239 = vpop.f32.mrb[0].mxu0
    %v240 = vadd.f32 %v97, %v239
    %v241 = vpop.f32.mrb[0].mxu0
    %242 = vmatprep.mubr.f32.mxu0 0.0
    %243 = vmatmul.mubr.f32.gmra.mrb[0].mxu0 %v119
    %v244 = vpop.f32.mrb[0].mxu0
    %v245 = vadd.f32 %v97, %v244
    %v246 = vpop.f32.mrb[0].mxu0
    %247 = vmatprep.mubr.f32.mxu0 0.0
    %248 = vmatmul.mubr.f32.gmra.mrb[0].mxu0 %v122
    %v249 = vpop.f32.mrb[0].mxu0
    %v250 = vadd.f32 %v97, %v249
    %v251 = vpop.f32.mrb[0].mxu0
    %252 = vmatprep.mubr.f32.mxu0 0.0
    %253 = vmatmul.mubr.f32.gmra.mrb[0].mxu0 %v125
    %v254 = vpop.f32.mrb[0].mxu0
    %v255 = vadd.f32 %v97, %v254
    %v256 = vpop.f32.mrb[0].mxu0
    %257 = vmatprep.mubr.f32.mxu0 0.0
    %258 = vmatmul.mubr.f32.gmra.mrb[0].mxu0 %v128
    %v259 = vpop.f32.mrb[0].mxu0
    %v260 = vadd.f32 %v97, %v259
    %v261 = vpop.f32.mrb[0].mxu0
    %262 = vmatprep.mubr.f32.mxu0 0.0
    %263 = vmatmul.mubr.f32.gmra.mrb[0].mxu0 %v131
    %v264 = vpop.f32.mrb[0].mxu0
    %v265 = vadd.f32 %v97, %v264
    %v266 = vpop.f32.mrb[0].mxu0
    %267 = vmatprep.mubr.f32.mxu0 0.0
    %268 = vmatmul.mubr.f32.gmra.mrb[0].mxu0 %v134
    %v269 = vpop.f32.mrb[0].mxu0
    %v270 = vadd.f32 %v97, %v269
    %v271 = vpop.f32.mrb[0].mxu0
    %272 = vmatprep.mubr.f32.mxu0 0.0
    %273 = vmatmul.mubr.f32.gmra.mrb[0].mxu0 %v137
    %v274 = vpop.f32.mrb[0].mxu0
    %v275 = vadd.f32 %v97, %v274
    %v276 = vpop.f32.mrb[0].mxu0
    %277 = vmatprep.mubr.f32.mxu0 0.0
    %278 = vmatmul.mubr.f32.gmra.mrb[0].mxu0 %v140
    %v279 = vpop.f32.mrb[0].mxu0
    %v280 = vadd.f32 %v97, %v279
    %v281 = vpop.f32.mrb[0].mxu0
    %282 = vmatprep.mubr.f32.mxu0 0.0
    %283 = vmatmul.mubr.f32.gmra.mrb[0].mxu0 %v143
    %v284 = vpop.f32.mrb[0].mxu0
    %v285 = vadd.f32 %v97, %v284
    %v286 = vpop.f32.mrb[0].mxu0
    %287 = vmatprep.mubr.f32.mxu0 0.0
    %288 = vmatmul.mubr.f32.gmra.mrb[0].mxu0 %v146
    %v289 = vpop.f32.mrb[0].mxu0
    %v290 = vadd.f32 %v97, %v289
    %v291 = vpop.f32.mrb[0].mxu0
    %292 = vdwg.mxu0
    %293 = vst [vmem:[#allocation2] sm:$0xff] %v215
    %294 = vst [vmem:[#allocation2 + $0x8] sm:$0xff] %v220
    %295 = vst [vmem:[#allocation2 + $0x10] sm:$0xff] %v225
    %296 = vst [vmem:[#allocation2 + $0x18] sm:$0xff] %v230
    %297 = vst [vmem:[#allocation2 + $0x20] sm:$0xff] %v235
    %298 = vst [vmem:[#allocation2 + $0x28] sm:$0xff] %v240
    %299 = vst [vmem:[#allocation2 + $0x30] sm:$0xff] %v245
    %300 = vst [vmem:[#allocation2 + $0x38] sm:$0xff] %v250
    %301 = vst [vmem:[#allocation2 + $0x40] sm:$0xff] %v255
    %302 = vst [vmem:[#allocation2 + $0x48] sm:$0xff] %v260
    %303 = vst [vmem:[#allocation2 + $0x50] sm:$0xff] %v265
    %304 = vst [vmem:[#allocation2 + $0x58] sm:$0xff] %v270
    %305 = vst [vmem:[#allocation2 + $0x60] sm:$0xff] %v275
    %306 = vst [vmem:[#allocation2 + $0x68] sm:$0xff] %v280
    %307 = vst [vmem:[#allocation2 + $0x70] sm:$0xff] %v285
    %308 = vst [vmem:[#allocation2 + $0x78] sm:$0xff] %v290
    %v309 = vld [vmem:[#allocation2] sm:$0xff]
    %vm310 = vcmask 261120
    %v312 = vsel %vm310, 0.0, 0
    %314 = vmatprep.subr.mxu0 0.0
    %315 = vmatpush1.msra.mxu0 %v72
    %316 = vmatprep.subr.mxu0 0.0
    %317 = vmatpush1.msra.mxu0 %v73
    %318 = vmatprep.subr.mxu0 0.0
    %319 = vmatpush1.msra.mxu0 %v74
    %320 = vmatprep.subr.mxu0 0.0
    %321 = vmatpush1.msra.mxu0 %v75
    %322 = vmatprep.subr.mxu0 0.0
    %323 = vmatpush1.msra.mxu0 0.0
    %324 = vmatprep.subr.mxu0 0.0
    %325 = vmatpush1.msra.mxu0 0.0
    %326 = vmatprep.subr.mxu0 0.0
    %327 = vmatpush1.msra.mxu0 0.0
    %328 = vmatprep.subr.mxu0 0.0
    %329 = vmatpush1.msra.mxu0 0.0
    %330 = vmatprep.subr.mxu0 0.0
    %331 = vmatpush1.msra.mxu0 0.0
    %332 = vmatprep.subr.mxu0 0.0
    %333 = vmatpush1.msra.mxu0 0.0
    %334 = vmatprep.subr.mxu0 0.0
    %335 = vmatpush1.msra.mxu0 0.0
    %336 = vmatprep.subr.mxu0 0.0
    %337 = vmatpush1.msra.mxu0 0.0
    %338 = vmatprep.subr.mxu0 0.0
    %339 = vmatpush1.msra.mxu0 0.0
    %340 = vmatprep.subr.mxu0 0.0
    %341 = vmatpush1.msra.mxu0 0.0
    %342 = vmatprep.subr.mxu0 0.0
    %343 = vmatpush1.msra.mxu0 0.0
    %344 = vmatprep.subr.mxu0 0.0
    %345 = vmatpush1.msra.mxu0 0.0
    %346 = vmatprep.subr.mxu0 0.0
    %347 = vmatpush1.msra.mxu0 0.0
    %348 = vmatprep.subr.mxu0 0.0
    %349 = vmatpush1.msra.mxu0 0.0
    %350 = vmatprep.subr.mxu0 0.0
    %351 = vmatpush1.msra.mxu0 0.0
    %352 = vmatprep.subr.mxu0 0.0
    %353 = vmatpush1.msra.mxu0 0.0
    %354 = vmatprep.subr.mxu0 0.0
    %355 = vmatpush1.msra.mxu0 0.0
    %356 = vmatprep.subr.mxu0 0.0
    %357 = vmatpush1.msra.mxu0 0.0
    %358 = vmatprep.subr.mxu0 0.0
    %359 = vmatpush1.msra.mxu0 0.0
    %360 = vmatprep.subr.mxu0 0.0
    %361 = vmatpush1.msra.mxu0 0.0
    %362 = vmatprep.subr.mxu0 0.0
    %363 = vmatpush1.msra.mxu0 0.0
    %364 = vmatprep.subr.mxu0 0.0
    %365 = vmatpush1.msra.mxu0 0.0
    %366 = vmatprep.subr.mxu0 0.0
    %367 = vmatpush1.msra.mxu0 0.0
    %368 = vmatprep.subr.mxu0 0.0
    %369 = vmatpush1.msra.mxu0 0.0
    %370 = vmatprep.subr.mxu0 0.0
    %371 = vmatpush1.msra.mxu0 0.0
    %372 = vmatprep.subr.mxu0 0.0
    %373 = vmatpush1.msra.mxu0 0.0
    %374 = vmatprep.subr.mxu0 0.0
    %375 = vmatpush1.msra.mxu0 0.0
    %376 = vmatprep.subr.mxu0 0.0
    %377 = vmatpush1.msra.mxu0 0.0
    %378 = vmatprep.mubr.f32.mxu0 0.0
    %379 = vmatmul.mubr.f32.gmra.mrb[0].mxu0 %v312
    %v380 = vpop.f32.mrb[0].mxu0
    %v381 = vadd.f32 0.0, %v380
    %v382 = vpop.f32.mrb[0].mxu0
    %383 = vdwg.mxu0
    %v384 = vadd.f32 %v309, %v381
    %v385 = vxor.u32 %v384, 2147483648
    %v386 = vmul.f32 %v385, 1.442695
    %v387 = vpow.pop %v386
    %v388 = vadd.f32 %v387, 1.0
    %v389 = vrcp.pop %v388
    %v390 = vmul.f32 1.0, %v389
    %v391 = vtanh.pop %v384
    %v392 = vmul.f32 %v390, 0.0
    %394 = vrot.lane.b32.xlu0 %v391, 64
    %v395 = vpop.permute.xlu0 %394
    %v397 = vmul.f32 %v390, %v395
    %399 = vrot.lane.b32.xlu0 %v397, 32
    %v400 = vpop.permute.xlu0 %399
    %v402 = vadd.f32 %v392, %v400
    %v403 = vtanh.pop %v402
    %405 = vrot.lane.b32.xlu0 %v403, 64
    %v406 = vpop.permute.xlu0 %405
    %v408 = vmul.f32 %v390, %v406
    %410 = vrot.lane.b32.xlu0 %v408, 32
    %v411 = vpop.permute.xlu0 %410
    %413 = vst.msk [vmem:[#allocation3] sm:$0xff] %vm310, %v411
    %s414 = scalar_lea.vmem [#allocation2], 8
    %v415 = vld [vmem:[%s414] sm:$0xff]
    %v416 = vsel %vm310, %v411, 0
    %418 = vmatprep.subr.mxu0 0.0
    %419 = vmatpush1.msra.mxu0 %v72
    %420 = vmatprep.subr.mxu0 0.0
    %421 = vmatpush1.msra.mxu0 %v73
    %422 = vmatprep.subr.mxu0 0.0
    %423 = vmatpush1.msra.mxu0 %v74
    %424 = vmatprep.subr.mxu0 0.0
    %425 = vmatpush1.msra.mxu0 %v75
    %426 = vmatprep.subr.mxu0 0.0
    %427 = vmatpush1.msra.mxu0 0.0
    %428 = vmatprep.subr.mxu0 0.0
    %429 = vmatpush1.msra.mxu0 0.0
    %430 = vmatprep.subr.mxu0 0.0
    %431 = vmatpush1.msra.mxu0 0.0
    %432 = vmatprep.subr.mxu0 0.0
    %433 = vmatpush1.msra.mxu0 0.0
    %434 = vmatprep.subr.mxu0 0.0
    %435 = vmatpush1.msra.mxu0 0.0
    %436 = vmatprep.subr.mxu0 0.0
    %437 = vmatpush1.msra.mxu0 0.0
    %438 = vmatprep.subr.mxu0 0.0
    %439 = vmatpush1.msra.mxu0 0.0
    %440 = vmatprep.subr.mxu0 0.0
    %441 = vmatpush1.msra.mxu0 0.0
    %442 = vmatprep.subr.mxu0 0.0
    %443 = vmatpush1.msra.mxu0 0.0
    %444 = vmatprep.subr.mxu0 0.0
    %445 = vmatpush1.msra.mxu0 0.0
    %446 = vmatprep.subr.mxu0 0.0
    %447 = vmatpush1.msra.mxu0 0.0
    %448 = vmatprep.subr.mxu0 0.0
    %449 = vmatpush1.msra.mxu0 0.0
    %450 = vmatprep.subr.mxu0 0.0
    %451 = vmatpush1.msra.mxu0 0.0
    %452 = vmatprep.subr.mxu0 0.0
    %453 = vmatpush1.msra.mxu0 0.0
    %454 = vmatprep.subr.mxu0 0.0
    %455 = vmatpush1.msra.mxu0 0.0
    %456 = vmatprep.subr.mxu0 0.0
    %457 = vmatpush1.msra.mxu0 0.0
    %458 = vmatprep.subr.mxu0 0.0
    %459 = vmatpush1.msra.mxu0 0.0
    %460 = vmatprep.subr.mxu0 0.0
    %461 = vmatpush1.msra.mxu0 0.0
    %462 = vmatprep.subr.mxu0 0.0
    %463 = vmatpush1.msra.mxu0 0.0
    %464 = vmatprep.subr.mxu0 0.0
    %465 = vmatpush1.msra.mxu0 0.0
    %466 = vmatprep.subr.mxu0 0.0
    %467 = vmatpush1.msra.mxu0 0.0
    %468 = vmatprep.subr.mxu0 0.0
    %469 = vmatpush1.msra.mxu0 0.0
    %470 = vmatprep.subr.mxu0 0.0
    %471 = vmatpush1.msra.mxu0 0.0
    %472 = vmatprep.subr.mxu0 0.0
    %473 = vmatpush1.msra.mxu0 0.0
    %474 = vmatprep.subr.mxu0 0.0
    %475 = vmatpush1.msra.mxu0 0.0
    %476 = vmatprep.subr.mxu0 0.0
    %477 = vmatpush1.msra.mxu0 0.0
    %478 = vmatprep.subr.mxu0 0.0
    %479 = vmatpush1.msra.mxu0 0.0
    %480 = vmatprep.subr.mxu0 0.0
    %481 = vmatpush1.msra.mxu0 0.0
    %482 = vmatprep.mubr.f32.mxu0 0.0
    %483 = vmatmul.mubr.f32.gmra.mrb[0].mxu0 %v416
    %v484 = vpop.f32.mrb[0].mxu0
    %v485 = vadd.f32 0.0, %v484
    %v486 = vpop.f32.mrb[0].mxu0
    %487 = vdwg.mxu0
    %v488 = vadd.f32 %v415, %v485
    %v489 = vxor.u32 %v488, 2147483648
    %v490 = vmul.f32 %v489, 1.442695
    %v491 = vpow.pop %v490
    %v492 = vadd.f32 %v491, 1.0
    %v493 = vrcp.pop %v492
    %v494 = vmul.f32 1.0, %v493
    %v495 = vtanh.pop %v488
    %v496 = vmul.f32 %v494, %v402
    %498 = vrot.lane.b32.xlu0 %v495, 64
    %v499 = vpop.permute.xlu0 %498
    %v501 = vmul.f32 %v494, %v499
    %503 = vrot.lane.b32.xlu0 %v501, 32
    %v504 = vpop.permute.xlu0 %503
    %v506 = vadd.f32 %v496, %v504
    %v507 = vtanh.pop %v506
    %509 = vrot.lane.b32.xlu0 %v507, 64
    %v510 = vpop.permute.xlu0 %509
    %v512 = vmul.f32 %v494, %v510
    %514 = vrot.lane.b32.xlu0 %v512, 32
    %v515 = vpop.permute.xlu0 %514
    %s517 = scalar_lea.vmem [#allocation3], 8
    %518 = vst.msk [vmem:[%s517] sm:$0xff] %vm310, %v515
    %s519 = scalar_lea.vmem [#allocation2], 16
    %v520 = vld [vmem:[%s519] sm:$0xff]
    %v521 = vsel %vm310, %v515, 0
    %523 = vmatprep.subr.mxu0 0.0
    %524 = vmatpush1.msra.mxu0 %v72
    %525 = vmatprep.subr.mxu0 0.0
    %526 = vmatpush1.msra.mxu0 %v73
    %527 = vmatprep.subr.mxu0 0.0
    %528 = vmatpush1.msra.mxu0 %v74
    %529 = vmatprep.subr.mxu0 0.0
    %530 = vmatpush1.msra.mxu0 %v75
    %531 = vmatprep.subr.mxu0 0.0
    %532 = vmatpush1.msra.mxu0 0.0
    %533 = vmatprep.subr.mxu0 0.0
    %534 = vmatpush1.msra.mxu0 0.0
    %535 = vmatprep.subr.mxu0 0.0
    %536 = vmatpush1.msra.mxu0 0.0
    %537 = vmatprep.subr.mxu0 0.0
    %538 = vmatpush1.msra.mxu0 0.0
    %539 = vmatprep.subr.mxu0 0.0
    %540 = vmatpush1.msra.mxu0 0.0
    %541 = vmatprep.subr.mxu0 0.0
    %542 = vmatpush1.msra.mxu0 0.0
    %543 = vmatprep.subr.mxu0 0.0
    %544 = vmatpush1.msra.mxu0 0.0
    %545 = vmatprep.subr.mxu0 0.0
    %546 = vmatpush1.msra.mxu0 0.0
    %547 = vmatprep.subr.mxu0 0.0
    %548 = vmatpush1.msra.mxu0 0.0
    %549 = vmatprep.subr.mxu0 0.0
    %550 = vmatpush1.msra.mxu0 0.0
    %551 = vmatprep.subr.mxu0 0.0
    %552 = vmatpush1.msra.mxu0 0.0
    %553 = vmatprep.subr.mxu0 0.0
    %554 = vmatpush1.msra.mxu0 0.0
    %555 = vmatprep.subr.mxu0 0.0
    %556 = vmatpush1.msra.mxu0 0.0
    %557 = vmatprep.subr.mxu0 0.0
    %558 = vmatpush1.msra.mxu0 0.0
    %559 = vmatprep.subr.mxu0 0.0
    %560 = vmatpush1.msra.mxu0 0.0
    %561 = vmatprep.subr.mxu0 0.0
    %562 = vmatpush1.msra.mxu0 0.0
    %563 = vmatprep.subr.mxu0 0.0
    %564 = vmatpush1.msra.mxu0 0.0
    %565 = vmatprep.subr.mxu0 0.0
    %566 = vmatpush1.msra.mxu0 0.0
    %567 = vmatprep.subr.mxu0 0.0
    %568 = vmatpush1.msra.mxu0 0.0
    %569 = vmatprep.subr.mxu0 0.0
    %570 = vmatpush1.msra.mxu0 0.0
    %571 = vmatprep.subr.mxu0 0.0
    %572 = vmatpush1.msra.mxu0 0.0
    %573 = vmatprep.subr.mxu0 0.0
    %574 = vmatpush1.msra.mxu0 0.0
    %575 = vmatprep.subr.mxu0 0.0
    %576 = vmatpush1.msra.mxu0 0.0
    %577 = vmatprep.subr.mxu0 0.0
    %578 = vmatpush1.msra.mxu0 0.0
    %579 = vmatprep.subr.mxu0 0.0
    %580 = vmatpush1.msra.mxu0 0.0
    %581 = vmatprep.subr.mxu0 0.0
    %582 = vmatpush1.msra.mxu0 0.0
    %583 = vmatprep.subr.mxu0 0.0
    %584 = vmatpush1.msra.mxu0 0.0
    %585 = vmatprep.subr.mxu0 0.0
    %586 = vmatpush1.msra.mxu0 0.0
    %587 = vmatprep.mubr.f32.mxu0 0.0
    %588 = vmatmul.mubr.f32.gmra.mrb[0].mxu0 %v521
    %v589 = vpop.f32.mrb[0].mxu0
    %v590 = vadd.f32 0.0, %v589
    %v591 = vpop.f32.mrb[0].mxu0
    %592 = vdwg.mxu0
    %v593 = vadd.f32 %v520, %v590
    %v594 = vxor.u32 %v593, 2147483648
    %v595 = vmul.f32 %v594, 1.442695
    %v596 = vpow.pop %v595
    %v597 = vadd.f32 %v596, 1.0
    %v598 = vrcp.pop %v597
    %v599 = vmul.f32 1.0, %v598
    %v600 = vtanh.pop %v593
    %v601 = vmul.f32 %v599, %v506
    %603 = vrot.lane.b32.xlu0 %v600, 64
    %v604 = vpop.permute.xlu0 %603
    %v606 = vmul.f32 %v599, %v604
    %608 = vrot.lane.b32.xlu0 %v606, 32
    %v609 = vpop.permute.xlu0 %608
    %v611 = vadd.f32 %v601, %v609
    %v612 = vtanh.pop %v611
    %614 = vrot.lane.b32.xlu0 %v612, 64
    %v615 = vpop.permute.xlu0 %614
    %v617 = vmul.f32 %v599, %v615
    %619 = vrot.lane.b32.xlu0 %v617, 32
    %v620 = vpop.permute.xlu0 %619
    %s622 = scalar_lea.vmem [#allocation3], 16
    %623 = vst.msk [vmem:[%s622] sm:$0xff] %vm310, %v620
    %s624 = scalar_lea.vmem [#allocation2], 24
    %v625 = vld [vmem:[%s624] sm:$0xff]
    %v626 = vsel %vm310, %v620, 0
    %628 = vmatprep.subr.mxu0 0.0
    %629 = vmatpush1.msra.mxu0 %v72
    %630 = vmatprep.subr.mxu0 0.0
    %631 = vmatpush1.msra.mxu0 %v73
    %632 = vmatprep.subr.mxu0 0.0
    %633 = vmatpush1.msra.mxu0 %v74
    %634 = vmatprep.subr.mxu0 0.0
    %635 = vmatpush1.msra.mxu0 %v75
    %636 = vmatprep.subr.mxu0 0.0
    %637 = vmatpush1.msra.mxu0 0.0
    %638 = vmatprep.subr.mxu0 0.0
    %639 = vmatpush1.msra.mxu0 0.0
    %640 = vmatprep.subr.mxu0 0.0
    %641 = vmatpush1.msra.mxu0 0.0
    %642 = vmatprep.subr.mxu0 0.0
    %643 = vmatpush1.msra.mxu0 0.0
    %644 = vmatprep.subr.mxu0 0.0
    %645 = vmatpush1.msra.mxu0 0.0
    %646 = vmatprep.subr.mxu0 0.0
    %647 = vmatpush1.msra.mxu0 0.0
    %648 = vmatprep.subr.mxu0 0.0
    %649 = vmatpush1.msra.mxu0 0.0
    %650 = vmatprep.subr.mxu0 0.0
    %651 = vmatpush1.msra.mxu0 0.0
    %652 = vmatprep.subr.mxu0 0.0
    %653 = vmatpush1.msra.mxu0 0.0
    %654 = vmatprep.subr.mxu0 0.0
    %655 = vmatpush1.msra.mxu0 0.0
    %656 = vmatprep.subr.mxu0 0.0
    %657 = vmatpush1.msra.mxu0 0.0
    %658 = vmatprep.subr.mxu0 0.0
    %659 = vmatpush1.msra.mxu0 0.0
    %660 = vmatprep.subr.mxu0 0.0
    %661 = vmatpush1.msra.mxu0 0.0
    %662 = vmatprep.subr.mxu0 0.0
    %663 = vmatpush1.msra.mxu0 0.0
    %664 = vmatprep.subr.mxu0 0.0
    %665 = vmatpush1.msra.mxu0 0.0
    %666 = vmatprep.subr.mxu0 0.0
    %667 = vmatpush1.msra.mxu0 0.0
    %668 = vmatprep.subr.mxu0 0.0
    %669 = vmatpush1.msra.mxu0 0.0
    %670 = vmatprep.subr.mxu0 0.0
    %671 = vmatpush1.msra.mxu0 0.0
    %672 = vmatprep.subr.mxu0 0.0
    %673 = vmatpush1.msra.mxu0 0.0
    %674 = vmatprep.subr.mxu0 0.0
    %675 = vmatpush1.msra.mxu0 0.0
    %676 = vmatprep.subr.mxu0 0.0
    %677 = vmatpush1.msra.mxu0 0.0
    %678 = vmatprep.subr.mxu0 0.0
    %679 = vmatpush1.msra.mxu0 0.0
    %680 = vmatprep.subr.mxu0 0.0
    %681 = vmatpush1.msra.mxu0 0.0
    %682 = vmatprep.subr.mxu0 0.0
    %683 = vmatpush1.msra.mxu0 0.0
    %684 = vmatprep.subr.mxu0 0.0
    %685 = vmatpush1.msra.mxu0 0.0
    %686 = vmatprep.subr.mxu0 0.0
    %687 = vmatpush1.msra.mxu0 0.0
    %688 = vmatprep.subr.mxu0 0.0
    %689 = vmatpush1.msra.mxu0 0.0
    %690 = vmatprep.subr.mxu0 0.0
    %691 = vmatpush1.msra.mxu0 0.0
    %692 = vmatprep.mubr.f32.mxu0 0.0
    %693 = vmatmul.mubr.f32.gmra.mrb[0].mxu0 %v626
    %v694 = vpop.f32.mrb[0].mxu0
    %v695 = vadd.f32 0.0, %v694
    %v696 = vpop.f32.mrb[0].mxu0
    %697 = vdwg.mxu0
    %v698 = vadd.f32 %v625, %v695
    %v699 = vxor.u32 %v698, 2147483648
    %v700 = vmul.f32 %v699, 1.442695
    %v701 = vpow.pop %v700
    %v702 = vadd.f32 %v701, 1.0
    %v703 = vrcp.pop %v702
    %v704 = vmul.f32 1.0, %v703
    %v705 = vtanh.pop %v698
    %v706 = vmul.f32 %v704, %v611
    %708 = vrot.lane.b32.xlu0 %v705, 64
    %v709 = vpop.permute.xlu0 %708
    %v711 = vmul.f32 %v704, %v709
    %713 = vrot.lane.b32.xlu0 %v711, 32
    %v714 = vpop.permute.xlu0 %713
    %v716 = vadd.f32 %v706, %v714
    %v717 = vtanh.pop %v716
    %719 = vrot.lane.b32.xlu0 %v717, 64
    %v720 = vpop.permute.xlu0 %719
    %v722 = vmul.f32 %v704, %v720
    %724 = vrot.lane.b32.xlu0 %v722, 32
    %v725 = vpop.permute.xlu0 %724
    %s727 = scalar_lea.vmem [#allocation3], 24
    %728 = vst.msk [vmem:[%s727] sm:$0xff] %vm310, %v725
    %s729 = scalar_lea.vmem [#allocation2], 32
    %v730 = vld [vmem:[%s729] sm:$0xff]
    %v731 = vsel %vm310, %v725, 0
    %733 = vmatprep.subr.mxu0 0.0
    %734 = vmatpush1.msra.mxu0 %v72
    %735 = vmatprep.subr.mxu0 0.0
    %736 = vmatpush1.msra.mxu0 %v73
    %737 = vmatprep.subr.mxu0 0.0
    %738 = vmatpush1.msra.mxu0 %v74
    %739 = vmatprep.subr.mxu0 0.0
    %740 = vmatpush1.msra.mxu0 %v75
    %741 = vmatprep.subr.mxu0 0.0
    %742 = vmatpush1.msra.mxu0 0.0
    %743 = vmatprep.subr.mxu0 0.0
    %744 = vmatpush1.msra.mxu0 0.0
    %745 = vmatprep.subr.mxu0 0.0
    %746 = vmatpush1.msra.mxu0 0.0
    %747 = vmatprep.subr.mxu0 0.0
    %748 = vmatpush1.msra.mxu0 0.0
    %749 = vmatprep.subr.mxu0 0.0
    %750 = vmatpush1.msra.mxu0 0.0
    %751 = vmatprep.subr.mxu0 0.0
    %752 = vmatpush1.msra.mxu0 0.0
    %753 = vmatprep.subr.mxu0 0.0
    %754 = vmatpush1.msra.mxu0 0.0
    %755 = vmatprep.subr.mxu0 0.0
    %756 = vmatpush1.msra.mxu0 0.0
    %757 = vmatprep.subr.mxu0 0.0
    %758 = vmatpush1.msra.mxu0 0.0
    %759 = vmatprep.subr.mxu0 0.0
    %760 = vmatpush1.msra.mxu0 0.0
    %761 = vmatprep.subr.mxu0 0.0
    %762 = vmatpush1.msra.mxu0 0.0
    %763 = vmatprep.subr.mxu0 0.0
    %764 = vmatpush1.msra.mxu0 0.0
    %765 = vmatprep.subr.mxu0 0.0
    %766 = vmatpush1.msra.mxu0 0.0
    %767 = vmatprep.subr.mxu0 0.0
    %768 = vmatpush1.msra.mxu0 0.0
    %769 = vmatprep.subr.mxu0 0.0
    %770 = vmatpush1.msra.mxu0 0.0
    %771 = vmatprep.subr.mxu0 0.0
    %772 = vmatpush1.msra.mxu0 0.0
    %773 = vmatprep.subr.mxu0 0.0
    %774 = vmatpush1.msra.mxu0 0.0
    %775 = vmatprep.subr.mxu0 0.0
    %776 = vmatpush1.msra.mxu0 0.0
    %777 = vmatprep.subr.mxu0 0.0
    %778 = vmatpush1.msra.mxu0 0.0
    %779 = vmatprep.subr.mxu0 0.0
    %780 = vmatpush1.msra.mxu0 0.0
    %781 = vmatprep.subr.mxu0 0.0
    %782 = vmatpush1.msra.mxu0 0.0
    %783 = vmatprep.subr.mxu0 0.0
    %784 = vmatpush1.msra.mxu0 0.0
    %785 = vmatprep.subr.mxu0 0.0
    %786 = vmatpush1.msra.mxu0 0.0
    %787 = vmatprep.subr.mxu0 0.0
    %788 = vmatpush1.msra.mxu0 0.0
    %789 = vmatprep.subr.mxu0 0.0
    %790 = vmatpush1.msra.mxu0 0.0
    %791 = vmatprep.subr.mxu0 0.0
    %792 = vmatpush1.msra.mxu0 0.0
    %793 = vmatprep.subr.mxu0 0.0
    %794 = vmatpush1.msra.mxu0 0.0
    %795 = vmatprep.subr.mxu0 0.0
    %796 = vmatpush1.msra.mxu0 0.0
    %797 = vmatprep.mubr.f32.mxu0 0.0
    %798 = vmatmul.mubr.f32.gmra.mrb[0].mxu0 %v731
    %v799 = vpop.f32.mrb[0].mxu0
    %v800 = vadd.f32 0.0, %v799
    %v801 = vpop.f32.mrb[0].mxu0
    %802 = vdwg.mxu0
    %v803 = vadd.f32 %v730, %v800
    %v804 = vxor.u32 %v803, 2147483648
    %v805 = vmul.f32 %v804, 1.442695
    %v806 = vpow.pop %v805
    %v807 = vadd.f32 %v806, 1.0
    %v808 = vrcp.pop %v807
    %v809 = vmul.f32 1.0, %v808
    %v810 = vtanh.pop %v803
    %v811 = vmul.f32 %v809, %v716
    %813 = vrot.lane.b32.xlu0 %v810, 64
    %v814 = vpop.permute.xlu0 %813
    %v816 = vmul.f32 %v809, %v814
    %818 = vrot.lane.b32.xlu0 %v816, 32
    %v819 = vpop.permute.xlu0 %818
    %v821 = vadd.f32 %v811, %v819
    %v822 = vtanh.pop %v821
    %824 = vrot.lane.b32.xlu0 %v822, 64
    %v825 = vpop.permute.xlu0 %824
    %v827 = vmul.f32 %v809, %v825
    %829 = vrot.lane.b32.xlu0 %v827, 32
    %v830 = vpop.permute.xlu0 %829
    %s832 = scalar_lea.vmem [#allocation3], 32
    %833 = vst.msk [vmem:[%s832] sm:$0xff] %vm310, %v830
    %s834 = scalar_lea.vmem [#allocation2], 40
    %v835 = vld [vmem:[%s834] sm:$0xff]
    %v836 = vsel %vm310, %v830, 0
    %838 = vmatprep.subr.mxu0 0.0
    %839 = vmatpush1.msra.mxu0 %v72
    %840 = vmatprep.subr.mxu0 0.0
    %841 = vmatpush1.msra.mxu0 %v73
    %842 = vmatprep.subr.mxu0 0.0
    %843 = vmatpush1.msra.mxu0 %v74
    %844 = vmatprep.subr.mxu0 0.0
    %845 = vmatpush1.msra.mxu0 %v75
    %846 = vmatprep.subr.mxu0 0.0
    %847 = vmatpush1.msra.mxu0 0.0
    %848 = vmatprep.subr.mxu0 0.0
    %849 = vmatpush1.msra.mxu0 0.0
    %850 = vmatprep.subr.mxu0 0.0
    %851 = vmatpush1.msra.mxu0 0.0
    %852 = vmatprep.subr.mxu0 0.0
    %853 = vmatpush1.msra.mxu0 0.0
    %854 = vmatprep.subr.mxu0 0.0
    %855 = vmatpush1.msra.mxu0 0.0
    %856 = vmatprep.subr.mxu0 0.0
    %857 = vmatpush1.msra.mxu0 0.0
    %858 = vmatprep.subr.mxu0 0.0
    %859 = vmatpush1.msra.mxu0 0.0
    %860 = vmatprep.subr.mxu0 0.0
    %861 = vmatpush1.msra.mxu0 0.0
    %862 = vmatprep.subr.mxu0 0.0
    %863 = vmatpush1.msra.mxu0 0.0
    %864 = vmatprep.subr.mxu0 0.0
    %865 = vmatpush1.msra.mxu0 0.0
    %866 = vmatprep.subr.mxu0 0.0
    %867 = vmatpush1.msra.mxu0 0.0
    %868 = vmatprep.subr.mxu0 0.0
    %869 = vmatpush1.msra.mxu0 0.0
    %870 = vmatprep.subr.mxu0 0.0
    %871 = vmatpush1.msra.mxu0 0.0
    %872 = vmatprep.subr.mxu0 0.0
    %873 = vmatpush1.msra.mxu0 0.0
    %874 = vmatprep.subr.mxu0 0.0
    %875 = vmatpush1.msra.mxu0 0.0
    %876 = vmatprep.subr.mxu0 0.0
    %877 = vmatpush1.msra.mxu0 0.0
    %878 = vmatprep.subr.mxu0 0.0
    %879 = vmatpush1.msra.mxu0 0.0
    %880 = vmatprep.subr.mxu0 0.0
    %881 = vmatpush1.msra.mxu0 0.0
    %882 = vmatprep.subr.mxu0 0.0
    %883 = vmatpush1.msra.mxu0 0.0
    %884 = vmatprep.subr.mxu0 0.0
    %885 = vmatpush1.msra.mxu0 0.0
    %886 = vmatprep.subr.mxu0 0.0
    %887 = vmatpush1.msra.mxu0 0.0
    %888 = vmatprep.subr.mxu0 0.0
    %889 = vmatpush1.msra.mxu0 0.0
    %890 = vmatprep.subr.mxu0 0.0
    %891 = vmatpush1.msra.mxu0 0.0
    %892 = vmatprep.subr.mxu0 0.0
    %893 = vmatpush1.msra.mxu0 0.0
    %894 = vmatprep.subr.mxu0 0.0
    %895 = vmatpush1.msra.mxu0 0.0
    %896 = vmatprep.subr.mxu0 0.0
    %897 = vmatpush1.msra.mxu0 0.0
    %898 = vmatprep.subr.mxu0 0.0
    %899 = vmatpush1.msra.mxu0 0.0
    %900 = vmatprep.subr.mxu0 0.0
    %901 = vmatpush1.msra.mxu0 0.0
    %902 = vmatprep.mubr.f32.mxu0 0.0
    %903 = vmatmul.mubr.f32.gmra.mrb[0].mxu0 %v836
    %v904 = vpop.f32.mrb[0].mxu0
    %v905 = vadd.f32 0.0, %v904
    %v906 = vpop.f32.mrb[0].mxu0
    %907 = vdwg.mxu0
    %v908 = vadd.f32 %v835, %v905
    %v909 = vxor.u32 %v908, 2147483648
    %v910 = vmul.f32 %v909, 1.442695
    %v911 = vpow.pop %v910
    %v912 = vadd.f32 %v911, 1.0
    %v913 = vrcp.pop %v912
    %v914 = vmul.f32 1.0, %v913
    %v915 = vtanh.pop %v908
    %v916 = vmul.f32 %v914, %v821
    %918 = vrot.lane.b32.xlu0 %v915, 64
    %v919 = vpop.permute.xlu0 %918
    %v921 = vmul.f32 %v914, %v919
    %923 = vrot.lane.b32.xlu0 %v921, 32
    %v924 = vpop.permute.xlu0 %923
    %v926 = vadd.f32 %v916, %v924
    %v927 = vtanh.pop %v926
    %929 = vrot.lane.b32.xlu0 %v927, 64
    %v930 = vpop.permute.xlu0 %929
    %v932 = vmul.f32 %v914, %v930
    %934 = vrot.lane.b32.xlu0 %v932, 32
    %v935 = vpop.permute.xlu0 %934
    %s937 = scalar_lea.vmem [#allocation3], 40
    %938 = vst.msk [vmem:[%s937] sm:$0xff] %vm310, %v935
    %s939 = scalar_lea.vmem [#allocation2], 48
    %v940 = vld [vmem:[%s939] sm:$0xff]
    %v941 = vsel %vm310, %v935, 0
    %943 = vmatprep.subr.mxu0 0.0
    %944 = vmatpush1.msra.mxu0 %v72
    %945 = vmatprep.subr.mxu0 0.0
    %946 = vmatpush1.msra.mxu0 %v73
    %947 = vmatprep.subr.mxu0 0.0
    %948 = vmatpush1.msra.mxu0 %v74
    %949 = vmatprep.subr.mxu0 0.0
    %950 = vmatpush1.msra.mxu0 %v75
    %951 = vmatprep.subr.mxu0 0.0
    %952 = vmatpush1.msra.mxu0 0.0
    %953 = vmatprep.subr.mxu0 0.0
    %954 = vmatpush1.msra.mxu0 0.0
    %955 = vmatprep.subr.mxu0 0.0
    %956 = vmatpush1.msra.mxu0 0.0
    %957 = vmatprep.subr.mxu0 0.0
    %958 = vmatpush1.msra.mxu0 0.0
    %959 = vmatprep.subr.mxu0 0.0
    %960 = vmatpush1.msra.mxu0 0.0
    %961 = vmatprep.subr.mxu0 0.0
    %962 = vmatpush1.msra.mxu0 0.0
    %963 = vmatprep.subr.mxu0 0.0
    %964 = vmatpush1.msra.mxu0 0.0
    %965 = vmatprep.subr.mxu0 0.0
    %966 = vmatpush1.msra.mxu0 0.0
    %967 = vmatprep.subr.mxu0 0.0
    %968 = vmatpush1.msra.mxu0 0.0
    %969 = vmatprep.subr.mxu0 0.0
    %970 = vmatpush1.msra.mxu0 0.0
    %971 = vmatprep.subr.mxu0 0.0
    %972 = vmatpush1.msra.mxu0 0.0
    %973 = vmatprep.subr.mxu0 0.0
    %974 = vmatpush1.msra.mxu0 0.0
    %975 = vmatprep.subr.mxu0 0.0
    %976 = vmatpush1.msra.mxu0 0.0
    %977 = vmatprep.subr.mxu0 0.0
    %978 = vmatpush1.msra.mxu0 0.0
    %979 = vmatprep.subr.mxu0 0.0
    %980 = vmatpush1.msra.mxu0 0.0
    %981 = vmatprep.subr.mxu0 0.0
    %982 = vmatpush1.msra.mxu0 0.0
    %983 = vmatprep.subr.mxu0 0.0
    %984 = vmatpush1.msra.mxu0 0.0
    %985 = vmatprep.subr.mxu0 0.0
    %986 = vmatpush1.msra.mxu0 0.0
    %987 = vmatprep.subr.mxu0 0.0
    %988 = vmatpush1.msra.mxu0 0.0
    %989 = vmatprep.subr.mxu0 0.0
    %990 = vmatpush1.msra.mxu0 0.0
    %991 = vmatprep.subr.mxu0 0.0
    %992 = vmatpush1.msra.mxu0 0.0
    %993 = vmatprep.subr.mxu0 0.0
    %994 = vmatpush1.msra.mxu0 0.0
    %995 = vmatprep.subr.mxu0 0.0
    %996 = vmatpush1.msra.mxu0 0.0
    %997 = vmatprep.subr.mxu0 0.0
    %998 = vmatpush1.msra.mxu0 0.0
    %999 = vmatprep.subr.mxu0 0.0
    %1000 = vmatpush1.msra.mxu0 0.0
    %1001 = vmatprep.subr.mxu0 0.0
    %1002 = vmatpush1.msra.mxu0 0.0
    %1003 = vmatprep.subr.mxu0 0.0
    %1004 = vmatpush1.msra.mxu0 0.0
    %1005 = vmatprep.subr.mxu0 0.0
    %1006 = vmatpush1.msra.mxu0 0.0
    %1007 = vmatprep.mubr.f32.mxu0 0.0
    %1008 = vmatmul.mubr.f32.gmra.mrb[0].mxu0 %v941
    %v1009 = vpop.f32.mrb[0].mxu0
    %v1010 = vadd.f32 0.0, %v1009
    %v1011 = vpop.f32.mrb[0].mxu0
    %1012 = vdwg.mxu0
    %v1013 = vadd.f32 %v940, %v1010
    %v1014 = vxor.u32 %v1013, 2147483648
    %v1015 = vmul.f32 %v1014, 1.442695
    %v1016 = vpow.pop %v1015
    %v1017 = vadd.f32 %v1016, 1.0
    %v1018 = vrcp.pop %v1017
    %v1019 = vmul.f32 1.0, %v1018
    %v1020 = vtanh.pop %v1013
    %v1021 = vmul.f32 %v1019, %v926
    %1023 = vrot.lane.b32.xlu0 %v1020, 64
    %v1024 = vpop.permute.xlu0 %1023
    %v1026 = vmul.f32 %v1019, %v1024
    %1028 = vrot.lane.b32.xlu0 %v1026, 32
    %v1029 = vpop.permute.xlu0 %1028
    %v1031 = vadd.f32 %v1021, %v1029
    %v1032 = vtanh.pop %v1031
    %1034 = vrot.lane.b32.xlu0 %v1032, 64
    %v1035 = vpop.permute.xlu0 %1034
    %v1037 = vmul.f32 %v1019, %v1035
    %1039 = vrot.lane.b32.xlu0 %v1037, 32
    %v1040 = vpop.permute.xlu0 %1039
    %s1042 = scalar_lea.vmem [#allocation3], 48
    %1043 = vst.msk [vmem:[%s1042] sm:$0xff] %vm310, %v1040
    %s1044 = scalar_lea.vmem [#allocation2], 56
    %v1045 = vld [vmem:[%s1044] sm:$0xff]
    %v1046 = vsel %vm310, %v1040, 0
    %1048 = vmatprep.subr.mxu0 0.0
    %1049 = vmatpush1.msra.mxu0 %v72
    %1050 = vmatprep.subr.mxu0 0.0
    %1051 = vmatpush1.msra.mxu0 %v73
    %1052 = vmatprep.subr.mxu0 0.0
    %1053 = vmatpush1.msra.mxu0 %v74
    %1054 = vmatprep.subr.mxu0 0.0
    %1055 = vmatpush1.msra.mxu0 %v75
    %1056 = vmatprep.subr.mxu0 0.0
    %1057 = vmatpush1.msra.mxu0 0.0
    %1058 = vmatprep.subr.mxu0 0.0
    %1059 = vmatpush1.msra.mxu0 0.0
    %1060 = vmatprep.subr.mxu0 0.0
    %1061 = vmatpush1.msra.mxu0 0.0
    %1062 = vmatprep.subr.mxu0 0.0
    %1063 = vmatpush1.msra.mxu0 0.0
    %1064 = vmatprep.subr.mxu0 0.0
    %1065 = vmatpush1.msra.mxu0 0.0
    %1066 = vmatprep.subr.mxu0 0.0
    %1067 = vmatpush1.msra.mxu0 0.0
    %1068 = vmatprep.subr.mxu0 0.0
    %1069 = vmatpush1.msra.mxu0 0.0
    %1070 = vmatprep.subr.mxu0 0.0
    %1071 = vmatpush1.msra.mxu0 0.0
    %1072 = vmatprep.subr.mxu0 0.0
    %1073 = vmatpush1.msra.mxu0 0.0
    %1074 = vmatprep.subr.mxu0 0.0
    %1075 = vmatpush1.msra.mxu0 0.0
    %1076 = vmatprep.subr.mxu0 0.0
    %1077 = vmatpush1.msra.mxu0 0.0
    %1078 = vmatprep.subr.mxu0 0.0
    %1079 = vmatpush1.msra.mxu0 0.0
    %1080 = vmatprep.subr.mxu0 0.0
    %1081 = vmatpush1.msra.mxu0 0.0
    %1082 = vmatprep.subr.mxu0 0.0
    %1083 = vmatpush1.msra.mxu0 0.0
    %1084 = vmatprep.subr.mxu0 0.0
    %1085 = vmatpush1.msra.mxu0 0.0
    %1086 = vmatprep.subr.mxu0 0.0
    %1087 = vmatpush1.msra.mxu0 0.0
    %1088 = vmatprep.subr.mxu0 0.0
    %1089 = vmatpush1.msra.mxu0 0.0
    %1090 = vmatprep.subr.mxu0 0.0
    %1091 = vmatpush1.msra.mxu0 0.0
    %1092 = vmatprep.subr.mxu0 0.0
    %1093 = vmatpush1.msra.mxu0 0.0
    %1094 = vmatprep.subr.mxu0 0.0
    %1095 = vmatpush1.msra.mxu0 0.0
    %1096 = vmatprep.subr.mxu0 0.0
    %1097 = vmatpush1.msra.mxu0 0.0
    %1098 = vmatprep.subr.mxu0 0.0
    %1099 = vmatpush1.msra.mxu0 0.0
    %1100 = vmatprep.subr.mxu0 0.0
    %1101 = vmatpush1.msra.mxu0 0.0
    %1102 = vmatprep.subr.mxu0 0.0
    %1103 = vmatpush1.msra.mxu0 0.0
    %1104 = vmatprep.subr.mxu0 0.0
    %1105 = vmatpush1.msra.mxu0 0.0
    %1106 = vmatprep.subr.mxu0 0.0
    %1107 = vmatpush1.msra.mxu0 0.0
    %1108 = vmatprep.subr.mxu0 0.0
    %1109 = vmatpush1.msra.mxu0 0.0
    %1110 = vmatprep.subr.mxu0 0.0
    %1111 = vmatpush1.msra.mxu0 0.0
    %1112 = vmatprep.mubr.f32.mxu0 0.0
    %1113 = vmatmul.mubr.f32.gmra.mrb[0].mxu0 %v1046
    %v1114 = vpop.f32.mrb[0].mxu0
    %v1115 = vadd.f32 0.0, %v1114
    %v1116 = vpop.f32.mrb[0].mxu0
    %1117 = vdwg.mxu0
    %v1118 = vadd.f32 %v1045, %v1115
    %v1119 = vxor.u32 %v1118, 2147483648
    %v1120 = vmul.f32 %v1119, 1.442695
    %v1121 = vpow.pop %v1120
    %v1122 = vadd.f32 %v1121, 1.0
    %v1123 = vrcp.pop %v1122
    %v1124 = vmul.f32 1.0, %v1123
    %v1125 = vtanh.pop %v1118
    %v1126 = vmul.f32 %v1124, %v1031
    %1128 = vrot.lane.b32.xlu0 %v1125, 64
    %v1129 = vpop.permute.xlu0 %1128
    %v1131 = vmul.f32 %v1124, %v1129
    %1133 = vrot.lane.b32.xlu0 %v1131, 32
    %v1134 = vpop.permute.xlu0 %1133
    %v1136 = vadd.f32 %v1126, %v1134
    %v1137 = vtanh.pop %v1136
    %1139 = vrot.lane.b32.xlu0 %v1137, 64
    %v1140 = vpop.permute.xlu0 %1139
    %v1142 = vmul.f32 %v1124, %v1140
    %1144 = vrot.lane.b32.xlu0 %v1142, 32
    %v1145 = vpop.permute.xlu0 %1144
    %s1147 = scalar_lea.vmem [#allocation3], 56
    %1148 = vst.msk [vmem:[%s1147] sm:$0xff] %vm310, %v1145
    %s1149 = scalar_lea.vmem [#allocation2], 64
    %v1150 = vld [vmem:[%s1149] sm:$0xff]
    %v1151 = vsel %vm310, %v1145, 0
    %1153 = vmatprep.subr.mxu0 0.0
    %1154 = vmatpush1.msra.mxu0 %v72
    %1155 = vmatprep.subr.mxu0 0.0
    %1156 = vmatpush1.msra.mxu0 %v73
    %1157 = vmatprep.subr.mxu0 0.0
    %1158 = vmatpush1.msra.mxu0 %v74
    %1159 = vmatprep.subr.mxu0 0.0
    %1160 = vmatpush1.msra.mxu0 %v75
    %1161 = vmatprep.subr.mxu0 0.0
    %1162 = vmatpush1.msra.mxu0 0.0
    %1163 = vmatprep.subr.mxu0 0.0
    %1164 = vmatpush1.msra.mxu0 0.0
    %1165 = vmatprep.subr.mxu0 0.0
    %1166 = vmatpush1.msra.mxu0 0.0
    %1167 = vmatprep.subr.mxu0 0.0
    %1168 = vmatpush1.msra.mxu0 0.0
    %1169 = vmatprep.subr.mxu0 0.0
    %1170 = vmatpush1.msra.mxu0 0.0
    %1171 = vmatprep.subr.mxu0 0.0
    %1172 = vmatpush1.msra.mxu0 0.0
    %1173 = vmatprep.subr.mxu0 0.0
    %1174 = vmatpush1.msra.mxu0 0.0
    %1175 = vmatprep.subr.mxu0 0.0
    %1176 = vmatpush1.msra.mxu0 0.0
    %1177 = vmatprep.subr.mxu0 0.0
    %1178 = vmatpush1.msra.mxu0 0.0
    %1179 = vmatprep.subr.mxu0 0.0
    %1180 = vmatpush1.msra.mxu0 0.0
    %1181 = vmatprep.subr.mxu0 0.0
    %1182 = vmatpush1.msra.mxu0 0.0
    %1183 = vmatprep.subr.mxu0 0.0
    %1184 = vmatpush1.msra.mxu0 0.0
    %1185 = vmatprep.subr.mxu0 0.0
    %1186 = vmatpush1.msra.mxu0 0.0
    %1187 = vmatprep.subr.mxu0 0.0
    %1188 = vmatpush1.msra.mxu0 0.0
    %1189 = vmatprep.subr.mxu0 0.0
    %1190 = vmatpush1.msra.mxu0 0.0
    %1191 = vmatprep.subr.mxu0 0.0
    %1192 = vmatpush1.msra.mxu0 0.0
    %1193 = vmatprep.subr.mxu0 0.0
    %1194 = vmatpush1.msra.mxu0 0.0
    %1195 = vmatprep.subr.mxu0 0.0
    %1196 = vmatpush1.msra.mxu0 0.0
    %1197 = vmatprep.subr.mxu0 0.0
    %1198 = vmatpush1.msra.mxu0 0.0
    %1199 = vmatprep.subr.mxu0 0.0
    %1200 = vmatpush1.msra.mxu0 0.0
    %1201 = vmatprep.subr.mxu0 0.0
    %1202 = vmatpush1.msra.mxu0 0.0
    %1203 = vmatprep.subr.mxu0 0.0
    %1204 = vmatpush1.msra.mxu0 0.0
    %1205 = vmatprep.subr.mxu0 0.0
    %1206 = vmatpush1.msra.mxu0 0.0
    %1207 = vmatprep.subr.mxu0 0.0
    %1208 = vmatpush1.msra.mxu0 0.0
    %1209 = vmatprep.subr.mxu0 0.0
    %1210 = vmatpush1.msra.mxu0 0.0
    %1211 = vmatprep.subr.mxu0 0.0
    %1212 = vmatpush1.msra.mxu0 0.0
    %1213 = vmatprep.subr.mxu0 0.0
    %1214 = vmatpush1.msra.mxu0 0.0
    %1215 = vmatprep.subr.mxu0 0.0
    %1216 = vmatpush1.msra.mxu0 0.0
    %1217 = vmatprep.mubr.f32.mxu0 0.0
    %1218 = vmatmul.mubr.f32.gmra.mrb[0].mxu0 %v1151
    %v1219 = vpop.f32.mrb[0].mxu0
    %v1220 = vadd.f32 0.0, %v1219
    %v1221 = vpop.f32.mrb[0].mxu0
    %1222 = vdwg.mxu0
    %v1223 = vadd.f32 %v1150, %v1220
    %v1224 = vxor.u32 %v1223, 2147483648
    %v1225 = vmul.f32 %v1224, 1.442695
    %v1226 = vpow.pop %v1225
    %v1227 = vadd.f32 %v1226, 1.0
    %v1228 = vrcp.pop %v1227
    %v1229 = vmul.f32 1.0, %v1228
    %v1230 = vtanh.pop %v1223
    %v1231 = vmul.f32 %v1229, %v1136
    %1233 = vrot.lane.b32.xlu0 %v1230, 64
    %v1234 = vpop.permute.xlu0 %1233
    %v1236 = vmul.f32 %v1229, %v1234
    %1238 = vrot.lane.b32.xlu0 %v1236, 32
    %v1239 = vpop.permute.xlu0 %1238
    %v1241 = vadd.f32 %v1231, %v1239
    %v1242 = vtanh.pop %v1241
    %1244 = vrot.lane.b32.xlu0 %v1242, 64
    %v1245 = vpop.permute.xlu0 %1244
    %v1247 = vmul.f32 %v1229, %v1245
    %1249 = vrot.lane.b32.xlu0 %v1247, 32
    %v1250 = vpop.permute.xlu0 %1249
    %s1252 = scalar_lea.vmem [#allocation3], 64
    %1253 = vst.msk [vmem:[%s1252] sm:$0xff] %vm310, %v1250
    %s1254 = scalar_lea.vmem [#allocation2], 72
    %v1255 = vld [vmem:[%s1254] sm:$0xff]
    %v1256 = vsel %vm310, %v1250, 0
    %1258 = vmatprep.subr.mxu0 0.0
    %1259 = vmatpush1.msra.mxu0 %v72
    %1260 = vmatprep.subr.mxu0 0.0
    %1261 = vmatpush1.msra.mxu0 %v73
    %1262 = vmatprep.subr.mxu0 0.0
    %1263 = vmatpush1.msra.mxu0 %v74
    %1264 = vmatprep.subr.mxu0 0.0
    %1265 = vmatpush1.msra.mxu0 %v75
    %1266 = vmatprep.subr.mxu0 0.0
    %1267 = vmatpush1.msra.mxu0 0.0
    %1268 = vmatprep.subr.mxu0 0.0
    %1269 = vmatpush1.msra.mxu0 0.0
    %1270 = vmatprep.subr.mxu0 0.0
    %1271 = vmatpush1.msra.mxu0 0.0
    %1272 = vmatprep.subr.mxu0 0.0
    %1273 = vmatpush1.msra.mxu0 0.0
    %1274 = vmatprep.subr.mxu0 0.0
    %1275 = vmatpush1.msra.mxu0 0.0
    %1276 = vmatprep.subr.mxu0 0.0
    %1277 = vmatpush1.msra.mxu0 0.0
    %1278 = vmatprep.subr.mxu0 0.0
    %1279 = vmatpush1.msra.mxu0 0.0
    %1280 = vmatprep.subr.mxu0 0.0
    %1281 = vmatpush1.msra.mxu0 0.0
    %1282 = vmatprep.subr.mxu0 0.0
    %1283 = vmatpush1.msra.mxu0 0.0
    %1284 = vmatprep.subr.mxu0 0.0
    %1285 = vmatpush1.msra.mxu0 0.0
    %1286 = vmatprep.subr.mxu0 0.0
    %1287 = vmatpush1.msra.mxu0 0.0
    %1288 = vmatprep.subr.mxu0 0.0
    %1289 = vmatpush1.msra.mxu0 0.0
    %1290 = vmatprep.subr.mxu0 0.0
    %1291 = vmatpush1.msra.mxu0 0.0
    %1292 = vmatprep.subr.mxu0 0.0
    %1293 = vmatpush1.msra.mxu0 0.0
    %1294 = vmatprep.subr.mxu0 0.0
    %1295 = vmatpush1.msra.mxu0 0.0
    %1296 = vmatprep.subr.mxu0 0.0
    %1297 = vmatpush1.msra.mxu0 0.0
    %1298 = vmatprep.subr.mxu0 0.0
    %1299 = vmatpush1.msra.mxu0 0.0
    %1300 = vmatprep.subr.mxu0 0.0
    %1301 = vmatpush1.msra.mxu0 0.0
    %1302 = vmatprep.subr.mxu0 0.0
    %1303 = vmatpush1.msra.mxu0 0.0
    %1304 = vmatprep.subr.mxu0 0.0
    %1305 = vmatpush1.msra.mxu0 0.0
    %1306 = vmatprep.subr.mxu0 0.0
    %1307 = vmatpush1.msra.mxu0 0.0
    %1308 = vmatprep.subr.mxu0 0.0
    %1309 = vmatpush1.msra.mxu0 0.0
    %1310 = vmatprep.subr.mxu0 0.0
    %1311 = vmatpush1.msra.mxu0 0.0
    %1312 = vmatprep.subr.mxu0 0.0
    %1313 = vmatpush1.msra.mxu0 0.0
    %1314 = vmatprep.subr.mxu0 0.0
    %1315 = vmatpush1.msra.mxu0 0.0
    %1316 = vmatprep.subr.mxu0 0.0
    %1317 = vmatpush1.msra.mxu0 0.0
    %1318 = vmatprep.subr.mxu0 0.0
    %1319 = vmatpush1.msra.mxu0 0.0
    %1320 = vmatprep.subr.mxu0 0.0
    %1321 = vmatpush1.msra.mxu0 0.0
    %1322 = vmatprep.mubr.f32.mxu0 0.0
    %1323 = vmatmul.mubr.f32.gmra.mrb[0].mxu0 %v1256
    %v1324 = vpop.f32.mrb[0].mxu0
    %v1325 = vadd.f32 0.0, %v1324
    %v1326 = vpop.f32.mrb[0].mxu0
    %1327 = vdwg.mxu0
    %v1328 = vadd.f32 %v1255, %v1325
    %v1329 = vxor.u32 %v1328, 2147483648
    %v1330 = vmul.f32 %v1329, 1.442695
    %v1331 = vpow.pop %v1330
    %v1332 = vadd.f32 %v1331, 1.0
    %v1333 = vrcp.pop %v1332
    %v1334 = vmul.f32 1.0, %v1333
    %v1335 = vtanh.pop %v1328
    %v1336 = vmul.f32 %v1334, %v1241
    %1338 = vrot.lane.b32.xlu0 %v1335, 64
    %v1339 = vpop.permute.xlu0 %1338
    %v1341 = vmul.f32 %v1334, %v1339
    %1343 = vrot.lane.b32.xlu0 %v1341, 32
    %v1344 = vpop.permute.xlu0 %1343
    %v1346 = vadd.f32 %v1336, %v1344
    %v1347 = vtanh.pop %v1346
    %1349 = vrot.lane.b32.xlu0 %v1347, 64
    %v1350 = vpop.permute.xlu0 %1349
    %v1352 = vmul.f32 %v1334, %v1350
    %1354 = vrot.lane.b32.xlu0 %v1352, 32
    %v1355 = vpop.permute.xlu0 %1354
    %s1357 = scalar_lea.vmem [#allocation3], 72
    %1358 = vst.msk [vmem:[%s1357] sm:$0xff] %vm310, %v1355
    %s1359 = scalar_lea.vmem [#allocation2], 80
    %v1360 = vld [vmem:[%s1359] sm:$0xff]
    %v1361 = vsel %vm310, %v1355, 0
    %1363 = vmatprep.subr.mxu0 0.0
    %1364 = vmatpush1.msra.mxu0 %v72
    %1365 = vmatprep.subr.mxu0 0.0
    %1366 = vmatpush1.msra.mxu0 %v73
    %1367 = vmatprep.subr.mxu0 0.0
    %1368 = vmatpush1.msra.mxu0 %v74
    %1369 = vmatprep.subr.mxu0 0.0
    %1370 = vmatpush1.msra.mxu0 %v75
    %1371 = vmatprep.subr.mxu0 0.0
    %1372 = vmatpush1.msra.mxu0 0.0
    %1373 = vmatprep.subr.mxu0 0.0
    %1374 = vmatpush1.msra.mxu0 0.0
    %1375 = vmatprep.subr.mxu0 0.0
    %1376 = vmatpush1.msra.mxu0 0.0
    %1377 = vmatprep.subr.mxu0 0.0
    %1378 = vmatpush1.msra.mxu0 0.0
    %1379 = vmatprep.subr.mxu0 0.0
    %1380 = vmatpush1.msra.mxu0 0.0
    %1381 = vmatprep.subr.mxu0 0.0
    %1382 = vmatpush1.msra.mxu0 0.0
    %1383 = vmatprep.subr.mxu0 0.0
    %1384 = vmatpush1.msra.mxu0 0.0
    %1385 = vmatprep.subr.mxu0 0.0
    %1386 = vmatpush1.msra.mxu0 0.0
    %1387 = vmatprep.subr.mxu0 0.0
    %1388 = vmatpush1.msra.mxu0 0.0
    %1389 = vmatprep.subr.mxu0 0.0
    %1390 = vmatpush1.msra.mxu0 0.0
    %1391 = vmatprep.subr.mxu0 0.0
    %1392 = vmatpush1.msra.mxu0 0.0
    %1393 = vmatprep.subr.mxu0 0.0
    %1394 = vmatpush1.msra.mxu0 0.0
    %1395 = vmatprep.subr.mxu0 0.0
    %1396 = vmatpush1.msra.mxu0 0.0
    %1397 = vmatprep.subr.mxu0 0.0
    %1398 = vmatpush1.msra.mxu0 0.0
    %1399 = vmatprep.subr.mxu0 0.0
    %1400 = vmatpush1.msra.mxu0 0.0
    %1401 = vmatprep.subr.mxu0 0.0
    %1402 = vmatpush1.msra.mxu0 0.0
    %1403 = vmatprep.subr.mxu0 0.0
    %1404 = vmatpush1.msra.mxu0 0.0
    %1405 = vmatprep.subr.mxu0 0.0
    %1406 = vmatpush1.msra.mxu0 0.0
    %1407 = vmatprep.subr.mxu0 0.0
    %1408 = vmatpush1.msra.mxu0 0.0
    %1409 = vmatprep.subr.mxu0 0.0
    %1410 = vmatpush1.msra.mxu0 0.0
    %1411 = vmatprep.subr.mxu0 0.0
    %1412 = vmatpush1.msra.mxu0 0.0
    %1413 = vmatprep.subr.mxu0 0.0
    %1414 = vmatpush1.msra.mxu0 0.0
    %1415 = vmatprep.subr.mxu0 0.0
    %1416 = vmatpush1.msra.mxu0 0.0
    %1417 = vmatprep.subr.mxu0 0.0
    %1418 = vmatpush1.msra.mxu0 0.0
    %1419 = vmatprep.subr.mxu0 0.0
    %1420 = vmatpush1.msra.mxu0 0.0
    %1421 = vmatprep.subr.mxu0 0.0
    %1422 = vmatpush1.msra.mxu0 0.0
    %1423 = vmatprep.subr.mxu0 0.0
    %1424 = vmatpush1.msra.mxu0 0.0
    %1425 = vmatprep.subr.mxu0 0.0
    %1426 = vmatpush1.msra.mxu0 0.0
    %1427 = vmatprep.mubr.f32.mxu0 0.0
    %1428 = vmatmul.mubr.f32.gmra.mrb[0].mxu0 %v1361
    %v1429 = vpop.f32.mrb[0].mxu0
    %v1430 = vadd.f32 0.0, %v1429
    %v1431 = vpop.f32.mrb[0].mxu0
    %1432 = vdwg.mxu0
    %v1433 = vadd.f32 %v1360, %v1430
    %v1434 = vxor.u32 %v1433, 2147483648
    %v1435 = vmul.f32 %v1434, 1.442695
    %v1436 = vpow.pop %v1435
    %v1437 = vadd.f32 %v1436, 1.0
    %v1438 = vrcp.pop %v1437
    %v1439 = vmul.f32 1.0, %v1438
    %v1440 = vtanh.pop %v1433
    %v1441 = vmul.f32 %v1439, %v1346
    %1443 = vrot.lane.b32.xlu0 %v1440, 64
    %v1444 = vpop.permute.xlu0 %1443
    %v1446 = vmul.f32 %v1439, %v1444
    %1448 = vrot.lane.b32.xlu0 %v1446, 32
    %v1449 = vpop.permute.xlu0 %1448
    %v1451 = vadd.f32 %v1441, %v1449
    %v1452 = vtanh.pop %v1451
    %1454 = vrot.lane.b32.xlu0 %v1452, 64
    %v1455 = vpop.permute.xlu0 %1454
    %v1457 = vmul.f32 %v1439, %v1455
    %1459 = vrot.lane.b32.xlu0 %v1457, 32
    %v1460 = vpop.permute.xlu0 %1459
    %s1462 = scalar_lea.vmem [#allocation3], 80
    %1463 = vst.msk [vmem:[%s1462] sm:$0xff] %vm310, %v1460
    %s1464 = scalar_lea.vmem [#allocation2], 88
    %v1465 = vld [vmem:[%s1464] sm:$0xff]
    %v1466 = vsel %vm310, %v1460, 0
    %1468 = vmatprep.subr.mxu0 0.0
    %1469 = vmatpush1.msra.mxu0 %v72
    %1470 = vmatprep.subr.mxu0 0.0
    %1471 = vmatpush1.msra.mxu0 %v73
    %1472 = vmatprep.subr.mxu0 0.0
    %1473 = vmatpush1.msra.mxu0 %v74
    %1474 = vmatprep.subr.mxu0 0.0
    %1475 = vmatpush1.msra.mxu0 %v75
    %1476 = vmatprep.subr.mxu0 0.0
    %1477 = vmatpush1.msra.mxu0 0.0
    %1478 = vmatprep.subr.mxu0 0.0
    %1479 = vmatpush1.msra.mxu0 0.0
    %1480 = vmatprep.subr.mxu0 0.0
    %1481 = vmatpush1.msra.mxu0 0.0
    %1482 = vmatprep.subr.mxu0 0.0
    %1483 = vmatpush1.msra.mxu0 0.0
    %1484 = vmatprep.subr.mxu0 0.0
    %1485 = vmatpush1.msra.mxu0 0.0
    %1486 = vmatprep.subr.mxu0 0.0
    %1487 = vmatpush1.msra.mxu0 0.0
    %1488 = vmatprep.subr.mxu0 0.0
    %1489 = vmatpush1.msra.mxu0 0.0
    %1490 = vmatprep.subr.mxu0 0.0
    %1491 = vmatpush1.msra.mxu0 0.0
    %1492 = vmatprep.subr.mxu0 0.0
    %1493 = vmatpush1.msra.mxu0 0.0
    %1494 = vmatprep.subr.mxu0 0.0
    %1495 = vmatpush1.msra.mxu0 0.0
    %1496 = vmatprep.subr.mxu0 0.0
    %1497 = vmatpush1.msra.mxu0 0.0
    %1498 = vmatprep.subr.mxu0 0.0
    %1499 = vmatpush1.msra.mxu0 0.0
    %1500 = vmatprep.subr.mxu0 0.0
    %1501 = vmatpush1.msra.mxu0 0.0
    %1502 = vmatprep.subr.mxu0 0.0
    %1503 = vmatpush1.msra.mxu0 0.0
    %1504 = vmatprep.subr.mxu0 0.0
    %1505 = vmatpush1.msra.mxu0 0.0
    %1506 = vmatprep.subr.mxu0 0.0
    %1507 = vmatpush1.msra.mxu0 0.0
    %1508 = vmatprep.subr.mxu0 0.0
    %1509 = vmatpush1.msra.mxu0 0.0
    %1510 = vmatprep.subr.mxu0 0.0
    %1511 = vmatpush1.msra.mxu0 0.0
    %1512 = vmatprep.subr.mxu0 0.0
    %1513 = vmatpush1.msra.mxu0 0.0
    %1514 = vmatprep.subr.mxu0 0.0
    %1515 = vmatpush1.msra.mxu0 0.0
    %1516 = vmatprep.subr.mxu0 0.0
    %1517 = vmatpush1.msra.mxu0 0.0
    %1518 = vmatprep.subr.mxu0 0.0
    %1519 = vmatpush1.msra.mxu0 0.0
    %1520 = vmatprep.subr.mxu0 0.0
    %1521 = vmatpush1.msra.mxu0 0.0
    %1522 = vmatprep.subr.mxu0 0.0
    %1523 = vmatpush1.msra.mxu0 0.0
    %1524 = vmatprep.subr.mxu0 0.0
    %1525 = vmatpush1.msra.mxu0 0.0
    %1526 = vmatprep.subr.mxu0 0.0
    %1527 = vmatpush1.msra.mxu0 0.0
    %1528 = vmatprep.subr.mxu0 0.0
    %1529 = vmatpush1.msra.mxu0 0.0
    %1530 = vmatprep.subr.mxu0 0.0
    %1531 = vmatpush1.msra.mxu0 0.0
    %1532 = vmatprep.mubr.f32.mxu0 0.0
    %1533 = vmatmul.mubr.f32.gmra.mrb[0].mxu0 %v1466
    %v1534 = vpop.f32.mrb[0].mxu0
    %v1535 = vadd.f32 0.0, %v1534
    %v1536 = vpop.f32.mrb[0].mxu0
    %1537 = vdwg.mxu0
    %v1538 = vadd.f32 %v1465, %v1535
    %v1539 = vxor.u32 %v1538, 2147483648
    %v1540 = vmul.f32 %v1539, 1.442695
    %v1541 = vpow.pop %v1540
    %v1542 = vadd.f32 %v1541, 1.0
    %v1543 = vrcp.pop %v1542
    %v1544 = vmul.f32 1.0, %v1543
    %v1545 = vtanh.pop %v1538
    %v1546 = vmul.f32 %v1544, %v1451
    %1548 = vrot.lane.b32.xlu0 %v1545, 64
    %v1549 = vpop.permute.xlu0 %1548
    %v1551 = vmul.f32 %v1544, %v1549
    %1553 = vrot.lane.b32.xlu0 %v1551, 32
    %v1554 = vpop.permute.xlu0 %1553
    %v1556 = vadd.f32 %v1546, %v1554
    %v1557 = vtanh.pop %v1556
    %1559 = vrot.lane.b32.xlu0 %v1557, 64
    %v1560 = vpop.permute.xlu0 %1559
    %v1562 = vmul.f32 %v1544, %v1560
    %1564 = vrot.lane.b32.xlu0 %v1562, 32
    %v1565 = vpop.permute.xlu0 %1564
    %s1567 = scalar_lea.vmem [#allocation3], 88
    %1568 = vst.msk [vmem:[%s1567] sm:$0xff] %vm310, %v1565
    %s1569 = scalar_lea.vmem [#allocation2], 96
    %v1570 = vld [vmem:[%s1569] sm:$0xff]
    %v1571 = vsel %vm310, %v1565, 0
    %1573 = vmatprep.subr.mxu0 0.0
    %1574 = vmatpush1.msra.mxu0 %v72
    %1575 = vmatprep.subr.mxu0 0.0
    %1576 = vmatpush1.msra.mxu0 %v73
    %1577 = vmatprep.subr.mxu0 0.0
    %1578 = vmatpush1.msra.mxu0 %v74
    %1579 = vmatprep.subr.mxu0 0.0
    %1580 = vmatpush1.msra.mxu0 %v75
    %1581 = vmatprep.subr.mxu0 0.0
    %1582 = vmatpush1.msra.mxu0 0.0
    %1583 = vmatprep.subr.mxu0 0.0
    %1584 = vmatpush1.msra.mxu0 0.0
    %1585 = vmatprep.subr.mxu0 0.0
    %1586 = vmatpush1.msra.mxu0 0.0
    %1587 = vmatprep.subr.mxu0 0.0
    %1588 = vmatpush1.msra.mxu0 0.0
    %1589 = vmatprep.subr.mxu0 0.0
    %1590 = vmatpush1.msra.mxu0 0.0
    %1591 = vmatprep.subr.mxu0 0.0
    %1592 = vmatpush1.msra.mxu0 0.0
    %1593 = vmatprep.subr.mxu0 0.0
    %1594 = vmatpush1.msra.mxu0 0.0
    %1595 = vmatprep.subr.mxu0 0.0
    %1596 = vmatpush1.msra.mxu0 0.0
    %1597 = vmatprep.subr.mxu0 0.0
    %1598 = vmatpush1.msra.mxu0 0.0
    %1599 = vmatprep.subr.mxu0 0.0
    %1600 = vmatpush1.msra.mxu0 0.0
    %1601 = vmatprep.subr.mxu0 0.0
    %1602 = vmatpush1.msra.mxu0 0.0
    %1603 = vmatprep.subr.mxu0 0.0
    %1604 = vmatpush1.msra.mxu0 0.0
    %1605 = vmatprep.subr.mxu0 0.0
    %1606 = vmatpush1.msra.mxu0 0.0
    %1607 = vmatprep.subr.mxu0 0.0
    %1608 = vmatpush1.msra.mxu0 0.0
    %1609 = vmatprep.subr.mxu0 0.0
    %1610 = vmatpush1.msra.mxu0 0.0
    %1611 = vmatprep.subr.mxu0 0.0
    %1612 = vmatpush1.msra.mxu0 0.0
    %1613 = vmatprep.subr.mxu0 0.0
    %1614 = vmatpush1.msra.mxu0 0.0
    %1615 = vmatprep.subr.mxu0 0.0
    %1616 = vmatpush1.msra.mxu0 0.0
    %1617 = vmatprep.subr.mxu0 0.0
    %1618 = vmatpush1.msra.mxu0 0.0
    %1619 = vmatprep.subr.mxu0 0.0
    %1620 = vmatpush1.msra.mxu0 0.0
    %1621 = vmatprep.subr.mxu0 0.0
    %1622 = vmatpush1.msra.mxu0 0.0
    %1623 = vmatprep.subr.mxu0 0.0
    %1624 = vmatpush1.msra.mxu0 0.0
    %1625 = vmatprep.subr.mxu0 0.0
    %1626 = vmatpush1.msra.mxu0 0.0
    %1627 = vmatprep.subr.mxu0 0.0
    %1628 = vmatpush1.msra.mxu0 0.0
    %1629 = vmatprep.subr.mxu0 0.0
    %1630 = vmatpush1.msra.mxu0 0.0
    %1631 = vmatprep.subr.mxu0 0.0
    %1632 = vmatpush1.msra.mxu0 0.0
    %1633 = vmatprep.subr.mxu0 0.0
    %1634 = vmatpush1.msra.mxu0 0.0
    %1635 = vmatprep.subr.mxu0 0.0
    %1636 = vmatpush1.msra.mxu0 0.0
    %1637 = vmatprep.mubr.f32.mxu0 0.0
    %1638 = vmatmul.mubr.f32.gmra.mrb[0].mxu0 %v1571
    %v1639 = vpop.f32.mrb[0].mxu0
    %v1640 = vadd.f32 0.0, %v1639
    %v1641 = vpop.f32.mrb[0].mxu0
    %1642 = vdwg.mxu0
    %v1643 = vadd.f32 %v1570, %v1640
    %v1644 = vxor.u32 %v1643, 2147483648
    %v1645 = vmul.f32 %v1644, 1.442695
    %v1646 = vpow.pop %v1645
    %v1647 = vadd.f32 %v1646, 1.0
    %v1648 = vrcp.pop %v1647
    %v1649 = vmul.f32 1.0, %v1648
    %v1650 = vtanh.pop %v1643
    %v1651 = vmul.f32 %v1649, %v1556
    %1653 = vrot.lane.b32.xlu0 %v1650, 64
    %v1654 = vpop.permute.xlu0 %1653
    %v1656 = vmul.f32 %v1649, %v1654
    %1658 = vrot.lane.b32.xlu0 %v1656, 32
    %v1659 = vpop.permute.xlu0 %1658
    %v1661 = vadd.f32 %v1651, %v1659
    %v1662 = vtanh.pop %v1661
    %1664 = vrot.lane.b32.xlu0 %v1662, 64
    %v1665 = vpop.permute.xlu0 %1664
    %v1667 = vmul.f32 %v1649, %v1665
    %1669 = vrot.lane.b32.xlu0 %v1667, 32
    %v1670 = vpop.permute.xlu0 %1669
    %s1672 = scalar_lea.vmem [#allocation3], 96
    %1673 = vst.msk [vmem:[%s1672] sm:$0xff] %vm310, %v1670
    %s1674 = scalar_lea.vmem [#allocation2], 104
    %v1675 = vld [vmem:[%s1674] sm:$0xff]
    %v1676 = vsel %vm310, %v1670, 0
    %1678 = vmatprep.subr.mxu0 0.0
    %1679 = vmatpush1.msra.mxu0 %v72
    %1680 = vmatprep.subr.mxu0 0.0
    %1681 = vmatpush1.msra.mxu0 %v73
    %1682 = vmatprep.subr.mxu0 0.0
    %1683 = vmatpush1.msra.mxu0 %v74
    %1684 = vmatprep.subr.mxu0 0.0
    %1685 = vmatpush1.msra.mxu0 %v75
    %1686 = vmatprep.subr.mxu0 0.0
    %1687 = vmatpush1.msra.mxu0 0.0
    %1688 = vmatprep.subr.mxu0 0.0
    %1689 = vmatpush1.msra.mxu0 0.0
    %1690 = vmatprep.subr.mxu0 0.0
    %1691 = vmatpush1.msra.mxu0 0.0
    %1692 = vmatprep.subr.mxu0 0.0
    %1693 = vmatpush1.msra.mxu0 0.0
    %1694 = vmatprep.subr.mxu0 0.0
    %1695 = vmatpush1.msra.mxu0 0.0
    %1696 = vmatprep.subr.mxu0 0.0
    %1697 = vmatpush1.msra.mxu0 0.0
    %1698 = vmatprep.subr.mxu0 0.0
    %1699 = vmatpush1.msra.mxu0 0.0
    %1700 = vmatprep.subr.mxu0 0.0
    %1701 = vmatpush1.msra.mxu0 0.0
    %1702 = vmatprep.subr.mxu0 0.0
    %1703 = vmatpush1.msra.mxu0 0.0
    %1704 = vmatprep.subr.mxu0 0.0
    %1705 = vmatpush1.msra.mxu0 0.0
    %1706 = vmatprep.subr.mxu0 0.0
    %1707 = vmatpush1.msra.mxu0 0.0
    %1708 = vmatprep.subr.mxu0 0.0
    %1709 = vmatpush1.msra.mxu0 0.0
    %1710 = vmatprep.subr.mxu0 0.0
    %1711 = vmatpush1.msra.mxu0 0.0
    %1712 = vmatprep.subr.mxu0 0.0
    %1713 = vmatpush1.msra.mxu0 0.0
    %1714 = vmatprep.subr.mxu0 0.0
    %1715 = vmatpush1.msra.mxu0 0.0
    %1716 = vmatprep.subr.mxu0 0.0
    %1717 = vmatpush1.msra.mxu0 0.0
    %1718 = vmatprep.subr.mxu0 0.0
    %1719 = vmatpush1.msra.mxu0 0.0
    %1720 = vmatprep.subr.mxu0 0.0
    %1721 = vmatpush1.msra.mxu0 0.0
    %1722 = vmatprep.subr.mxu0 0.0
    %1723 = vmatpush1.msra.mxu0 0.0
    %1724 = vmatprep.subr.mxu0 0.0
    %1725 = vmatpush1.msra.mxu0 0.0
    %1726 = vmatprep.subr.mxu0 0.0
    %1727 = vmatpush1.msra.mxu0 0.0
    %1728 = vmatprep.subr.mxu0 0.0
    %1729 = vmatpush1.msra.mxu0 0.0
    %1730 = vmatprep.subr.mxu0 0.0
    %1731 = vmatpush1.msra.mxu0 0.0
    %1732 = vmatprep.subr.mxu0 0.0
    %1733 = vmatpush1.msra.mxu0 0.0
    %1734 = vmatprep.subr.mxu0 0.0
    %1735 = vmatpush1.msra.mxu0 0.0
    %1736 = vmatprep.subr.mxu0 0.0
    %1737 = vmatpush1.msra.mxu0 0.0
    %1738 = vmatprep.subr.mxu0 0.0
    %1739 = vmatpush1.msra.mxu0 0.0
    %1740 = vmatprep.subr.mxu0 0.0
    %1741 = vmatpush1.msra.mxu0 0.0
    %1742 = vmatprep.mubr.f32.mxu0 0.0
    %1743 = vmatmul.mubr.f32.gmra.mrb[0].mxu0 %v1676
    %v1744 = vpop.f32.mrb[0].mxu0
    %v1745 = vadd.f32 0.0, %v1744
    %v1746 = vpop.f32.mrb[0].mxu0
    %1747 = vdwg.mxu0
    %v1748 = vadd.f32 %v1675, %v1745
    %v1749 = vxor.u32 %v1748, 2147483648
    %v1750 = vmul.f32 %v1749, 1.442695
    %v1751 = vpow.pop %v1750
    %v1752 = vadd.f32 %v1751, 1.0
    %v1753 = vrcp.pop %v1752
    %v1754 = vmul.f32 1.0, %v1753
    %v1755 = vtanh.pop %v1748
    %v1756 = vmul.f32 %v1754, %v1661
    %1758 = vrot.lane.b32.xlu0 %v1755, 64
    %v1759 = vpop.permute.xlu0 %1758
    %v1761 = vmul.f32 %v1754, %v1759
    %1763 = vrot.lane.b32.xlu0 %v1761, 32
    %v1764 = vpop.permute.xlu0 %1763
    %v1766 = vadd.f32 %v1756, %v1764
    %v1767 = vtanh.pop %v1766
    %1769 = vrot.lane.b32.xlu0 %v1767, 64
    %v1770 = vpop.permute.xlu0 %1769
    %v1772 = vmul.f32 %v1754, %v1770
    %1774 = vrot.lane.b32.xlu0 %v1772, 32
    %v1775 = vpop.permute.xlu0 %1774
    %s1777 = scalar_lea.vmem [#allocation3], 104
    %1778 = vst.msk [vmem:[%s1777] sm:$0xff] %vm310, %v1775
    %s1779 = scalar_lea.vmem [#allocation2], 112
    %v1780 = vld [vmem:[%s1779] sm:$0xff]
    %v1781 = vsel %vm310, %v1775, 0
    %1783 = vmatprep.subr.mxu0 0.0
    %1784 = vmatpush1.msra.mxu0 %v72
    %1785 = vmatprep.subr.mxu0 0.0
    %1786 = vmatpush1.msra.mxu0 %v73
    %1787 = vmatprep.subr.mxu0 0.0
    %1788 = vmatpush1.msra.mxu0 %v74
    %1789 = vmatprep.subr.mxu0 0.0
    %1790 = vmatpush1.msra.mxu0 %v75
    %1791 = vmatprep.subr.mxu0 0.0
    %1792 = vmatpush1.msra.mxu0 0.0
    %1793 = vmatprep.subr.mxu0 0.0
    %1794 = vmatpush1.msra.mxu0 0.0
    %1795 = vmatprep.subr.mxu0 0.0
    %1796 = vmatpush1.msra.mxu0 0.0
    %1797 = vmatprep.subr.mxu0 0.0
    %1798 = vmatpush1.msra.mxu0 0.0
    %1799 = vmatprep.subr.mxu0 0.0
    %1800 = vmatpush1.msra.mxu0 0.0
    %1801 = vmatprep.subr.mxu0 0.0
    %1802 = vmatpush1.msra.mxu0 0.0
    %1803 = vmatprep.subr.mxu0 0.0
    %1804 = vmatpush1.msra.mxu0 0.0
    %1805 = vmatprep.subr.mxu0 0.0
    %1806 = vmatpush1.msra.mxu0 0.0
    %1807 = vmatprep.subr.mxu0 0.0
    %1808 = vmatpush1.msra.mxu0 0.0
    %1809 = vmatprep.subr.mxu0 0.0
    %1810 = vmatpush1.msra.mxu0 0.0
    %1811 = vmatprep.subr.mxu0 0.0
    %1812 = vmatpush1.msra.mxu0 0.0
    %1813 = vmatprep.subr.mxu0 0.0
    %1814 = vmatpush1.msra.mxu0 0.0
    %1815 = vmatprep.subr.mxu0 0.0
    %1816 = vmatpush1.msra.mxu0 0.0
    %1817 = vmatprep.subr.mxu0 0.0
    %1818 = vmatpush1.msra.mxu0 0.0
    %1819 = vmatprep.subr.mxu0 0.0
    %1820 = vmatpush1.msra.mxu0 0.0
    %1821 = vmatprep.subr.mxu0 0.0
    %1822 = vmatpush1.msra.mxu0 0.0
    %1823 = vmatprep.subr.mxu0 0.0
    %1824 = vmatpush1.msra.mxu0 0.0
    %1825 = vmatprep.subr.mxu0 0.0
    %1826 = vmatpush1.msra.mxu0 0.0
    %1827 = vmatprep.subr.mxu0 0.0
    %1828 = vmatpush1.msra.mxu0 0.0
    %1829 = vmatprep.subr.mxu0 0.0
    %1830 = vmatpush1.msra.mxu0 0.0
    %1831 = vmatprep.subr.mxu0 0.0
    %1832 = vmatpush1.msra.mxu0 0.0
    %1833 = vmatprep.subr.mxu0 0.0
    %1834 = vmatpush1.msra.mxu0 0.0
    %1835 = vmatprep.subr.mxu0 0.0
    %1836 = vmatpush1.msra.mxu0 0.0
    %1837 = vmatprep.subr.mxu0 0.0
    %1838 = vmatpush1.msra.mxu0 0.0
    %1839 = vmatprep.subr.mxu0 0.0
    %1840 = vmatpush1.msra.mxu0 0.0
    %1841 = vmatprep.subr.mxu0 0.0
    %1842 = vmatpush1.msra.mxu0 0.0
    %1843 = vmatprep.subr.mxu0 0.0
    %1844 = vmatpush1.msra.mxu0 0.0
    %1845 = vmatprep.subr.mxu0 0.0
    %1846 = vmatpush1.msra.mxu0 0.0
    %1847 = vmatprep.mubr.f32.mxu0 0.0
    %1848 = vmatmul.mubr.f32.gmra.mrb[0].mxu0 %v1781
    %v1849 = vpop.f32.mrb[0].mxu0
    %v1850 = vadd.f32 0.0, %v1849
    %v1851 = vpop.f32.mrb[0].mxu0
    %1852 = vdwg.mxu0
    %v1853 = vadd.f32 %v1780, %v1850
    %v1854 = vxor.u32 %v1853, 2147483648
    %v1855 = vmul.f32 %v1854, 1.442695
    %v1856 = vpow.pop %v1855
    %v1857 = vadd.f32 %v1856, 1.0
    %v1858 = vrcp.pop %v1857
    %v1859 = vmul.f32 1.0, %v1858
    %v1860 = vtanh.pop %v1853
    %v1861 = vmul.f32 %v1859, %v1766
    %1863 = vrot.lane.b32.xlu0 %v1860, 64
    %v1864 = vpop.permute.xlu0 %1863
    %v1866 = vmul.f32 %v1859, %v1864
    %1868 = vrot.lane.b32.xlu0 %v1866, 32
    %v1869 = vpop.permute.xlu0 %1868
    %v1871 = vadd.f32 %v1861, %v1869
    %v1872 = vtanh.pop %v1871
    %1874 = vrot.lane.b32.xlu0 %v1872, 64
    %v1875 = vpop.permute.xlu0 %1874
    %v1877 = vmul.f32 %v1859, %v1875
    %1879 = vrot.lane.b32.xlu0 %v1877, 32
    %v1880 = vpop.permute.xlu0 %1879
    %s1882 = scalar_lea.vmem [#allocation3], 112
    %1883 = vst.msk [vmem:[%s1882] sm:$0xff] %vm310, %v1880
    %s1884 = scalar_lea.vmem [#allocation2], 120
    %v1885 = vld [vmem:[%s1884] sm:$0xff]
    %v1886 = vsel %vm310, %v1880, 0
    %1888 = vmatprep.subr.mxu0 0.0
    %1889 = vmatpush1.msra.mxu0 %v72
    %1890 = vmatprep.subr.mxu0 0.0
    %1891 = vmatpush1.msra.mxu0 %v73
    %1892 = vmatprep.subr.mxu0 0.0
    %1893 = vmatpush1.msra.mxu0 %v74
    %1894 = vmatprep.subr.mxu0 0.0
    %1895 = vmatpush1.msra.mxu0 %v75
    %1896 = vmatprep.subr.mxu0 0.0
    %1897 = vmatpush1.msra.mxu0 0.0
    %1898 = vmatprep.subr.mxu0 0.0
    %1899 = vmatpush1.msra.mxu0 0.0
    %1900 = vmatprep.subr.mxu0 0.0
    %1901 = vmatpush1.msra.mxu0 0.0
    %1902 = vmatprep.subr.mxu0 0.0
    %1903 = vmatpush1.msra.mxu0 0.0
    %1904 = vmatprep.subr.mxu0 0.0
    %1905 = vmatpush1.msra.mxu0 0.0
    %1906 = vmatprep.subr.mxu0 0.0
    %1907 = vmatpush1.msra.mxu0 0.0
    %1908 = vmatprep.subr.mxu0 0.0
    %1909 = vmatpush1.msra.mxu0 0.0
    %1910 = vmatprep.subr.mxu0 0.0
    %1911 = vmatpush1.msra.mxu0 0.0
    %1912 = vmatprep.subr.mxu0 0.0
    %1913 = vmatpush1.msra.mxu0 0.0
    %1914 = vmatprep.subr.mxu0 0.0
    %1915 = vmatpush1.msra.mxu0 0.0
    %1916 = vmatprep.subr.mxu0 0.0
    %1917 = vmatpush1.msra.mxu0 0.0
    %1918 = vmatprep.subr.mxu0 0.0
    %1919 = vmatpush1.msra.mxu0 0.0
    %1920 = vmatprep.subr.mxu0 0.0
    %1921 = vmatpush1.msra.mxu0 0.0
    %1922 = vmatprep.subr.mxu0 0.0
    %1923 = vmatpush1.msra.mxu0 0.0
    %1924 = vmatprep.subr.mxu0 0.0
    %1925 = vmatpush1.msra.mxu0 0.0
    %1926 = vmatprep.subr.mxu0 0.0
    %1927 = vmatpush1.msra.mxu0 0.0
    %1928 = vmatprep.subr.mxu0 0.0
    %1929 = vmatpush1.msra.mxu0 0.0
    %1930 = vmatprep.subr.mxu0 0.0
    %1931 = vmatpush1.msra.mxu0 0.0
    %1932 = vmatprep.subr.mxu0 0.0
    %1933 = vmatpush1.msra.mxu0 0.0
    %1934 = vmatprep.subr.mxu0 0.0
    %1935 = vmatpush1.msra.mxu0 0.0
    %1936 = vmatprep.subr.mxu0 0.0
    %1937 = vmatpush1.msra.mxu0 0.0
    %1938 = vmatprep.subr.mxu0 0.0
    %1939 = vmatpush1.msra.mxu0 0.0
    %1940 = vmatprep.subr.mxu0 0.0
    %1941 = vmatpush1.msra.mxu0 0.0
    %1942 = vmatprep.subr.mxu0 0.0
    %1943 = vmatpush1.msra.mxu0 0.0
    %1944 = vmatprep.subr.mxu0 0.0
    %1945 = vmatpush1.msra.mxu0 0.0
    %1946 = vmatprep.subr.mxu0 0.0
    %1947 = vmatpush1.msra.mxu0 0.0
    %1948 = vmatprep.subr.mxu0 0.0
    %1949 = vmatpush1.msra.mxu0 0.0
    %1950 = vmatprep.subr.mxu0 0.0
    %1951 = vmatpush1.msra.mxu0 0.0
    %1952 = vmatprep.mubr.f32.mxu0 0.0
    %1953 = vmatmul.mubr.f32.gmra.mrb[0].mxu0 %v1886
    %v1954 = vpop.f32.mrb[0].mxu0
    %v1955 = vadd.f32 0.0, %v1954
    %v1956 = vpop.f32.mrb[0].mxu0
    %1957 = vdwg.mxu0
    %v1958 = vadd.f32 %v1885, %v1955
    %v1959 = vxor.u32 %v1958, 2147483648
    %v1960 = vmul.f32 %v1959, 1.442695
    %v1961 = vpow.pop %v1960
    %v1962 = vadd.f32 %v1961, 1.0
    %v1963 = vrcp.pop %v1962
    %v1964 = vmul.f32 1.0, %v1963
    %v1965 = vtanh.pop %v1958
    %v1966 = vmul.f32 %v1964, %v1871
    %1968 = vrot.lane.b32.xlu0 %v1965, 64
    %v1969 = vpop.permute.xlu0 %1968
    %v1971 = vmul.f32 %v1964, %v1969
    %1973 = vrot.lane.b32.xlu0 %v1971, 32
    %v1974 = vpop.permute.xlu0 %1973
    %v1976 = vadd.f32 %v1966, %v1974
    %v1977 = vtanh.pop %v1976
    %1979 = vrot.lane.b32.xlu0 %v1977, 64
    %v1980 = vpop.permute.xlu0 %1979
    %v1982 = vmul.f32 %v1964, %v1980
    %1984 = vrot.lane.b32.xlu0 %v1982, 32
    %v1985 = vpop.permute.xlu0 %1984
    %s1987 = scalar_lea.vmem [#allocation3], 120
    %1988 = vst.msk [vmem:[%s1987] sm:$0xff] %vm310, %v1985
    %v1989 = vld [vmem:[%s4] sm:$0xff]
    %v1990 = vld [vmem:[%s4 + $0x8] sm:$0xff]
    %v1991 = vld [vmem:[%s4 + $0x10] sm:$0xff]
    %v1992 = vld [vmem:[%s4 + $0x18] sm:$0xff]
    %v1993 = vld [vmem:[%s5] sm:$0xff]
    %v1994 = vld [vmem:[%s5 + $0x8] sm:$0xff]
    %v1995 = vld [vmem:[%s5 + $0x10] sm:$0xff]
    %v1996 = vld [vmem:[%s5 + $0x18] sm:$0xff]
    %v1997 = vld [vmem:[%s6] sm:$0x1]
    %v1998 = vld [vmem:[#allocation3] sm:$0xff]
    %v1999 = vld [vmem:[#allocation3 + $0x8] sm:$0xff]
    %v2000 = vld [vmem:[#allocation3 + $0x10] sm:$0xff]
    %v2001 = vld [vmem:[#allocation3 + $0x18] sm:$0xff]
    %v2002 = vld [vmem:[#allocation3 + $0x20] sm:$0xff]
    %v2003 = vld [vmem:[#allocation3 + $0x28] sm:$0xff]
    %v2004 = vld [vmem:[#allocation3 + $0x30] sm:$0xff]
    %v2005 = vld [vmem:[#allocation3 + $0x38] sm:$0xff]
    %v2006 = vld [vmem:[#allocation3 + $0x40] sm:$0xff]
    %v2007 = vld [vmem:[#allocation3 + $0x48] sm:$0xff]
    %v2008 = vld [vmem:[#allocation3 + $0x50] sm:$0xff]
    %v2009 = vld [vmem:[#allocation3 + $0x58] sm:$0xff]
    %v2010 = vld [vmem:[#allocation3 + $0x60] sm:$0xff]
    %v2011 = vld [vmem:[#allocation3 + $0x68] sm:$0xff]
    %v2012 = vld [vmem:[#allocation3 + $0x70] sm:$0xff]
    %v2013 = vld [vmem:[#allocation3 + $0x78] sm:$0xff]
    %v2015 = vlaneseq
    %v2016 = vshrl.u32 %v2015, 7
    %v2017 = vsub.s32 0, %v2016
    %v2018 = vrot.slane %v1997, %v2017
    %v2021 = vsel %vm310, %v1998, 0
    %v2024 = vsel %vm310, %v1999, 0
    %v2027 = vsel %vm310, %v2000, 0
    %v2030 = vsel %vm310, %v2001, 0
    %v2033 = vsel %vm310, %v2002, 0
    %v2036 = vsel %vm310, %v2003, 0
    %v2039 = vsel %vm310, %v2004, 0
    %v2042 = vsel %vm310, %v2005, 0
    %v2045 = vsel %vm310, %v2006, 0
    %v2048 = vsel %vm310, %v2007, 0
    %v2051 = vsel %vm310, %v2008, 0
    %v2054 = vsel %vm310, %v2009, 0
    %v2057 = vsel %vm310, %v2010, 0
    %v2060 = vsel %vm310, %v2011, 0
    %v2063 = vsel %vm310, %v2012, 0
    %v2066 = vsel %vm310, %v2013, 0
    %2068 = vmatprep.subr.mxu0 0.0
    %2069 = vmatpush1.msra.mxu0 %v1989
    %2070 = vmatprep.subr.mxu0 0.0
    %2071 = vmatpush1.msra.mxu0 %v1990
    %2072 = vmatprep.subr.mxu0 0.0
    %2073 = vmatpush1.msra.mxu0 %v1991
    %2074 = vmatprep.subr.mxu0 0.0
    %2075 = vmatpush1.msra.mxu0 %v1992
    %2076 = vmatprep.subr.mxu0 0.0
    %2077 = vmatpush1.msra.mxu0 0.0
    %2078 = vmatprep.subr.mxu0 0.0
    %2079 = vmatpush1.msra.mxu0 0.0
    %2080 = vmatprep.subr.mxu0 0.0
    %2081 = vmatpush1.msra.mxu0 0.0
    %2082 = vmatprep.subr.mxu0 0.0
    %2083 = vmatpush1.msra.mxu0 0.0
    %2084 = vmatprep.subr.mxu0 0.0
    %2085 = vmatpush1.msra.mxu0 0.0
    %2086 = vmatprep.subr.mxu0 0.0
    %2087 = vmatpush1.msra.mxu0 0.0
    %2088 = vmatprep.subr.mxu0 0.0
    %2089 = vmatpush1.msra.mxu0 0.0
    %2090 = vmatprep.subr.mxu0 0.0
    %2091 = vmatpush1.msra.mxu0 0.0
    %2092 = vmatprep.subr.mxu0 0.0
    %2093 = vmatpush1.msra.mxu0 0.0
    %2094 = vmatprep.subr.mxu0 0.0
    %2095 = vmatpush1.msra.mxu0 0.0
    %2096 = vmatprep.subr.mxu0 0.0
    %2097 = vmatpush1.msra.mxu0 0.0
    %2098 = vmatprep.subr.mxu0 0.0
    %2099 = vmatpush1.msra.mxu0 0.0
    %2100 = vmatprep.subr.mxu0 0.0
    %2101 = vmatpush1.msra.mxu0 0.0
    %2102 = vmatprep.subr.mxu0 0.0
    %2103 = vmatpush1.msra.mxu0 0.0
    %2104 = vmatprep.subr.mxu0 0.0
    %2105 = vmatpush1.msra.mxu0 0.0
    %2106 = vmatprep.subr.mxu0 0.0
    %2107 = vmatpush1.msra.mxu0 0.0
    %2108 = vmatprep.subr.mxu0 0.0
    %2109 = vmatpush1.msra.mxu0 0.0
    %2110 = vmatprep.subr.mxu0 0.0
    %2111 = vmatpush1.msra.mxu0 0.0
    %2112 = vmatprep.subr.mxu0 0.0
    %2113 = vmatpush1.msra.mxu0 0.0
    %2114 = vmatprep.subr.mxu0 0.0
    %2115 = vmatpush1.msra.mxu0 0.0
    %2116 = vmatprep.subr.mxu0 0.0
    %2117 = vmatpush1.msra.mxu0 0.0
    %2118 = vmatprep.subr.mxu0 0.0
    %2119 = vmatpush1.msra.mxu0 0.0
    %2120 = vmatprep.subr.mxu0 0.0
    %2121 = vmatpush1.msra.mxu0 0.0
    %2122 = vmatprep.subr.mxu0 0.0
    %2123 = vmatpush1.msra.mxu0 0.0
    %2124 = vmatprep.subr.mxu0 0.0
    %2125 = vmatpush1.msra.mxu0 0.0
    %2126 = vmatprep.subr.mxu0 0.0
    %2127 = vmatpush1.msra.mxu0 0.0
    %2128 = vmatprep.subr.mxu0 0.0
    %2129 = vmatpush1.msra.mxu0 0.0
    %2130 = vmatprep.subr.mxu0 0.0
    %2131 = vmatpush1.msra.mxu0 0.0
    %2132 = vmatprep.mubr.f32.mxu0 0.0
    %2133 = vmatmul.mubr.f32.gmra.mrb[0].mxu0 %v2021
    %v2134 = vpop.f32.mrb[0].mxu0
    %v2135 = vadd.f32 %v2018, %v2134
    %v2136 = vpop.f32.mrb[0].mxu0
    %2137 = vmatprep.mubr.f32.mxu0 0.0
    %2138 = vmatmul.mubr.f32.gmra.mrb[0].mxu0 %v2024
    %v2139 = vpop.f32.mrb[0].mxu0
    %v2140 = vadd.f32 %v2018, %v2139
    %v2141 = vpop.f32.mrb[0].mxu0
    %2142 = vmatprep.mubr.f32.mxu0 0.0
    %2143 = vmatmul.mubr.f32.gmra.mrb[0].mxu0 %v2027
    %v2144 = vpop.f32.mrb[0].mxu0
    %v2145 = vadd.f32 %v2018, %v2144
    %v2146 = vpop.f32.mrb[0].mxu0
    %2147 = vmatprep.mubr.f32.mxu0 0.0
    %2148 = vmatmul.mubr.f32.gmra.mrb[0].mxu0 %v2030
    %v2149 = vpop.f32.mrb[0].mxu0
    %v2150 = vadd.f32 %v2018, %v2149
    %v2151 = vpop.f32.mrb[0].mxu0
    %2152 = vmatprep.mubr.f32.mxu0 0.0
    %2153 = vmatmul.mubr.f32.gmra.mrb[0].mxu0 %v2033
    %v2154 = vpop.f32.mrb[0].mxu0
    %v2155 = vadd.f32 %v2018, %v2154
    %v2156 = vpop.f32.mrb[0].mxu0
    %2157 = vmatprep.mubr.f32.mxu0 0.0
    %2158 = vmatmul.mubr.f32.gmra.mrb[0].mxu0 %v2036
    %v2159 = vpop.f32.mrb[0].mxu0
    %v2160 = vadd.f32 %v2018, %v2159
    %v2161 = vpop.f32.mrb[0].mxu0
    %2162 = vmatprep.mubr.f32.mxu0 0.0
    %2163 = vmatmul.mubr.f32.gmra.mrb[0].mxu0 %v2039
    %v2164 = vpop.f32.mrb[0].mxu0
    %v2165 = vadd.f32 %v2018, %v2164
    %v2166 = vpop.f32.mrb[0].mxu0
    %2167 = vmatprep.mubr.f32.mxu0 0.0
    %2168 = vmatmul.mubr.f32.gmra.mrb[0].mxu0 %v2042
    %v2169 = vpop.f32.mrb[0].mxu0
    %v2170 = vadd.f32 %v2018, %v2169
    %v2171 = vpop.f32.mrb[0].mxu0
    %2172 = vmatprep.mubr.f32.mxu0 0.0
    %2173 = vmatmul.mubr.f32.gmra.mrb[0].mxu0 %v2045
    %v2174 = vpop.f32.mrb[0].mxu0
    %v2175 = vadd.f32 %v2018, %v2174
    %v2176 = vpop.f32.mrb[0].mxu0
    %2177 = vmatprep.mubr.f32.mxu0 0.0
    %2178 = vmatmul.mubr.f32.gmra.mrb[0].mxu0 %v2048
    %v2179 = vpop.f32.mrb[0].mxu0
    %v2180 = vadd.f32 %v2018, %v2179
    %v2181 = vpop.f32.mrb[0].mxu0
    %2182 = vmatprep.mubr.f32.mxu0 0.0
    %2183 = vmatmul.mubr.f32.gmra.mrb[0].mxu0 %v2051
    %v2184 = vpop.f32.mrb[0].mxu0
    %v2185 = vadd.f32 %v2018, %v2184
    %v2186 = vpop.f32.mrb[0].mxu0
    %2187 = vmatprep.mubr.f32.mxu0 0.0
    %2188 = vmatmul.mubr.f32.gmra.mrb[0].mxu0 %v2054
    %v2189 = vpop.f32.mrb[0].mxu0
    %v2190 = vadd.f32 %v2018, %v2189
    %v2191 = vpop.f32.mrb[0].mxu0
    %2192 = vmatprep.mubr.f32.mxu0 0.0
    %2193 = vmatmul.mubr.f32.gmra.mrb[0].mxu0 %v2057
    %v2194 = vpop.f32.mrb[0].mxu0
    %v2195 = vadd.f32 %v2018, %v2194
    %v2196 = vpop.f32.mrb[0].mxu0
    %2197 = vmatprep.mubr.f32.mxu0 0.0
    %2198 = vmatmul.mubr.f32.gmra.mrb[0].mxu0 %v2060
    %v2199 = vpop.f32.mrb[0].mxu0
    %v2200 = vadd.f32 %v2018, %v2199
    %v2201 = vpop.f32.mrb[0].mxu0
    %2202 = vmatprep.mubr.f32.mxu0 0.0
    %2203 = vmatmul.mubr.f32.gmra.mrb[0].mxu0 %v2063
    %v2204 = vpop.f32.mrb[0].mxu0
    %v2205 = vadd.f32 %v2018, %v2204
    %v2206 = vpop.f32.mrb[0].mxu0
    %2207 = vmatprep.mubr.f32.mxu0 0.0
    %2208 = vmatmul.mubr.f32.gmra.mrb[0].mxu0 %v2066
    %v2209 = vpop.f32.mrb[0].mxu0
    %v2210 = vadd.f32 %v2018, %v2209
    %v2211 = vpop.f32.mrb[0].mxu0
    %2212 = vdwg.mxu0
    %2213 = vst [vmem:[#allocation2] sm:$0xff] %v2135
    %2214 = vst [vmem:[#allocation2 + $0x8] sm:$0xff] %v2140
    %2215 = vst [vmem:[#allocation2 + $0x10] sm:$0xff] %v2145
    %2216 = vst [vmem:[#allocation2 + $0x18] sm:$0xff] %v2150
    %2217 = vst [vmem:[#allocation2 + $0x20] sm:$0xff] %v2155
    %2218 = vst [vmem:[#allocation2 + $0x28] sm:$0xff] %v2160
    %2219 = vst [vmem:[#allocation2 + $0x30] sm:$0xff] %v2165
    %2220 = vst [vmem:[#allocation2 + $0x38] sm:$0xff] %v2170
    %2221 = vst [vmem:[#allocation2 + $0x40] sm:$0xff] %v2175
    %2222 = vst [vmem:[#allocation2 + $0x48] sm:$0xff] %v2180
    %2223 = vst [vmem:[#allocation2 + $0x50] sm:$0xff] %v2185
    %2224 = vst [vmem:[#allocation2 + $0x58] sm:$0xff] %v2190
    %2225 = vst [vmem:[#allocation2 + $0x60] sm:$0xff] %v2195
    %2226 = vst [vmem:[#allocation2 + $0x68] sm:$0xff] %v2200
    %2227 = vst [vmem:[#allocation2 + $0x70] sm:$0xff] %v2205
    %2228 = vst [vmem:[#allocation2 + $0x78] sm:$0xff] %v2210
    %v2229 = vld [vmem:[#allocation2] sm:$0xff]
    %2230 = vmatprep.subr.mxu0 0.0
    %2231 = vmatpush1.msra.mxu0 %v1993
    %2232 = vmatprep.subr.mxu0 0.0
    %2233 = vmatpush1.msra.mxu0 %v1994
    %2234 = vmatprep.subr.mxu0 0.0
    %2235 = vmatpush1.msra.mxu0 %v1995
    %2236 = vmatprep.subr.mxu0 0.0
    %2237 = vmatpush1.msra.mxu0 %v1996
    %2238 = vmatprep.subr.mxu0 0.0
    %2239 = vmatpush1.msra.mxu0 0.0
    %2240 = vmatprep.subr.mxu0 0.0
    %2241 = vmatpush1.msra.mxu0 0.0
    %2242 = vmatprep.subr.mxu0 0.0
    %2243 = vmatpush1.msra.mxu0 0.0
    %2244 = vmatprep.subr.mxu0 0.0
    %2245 = vmatpush1.msra.mxu0 0.0
    %2246 = vmatprep.subr.mxu0 0.0
    %2247 = vmatpush1.msra.mxu0 0.0
    %2248 = vmatprep.subr.mxu0 0.0
    %2249 = vmatpush1.msra.mxu0 0.0
    %2250 = vmatprep.subr.mxu0 0.0
    %2251 = vmatpush1.msra.mxu0 0.0
    %2252 = vmatprep.subr.mxu0 0.0
    %2253 = vmatpush1.msra.mxu0 0.0
    %2254 = vmatprep.subr.mxu0 0.0
    %2255 = vmatpush1.msra.mxu0 0.0
    %2256 = vmatprep.subr.mxu0 0.0
    %2257 = vmatpush1.msra.mxu0 0.0
    %2258 = vmatprep.subr.mxu0 0.0
    %2259 = vmatpush1.msra.mxu0 0.0
    %2260 = vmatprep.subr.mxu0 0.0
    %2261 = vmatpush1.msra.mxu0 0.0
    %2262 = vmatprep.subr.mxu0 0.0
    %2263 = vmatpush1.msra.mxu0 0.0
    %2264 = vmatprep.subr.mxu0 0.0
    %2265 = vmatpush1.msra.mxu0 0.0
    %2266 = vmatprep.subr.mxu0 0.0
    %2267 = vmatpush1.msra.mxu0 0.0
    %2268 = vmatprep.subr.mxu0 0.0
    %2269 = vmatpush1.msra.mxu0 0.0
    %2270 = vmatprep.subr.mxu0 0.0
    %2271 = vmatpush1.msra.mxu0 0.0
    %2272 = vmatprep.subr.mxu0 0.0
    %2273 = vmatpush1.msra.mxu0 0.0
    %2274 = vmatprep.subr.mxu0 0.0
    %2275 = vmatpush1.msra.mxu0 0.0
    %2276 = vmatprep.subr.mxu0 0.0
    %2277 = vmatpush1.msra.mxu0 0.0
    %2278 = vmatprep.subr.mxu0 0.0
    %2279 = vmatpush1.msra.mxu0 0.0
    %2280 = vmatprep.subr.mxu0 0.0
    %2281 = vmatpush1.msra.mxu0 0.0
    %2282 = vmatprep.subr.mxu0 0.0
    %2283 = vmatpush1.msra.mxu0 0.0
    %2284 = vmatprep.subr.mxu0 0.0
    %2285 = vmatpush1.msra.mxu0 0.0
    %2286 = vmatprep.subr.mxu0 0.0
    %2287 = vmatpush1.msra.mxu0 0.0
    %2288 = vmatprep.subr.mxu0 0.0
    %2289 = vmatpush1.msra.mxu0 0.0
    %2290 = vmatprep.subr.mxu0 0.0
    %2291 = vmatpush1.msra.mxu0 0.0
    %2292 = vmatprep.subr.mxu0 0.0
    %2293 = vmatpush1.msra.mxu0 0.0
    %2294 = vmatprep.mubr.f32.mxu0 0.0
    %2295 = vmatmul.mubr.f32.gmra.mrb[0].mxu0 %v312
    %v2296 = vpop.f32.mrb[0].mxu0
    %v2297 = vadd.f32 0.0, %v2296
    %v2298 = vpop.f32.mrb[0].mxu0
    %2299 = vdwg.mxu0
    %v2300 = vadd.f32 %v2229, %v2297
    %v2301 = vxor.u32 %v2300, 2147483648
    %v2302 = vmul.f32 %v2301, 1.442695
    %v2303 = vpow.pop %v2302
    %v2304 = vadd.f32 %v2303, 1.0
    %v2305 = vrcp.pop %v2304
    %v2306 = vmul.f32 1.0, %v2305
    %v2307 = vtanh.pop %v2300
    %v2308 = vmul.f32 %v2306, 0.0
    %2310 = vrot.lane.b32.xlu0 %v2307, 64
    %v2311 = vpop.permute.xlu0 %2310
    %v2313 = vmul.f32 %v2306, %v2311
    %2315 = vrot.lane.b32.xlu0 %v2313, 32
    %v2316 = vpop.permute.xlu0 %2315
    %v2318 = vadd.f32 %v2308, %v2316
    %v2319 = vtanh.pop %v2318
    %2321 = vrot.lane.b32.xlu0 %v2319, 64
    %v2322 = vpop.permute.xlu0 %2321
    %v2324 = vmul.f32 %v2306, %v2322
    %2326 = vrot.lane.b32.xlu0 %v2324, 32
    %v2327 = vpop.permute.xlu0 %2326
    %2329 = vst.msk [vmem:[#allocation3] sm:$0xff] %vm310, %v2327
    %v2330 = vld [vmem:[%s414] sm:$0xff]
    %v2331 = vsel %vm310, %v2327, 0
    %2333 = vmatprep.subr.mxu0 0.0
    %2334 = vmatpush1.msra.mxu0 %v1993
    %2335 = vmatprep.subr.mxu0 0.0
    %2336 = vmatpush1.msra.mxu0 %v1994
    %2337 = vmatprep.subr.mxu0 0.0
    %2338 = vmatpush1.msra.mxu0 %v1995
    %2339 = vmatprep.subr.mxu0 0.0
    %2340 = vmatpush1.msra.mxu0 %v1996
    %2341 = vmatprep.subr.mxu0 0.0
    %2342 = vmatpush1.msra.mxu0 0.0
    %2343 = vmatprep.subr.mxu0 0.0
    %2344 = vmatpush1.msra.mxu0 0.0
    %2345 = vmatprep.subr.mxu0 0.0
    %2346 = vmatpush1.msra.mxu0 0.0
    %2347 = vmatprep.subr.mxu0 0.0
    %2348 = vmatpush1.msra.mxu0 0.0
    %2349 = vmatprep.subr.mxu0 0.0
    %2350 = vmatpush1.msra.mxu0 0.0
    %2351 = vmatprep.subr.mxu0 0.0
    %2352 = vmatpush1.msra.mxu0 0.0
    %2353 = vmatprep.subr.mxu0 0.0
    %2354 = vmatpush1.msra.mxu0 0.0
    %2355 = vmatprep.subr.mxu0 0.0
    %2356 = vmatpush1.msra.mxu0 0.0
    %2357 = vmatprep.subr.mxu0 0.0
    %2358 = vmatpush1.msra.mxu0 0.0
    %2359 = vmatprep.subr.mxu0 0.0
    %2360 = vmatpush1.msra.mxu0 0.0
    %2361 = vmatprep.subr.mxu0 0.0
    %2362 = vmatpush1.msra.mxu0 0.0
    %2363 = vmatprep.subr.mxu0 0.0
    %2364 = vmatpush1.msra.mxu0 0.0
    %2365 = vmatprep.subr.mxu0 0.0
    %2366 = vmatpush1.msra.mxu0 0.0
    %2367 = vmatprep.subr.mxu0 0.0
    %2368 = vmatpush1.msra.mxu0 0.0
    %2369 = vmatprep.subr.mxu0 0.0
    %2370 = vmatpush1.msra.mxu0 0.0
    %2371 = vmatprep.subr.mxu0 0.0
    %2372 = vmatpush1.msra.mxu0 0.0
    %2373 = vmatprep.subr.mxu0 0.0
    %2374 = vmatpush1.msra.mxu0 0.0
    %2375 = vmatprep.subr.mxu0 0.0
    %2376 = vmatpush1.msra.mxu0 0.0
    %2377 = vmatprep.subr.mxu0 0.0
    %2378 = vmatpush1.msra.mxu0 0.0
    %2379 = vmatprep.subr.mxu0 0.0
    %2380 = vmatpush1.msra.mxu0 0.0
    %2381 = vmatprep.subr.mxu0 0.0
    %2382 = vmatpush1.msra.mxu0 0.0
    %2383 = vmatprep.subr.mxu0 0.0
    %2384 = vmatpush1.msra.mxu0 0.0
    %2385 = vmatprep.subr.mxu0 0.0
    %2386 = vmatpush1.msra.mxu0 0.0
    %2387 = vmatprep.subr.mxu0 0.0
    %2388 = vmatpush1.msra.mxu0 0.0
    %2389 = vmatprep.subr.mxu0 0.0
    %2390 = vmatpush1.msra.mxu0 0.0
    %2391 = vmatprep.subr.mxu0 0.0
    %2392 = vmatpush1.msra.mxu0 0.0
    %2393 = vmatprep.subr.mxu0 0.0
    %2394 = vmatpush1.msra.mxu0 0.0
    %2395 = vmatprep.subr.mxu0 0.0
    %2396 = vmatpush1.msra.mxu0 0.0
    %2397 = vmatprep.mubr.f32.mxu0 0.0
    %2398 = vmatmul.mubr.f32.gmra.mrb[0].mxu0 %v2331
    %v2399 = vpop.f32.mrb[0].mxu0
    %v2400 = vadd.f32 0.0, %v2399
    %v2401 = vpop.f32.mrb[0].mxu0
    %2402 = vdwg.mxu0
    %v2403 = vadd.f32 %v2330, %v2400
    %v2404 = vxor.u32 %v2403, 2147483648
    %v2405 = vmul.f32 %v2404, 1.442695
    %v2406 = vpow.pop %v2405
    %v2407 = vadd.f32 %v2406, 1.0
    %v2408 = vrcp.pop %v2407
    %v2409 = vmul.f32 1.0, %v2408
    %v2410 = vtanh.pop %v2403
    %v2411 = vmul.f32 %v2409, %v2318
    %2413 = vrot.lane.b32.xlu0 %v2410, 64
    %v2414 = vpop.permute.xlu0 %2413
    %v2416 = vmul.f32 %v2409, %v2414
    %2418 = vrot.lane.b32.xlu0 %v2416, 32
    %v2419 = vpop.permute.xlu0 %2418
    %v2421 = vadd.f32 %v2411, %v2419
    %v2422 = vtanh.pop %v2421
    %2424 = vrot.lane.b32.xlu0 %v2422, 64
    %v2425 = vpop.permute.xlu0 %2424
    %v2427 = vmul.f32 %v2409, %v2425
    %2429 = vrot.lane.b32.xlu0 %v2427, 32
    %v2430 = vpop.permute.xlu0 %2429
    %2432 = vst.msk [vmem:[%s517] sm:$0xff] %vm310, %v2430
    %v2433 = vld [vmem:[%s519] sm:$0xff]
    %v2434 = vsel %vm310, %v2430, 0
    %2436 = vmatprep.subr.mxu0 0.0
    %2437 = vmatpush1.msra.mxu0 %v1993
    %2438 = vmatprep.subr.mxu0 0.0
    %2439 = vmatpush1.msra.mxu0 %v1994
    %2440 = vmatprep.subr.mxu0 0.0
    %2441 = vmatpush1.msra.mxu0 %v1995
    %2442 = vmatprep.subr.mxu0 0.0
    %2443 = vmatpush1.msra.mxu0 %v1996
    %2444 = vmatprep.subr.mxu0 0.0
    %2445 = vmatpush1.msra.mxu0 0.0
    %2446 = vmatprep.subr.mxu0 0.0
    %2447 = vmatpush1.msra.mxu0 0.0
    %2448 = vmatprep.subr.mxu0 0.0
    %2449 = vmatpush1.msra.mxu0 0.0
    %2450 = vmatprep.subr.mxu0 0.0
    %2451 = vmatpush1.msra.mxu0 0.0
    %2452 = vmatprep.subr.mxu0 0.0
    %2453 = vmatpush1.msra.mxu0 0.0
    %2454 = vmatprep.subr.mxu0 0.0
    %2455 = vmatpush1.msra.mxu0 0.0
    %2456 = vmatprep.subr.mxu0 0.0
    %2457 = vmatpush1.msra.mxu0 0.0
    %2458 = vmatprep.subr.mxu0 0.0
    %2459 = vmatpush1.msra.mxu0 0.0
    %2460 = vmatprep.subr.mxu0 0.0
    %2461 = vmatpush1.msra.mxu0 0.0
    %2462 = vmatprep.subr.mxu0 0.0
    %2463 = vmatpush1.msra.mxu0 0.0
    %2464 = vmatprep.subr.mxu0 0.0
    %2465 = vmatpush1.msra.mxu0 0.0
    %2466 = vmatprep.subr.mxu0 0.0
    %2467 = vmatpush1.msra.mxu0 0.0
    %2468 = vmatprep.subr.mxu0 0.0
    %2469 = vmatpush1.msra.mxu0 0.0
    %2470 = vmatprep.subr.mxu0 0.0
    %2471 = vmatpush1.msra.mxu0 0.0
    %2472 = vmatprep.subr.mxu0 0.0
    %2473 = vmatpush1.msra.mxu0 0.0
    %2474 = vmatprep.subr.mxu0 0.0
    %2475 = vmatpush1.msra.mxu0 0.0
    %2476 = vmatprep.subr.mxu0 0.0
    %2477 = vmatpush1.msra.mxu0 0.0
    %2478 = vmatprep.subr.mxu0 0.0
    %2479 = vmatpush1.msra.mxu0 0.0
    %2480 = vmatprep.subr.mxu0 0.0
    %2481 = vmatpush1.msra.mxu0 0.0
    %2482 = vmatprep.subr.mxu0 0.0
    %2483 = vmatpush1.msra.mxu0 0.0
    %2484 = vmatprep.subr.mxu0 0.0
    %2485 = vmatpush1.msra.mxu0 0.0
    %2486 = vmatprep.subr.mxu0 0.0
    %2487 = vmatpush1.msra.mxu0 0.0
    %2488 = vmatprep.subr.mxu0 0.0
    %2489 = vmatpush1.msra.mxu0 0.0
    %2490 = vmatprep.subr.mxu0 0.0
    %2491 = vmatpush1.msra.mxu0 0.0
    %2492 = vmatprep.subr.mxu0 0.0
    %2493 = vmatpush1.msra.mxu0 0.0
    %2494 = vmatprep.subr.mxu0 0.0
    %2495 = vmatpush1.msra.mxu0 0.0
    %2496 = vmatprep.subr.mxu0 0.0
    %2497 = vmatpush1.msra.mxu0 0.0
    %2498 = vmatprep.subr.mxu0 0.0
    %2499 = vmatpush1.msra.mxu0 0.0
    %2500 = vmatprep.mubr.f32.mxu0 0.0
    %2501 = vmatmul.mubr.f32.gmra.mrb[0].mxu0 %v2434
    %v2502 = vpop.f32.mrb[0].mxu0
    %v2503 = vadd.f32 0.0, %v2502
    %v2504 = vpop.f32.mrb[0].mxu0
    %2505 = vdwg.mxu0
    %v2506 = vadd.f32 %v2433, %v2503
    %v2507 = vxor.u32 %v2506, 2147483648
    %v2508 = vmul.f32 %v2507, 1.442695
    %v2509 = vpow.pop %v2508
    %v2510 = vadd.f32 %v2509, 1.0
    %v2511 = vrcp.pop %v2510
    %v2512 = vmul.f32 1.0, %v2511
    %v2513 = vtanh.pop %v2506
    %v2514 = vmul.f32 %v2512, %v2421
    %2516 = vrot.lane.b32.xlu0 %v2513, 64
    %v2517 = vpop.permute.xlu0 %2516
    %v2519 = vmul.f32 %v2512, %v2517
    %2521 = vrot.lane.b32.xlu0 %v2519, 32
    %v2522 = vpop.permute.xlu0 %2521
    %v2524 = vadd.f32 %v2514, %v2522
    %v2525 = vtanh.pop %v2524
    %2527 = vrot.lane.b32.xlu0 %v2525, 64
    %v2528 = vpop.permute.xlu0 %2527
    %v2530 = vmul.f32 %v2512, %v2528
    %2532 = vrot.lane.b32.xlu0 %v2530, 32
    %v2533 = vpop.permute.xlu0 %2532
    %2535 = vst.msk [vmem:[%s622] sm:$0xff] %vm310, %v2533
    %v2536 = vld [vmem:[%s624] sm:$0xff]
    %v2537 = vsel %vm310, %v2533, 0
    %2539 = vmatprep.subr.mxu0 0.0
    %2540 = vmatpush1.msra.mxu0 %v1993
    %2541 = vmatprep.subr.mxu0 0.0
    %2542 = vmatpush1.msra.mxu0 %v1994
    %2543 = vmatprep.subr.mxu0 0.0
    %2544 = vmatpush1.msra.mxu0 %v1995
    %2545 = vmatprep.subr.mxu0 0.0
    %2546 = vmatpush1.msra.mxu0 %v1996
    %2547 = vmatprep.subr.mxu0 0.0
    %2548 = vmatpush1.msra.mxu0 0.0
    %2549 = vmatprep.subr.mxu0 0.0
    %2550 = vmatpush1.msra.mxu0 0.0
    %2551 = vmatprep.subr.mxu0 0.0
    %2552 = vmatpush1.msra.mxu0 0.0
    %2553 = vmatprep.subr.mxu0 0.0
    %2554 = vmatpush1.msra.mxu0 0.0
    %2555 = vmatprep.subr.mxu0 0.0
    %2556 = vmatpush1.msra.mxu0 0.0
    %2557 = vmatprep.subr.mxu0 0.0
    %2558 = vmatpush1.msra.mxu0 0.0
    %2559 = vmatprep.subr.mxu0 0.0
    %2560 = vmatpush1.msra.mxu0 0.0
    %2561 = vmatprep.subr.mxu0 0.0
    %2562 = vmatpush1.msra.mxu0 0.0
    %2563 = vmatprep.subr.mxu0 0.0
    %2564 = vmatpush1.msra.mxu0 0.0
    %2565 = vmatprep.subr.mxu0 0.0
    %2566 = vmatpush1.msra.mxu0 0.0
    %2567 = vmatprep.subr.mxu0 0.0
    %2568 = vmatpush1.msra.mxu0 0.0
    %2569 = vmatprep.subr.mxu0 0.0
    %2570 = vmatpush1.msra.mxu0 0.0
    %2571 = vmatprep.subr.mxu0 0.0
    %2572 = vmatpush1.msra.mxu0 0.0
    %2573 = vmatprep.subr.mxu0 0.0
    %2574 = vmatpush1.msra.mxu0 0.0
    %2575 = vmatprep.subr.mxu0 0.0
    %2576 = vmatpush1.msra.mxu0 0.0
    %2577 = vmatprep.subr.mxu0 0.0
    %2578 = vmatpush1.msra.mxu0 0.0
    %2579 = vmatprep.subr.mxu0 0.0
    %2580 = vmatpush1.msra.mxu0 0.0
    %2581 = vmatprep.subr.mxu0 0.0
    %2582 = vmatpush1.msra.mxu0 0.0
    %2583 = vmatprep.subr.mxu0 0.0
    %2584 = vmatpush1.msra.mxu0 0.0
    %2585 = vmatprep.subr.mxu0 0.0
    %2586 = vmatpush1.msra.mxu0 0.0
    %2587 = vmatprep.subr.mxu0 0.0
    %2588 = vmatpush1.msra.mxu0 0.0
    %2589 = vmatprep.subr.mxu0 0.0
    %2590 = vmatpush1.msra.mxu0 0.0
    %2591 = vmatprep.subr.mxu0 0.0
    %2592 = vmatpush1.msra.mxu0 0.0
    %2593 = vmatprep.subr.mxu0 0.0
    %2594 = vmatpush1.msra.mxu0 0.0
    %2595 = vmatprep.subr.mxu0 0.0
    %2596 = vmatpush1.msra.mxu0 0.0
    %2597 = vmatprep.subr.mxu0 0.0
    %2598 = vmatpush1.msra.mxu0 0.0
    %2599 = vmatprep.subr.mxu0 0.0
    %2600 = vmatpush1.msra.mxu0 0.0
    %2601 = vmatprep.subr.mxu0 0.0
    %2602 = vmatpush1.msra.mxu0 0.0
    %2603 = vmatprep.mubr.f32.mxu0 0.0
    %2604 = vmatmul.mubr.f32.gmra.mrb[0].mxu0 %v2537
    %v2605 = vpop.f32.mrb[0].mxu0
    %v2606 = vadd.f32 0.0, %v2605
    %v2607 = vpop.f32.mrb[0].mxu0
    %2608 = vdwg.mxu0
    %v2609 = vadd.f32 %v2536, %v2606
    %v2610 = vxor.u32 %v2609, 2147483648
    %v2611 = vmul.f32 %v2610, 1.442695
    %v2612 = vpow.pop %v2611
    %v2613 = vadd.f32 %v2612, 1.0
    %v2614 = vrcp.pop %v2613
    %v2615 = vmul.f32 1.0, %v2614
    %v2616 = vtanh.pop %v2609
    %v2617 = vmul.f32 %v2615, %v2524
    %2619 = vrot.lane.b32.xlu0 %v2616, 64
    %v2620 = vpop.permute.xlu0 %2619
    %v2622 = vmul.f32 %v2615, %v2620
    %2624 = vrot.lane.b32.xlu0 %v2622, 32
    %v2625 = vpop.permute.xlu0 %2624
    %v2627 = vadd.f32 %v2617, %v2625
    %v2628 = vtanh.pop %v2627
    %2630 = vrot.lane.b32.xlu0 %v2628, 64
    %v2631 = vpop.permute.xlu0 %2630
    %v2633 = vmul.f32 %v2615, %v2631
    %2635 = vrot.lane.b32.xlu0 %v2633, 32
    %v2636 = vpop.permute.xlu0 %2635
    %2638 = vst.msk [vmem:[%s727] sm:$0xff] %vm310, %v2636
    %v2639 = vld [vmem:[%s729] sm:$0xff]
    %v2640 = vsel %vm310, %v2636, 0
    %2642 = vmatprep.subr.mxu0 0.0
    %2643 = vmatpush1.msra.mxu0 %v1993
    %2644 = vmatprep.subr.mxu0 0.0
    %2645 = vmatpush1.msra.mxu0 %v1994
    %2646 = vmatprep.subr.mxu0 0.0
    %2647 = vmatpush1.msra.mxu0 %v1995
    %2648 = vmatprep.subr.mxu0 0.0
    %2649 = vmatpush1.msra.mxu0 %v1996
    %2650 = vmatprep.subr.mxu0 0.0
    %2651 = vmatpush1.msra.mxu0 0.0
    %2652 = vmatprep.subr.mxu0 0.0
    %2653 = vmatpush1.msra.mxu0 0.0
    %2654 = vmatprep.subr.mxu0 0.0
    %2655 = vmatpush1.msra.mxu0 0.0
    %2656 = vmatprep.subr.mxu0 0.0
    %2657 = vmatpush1.msra.mxu0 0.0
    %2658 = vmatprep.subr.mxu0 0.0
    %2659 = vmatpush1.msra.mxu0 0.0
    %2660 = vmatprep.subr.mxu0 0.0
    %2661 = vmatpush1.msra.mxu0 0.0
    %2662 = vmatprep.subr.mxu0 0.0
    %2663 = vmatpush1.msra.mxu0 0.0
    %2664 = vmatprep.subr.mxu0 0.0
    %2665 = vmatpush1.msra.mxu0 0.0
    %2666 = vmatprep.subr.mxu0 0.0
    %2667 = vmatpush1.msra.mxu0 0.0
    %2668 = vmatprep.subr.mxu0 0.0
    %2669 = vmatpush1.msra.mxu0 0.0
    %2670 = vmatprep.subr.mxu0 0.0
    %2671 = vmatpush1.msra.mxu0 0.0
    %2672 = vmatprep.subr.mxu0 0.0
    %2673 = vmatpush1.msra.mxu0 0.0
    %2674 = vmatprep.subr.mxu0 0.0
    %2675 = vmatpush1.msra.mxu0 0.0
    %2676 = vmatprep.subr.mxu0 0.0
    %2677 = vmatpush1.msra.mxu0 0.0
    %2678 = vmatprep.subr.mxu0 0.0
    %2679 = vmatpush1.msra.mxu0 0.0
    %2680 = vmatprep.subr.mxu0 0.0
    %2681 = vmatpush1.msra.mxu0 0.0
    %2682 = vmatprep.subr.mxu0 0.0
    %2683 = vmatpush1.msra.mxu0 0.0
    %2684 = vmatprep.subr.mxu0 0.0
    %2685 = vmatpush1.msra.mxu0 0.0
    %2686 = vmatprep.subr.mxu0 0.0
    %2687 = vmatpush1.msra.mxu0 0.0
    %2688 = vmatprep.subr.mxu0 0.0
    %2689 = vmatpush1.msra.mxu0 0.0
    %2690 = vmatprep.subr.mxu0 0.0
    %2691 = vmatpush1.msra.mxu0 0.0
    %2692 = vmatprep.subr.mxu0 0.0
    %2693 = vmatpush1.msra.mxu0 0.0
    %2694 = vmatprep.subr.mxu0 0.0
    %2695 = vmatpush1.msra.mxu0 0.0
    %2696 = vmatprep.subr.mxu0 0.0
    %2697 = vmatpush1.msra.mxu0 0.0
    %2698 = vmatprep.subr.mxu0 0.0
    %2699 = vmatpush1.msra.mxu0 0.0
    %2700 = vmatprep.subr.mxu0 0.0
    %2701 = vmatpush1.msra.mxu0 0.0
    %2702 = vmatprep.subr.mxu0 0.0
    %2703 = vmatpush1.msra.mxu0 0.0
    %2704 = vmatprep.subr.mxu0 0.0
    %2705 = vmatpush1.msra.mxu0 0.0
    %2706 = vmatprep.mubr.f32.mxu0 0.0
    %2707 = vmatmul.mubr.f32.gmra.mrb[0].mxu0 %v2640
    %v2708 = vpop.f32.mrb[0].mxu0
    %v2709 = vadd.f32 0.0, %v2708
    %v2710 = vpop.f32.mrb[0].mxu0
    %2711 = vdwg.mxu0
    %v2712 = vadd.f32 %v2639, %v2709
    %v2713 = vxor.u32 %v2712, 2147483648
    %v2714 = vmul.f32 %v2713, 1.442695
    %v2715 = vpow.pop %v2714
    %v2716 = vadd.f32 %v2715, 1.0
    %v2717 = vrcp.pop %v2716
    %v2718 = vmul.f32 1.0, %v2717
    %v2719 = vtanh.pop %v2712
    %v2720 = vmul.f32 %v2718, %v2627
    %2722 = vrot.lane.b32.xlu0 %v2719, 64
    %v2723 = vpop.permute.xlu0 %2722
    %v2725 = vmul.f32 %v2718, %v2723
    %2727 = vrot.lane.b32.xlu0 %v2725, 32
    %v2728 = vpop.permute.xlu0 %2727
    %v2730 = vadd.f32 %v2720, %v2728
    %v2731 = vtanh.pop %v2730
    %2733 = vrot.lane.b32.xlu0 %v2731, 64
    %v2734 = vpop.permute.xlu0 %2733
    %v2736 = vmul.f32 %v2718, %v2734
    %2738 = vrot.lane.b32.xlu0 %v2736, 32
    %v2739 = vpop.permute.xlu0 %2738
    %2741 = vst.msk [vmem:[%s832] sm:$0xff] %vm310, %v2739
    %v2742 = vld [vmem:[%s834] sm:$0xff]
    %v2743 = vsel %vm310, %v2739, 0
    %2745 = vmatprep.subr.mxu0 0.0
    %2746 = vmatpush1.msra.mxu0 %v1993
    %2747 = vmatprep.subr.mxu0 0.0
    %2748 = vmatpush1.msra.mxu0 %v1994
    %2749 = vmatprep.subr.mxu0 0.0
    %2750 = vmatpush1.msra.mxu0 %v1995
    %2751 = vmatprep.subr.mxu0 0.0
    %2752 = vmatpush1.msra.mxu0 %v1996
    %2753 = vmatprep.subr.mxu0 0.0
    %2754 = vmatpush1.msra.mxu0 0.0
    %2755 = vmatprep.subr.mxu0 0.0
    %2756 = vmatpush1.msra.mxu0 0.0
    %2757 = vmatprep.subr.mxu0 0.0
    %2758 = vmatpush1.msra.mxu0 0.0
    %2759 = vmatprep.subr.mxu0 0.0
    %2760 = vmatpush1.msra.mxu0 0.0
    %2761 = vmatprep.subr.mxu0 0.0
    %2762 = vmatpush1.msra.mxu0 0.0
    %2763 = vmatprep.subr.mxu0 0.0
    %2764 = vmatpush1.msra.mxu0 0.0
    %2765 = vmatprep.subr.mxu0 0.0
    %2766 = vmatpush1.msra.mxu0 0.0
    %2767 = vmatprep.subr.mxu0 0.0
    %2768 = vmatpush1.msra.mxu0 0.0
    %2769 = vmatprep.subr.mxu0 0.0
    %2770 = vmatpush1.msra.mxu0 0.0
    %2771 = vmatprep.subr.mxu0 0.0
    %2772 = vmatpush1.msra.mxu0 0.0
    %2773 = vmatprep.subr.mxu0 0.0
    %2774 = vmatpush1.msra.mxu0 0.0
    %2775 = vmatprep.subr.mxu0 0.0
    %2776 = vmatpush1.msra.mxu0 0.0
    %2777 = vmatprep.subr.mxu0 0.0
    %2778 = vmatpush1.msra.mxu0 0.0
    %2779 = vmatprep.subr.mxu0 0.0
    %2780 = vmatpush1.msra.mxu0 0.0
    %2781 = vmatprep.subr.mxu0 0.0
    %2782 = vmatpush1.msra.mxu0 0.0
    %2783 = vmatprep.subr.mxu0 0.0
    %2784 = vmatpush1.msra.mxu0 0.0
    %2785 = vmatprep.subr.mxu0 0.0
    %2786 = vmatpush1.msra.mxu0 0.0
    %2787 = vmatprep.subr.mxu0 0.0
    %2788 = vmatpush1.msra.mxu0 0.0
    %2789 = vmatprep.subr.mxu0 0.0
    %2790 = vmatpush1.msra.mxu0 0.0
    %2791 = vmatprep.subr.mxu0 0.0
    %2792 = vmatpush1.msra.mxu0 0.0
    %2793 = vmatprep.subr.mxu0 0.0
    %2794 = vmatpush1.msra.mxu0 0.0
    %2795 = vmatprep.subr.mxu0 0.0
    %2796 = vmatpush1.msra.mxu0 0.0
    %2797 = vmatprep.subr.mxu0 0.0
    %2798 = vmatpush1.msra.mxu0 0.0
    %2799 = vmatprep.subr.mxu0 0.0
    %2800 = vmatpush1.msra.mxu0 0.0
    %2801 = vmatprep.subr.mxu0 0.0
    %2802 = vmatpush1.msra.mxu0 0.0
    %2803 = vmatprep.subr.mxu0 0.0
    %2804 = vmatpush1.msra.mxu0 0.0
    %2805 = vmatprep.subr.mxu0 0.0
    %2806 = vmatpush1.msra.mxu0 0.0
    %2807 = vmatprep.subr.mxu0 0.0
    %2808 = vmatpush1.msra.mxu0 0.0
    %2809 = vmatprep.mubr.f32.mxu0 0.0
    %2810 = vmatmul.mubr.f32.gmra.mrb[0].mxu0 %v2743
    %v2811 = vpop.f32.mrb[0].mxu0
    %v2812 = vadd.f32 0.0, %v2811
    %v2813 = vpop.f32.mrb[0].mxu0
    %2814 = vdwg.mxu0
    %v2815 = vadd.f32 %v2742, %v2812
    %v2816 = vxor.u32 %v2815, 2147483648
    %v2817 = vmul.f32 %v2816, 1.442695
    %v2818 = vpow.pop %v2817
    %v2819 = vadd.f32 %v2818, 1.0
    %v2820 = vrcp.pop %v2819
    %v2821 = vmul.f32 1.0, %v2820
    %v2822 = vtanh.pop %v2815
    %v2823 = vmul.f32 %v2821, %v2730
    %2825 = vrot.lane.b32.xlu0 %v2822, 64
    %v2826 = vpop.permute.xlu0 %2825
    %v2828 = vmul.f32 %v2821, %v2826
    %2830 = vrot.lane.b32.xlu0 %v2828, 32
    %v2831 = vpop.permute.xlu0 %2830
    %v2833 = vadd.f32 %v2823, %v2831
    %v2834 = vtanh.pop %v2833
    %2836 = vrot.lane.b32.xlu0 %v2834, 64
    %v2837 = vpop.permute.xlu0 %2836
    %v2839 = vmul.f32 %v2821, %v2837
    %2841 = vrot.lane.b32.xlu0 %v2839, 32
    %v2842 = vpop.permute.xlu0 %2841
    %2844 = vst.msk [vmem:[%s937] sm:$0xff] %vm310, %v2842
    %v2845 = vld [vmem:[%s939] sm:$0xff]
    %v2846 = vsel %vm310, %v2842, 0
    %2848 = vmatprep.subr.mxu0 0.0
    %2849 = vmatpush1.msra.mxu0 %v1993
    %2850 = vmatprep.subr.mxu0 0.0
    %2851 = vmatpush1.msra.mxu0 %v1994
    %2852 = vmatprep.subr.mxu0 0.0
    %2853 = vmatpush1.msra.mxu0 %v1995
    %2854 = vmatprep.subr.mxu0 0.0
    %2855 = vmatpush1.msra.mxu0 %v1996
    %2856 = vmatprep.subr.mxu0 0.0
    %2857 = vmatpush1.msra.mxu0 0.0
    %2858 = vmatprep.subr.mxu0 0.0
    %2859 = vmatpush1.msra.mxu0 0.0
    %2860 = vmatprep.subr.mxu0 0.0
    %2861 = vmatpush1.msra.mxu0 0.0
    %2862 = vmatprep.subr.mxu0 0.0
    %2863 = vmatpush1.msra.mxu0 0.0
    %2864 = vmatprep.subr.mxu0 0.0
    %2865 = vmatpush1.msra.mxu0 0.0
    %2866 = vmatprep.subr.mxu0 0.0
    %2867 = vmatpush1.msra.mxu0 0.0
    %2868 = vmatprep.subr.mxu0 0.0
    %2869 = vmatpush1.msra.mxu0 0.0
    %2870 = vmatprep.subr.mxu0 0.0
    %2871 = vmatpush1.msra.mxu0 0.0
    %2872 = vmatprep.subr.mxu0 0.0
    %2873 = vmatpush1.msra.mxu0 0.0
    %2874 = vmatprep.subr.mxu0 0.0
    %2875 = vmatpush1.msra.mxu0 0.0
    %2876 = vmatprep.subr.mxu0 0.0
    %2877 = vmatpush1.msra.mxu0 0.0
    %2878 = vmatprep.subr.mxu0 0.0
    %2879 = vmatpush1.msra.mxu0 0.0
    %2880 = vmatprep.subr.mxu0 0.0
    %2881 = vmatpush1.msra.mxu0 0.0
    %2882 = vmatprep.subr.mxu0 0.0
    %2883 = vmatpush1.msra.mxu0 0.0
    %2884 = vmatprep.subr.mxu0 0.0
    %2885 = vmatpush1.msra.mxu0 0.0
    %2886 = vmatprep.subr.mxu0 0.0
    %2887 = vmatpush1.msra.mxu0 0.0
    %2888 = vmatprep.subr.mxu0 0.0
    %2889 = vmatpush1.msra.mxu0 0.0
    %2890 = vmatprep.subr.mxu0 0.0
    %2891 = vmatpush1.msra.mxu0 0.0
    %2892 = vmatprep.subr.mxu0 0.0
    %2893 = vmatpush1.msra.mxu0 0.0
    %2894 = vmatprep.subr.mxu0 0.0
    %2895 = vmatpush1.msra.mxu0 0.0
    %2896 = vmatprep.subr.mxu0 0.0
    %2897 = vmatpush1.msra.mxu0 0.0
    %2898 = vmatprep.subr.mxu0 0.0
    %2899 = vmatpush1.msra.mxu0 0.0
    %2900 = vmatprep.subr.mxu0 0.0
    %2901 = vmatpush1.msra.mxu0 0.0
    %2902 = vmatprep.subr.mxu0 0.0
    %2903 = vmatpush1.msra.mxu0 0.0
    %2904 = vmatprep.subr.mxu0 0.0
    %2905 = vmatpush1.msra.mxu0 0.0
    %2906 = vmatprep.subr.mxu0 0.0
    %2907 = vmatpush1.msra.mxu0 0.0
    %2908 = vmatprep.subr.mxu0 0.0
    %2909 = vmatpush1.msra.mxu0 0.0
    %2910 = vmatprep.subr.mxu0 0.0
    %2911 = vmatpush1.msra.mxu0 0.0
    %2912 = vmatprep.mubr.f32.mxu0 0.0
    %2913 = vmatmul.mubr.f32.gmra.mrb[0].mxu0 %v2846
    %v2914 = vpop.f32.mrb[0].mxu0
    %v2915 = vadd.f32 0.0, %v2914
    %v2916 = vpop.f32.mrb[0].mxu0
    %2917 = vdwg.mxu0
    %v2918 = vadd.f32 %v2845, %v2915
    %v2919 = vxor.u32 %v2918, 2147483648
    %v2920 = vmul.f32 %v2919, 1.442695
    %v2921 = vpow.pop %v2920
    %v2922 = vadd.f32 %v2921, 1.0
    %v2923 = vrcp.pop %v2922
    %v2924 = vmul.f32 1.0, %v2923
    %v2925 = vtanh.pop %v2918
    %v2926 = vmul.f32 %v2924, %v2833
    %2928 = vrot.lane.b32.xlu0 %v2925, 64
    %v2929 = vpop.permute.xlu0 %2928
    %v2931 = vmul.f32 %v2924, %v2929
    %2933 = vrot.lane.b32.xlu0 %v2931, 32
    %v2934 = vpop.permute.xlu0 %2933
    %v2936 = vadd.f32 %v2926, %v2934
    %v2937 = vtanh.pop %v2936
    %2939 = vrot.lane.b32.xlu0 %v2937, 64
    %v2940 = vpop.permute.xlu0 %2939
    %v2942 = vmul.f32 %v2924, %v2940
    %2944 = vrot.lane.b32.xlu0 %v2942, 32
    %v2945 = vpop.permute.xlu0 %2944
    %2947 = vst.msk [vmem:[%s1042] sm:$0xff] %vm310, %v2945
    %v2948 = vld [vmem:[%s1044] sm:$0xff]
    %v2949 = vsel %vm310, %v2945, 0
    %2951 = vmatprep.subr.mxu0 0.0
    %2952 = vmatpush1.msra.mxu0 %v1993
    %2953 = vmatprep.subr.mxu0 0.0
    %2954 = vmatpush1.msra.mxu0 %v1994
    %2955 = vmatprep.subr.mxu0 0.0
    %2956 = vmatpush1.msra.mxu0 %v1995
    %2957 = vmatprep.subr.mxu0 0.0
    %2958 = vmatpush1.msra.mxu0 %v1996
    %2959 = vmatprep.subr.mxu0 0.0
    %2960 = vmatpush1.msra.mxu0 0.0
    %2961 = vmatprep.subr.mxu0 0.0
    %2962 = vmatpush1.msra.mxu0 0.0
    %2963 = vmatprep.subr.mxu0 0.0
    %2964 = vmatpush1.msra.mxu0 0.0
    %2965 = vmatprep.subr.mxu0 0.0
    %2966 = vmatpush1.msra.mxu0 0.0
    %2967 = vmatprep.subr.mxu0 0.0
    %2968 = vmatpush1.msra.mxu0 0.0
    %2969 = vmatprep.subr.mxu0 0.0
    %2970 = vmatpush1.msra.mxu0 0.0
    %2971 = vmatprep.subr.mxu0 0.0
    %2972 = vmatpush1.msra.mxu0 0.0
    %2973 = vmatprep.subr.mxu0 0.0
    %2974 = vmatpush1.msra.mxu0 0.0
    %2975 = vmatprep.subr.mxu0 0.0
    %2976 = vmatpush1.msra.mxu0 0.0
    %2977 = vmatprep.subr.mxu0 0.0
    %2978 = vmatpush1.msra.mxu0 0.0
    %2979 = vmatprep.subr.mxu0 0.0
    %2980 = vmatpush1.msra.mxu0 0.0
    %2981 = vmatprep.subr.mxu0 0.0
    %2982 = vmatpush1.msra.mxu0 0.0
    %2983 = vmatprep.subr.mxu0 0.0
    %2984 = vmatpush1.msra.mxu0 0.0
    %2985 = vmatprep.subr.mxu0 0.0
    %2986 = vmatpush1.msra.mxu0 0.0
    %2987 = vmatprep.subr.mxu0 0.0
    %2988 = vmatpush1.msra.mxu0 0.0
    %2989 = vmatprep.subr.mxu0 0.0
    %2990 = vmatpush1.msra.mxu0 0.0
    %2991 = vmatprep.subr.mxu0 0.0
    %2992 = vmatpush1.msra.mxu0 0.0
    %2993 = vmatprep.subr.mxu0 0.0
    %2994 = vmatpush1.msra.mxu0 0.0
    %2995 = vmatprep.subr.mxu0 0.0
    %2996 = vmatpush1.msra.mxu0 0.0
    %2997 = vmatprep.subr.mxu0 0.0
    %2998 = vmatpush1.msra.mxu0 0.0
    %2999 = vmatprep.subr.mxu0 0.0
    %3000 = vmatpush1.msra.mxu0 0.0
    %3001 = vmatprep.subr.mxu0 0.0
    %3002 = vmatpush1.msra.mxu0 0.0
    %3003 = vmatprep.subr.mxu0 0.0
    %3004 = vmatpush1.msra.mxu0 0.0
    %3005 = vmatprep.subr.mxu0 0.0
    %3006 = vmatpush1.msra.mxu0 0.0
    %3007 = vmatprep.subr.mxu0 0.0
    %3008 = vmatpush1.msra.mxu0 0.0
    %3009 = vmatprep.subr.mxu0 0.0
    %3010 = vmatpush1.msra.mxu0 0.0
    %3011 = vmatprep.subr.mxu0 0.0
    %3012 = vmatpush1.msra.mxu0 0.0
    %3013 = vmatprep.subr.mxu0 0.0
    %3014 = vmatpush1.msra.mxu0 0.0
    %3015 = vmatprep.mubr.f32.mxu0 0.0
    %3016 = vmatmul.mubr.f32.gmra.mrb[0].mxu0 %v2949
    %v3017 = vpop.f32.mrb[0].mxu0
    %v3018 = vadd.f32 0.0, %v3017
    %v3019 = vpop.f32.mrb[0].mxu0
    %3020 = vdwg.mxu0
    %v3021 = vadd.f32 %v2948, %v3018
    %v3022 = vxor.u32 %v3021, 2147483648
    %v3023 = vmul.f32 %v3022, 1.442695
    %v3024 = vpow.pop %v3023
    %v3025 = vadd.f32 %v3024, 1.0
    %v3026 = vrcp.pop %v3025
    %v3027 = vmul.f32 1.0, %v3026
    %v3028 = vtanh.pop %v3021
    %v3029 = vmul.f32 %v3027, %v2936
    %3031 = vrot.lane.b32.xlu0 %v3028, 64
    %v3032 = vpop.permute.xlu0 %3031
    %v3034 = vmul.f32 %v3027, %v3032
    %3036 = vrot.lane.b32.xlu0 %v3034, 32
    %v3037 = vpop.permute.xlu0 %3036
    %v3039 = vadd.f32 %v3029, %v3037
    %v3040 = vtanh.pop %v3039
    %3042 = vrot.lane.b32.xlu0 %v3040, 64
    %v3043 = vpop.permute.xlu0 %3042
    %v3045 = vmul.f32 %v3027, %v3043
    %3047 = vrot.lane.b32.xlu0 %v3045, 32
    %v3048 = vpop.permute.xlu0 %3047
    %3050 = vst.msk [vmem:[%s1147] sm:$0xff] %vm310, %v3048
    %v3051 = vld [vmem:[%s1149] sm:$0xff]
    %v3052 = vsel %vm310, %v3048, 0
    %3054 = vmatprep.subr.mxu0 0.0
    %3055 = vmatpush1.msra.mxu0 %v1993
    %3056 = vmatprep.subr.mxu0 0.0
    %3057 = vmatpush1.msra.mxu0 %v1994
    %3058 = vmatprep.subr.mxu0 0.0
    %3059 = vmatpush1.msra.mxu0 %v1995
    %3060 = vmatprep.subr.mxu0 0.0
    %3061 = vmatpush1.msra.mxu0 %v1996
    %3062 = vmatprep.subr.mxu0 0.0
    %3063 = vmatpush1.msra.mxu0 0.0
    %3064 = vmatprep.subr.mxu0 0.0
    %3065 = vmatpush1.msra.mxu0 0.0
    %3066 = vmatprep.subr.mxu0 0.0
    %3067 = vmatpush1.msra.mxu0 0.0
    %3068 = vmatprep.subr.mxu0 0.0
    %3069 = vmatpush1.msra.mxu0 0.0
    %3070 = vmatprep.subr.mxu0 0.0
    %3071 = vmatpush1.msra.mxu0 0.0
    %3072 = vmatprep.subr.mxu0 0.0
    %3073 = vmatpush1.msra.mxu0 0.0
    %3074 = vmatprep.subr.mxu0 0.0
    %3075 = vmatpush1.msra.mxu0 0.0
    %3076 = vmatprep.subr.mxu0 0.0
    %3077 = vmatpush1.msra.mxu0 0.0
    %3078 = vmatprep.subr.mxu0 0.0
    %3079 = vmatpush1.msra.mxu0 0.0
    %3080 = vmatprep.subr.mxu0 0.0
    %3081 = vmatpush1.msra.mxu0 0.0
    %3082 = vmatprep.subr.mxu0 0.0
    %3083 = vmatpush1.msra.mxu0 0.0
    %3084 = vmatprep.subr.mxu0 0.0
    %3085 = vmatpush1.msra.mxu0 0.0
    %3086 = vmatprep.subr.mxu0 0.0
    %3087 = vmatpush1.msra.mxu0 0.0
    %3088 = vmatprep.subr.mxu0 0.0
    %3089 = vmatpush1.msra.mxu0 0.0
    %3090 = vmatprep.subr.mxu0 0.0
    %3091 = vmatpush1.msra.mxu0 0.0
    %3092 = vmatprep.subr.mxu0 0.0
    %3093 = vmatpush1.msra.mxu0 0.0
    %3094 = vmatprep.subr.mxu0 0.0
    %3095 = vmatpush1.msra.mxu0 0.0
    %3096 = vmatprep.subr.mxu0 0.0
    %3097 = vmatpush1.msra.mxu0 0.0
    %3098 = vmatprep.subr.mxu0 0.0
    %3099 = vmatpush1.msra.mxu0 0.0
    %3100 = vmatprep.subr.mxu0 0.0
    %3101 = vmatpush1.msra.mxu0 0.0
    %3102 = vmatprep.subr.mxu0 0.0
    %3103 = vmatpush1.msra.mxu0 0.0
    %3104 = vmatprep.subr.mxu0 0.0
    %3105 = vmatpush1.msra.mxu0 0.0
    %3106 = vmatprep.subr.mxu0 0.0
    %3107 = vmatpush1.msra.mxu0 0.0
    %3108 = vmatprep.subr.mxu0 0.0
    %3109 = vmatpush1.msra.mxu0 0.0
    %3110 = vmatprep.subr.mxu0 0.0
    %3111 = vmatpush1.msra.mxu0 0.0
    %3112 = vmatprep.subr.mxu0 0.0
    %3113 = vmatpush1.msra.mxu0 0.0
    %3114 = vmatprep.subr.mxu0 0.0
    %3115 = vmatpush1.msra.mxu0 0.0
    %3116 = vmatprep.subr.mxu0 0.0
    %3117 = vmatpush1.msra.mxu0 0.0
    %3118 = vmatprep.mubr.f32.mxu0 0.0
    %3119 = vmatmul.mubr.f32.gmra.mrb[0].mxu0 %v3052
    %v3120 = vpop.f32.mrb[0].mxu0
    %v3121 = vadd.f32 0.0, %v3120
    %v3122 = vpop.f32.mrb[0].mxu0
    %3123 = vdwg.mxu0
    %v3124 = vadd.f32 %v3051, %v3121
    %v3125 = vxor.u32 %v3124, 2147483648
    %v3126 = vmul.f32 %v3125, 1.442695
    %v3127 = vpow.pop %v3126
    %v3128 = vadd.f32 %v3127, 1.0
    %v3129 = vrcp.pop %v3128
    %v3130 = vmul.f32 1.0, %v3129
    %v3131 = vtanh.pop %v3124
    %v3132 = vmul.f32 %v3130, %v3039
    %3134 = vrot.lane.b32.xlu0 %v3131, 64
    %v3135 = vpop.permute.xlu0 %3134
    %v3137 = vmul.f32 %v3130, %v3135
    %3139 = vrot.lane.b32.xlu0 %v3137, 32
    %v3140 = vpop.permute.xlu0 %3139
    %v3142 = vadd.f32 %v3132, %v3140
    %v3143 = vtanh.pop %v3142
    %3145 = vrot.lane.b32.xlu0 %v3143, 64
    %v3146 = vpop.permute.xlu0 %3145
    %v3148 = vmul.f32 %v3130, %v3146
    %3150 = vrot.lane.b32.xlu0 %v3148, 32
    %v3151 = vpop.permute.xlu0 %3150
    %3153 = vst.msk [vmem:[%s1252] sm:$0xff] %vm310, %v3151
    %v3154 = vld [vmem:[%s1254] sm:$0xff]
    %v3155 = vsel %vm310, %v3151, 0
    %3157 = vmatprep.subr.mxu0 0.0
    %3158 = vmatpush1.msra.mxu0 %v1993
    %3159 = vmatprep.subr.mxu0 0.0
    %3160 = vmatpush1.msra.mxu0 %v1994
    %3161 = vmatprep.subr.mxu0 0.0
    %3162 = vmatpush1.msra.mxu0 %v1995
    %3163 = vmatprep.subr.mxu0 0.0
    %3164 = vmatpush1.msra.mxu0 %v1996
    %3165 = vmatprep.subr.mxu0 0.0
    %3166 = vmatpush1.msra.mxu0 0.0
    %3167 = vmatprep.subr.mxu0 0.0
    %3168 = vmatpush1.msra.mxu0 0.0
    %3169 = vmatprep.subr.mxu0 0.0
    %3170 = vmatpush1.msra.mxu0 0.0
    %3171 = vmatprep.subr.mxu0 0.0
    %3172 = vmatpush1.msra.mxu0 0.0
    %3173 = vmatprep.subr.mxu0 0.0
    %3174 = vmatpush1.msra.mxu0 0.0
    %3175 = vmatprep.subr.mxu0 0.0
    %3176 = vmatpush1.msra.mxu0 0.0
    %3177 = vmatprep.subr.mxu0 0.0
    %3178 = vmatpush1.msra.mxu0 0.0
    %3179 = vmatprep.subr.mxu0 0.0
    %3180 = vmatpush1.msra.mxu0 0.0
    %3181 = vmatprep.subr.mxu0 0.0
    %3182 = vmatpush1.msra.mxu0 0.0
    %3183 = vmatprep.subr.mxu0 0.0
    %3184 = vmatpush1.msra.mxu0 0.0
    %3185 = vmatprep.subr.mxu0 0.0
    %3186 = vmatpush1.msra.mxu0 0.0
    %3187 = vmatprep.subr.mxu0 0.0
    %3188 = vmatpush1.msra.mxu0 0.0
    %3189 = vmatprep.subr.mxu0 0.0
    %3190 = vmatpush1.msra.mxu0 0.0
    %3191 = vmatprep.subr.mxu0 0.0
    %3192 = vmatpush1.msra.mxu0 0.0
    %3193 = vmatprep.subr.mxu0 0.0
    %3194 = vmatpush1.msra.mxu0 0.0
    %3195 = vmatprep.subr.mxu0 0.0
    %3196 = vmatpush1.msra.mxu0 0.0
    %3197 = vmatprep.subr.mxu0 0.0
    %3198 = vmatpush1.msra.mxu0 0.0
    %3199 = vmatprep.subr.mxu0 0.0
    %3200 = vmatpush1.msra.mxu0 0.0
    %3201 = vmatprep.subr.mxu0 0.0
    %3202 = vmatpush1.msra.mxu0 0.0
    %3203 = vmatprep.subr.mxu0 0.0
    %3204 = vmatpush1.msra.mxu0 0.0
    %3205 = vmatprep.subr.mxu0 0.0
    %3206 = vmatpush1.msra.mxu0 0.0
    %3207 = vmatprep.subr.mxu0 0.0
    %3208 = vmatpush1.msra.mxu0 0.0
    %3209 = vmatprep.subr.mxu0 0.0
    %3210 = vmatpush1.msra.mxu0 0.0
    %3211 = vmatprep.subr.mxu0 0.0
    %3212 = vmatpush1.msra.mxu0 0.0
    %3213 = vmatprep.subr.mxu0 0.0
    %3214 = vmatpush1.msra.mxu0 0.0
    %3215 = vmatprep.subr.mxu0 0.0
    %3216 = vmatpush1.msra.mxu0 0.0
    %3217 = vmatprep.subr.mxu0 0.0
    %3218 = vmatpush1.msra.mxu0 0.0
    %3219 = vmatprep.subr.mxu0 0.0
    %3220 = vmatpush1.msra.mxu0 0.0
    %3221 = vmatprep.mubr.f32.mxu0 0.0
    %3222 = vmatmul.mubr.f32.gmra.mrb[0].mxu0 %v3155
    %v3223 = vpop.f32.mrb[0].mxu0
    %v3224 = vadd.f32 0.0, %v3223
    %v3225 = vpop.f32.mrb[0].mxu0
    %3226 = vdwg.mxu0
    %v3227 = vadd.f32 %v3154, %v3224
    %v3228 = vxor.u32 %v3227, 2147483648
    %v3229 = vmul.f32 %v3228, 1.442695
    %v3230 = vpow.pop %v3229
    %v3231 = vadd.f32 %v3230, 1.0
    %v3232 = vrcp.pop %v3231
    %v3233 = vmul.f32 1.0, %v3232
    %v3234 = vtanh.pop %v3227
    %v3235 = vmul.f32 %v3233, %v3142
    %3237 = vrot.lane.b32.xlu0 %v3234, 64
    %v3238 = vpop.permute.xlu0 %3237
    %v3240 = vmul.f32 %v3233, %v3238
    %3242 = vrot.lane.b32.xlu0 %v3240, 32
    %v3243 = vpop.permute.xlu0 %3242
    %v3245 = vadd.f32 %v3235, %v3243
    %v3246 = vtanh.pop %v3245
    %3248 = vrot.lane.b32.xlu0 %v3246, 64
    %v3249 = vpop.permute.xlu0 %3248
    %v3251 = vmul.f32 %v3233, %v3249
    %3253 = vrot.lane.b32.xlu0 %v3251, 32
    %v3254 = vpop.permute.xlu0 %3253
    %3256 = vst.msk [vmem:[%s1357] sm:$0xff] %vm310, %v3254
    %v3257 = vld [vmem:[%s1359] sm:$0xff]
    %v3258 = vsel %vm310, %v3254, 0
    %3260 = vmatprep.subr.mxu0 0.0
    %3261 = vmatpush1.msra.mxu0 %v1993
    %3262 = vmatprep.subr.mxu0 0.0
    %3263 = vmatpush1.msra.mxu0 %v1994
    %3264 = vmatprep.subr.mxu0 0.0
    %3265 = vmatpush1.msra.mxu0 %v1995
    %3266 = vmatprep.subr.mxu0 0.0
    %3267 = vmatpush1.msra.mxu0 %v1996
    %3268 = vmatprep.subr.mxu0 0.0
    %3269 = vmatpush1.msra.mxu0 0.0
    %3270 = vmatprep.subr.mxu0 0.0
    %3271 = vmatpush1.msra.mxu0 0.0
    %3272 = vmatprep.subr.mxu0 0.0
    %3273 = vmatpush1.msra.mxu0 0.0
    %3274 = vmatprep.subr.mxu0 0.0
    %3275 = vmatpush1.msra.mxu0 0.0
    %3276 = vmatprep.subr.mxu0 0.0
    %3277 = vmatpush1.msra.mxu0 0.0
    %3278 = vmatprep.subr.mxu0 0.0
    %3279 = vmatpush1.msra.mxu0 0.0
    %3280 = vmatprep.subr.mxu0 0.0
    %3281 = vmatpush1.msra.mxu0 0.0
    %3282 = vmatprep.subr.mxu0 0.0
    %3283 = vmatpush1.msra.mxu0 0.0
    %3284 = vmatprep.subr.mxu0 0.0
    %3285 = vmatpush1.msra.mxu0 0.0
    %3286 = vmatprep.subr.mxu0 0.0
    %3287 = vmatpush1.msra.mxu0 0.0
    %3288 = vmatprep.subr.mxu0 0.0
    %3289 = vmatpush1.msra.mxu0 0.0
    %3290 = vmatprep.subr.mxu0 0.0
    %3291 = vmatpush1.msra.mxu0 0.0
    %3292 = vmatprep.subr.mxu0 0.0
    %3293 = vmatpush1.msra.mxu0 0.0
    %3294 = vmatprep.subr.mxu0 0.0
    %3295 = vmatpush1.msra.mxu0 0.0
    %3296 = vmatprep.subr.mxu0 0.0
    %3297 = vmatpush1.msra.mxu0 0.0
    %3298 = vmatprep.subr.mxu0 0.0
    %3299 = vmatpush1.msra.mxu0 0.0
    %3300 = vmatprep.subr.mxu0 0.0
    %3301 = vmatpush1.msra.mxu0 0.0
    %3302 = vmatprep.subr.mxu0 0.0
    %3303 = vmatpush1.msra.mxu0 0.0
    %3304 = vmatprep.subr.mxu0 0.0
    %3305 = vmatpush1.msra.mxu0 0.0
    %3306 = vmatprep.subr.mxu0 0.0
    %3307 = vmatpush1.msra.mxu0 0.0
    %3308 = vmatprep.subr.mxu0 0.0
    %3309 = vmatpush1.msra.mxu0 0.0
    %3310 = vmatprep.subr.mxu0 0.0
    %3311 = vmatpush1.msra.mxu0 0.0
    %3312 = vmatprep.subr.mxu0 0.0
    %3313 = vmatpush1.msra.mxu0 0.0
    %3314 = vmatprep.subr.mxu0 0.0
    %3315 = vmatpush1.msra.mxu0 0.0
    %3316 = vmatprep.subr.mxu0 0.0
    %3317 = vmatpush1.msra.mxu0 0.0
    %3318 = vmatprep.subr.mxu0 0.0
    %3319 = vmatpush1.msra.mxu0 0.0
    %3320 = vmatprep.subr.mxu0 0.0
    %3321 = vmatpush1.msra.mxu0 0.0
    %3322 = vmatprep.subr.mxu0 0.0
    %3323 = vmatpush1.msra.mxu0 0.0
    %3324 = vmatprep.mubr.f32.mxu0 0.0
    %3325 = vmatmul.mubr.f32.gmra.mrb[0].mxu0 %v3258
    %v3326 = vpop.f32.mrb[0].mxu0
    %v3327 = vadd.f32 0.0, %v3326
    %v3328 = vpop.f32.mrb[0].mxu0
    %3329 = vdwg.mxu0
    %v3330 = vadd.f32 %v3257, %v3327
    %v3331 = vxor.u32 %v3330, 2147483648
    %v3332 = vmul.f32 %v3331, 1.442695
    %v3333 = vpow.pop %v3332
    %v3334 = vadd.f32 %v3333, 1.0
    %v3335 = vrcp.pop %v3334
    %v3336 = vmul.f32 1.0, %v3335
    %v3337 = vtanh.pop %v3330
    %v3338 = vmul.f32 %v3336, %v3245
    %3340 = vrot.lane.b32.xlu0 %v3337, 64
    %v3341 = vpop.permute.xlu0 %3340
    %v3343 = vmul.f32 %v3336, %v3341
    %3345 = vrot.lane.b32.xlu0 %v3343, 32
    %v3346 = vpop.permute.xlu0 %3345
    %v3348 = vadd.f32 %v3338, %v3346
    %v3349 = vtanh.pop %v3348
    %3351 = vrot.lane.b32.xlu0 %v3349, 64
    %v3352 = vpop.permute.xlu0 %3351
    %v3354 = vmul.f32 %v3336, %v3352
    %3356 = vrot.lane.b32.xlu0 %v3354, 32
    %v3357 = vpop.permute.xlu0 %3356
    %3359 = vst.msk [vmem:[%s1462] sm:$0xff] %vm310, %v3357
    %v3360 = vld [vmem:[%s1464] sm:$0xff]
    %v3361 = vsel %vm310, %v3357, 0
    %3363 = vmatprep.subr.mxu0 0.0
    %3364 = vmatpush1.msra.mxu0 %v1993
    %3365 = vmatprep.subr.mxu0 0.0
    %3366 = vmatpush1.msra.mxu0 %v1994
    %3367 = vmatprep.subr.mxu0 0.0
    %3368 = vmatpush1.msra.mxu0 %v1995
    %3369 = vmatprep.subr.mxu0 0.0
    %3370 = vmatpush1.msra.mxu0 %v1996
    %3371 = vmatprep.subr.mxu0 0.0
    %3372 = vmatpush1.msra.mxu0 0.0
    %3373 = vmatprep.subr.mxu0 0.0
    %3374 = vmatpush1.msra.mxu0 0.0
    %3375 = vmatprep.subr.mxu0 0.0
    %3376 = vmatpush1.msra.mxu0 0.0
    %3377 = vmatprep.subr.mxu0 0.0
    %3378 = vmatpush1.msra.mxu0 0.0
    %3379 = vmatprep.subr.mxu0 0.0
    %3380 = vmatpush1.msra.mxu0 0.0
    %3381 = vmatprep.subr.mxu0 0.0
    %3382 = vmatpush1.msra.mxu0 0.0
    %3383 = vmatprep.subr.mxu0 0.0
    %3384 = vmatpush1.msra.mxu0 0.0
    %3385 = vmatprep.subr.mxu0 0.0
    %3386 = vmatpush1.msra.mxu0 0.0
    %3387 = vmatprep.subr.mxu0 0.0
    %3388 = vmatpush1.msra.mxu0 0.0
    %3389 = vmatprep.subr.mxu0 0.0
    %3390 = vmatpush1.msra.mxu0 0.0
    %3391 = vmatprep.subr.mxu0 0.0
    %3392 = vmatpush1.msra.mxu0 0.0
    %3393 = vmatprep.subr.mxu0 0.0
    %3394 = vmatpush1.msra.mxu0 0.0
    %3395 = vmatprep.subr.mxu0 0.0
    %3396 = vmatpush1.msra.mxu0 0.0
    %3397 = vmatprep.subr.mxu0 0.0
    %3398 = vmatpush1.msra.mxu0 0.0
    %3399 = vmatprep.subr.mxu0 0.0
    %3400 = vmatpush1.msra.mxu0 0.0
    %3401 = vmatprep.subr.mxu0 0.0
    %3402 = vmatpush1.msra.mxu0 0.0
    %3403 = vmatprep.subr.mxu0 0.0
    %3404 = vmatpush1.msra.mxu0 0.0
    %3405 = vmatprep.subr.mxu0 0.0
    %3406 = vmatpush1.msra.mxu0 0.0
    %3407 = vmatprep.subr.mxu0 0.0
    %3408 = vmatpush1.msra.mxu0 0.0
    %3409 = vmatprep.subr.mxu0 0.0
    %3410 = vmatpush1.msra.mxu0 0.0
    %3411 = vmatprep.subr.mxu0 0.0
    %3412 = vmatpush1.msra.mxu0 0.0
    %3413 = vmatprep.subr.mxu0 0.0
    %3414 = vmatpush1.msra.mxu0 0.0
    %3415 = vmatprep.subr.mxu0 0.0
    %3416 = vmatpush1.msra.mxu0 0.0
    %3417 = vmatprep.subr.mxu0 0.0
    %3418 = vmatpush1.msra.mxu0 0.0
    %3419 = vmatprep.subr.mxu0 0.0
    %3420 = vmatpush1.msra.mxu0 0.0
    %3421 = vmatprep.subr.mxu0 0.0
    %3422 = vmatpush1.msra.mxu0 0.0
    %3423 = vmatprep.subr.mxu0 0.0
    %3424 = vmatpush1.msra.mxu0 0.0
    %3425 = vmatprep.subr.mxu0 0.0
    %3426 = vmatpush1.msra.mxu0 0.0
    %3427 = vmatprep.mubr.f32.mxu0 0.0
    %3428 = vmatmul.mubr.f32.gmra.mrb[0].mxu0 %v3361
    %v3429 = vpop.f32.mrb[0].mxu0
    %v3430 = vadd.f32 0.0, %v3429
    %v3431 = vpop.f32.mrb[0].mxu0
    %3432 = vdwg.mxu0
    %v3433 = vadd.f32 %v3360, %v3430
    %v3434 = vxor.u32 %v3433, 2147483648
    %v3435 = vmul.f32 %v3434, 1.442695
    %v3436 = vpow.pop %v3435
    %v3437 = vadd.f32 %v3436, 1.0
    %v3438 = vrcp.pop %v3437
    %v3439 = vmul.f32 1.0, %v3438
    %v3440 = vtanh.pop %v3433
    %v3441 = vmul.f32 %v3439, %v3348
    %3443 = vrot.lane.b32.xlu0 %v3440, 64
    %v3444 = vpop.permute.xlu0 %3443
    %v3446 = vmul.f32 %v3439, %v3444
    %3448 = vrot.lane.b32.xlu0 %v3446, 32
    %v3449 = vpop.permute.xlu0 %3448
    %v3451 = vadd.f32 %v3441, %v3449
    %v3452 = vtanh.pop %v3451
    %3454 = vrot.lane.b32.xlu0 %v3452, 64
    %v3455 = vpop.permute.xlu0 %3454
    %v3457 = vmul.f32 %v3439, %v3455
    %3459 = vrot.lane.b32.xlu0 %v3457, 32
    %v3460 = vpop.permute.xlu0 %3459
    %3462 = vst.msk [vmem:[%s1567] sm:$0xff] %vm310, %v3460
    %v3463 = vld [vmem:[%s1569] sm:$0xff]
    %v3464 = vsel %vm310, %v3460, 0
    %3466 = vmatprep.subr.mxu0 0.0
    %3467 = vmatpush1.msra.mxu0 %v1993
    %3468 = vmatprep.subr.mxu0 0.0
    %3469 = vmatpush1.msra.mxu0 %v1994
    %3470 = vmatprep.subr.mxu0 0.0
    %3471 = vmatpush1.msra.mxu0 %v1995
    %3472 = vmatprep.subr.mxu0 0.0
    %3473 = vmatpush1.msra.mxu0 %v1996
    %3474 = vmatprep.subr.mxu0 0.0
    %3475 = vmatpush1.msra.mxu0 0.0
    %3476 = vmatprep.subr.mxu0 0.0
    %3477 = vmatpush1.msra.mxu0 0.0
    %3478 = vmatprep.subr.mxu0 0.0
    %3479 = vmatpush1.msra.mxu0 0.0
    %3480 = vmatprep.subr.mxu0 0.0
    %3481 = vmatpush1.msra.mxu0 0.0
    %3482 = vmatprep.subr.mxu0 0.0
    %3483 = vmatpush1.msra.mxu0 0.0
    %3484 = vmatprep.subr.mxu0 0.0
    %3485 = vmatpush1.msra.mxu0 0.0
    %3486 = vmatprep.subr.mxu0 0.0
    %3487 = vmatpush1.msra.mxu0 0.0
    %3488 = vmatprep.subr.mxu0 0.0
    %3489 = vmatpush1.msra.mxu0 0.0
    %3490 = vmatprep.subr.mxu0 0.0
    %3491 = vmatpush1.msra.mxu0 0.0
    %3492 = vmatprep.subr.mxu0 0.0
    %3493 = vmatpush1.msra.mxu0 0.0
    %3494 = vmatprep.subr.mxu0 0.0
    %3495 = vmatpush1.msra.mxu0 0.0
    %3496 = vmatprep.subr.mxu0 0.0
    %3497 = vmatpush1.msra.mxu0 0.0
    %3498 = vmatprep.subr.mxu0 0.0
    %3499 = vmatpush1.msra.mxu0 0.0
    %3500 = vmatprep.subr.mxu0 0.0
    %3501 = vmatpush1.msra.mxu0 0.0
    %3502 = vmatprep.subr.mxu0 0.0
    %3503 = vmatpush1.msra.mxu0 0.0
    %3504 = vmatprep.subr.mxu0 0.0
    %3505 = vmatpush1.msra.mxu0 0.0
    %3506 = vmatprep.subr.mxu0 0.0
    %3507 = vmatpush1.msra.mxu0 0.0
    %3508 = vmatprep.subr.mxu0 0.0
    %3509 = vmatpush1.msra.mxu0 0.0
    %3510 = vmatprep.subr.mxu0 0.0
    %3511 = vmatpush1.msra.mxu0 0.0
    %3512 = vmatprep.subr.mxu0 0.0
    %3513 = vmatpush1.msra.mxu0 0.0
    %3514 = vmatprep.subr.mxu0 0.0
    %3515 = vmatpush1.msra.mxu0 0.0
    %3516 = vmatprep.subr.mxu0 0.0
    %3517 = vmatpush1.msra.mxu0 0.0
    %3518 = vmatprep.subr.mxu0 0.0
    %3519 = vmatpush1.msra.mxu0 0.0
    %3520 = vmatprep.subr.mxu0 0.0
    %3521 = vmatpush1.msra.mxu0 0.0
    %3522 = vmatprep.subr.mxu0 0.0
    %3523 = vmatpush1.msra.mxu0 0.0
    %3524 = vmatprep.subr.mxu0 0.0
    %3525 = vmatpush1.msra.mxu0 0.0
    %3526 = vmatprep.subr.mxu0 0.0
    %3527 = vmatpush1.msra.mxu0 0.0
    %3528 = vmatprep.subr.mxu0 0.0
    %3529 = vmatpush1.msra.mxu0 0.0
    %3530 = vmatprep.mubr.f32.mxu0 0.0
    %3531 = vmatmul.mubr.f32.gmra.mrb[0].mxu0 %v3464
    %v3532 = vpop.f32.mrb[0].mxu0
    %v3533 = vadd.f32 0.0, %v3532
    %v3534 = vpop.f32.mrb[0].mxu0
    %3535 = vdwg.mxu0
    %v3536 = vadd.f32 %v3463, %v3533
    %v3537 = vxor.u32 %v3536, 2147483648
    %v3538 = vmul.f32 %v3537, 1.442695
    %v3539 = vpow.pop %v3538
    %v3540 = vadd.f32 %v3539, 1.0
    %v3541 = vrcp.pop %v3540
    %v3542 = vmul.f32 1.0, %v3541
    %v3543 = vtanh.pop %v3536
    %v3544 = vmul.f32 %v3542, %v3451
    %3546 = vrot.lane.b32.xlu0 %v3543, 64
    %v3547 = vpop.permute.xlu0 %3546
    %v3549 = vmul.f32 %v3542, %v3547
    %3551 = vrot.lane.b32.xlu0 %v3549, 32
    %v3552 = vpop.permute.xlu0 %3551
    %v3554 = vadd.f32 %v3544, %v3552
    %v3555 = vtanh.pop %v3554
    %3557 = vrot.lane.b32.xlu0 %v3555, 64
    %v3558 = vpop.permute.xlu0 %3557
    %v3560 = vmul.f32 %v3542, %v3558
    %3562 = vrot.lane.b32.xlu0 %v3560, 32
    %v3563 = vpop.permute.xlu0 %3562
    %3565 = vst.msk [vmem:[%s1672] sm:$0xff] %vm310, %v3563
    %v3566 = vld [vmem:[%s1674] sm:$0xff]
    %v3567 = vsel %vm310, %v3563, 0
    %3569 = vmatprep.subr.mxu0 0.0
    %3570 = vmatpush1.msra.mxu0 %v1993
    %3571 = vmatprep.subr.mxu0 0.0
    %3572 = vmatpush1.msra.mxu0 %v1994
    %3573 = vmatprep.subr.mxu0 0.0
    %3574 = vmatpush1.msra.mxu0 %v1995
    %3575 = vmatprep.subr.mxu0 0.0
    %3576 = vmatpush1.msra.mxu0 %v1996
    %3577 = vmatprep.subr.mxu0 0.0
    %3578 = vmatpush1.msra.mxu0 0.0
    %3579 = vmatprep.subr.mxu0 0.0
    %3580 = vmatpush1.msra.mxu0 0.0
    %3581 = vmatprep.subr.mxu0 0.0
    %3582 = vmatpush1.msra.mxu0 0.0
    %3583 = vmatprep.subr.mxu0 0.0
    %3584 = vmatpush1.msra.mxu0 0.0
    %3585 = vmatprep.subr.mxu0 0.0
    %3586 = vmatpush1.msra.mxu0 0.0
    %3587 = vmatprep.subr.mxu0 0.0
    %3588 = vmatpush1.msra.mxu0 0.0
    %3589 = vmatprep.subr.mxu0 0.0
    %3590 = vmatpush1.msra.mxu0 0.0
    %3591 = vmatprep.subr.mxu0 0.0
    %3592 = vmatpush1.msra.mxu0 0.0
    %3593 = vmatprep.subr.mxu0 0.0
    %3594 = vmatpush1.msra.mxu0 0.0
    %3595 = vmatprep.subr.mxu0 0.0
    %3596 = vmatpush1.msra.mxu0 0.0
    %3597 = vmatprep.subr.mxu0 0.0
    %3598 = vmatpush1.msra.mxu0 0.0
    %3599 = vmatprep.subr.mxu0 0.0
    %3600 = vmatpush1.msra.mxu0 0.0
    %3601 = vmatprep.subr.mxu0 0.0
    %3602 = vmatpush1.msra.mxu0 0.0
    %3603 = vmatprep.subr.mxu0 0.0
    %3604 = vmatpush1.msra.mxu0 0.0
    %3605 = vmatprep.subr.mxu0 0.0
    %3606 = vmatpush1.msra.mxu0 0.0
    %3607 = vmatprep.subr.mxu0 0.0
    %3608 = vmatpush1.msra.mxu0 0.0
    %3609 = vmatprep.subr.mxu0 0.0
    %3610 = vmatpush1.msra.mxu0 0.0
    %3611 = vmatprep.subr.mxu0 0.0
    %3612 = vmatpush1.msra.mxu0 0.0
    %3613 = vmatprep.subr.mxu0 0.0
    %3614 = vmatpush1.msra.mxu0 0.0
    %3615 = vmatprep.subr.mxu0 0.0
    %3616 = vmatpush1.msra.mxu0 0.0
    %3617 = vmatprep.subr.mxu0 0.0
    %3618 = vmatpush1.msra.mxu0 0.0
    %3619 = vmatprep.subr.mxu0 0.0
    %3620 = vmatpush1.msra.mxu0 0.0
    %3621 = vmatprep.subr.mxu0 0.0
    %3622 = vmatpush1.msra.mxu0 0.0
    %3623 = vmatprep.subr.mxu0 0.0
    %3624 = vmatpush1.msra.mxu0 0.0
    %3625 = vmatprep.subr.mxu0 0.0
    %3626 = vmatpush1.msra.mxu0 0.0
    %3627 = vmatprep.subr.mxu0 0.0
    %3628 = vmatpush1.msra.mxu0 0.0
    %3629 = vmatprep.subr.mxu0 0.0
    %3630 = vmatpush1.msra.mxu0 0.0
    %3631 = vmatprep.subr.mxu0 0.0
    %3632 = vmatpush1.msra.mxu0 0.0
    %3633 = vmatprep.mubr.f32.mxu0 0.0
    %3634 = vmatmul.mubr.f32.gmra.mrb[0].mxu0 %v3567
    %v3635 = vpop.f32.mrb[0].mxu0
    %v3636 = vadd.f32 0.0, %v3635
    %v3637 = vpop.f32.mrb[0].mxu0
    %3638 = vdwg.mxu0
    %v3639 = vadd.f32 %v3566, %v3636
    %v3640 = vxor.u32 %v3639, 2147483648
    %v3641 = vmul.f32 %v3640, 1.442695
    %v3642 = vpow.pop %v3641
    %v3643 = vadd.f32 %v3642, 1.0
    %v3644 = vrcp.pop %v3643
    %v3645 = vmul.f32 1.0, %v3644
    %v3646 = vtanh.pop %v3639
    %v3647 = vmul.f32 %v3645, %v3554
    %3649 = vrot.lane.b32.xlu0 %v3646, 64
    %v3650 = vpop.permute.xlu0 %3649
    %v3652 = vmul.f32 %v3645, %v3650
    %3654 = vrot.lane.b32.xlu0 %v3652, 32
    %v3655 = vpop.permute.xlu0 %3654
    %v3657 = vadd.f32 %v3647, %v3655
    %v3658 = vtanh.pop %v3657
    %3660 = vrot.lane.b32.xlu0 %v3658, 64
    %v3661 = vpop.permute.xlu0 %3660
    %v3663 = vmul.f32 %v3645, %v3661
    %3665 = vrot.lane.b32.xlu0 %v3663, 32
    %v3666 = vpop.permute.xlu0 %3665
    %3668 = vst.msk [vmem:[%s1777] sm:$0xff] %vm310, %v3666
    %v3669 = vld [vmem:[%s1779] sm:$0xff]
    %v3670 = vsel %vm310, %v3666, 0
    %3672 = vmatprep.subr.mxu0 0.0
    %3673 = vmatpush1.msra.mxu0 %v1993
    %3674 = vmatprep.subr.mxu0 0.0
    %3675 = vmatpush1.msra.mxu0 %v1994
    %3676 = vmatprep.subr.mxu0 0.0
    %3677 = vmatpush1.msra.mxu0 %v1995
    %3678 = vmatprep.subr.mxu0 0.0
    %3679 = vmatpush1.msra.mxu0 %v1996
    %3680 = vmatprep.subr.mxu0 0.0
    %3681 = vmatpush1.msra.mxu0 0.0
    %3682 = vmatprep.subr.mxu0 0.0
    %3683 = vmatpush1.msra.mxu0 0.0
    %3684 = vmatprep.subr.mxu0 0.0
    %3685 = vmatpush1.msra.mxu0 0.0
    %3686 = vmatprep.subr.mxu0 0.0
    %3687 = vmatpush1.msra.mxu0 0.0
    %3688 = vmatprep.subr.mxu0 0.0
    %3689 = vmatpush1.msra.mxu0 0.0
    %3690 = vmatprep.subr.mxu0 0.0
    %3691 = vmatpush1.msra.mxu0 0.0
    %3692 = vmatprep.subr.mxu0 0.0
    %3693 = vmatpush1.msra.mxu0 0.0
    %3694 = vmatprep.subr.mxu0 0.0
    %3695 = vmatpush1.msra.mxu0 0.0
    %3696 = vmatprep.subr.mxu0 0.0
    %3697 = vmatpush1.msra.mxu0 0.0
    %3698 = vmatprep.subr.mxu0 0.0
    %3699 = vmatpush1.msra.mxu0 0.0
    %3700 = vmatprep.subr.mxu0 0.0
    %3701 = vmatpush1.msra.mxu0 0.0
    %3702 = vmatprep.subr.mxu0 0.0
    %3703 = vmatpush1.msra.mxu0 0.0
    %3704 = vmatprep.subr.mxu0 0.0
    %3705 = vmatpush1.msra.mxu0 0.0
    %3706 = vmatprep.subr.mxu0 0.0
    %3707 = vmatpush1.msra.mxu0 0.0
    %3708 = vmatprep.subr.mxu0 0.0
    %3709 = vmatpush1.msra.mxu0 0.0
    %3710 = vmatprep.subr.mxu0 0.0
    %3711 = vmatpush1.msra.mxu0 0.0
    %3712 = vmatprep.subr.mxu0 0.0
    %3713 = vmatpush1.msra.mxu0 0.0
    %3714 = vmatprep.subr.mxu0 0.0
    %3715 = vmatpush1.msra.mxu0 0.0
    %3716 = vmatprep.subr.mxu0 0.0
    %3717 = vmatpush1.msra.mxu0 0.0
    %3718 = vmatprep.subr.mxu0 0.0
    %3719 = vmatpush1.msra.mxu0 0.0
    %3720 = vmatprep.subr.mxu0 0.0
    %3721 = vmatpush1.msra.mxu0 0.0
    %3722 = vmatprep.subr.mxu0 0.0
    %3723 = vmatpush1.msra.mxu0 0.0
    %3724 = vmatprep.subr.mxu0 0.0
    %3725 = vmatpush1.msra.mxu0 0.0
    %3726 = vmatprep.subr.mxu0 0.0
    %3727 = vmatpush1.msra.mxu0 0.0
    %3728 = vmatprep.subr.mxu0 0.0
    %3729 = vmatpush1.msra.mxu0 0.0
    %3730 = vmatprep.subr.mxu0 0.0
    %3731 = vmatpush1.msra.mxu0 0.0
    %3732 = vmatprep.subr.mxu0 0.0
    %3733 = vmatpush1.msra.mxu0 0.0
    %3734 = vmatprep.subr.mxu0 0.0
    %3735 = vmatpush1.msra.mxu0 0.0
    %3736 = vmatprep.mubr.f32.mxu0 0.0
    %3737 = vmatmul.mubr.f32.gmra.mrb[0].mxu0 %v3670
    %v3738 = vpop.f32.mrb[0].mxu0
    %v3739 = vadd.f32 0.0, %v3738
    %v3740 = vpop.f32.mrb[0].mxu0
    %3741 = vdwg.mxu0
    %v3742 = vadd.f32 %v3669, %v3739
    %v3743 = vxor.u32 %v3742, 2147483648
    %v3744 = vmul.f32 %v3743, 1.442695
    %v3745 = vpow.pop %v3744
    %v3746 = vadd.f32 %v3745, 1.0
    %v3747 = vrcp.pop %v3746
    %v3748 = vmul.f32 1.0, %v3747
    %v3749 = vtanh.pop %v3742
    %v3750 = vmul.f32 %v3748, %v3657
    %3752 = vrot.lane.b32.xlu0 %v3749, 64
    %v3753 = vpop.permute.xlu0 %3752
    %v3755 = vmul.f32 %v3748, %v3753
    %3757 = vrot.lane.b32.xlu0 %v3755, 32
    %v3758 = vpop.permute.xlu0 %3757
    %v3760 = vadd.f32 %v3750, %v3758
    %v3761 = vtanh.pop %v3760
    %3763 = vrot.lane.b32.xlu0 %v3761, 64
    %v3764 = vpop.permute.xlu0 %3763
    %v3766 = vmul.f32 %v3748, %v3764
    %3768 = vrot.lane.b32.xlu0 %v3766, 32
    %v3769 = vpop.permute.xlu0 %3768
    %3771 = vst.msk [vmem:[%s1882] sm:$0xff] %vm310, %v3769
    %v3772 = vld [vmem:[%s1884] sm:$0xff]
    %v3773 = vsel %vm310, %v3769, 0
    %3775 = vmatprep.subr.mxu0 0.0
    %3776 = vmatpush1.msra.mxu0 %v1993
    %3777 = vmatprep.subr.mxu0 0.0
    %3778 = vmatpush1.msra.mxu0 %v1994
    %3779 = vmatprep.subr.mxu0 0.0
    %3780 = vmatpush1.msra.mxu0 %v1995
    %3781 = vmatprep.subr.mxu0 0.0
    %3782 = vmatpush1.msra.mxu0 %v1996
    %3783 = vmatprep.subr.mxu0 0.0
    %3784 = vmatpush1.msra.mxu0 0.0
    %3785 = vmatprep.subr.mxu0 0.0
    %3786 = vmatpush1.msra.mxu0 0.0
    %3787 = vmatprep.subr.mxu0 0.0
    %3788 = vmatpush1.msra.mxu0 0.0
    %3789 = vmatprep.subr.mxu0 0.0
    %3790 = vmatpush1.msra.mxu0 0.0
    %3791 = vmatprep.subr.mxu0 0.0
    %3792 = vmatpush1.msra.mxu0 0.0
    %3793 = vmatprep.subr.mxu0 0.0
    %3794 = vmatpush1.msra.mxu0 0.0
    %3795 = vmatprep.subr.mxu0 0.0
    %3796 = vmatpush1.msra.mxu0 0.0
    %3797 = vmatprep.subr.mxu0 0.0
    %3798 = vmatpush1.msra.mxu0 0.0
    %3799 = vmatprep.subr.mxu0 0.0
    %3800 = vmatpush1.msra.mxu0 0.0
    %3801 = vmatprep.subr.mxu0 0.0
    %3802 = vmatpush1.msra.mxu0 0.0
    %3803 = vmatprep.subr.mxu0 0.0
    %3804 = vmatpush1.msra.mxu0 0.0
    %3805 = vmatprep.subr.mxu0 0.0
    %3806 = vmatpush1.msra.mxu0 0.0
    %3807 = vmatprep.subr.mxu0 0.0
    %3808 = vmatpush1.msra.mxu0 0.0
    %3809 = vmatprep.subr.mxu0 0.0
    %3810 = vmatpush1.msra.mxu0 0.0
    %3811 = vmatprep.subr.mxu0 0.0
    %3812 = vmatpush1.msra.mxu0 0.0
    %3813 = vmatprep.subr.mxu0 0.0
    %3814 = vmatpush1.msra.mxu0 0.0
    %3815 = vmatprep.subr.mxu0 0.0
    %3816 = vmatpush1.msra.mxu0 0.0
    %3817 = vmatprep.subr.mxu0 0.0
    %3818 = vmatpush1.msra.mxu0 0.0
    %3819 = vmatprep.subr.mxu0 0.0
    %3820 = vmatpush1.msra.mxu0 0.0
    %3821 = vmatprep.subr.mxu0 0.0
    %3822 = vmatpush1.msra.mxu0 0.0
    %3823 = vmatprep.subr.mxu0 0.0
    %3824 = vmatpush1.msra.mxu0 0.0
    %3825 = vmatprep.subr.mxu0 0.0
    %3826 = vmatpush1.msra.mxu0 0.0
    %3827 = vmatprep.subr.mxu0 0.0
    %3828 = vmatpush1.msra.mxu0 0.0
    %3829 = vmatprep.subr.mxu0 0.0
    %3830 = vmatpush1.msra.mxu0 0.0
    %3831 = vmatprep.subr.mxu0 0.0
    %3832 = vmatpush1.msra.mxu0 0.0
    %3833 = vmatprep.subr.mxu0 0.0
    %3834 = vmatpush1.msra.mxu0 0.0
    %3835 = vmatprep.subr.mxu0 0.0
    %3836 = vmatpush1.msra.mxu0 0.0
    %3837 = vmatprep.subr.mxu0 0.0
    %3838 = vmatpush1.msra.mxu0 0.0
    %3839 = vmatprep.mubr.f32.mxu0 0.0
    %3840 = vmatmul.mubr.f32.gmra.mrb[0].mxu0 %v3773
    %v3841 = vpop.f32.mrb[0].mxu0
    %v3842 = vadd.f32 0.0, %v3841
    %v3843 = vpop.f32.mrb[0].mxu0
    %3844 = vdwg.mxu0
    %v3845 = vadd.f32 %v3772, %v3842
    %v3846 = vxor.u32 %v3845, 2147483648
    %v3847 = vmul.f32 %v3846, 1.442695
    %v3848 = vpow.pop %v3847
    %v3849 = vadd.f32 %v3848, 1.0
    %v3850 = vrcp.pop %v3849
    %v3851 = vmul.f32 1.0, %v3850
    %v3852 = vtanh.pop %v3845
    %v3853 = vmul.f32 %v3851, %v3760
    %3855 = vrot.lane.b32.xlu0 %v3852, 64
    %v3856 = vpop.permute.xlu0 %3855
    %v3858 = vmul.f32 %v3851, %v3856
    %3860 = vrot.lane.b32.xlu0 %v3858, 32
    %v3861 = vpop.permute.xlu0 %3860
    %v3863 = vadd.f32 %v3853, %v3861
    %v3864 = vtanh.pop %v3863
    %3866 = vrot.lane.b32.xlu0 %v3864, 64
    %v3867 = vpop.permute.xlu0 %3866
    %v3869 = vmul.f32 %v3851, %v3867
    %3871 = vrot.lane.b32.xlu0 %v3869, 32
    %v3872 = vpop.permute.xlu0 %3871
    %3874 = vst.msk [vmem:[%s1987] sm:$0xff] %vm310, %v3872
    %v3875 = vld [vmem:[%s7] sm:$0xff]
    %v3876 = vld [vmem:[%s7 + $0x8] sm:$0xff]
    %v3877 = vld [vmem:[%s7 + $0x10] sm:$0xff]
    %v3878 = vld [vmem:[%s7 + $0x18] sm:$0xff]
    %v3879 = vld [vmem:[%s8] sm:$0xff]
    %v3880 = vld [vmem:[%s8 + $0x8] sm:$0xff]
    %v3881 = vld [vmem:[%s8 + $0x10] sm:$0xff]
    %v3882 = vld [vmem:[%s8 + $0x18] sm:$0xff]
    %v3883 = vld [vmem:[%s9] sm:$0x1]
    %v3884 = vld [vmem:[#allocation3] sm:$0xff]
    %v3885 = vld [vmem:[#allocation3 + $0x8] sm:$0xff]
    %v3886 = vld [vmem:[#allocation3 + $0x10] sm:$0xff]
    %v3887 = vld [vmem:[#allocation3 + $0x18] sm:$0xff]
    %v3888 = vld [vmem:[#allocation3 + $0x20] sm:$0xff]
    %v3889 = vld [vmem:[#allocation3 + $0x28] sm:$0xff]
    %v3890 = vld [vmem:[#allocation3 + $0x30] sm:$0xff]
    %v3891 = vld [vmem:[#allocation3 + $0x38] sm:$0xff]
    %v3892 = vld [vmem:[#allocation3 + $0x40] sm:$0xff]
    %v3893 = vld [vmem:[#allocation3 + $0x48] sm:$0xff]
    %v3894 = vld [vmem:[#allocation3 + $0x50] sm:$0xff]
    %v3895 = vld [vmem:[#allocation3 + $0x58] sm:$0xff]
    %v3896 = vld [vmem:[#allocation3 + $0x60] sm:$0xff]
    %v3897 = vld [vmem:[#allocation3 + $0x68] sm:$0xff]
    %v3898 = vld [vmem:[#allocation3 + $0x70] sm:$0xff]
    %v3899 = vld [vmem:[#allocation3 + $0x78] sm:$0xff]
    %v3901 = vlaneseq
    %v3902 = vshrl.u32 %v3901, 7
    %v3903 = vsub.s32 0, %v3902
    %v3904 = vrot.slane %v3883, %v3903
    %v3907 = vsel %vm310, %v3884, 0
    %v3910 = vsel %vm310, %v3885, 0
    %v3913 = vsel %vm310, %v3886, 0
    %v3916 = vsel %vm310, %v3887, 0
    %v3919 = vsel %vm310, %v3888, 0
    %v3922 = vsel %vm310, %v3889, 0
    %v3925 = vsel %vm310, %v3890, 0
    %v3928 = vsel %vm310, %v3891, 0
    %v3931 = vsel %vm310, %v3892, 0
    %v3934 = vsel %vm310, %v3893, 0
    %v3937 = vsel %vm310, %v3894, 0
    %v3940 = vsel %vm310, %v3895, 0
    %v3943 = vsel %vm310, %v3896, 0
    %v3946 = vsel %vm310, %v3897, 0
    %v3949 = vsel %vm310, %v3898, 0
    %v3952 = vsel %vm310, %v3899, 0
    %3954 = vmatprep.subr.mxu0 0.0
    %3955 = vmatpush1.msra.mxu0 %v3875
    %3956 = vmatprep.subr.mxu0 0.0
    %3957 = vmatpush1.msra.mxu0 %v3876
    %3958 = vmatprep.subr.mxu0 0.0
    %3959 = vmatpush1.msra.mxu0 %v3877
    %3960 = vmatprep.subr.mxu0 0.0
    %3961 = vmatpush1.msra.mxu0 %v3878
    %3962 = vmatprep.subr.mxu0 0.0
    %3963 = vmatpush1.msra.mxu0 0.0
    %3964 = vmatprep.subr.mxu0 0.0
    %3965 = vmatpush1.msra.mxu0 0.0
    %3966 = vmatprep.subr.mxu0 0.0
    %3967 = vmatpush1.msra.mxu0 0.0
    %3968 = vmatprep.subr.mxu0 0.0
    %3969 = vmatpush1.msra.mxu0 0.0
    %3970 = vmatprep.subr.mxu0 0.0
    %3971 = vmatpush1.msra.mxu0 0.0
    %3972 = vmatprep.subr.mxu0 0.0
    %3973 = vmatpush1.msra.mxu0 0.0
    %3974 = vmatprep.subr.mxu0 0.0
    %3975 = vmatpush1.msra.mxu0 0.0
    %3976 = vmatprep.subr.mxu0 0.0
    %3977 = vmatpush1.msra.mxu0 0.0
    %3978 = vmatprep.subr.mxu0 0.0
    %3979 = vmatpush1.msra.mxu0 0.0
    %3980 = vmatprep.subr.mxu0 0.0
    %3981 = vmatpush1.msra.mxu0 0.0
    %3982 = vmatprep.subr.mxu0 0.0
    %3983 = vmatpush1.msra.mxu0 0.0
    %3984 = vmatprep.subr.mxu0 0.0
    %3985 = vmatpush1.msra.mxu0 0.0
    %3986 = vmatprep.subr.mxu0 0.0
    %3987 = vmatpush1.msra.mxu0 0.0
    %3988 = vmatprep.subr.mxu0 0.0
    %3989 = vmatpush1.msra.mxu0 0.0
    %3990 = vmatprep.subr.mxu0 0.0
    %3991 = vmatpush1.msra.mxu0 0.0
    %3992 = vmatprep.subr.mxu0 0.0
    %3993 = vmatpush1.msra.mxu0 0.0
    %3994 = vmatprep.subr.mxu0 0.0
    %3995 = vmatpush1.msra.mxu0 0.0
    %3996 = vmatprep.subr.mxu0 0.0
    %3997 = vmatpush1.msra.mxu0 0.0
    %3998 = vmatprep.subr.mxu0 0.0
    %3999 = vmatpush1.msra.mxu0 0.0
    %4000 = vmatprep.subr.mxu0 0.0
    %4001 = vmatpush1.msra.mxu0 0.0
    %4002 = vmatprep.subr.mxu0 0.0
    %4003 = vmatpush1.msra.mxu0 0.0
    %4004 = vmatprep.subr.mxu0 0.0
    %4005 = vmatpush1.msra.mxu0 0.0
    %4006 = vmatprep.subr.mxu0 0.0
    %4007 = vmatpush1.msra.mxu0 0.0
    %4008 = vmatprep.subr.mxu0 0.0
    %4009 = vmatpush1.msra.mxu0 0.0
    %4010 = vmatprep.subr.mxu0 0.0
    %4011 = vmatpush1.msra.mxu0 0.0
    %4012 = vmatprep.subr.mxu0 0.0
    %4013 = vmatpush1.msra.mxu0 0.0
    %4014 = vmatprep.subr.mxu0 0.0
    %4015 = vmatpush1.msra.mxu0 0.0
    %4016 = vmatprep.subr.mxu0 0.0
    %4017 = vmatpush1.msra.mxu0 0.0
    %4018 = vmatprep.mubr.f32.mxu0 0.0
    %4019 = vmatmul.mubr.f32.gmra.mrb[0].mxu0 %v3907
    %v4020 = vpop.f32.mrb[0].mxu0
    %v4021 = vadd.f32 %v3904, %v4020
    %v4022 = vpop.f32.mrb[0].mxu0
    %4023 = vmatprep.mubr.f32.mxu0 0.0
    %4024 = vmatmul.mubr.f32.gmra.mrb[0].mxu0 %v3910
    %v4025 = vpop.f32.mrb[0].mxu0
    %v4026 = vadd.f32 %v3904, %v4025
    %v4027 = vpop.f32.mrb[0].mxu0
    %4028 = vmatprep.mubr.f32.mxu0 0.0
    %4029 = vmatmul.mubr.f32.gmra.mrb[0].mxu0 %v3913
    %v4030 = vpop.f32.mrb[0].mxu0
    %v4031 = vadd.f32 %v3904, %v4030
    %v4032 = vpop.f32.mrb[0].mxu0
    %4033 = vmatprep.mubr.f32.mxu0 0.0
    %4034 = vmatmul.mubr.f32.gmra.mrb[0].mxu0 %v3916
    %v4035 = vpop.f32.mrb[0].mxu0
    %v4036 = vadd.f32 %v3904, %v4035
    %v4037 = vpop.f32.mrb[0].mxu0
    %4038 = vmatprep.mubr.f32.mxu0 0.0
    %4039 = vmatmul.mubr.f32.gmra.mrb[0].mxu0 %v3919
    %v4040 = vpop.f32.mrb[0].mxu0
    %v4041 = vadd.f32 %v3904, %v4040
    %v4042 = vpop.f32.mrb[0].mxu0
    %4043 = vmatprep.mubr.f32.mxu0 0.0
    %4044 = vmatmul.mubr.f32.gmra.mrb[0].mxu0 %v3922
    %v4045 = vpop.f32.mrb[0].mxu0
    %v4046 = vadd.f32 %v3904, %v4045
    %v4047 = vpop.f32.mrb[0].mxu0
    %4048 = vmatprep.mubr.f32.mxu0 0.0
    %4049 = vmatmul.mubr.f32.gmra.mrb[0].mxu0 %v3925
    %v4050 = vpop.f32.mrb[0].mxu0
    %v4051 = vadd.f32 %v3904, %v4050
    %v4052 = vpop.f32.mrb[0].mxu0
    %4053 = vmatprep.mubr.f32.mxu0 0.0
    %4054 = vmatmul.mubr.f32.gmra.mrb[0].mxu0 %v3928
    %v4055 = vpop.f32.mrb[0].mxu0
    %v4056 = vadd.f32 %v3904, %v4055
    %v4057 = vpop.f32.mrb[0].mxu0
    %4058 = vmatprep.mubr.f32.mxu0 0.0
    %4059 = vmatmul.mubr.f32.gmra.mrb[0].mxu0 %v3931
    %v4060 = vpop.f32.mrb[0].mxu0
    %v4061 = vadd.f32 %v3904, %v4060
    %v4062 = vpop.f32.mrb[0].mxu0
    %4063 = vmatprep.mubr.f32.mxu0 0.0
    %4064 = vmatmul.mubr.f32.gmra.mrb[0].mxu0 %v3934
    %v4065 = vpop.f32.mrb[0].mxu0
    %v4066 = vadd.f32 %v3904, %v4065
    %v4067 = vpop.f32.mrb[0].mxu0
    %4068 = vmatprep.mubr.f32.mxu0 0.0
    %4069 = vmatmul.mubr.f32.gmra.mrb[0].mxu0 %v3937
    %v4070 = vpop.f32.mrb[0].mxu0
    %v4071 = vadd.f32 %v3904, %v4070
    %v4072 = vpop.f32.mrb[0].mxu0
    %4073 = vmatprep.mubr.f32.mxu0 0.0
    %4074 = vmatmul.mubr.f32.gmra.mrb[0].mxu0 %v3940
    %v4075 = vpop.f32.mrb[0].mxu0
    %v4076 = vadd.f32 %v3904, %v4075
    %v4077 = vpop.f32.mrb[0].mxu0
    %4078 = vmatprep.mubr.f32.mxu0 0.0
    %4079 = vmatmul.mubr.f32.gmra.mrb[0].mxu0 %v3943
    %v4080 = vpop.f32.mrb[0].mxu0
    %v4081 = vadd.f32 %v3904, %v4080
    %v4082 = vpop.f32.mrb[0].mxu0
    %4083 = vmatprep.mubr.f32.mxu0 0.0
    %4084 = vmatmul.mubr.f32.gmra.mrb[0].mxu0 %v3946
    %v4085 = vpop.f32.mrb[0].mxu0
    %v4086 = vadd.f32 %v3904, %v4085
    %v4087 = vpop.f32.mrb[0].mxu0
    %4088 = vmatprep.mubr.f32.mxu0 0.0
    %4089 = vmatmul.mubr.f32.gmra.mrb[0].mxu0 %v3949
    %v4090 = vpop.f32.mrb[0].mxu0
    %v4091 = vadd.f32 %v3904, %v4090
    %v4092 = vpop.f32.mrb[0].mxu0
    %4093 = vmatprep.mubr.f32.mxu0 0.0
    %4094 = vmatmul.mubr.f32.gmra.mrb[0].mxu0 %v3952
    %v4095 = vpop.f32.mrb[0].mxu0
    %v4096 = vadd.f32 %v3904, %v4095
    %v4097 = vpop.f32.mrb[0].mxu0
    %4098 = vdwg.mxu0
    %4099 = vst [vmem:[#allocation2] sm:$0xff] %v4021
    %4100 = vst [vmem:[#allocation2 + $0x8] sm:$0xff] %v4026
    %4101 = vst [vmem:[#allocation2 + $0x10] sm:$0xff] %v4031
    %4102 = vst [vmem:[#allocation2 + $0x18] sm:$0xff] %v4036
    %4103 = vst [vmem:[#allocation2 + $0x20] sm:$0xff] %v4041
    %4104 = vst [vmem:[#allocation2 + $0x28] sm:$0xff] %v4046
    %4105 = vst [vmem:[#allocation2 + $0x30] sm:$0xff] %v4051
    %4106 = vst [vmem:[#allocation2 + $0x38] sm:$0xff] %v4056
    %4107 = vst [vmem:[#allocation2 + $0x40] sm:$0xff] %v4061
    %4108 = vst [vmem:[#allocation2 + $0x48] sm:$0xff] %v4066
    %4109 = vst [vmem:[#allocation2 + $0x50] sm:$0xff] %v4071
    %4110 = vst [vmem:[#allocation2 + $0x58] sm:$0xff] %v4076
    %4111 = vst [vmem:[#allocation2 + $0x60] sm:$0xff] %v4081
    %4112 = vst [vmem:[#allocation2 + $0x68] sm:$0xff] %v4086
    %4113 = vst [vmem:[#allocation2 + $0x70] sm:$0xff] %v4091
    %4114 = vst [vmem:[#allocation2 + $0x78] sm:$0xff] %v4096
    %v4115 = vld [vmem:[#allocation2] sm:$0xff]
    %4116 = vmatprep.subr.mxu0 0.0
    %4117 = vmatpush1.msra.mxu0 %v3879
    %4118 = vmatprep.subr.mxu0 0.0
    %4119 = vmatpush1.msra.mxu0 %v3880
    %4120 = vmatprep.subr.mxu0 0.0
    %4121 = vmatpush1.msra.mxu0 %v3881
    %4122 = vmatprep.subr.mxu0 0.0
    %4123 = vmatpush1.msra.mxu0 %v3882
    %4124 = vmatprep.subr.mxu0 0.0
    %4125 = vmatpush1.msra.mxu0 0.0
    %4126 = vmatprep.subr.mxu0 0.0
    %4127 = vmatpush1.msra.mxu0 0.0
    %4128 = vmatprep.subr.mxu0 0.0
    %4129 = vmatpush1.msra.mxu0 0.0
    %4130 = vmatprep.subr.mxu0 0.0
    %4131 = vmatpush1.msra.mxu0 0.0
    %4132 = vmatprep.subr.mxu0 0.0
    %4133 = vmatpush1.msra.mxu0 0.0
    %4134 = vmatprep.subr.mxu0 0.0
    %4135 = vmatpush1.msra.mxu0 0.0
    %4136 = vmatprep.subr.mxu0 0.0
    %4137 = vmatpush1.msra.mxu0 0.0
    %4138 = vmatprep.subr.mxu0 0.0
    %4139 = vmatpush1.msra.mxu0 0.0
    %4140 = vmatprep.subr.mxu0 0.0
    %4141 = vmatpush1.msra.mxu0 0.0
    %4142 = vmatprep.subr.mxu0 0.0
    %4143 = vmatpush1.msra.mxu0 0.0
    %4144 = vmatprep.subr.mxu0 0.0
    %4145 = vmatpush1.msra.mxu0 0.0
    %4146 = vmatprep.subr.mxu0 0.0
    %4147 = vmatpush1.msra.mxu0 0.0
    %4148 = vmatprep.subr.mxu0 0.0
    %4149 = vmatpush1.msra.mxu0 0.0
    %4150 = vmatprep.subr.mxu0 0.0
    %4151 = vmatpush1.msra.mxu0 0.0
    %4152 = vmatprep.subr.mxu0 0.0
    %4153 = vmatpush1.msra.mxu0 0.0
    %4154 = vmatprep.subr.mxu0 0.0
    %4155 = vmatpush1.msra.mxu0 0.0
    %4156 = vmatprep.subr.mxu0 0.0
    %4157 = vmatpush1.msra.mxu0 0.0
    %4158 = vmatprep.subr.mxu0 0.0
    %4159 = vmatpush1.msra.mxu0 0.0
    %4160 = vmatprep.subr.mxu0 0.0
    %4161 = vmatpush1.msra.mxu0 0.0
    %4162 = vmatprep.subr.mxu0 0.0
    %4163 = vmatpush1.msra.mxu0 0.0
    %4164 = vmatprep.subr.mxu0 0.0
    %4165 = vmatpush1.msra.mxu0 0.0
    %4166 = vmatprep.subr.mxu0 0.0
    %4167 = vmatpush1.msra.mxu0 0.0
    %4168 = vmatprep.subr.mxu0 0.0
    %4169 = vmatpush1.msra.mxu0 0.0
    %4170 = vmatprep.subr.mxu0 0.0
    %4171 = vmatpush1.msra.mxu0 0.0
    %4172 = vmatprep.subr.mxu0 0.0
    %4173 = vmatpush1.msra.mxu0 0.0
    %4174 = vmatprep.subr.mxu0 0.0
    %4175 = vmatpush1.msra.mxu0 0.0
    %4176 = vmatprep.subr.mxu0 0.0
    %4177 = vmatpush1.msra.mxu0 0.0
    %4178 = vmatprep.subr.mxu0 0.0
    %4179 = vmatpush1.msra.mxu0 0.0
    %4180 = vmatprep.mubr.f32.mxu0 0.0
    %4181 = vmatmul.mubr.f32.gmra.mrb[0].mxu0 %v312
    %v4182 = vpop.f32.mrb[0].mxu0
    %v4183 = vadd.f32 0.0, %v4182
    %v4184 = vpop.f32.mrb[0].mxu0
    %4185 = vdwg.mxu0
    %v4186 = vadd.f32 %v4115, %v4183
    %v4187 = vxor.u32 %v4186, 2147483648
    %v4188 = vmul.f32 %v4187, 1.442695
    %v4189 = vpow.pop %v4188
    %v4190 = vadd.f32 %v4189, 1.0
    %v4191 = vrcp.pop %v4190
    %v4192 = vmul.f32 1.0, %v4191
    %v4193 = vtanh.pop %v4186
    %v4194 = vmul.f32 %v4192, 0.0
    %4196 = vrot.lane.b32.xlu0 %v4193, 64
    %v4197 = vpop.permute.xlu0 %4196
    %v4199 = vmul.f32 %v4192, %v4197
    %4201 = vrot.lane.b32.xlu0 %v4199, 32
    %v4202 = vpop.permute.xlu0 %4201
    %v4204 = vadd.f32 %v4194, %v4202
    %v4205 = vtanh.pop %v4204
    %4207 = vrot.lane.b32.xlu0 %v4205, 64
    %v4208 = vpop.permute.xlu0 %4207
    %v4210 = vmul.f32 %v4192, %v4208
    %v4211 = vld [vmem:[%s414] sm:$0xff]
    %4213 = vrot.lane.b32.xlu0 %v4210, 32
    %v4214 = vpop.permute.xlu0 %4213
    %v4215 = vsel %vm310, %v4214, 0
    %4217 = vmatprep.subr.mxu0 0.0
    %4218 = vmatpush1.msra.mxu0 %v3879
    %4219 = vmatprep.subr.mxu0 0.0
    %4220 = vmatpush1.msra.mxu0 %v3880
    %4221 = vmatprep.subr.mxu0 0.0
    %4222 = vmatpush1.msra.mxu0 %v3881
    %4223 = vmatprep.subr.mxu0 0.0
    %4224 = vmatpush1.msra.mxu0 %v3882
    %4225 = vmatprep.subr.mxu0 0.0
    %4226 = vmatpush1.msra.mxu0 0.0
    %4227 = vmatprep.subr.mxu0 0.0
    %4228 = vmatpush1.msra.mxu0 0.0
    %4229 = vmatprep.subr.mxu0 0.0
    %4230 = vmatpush1.msra.mxu0 0.0
    %4231 = vmatprep.subr.mxu0 0.0
    %4232 = vmatpush1.msra.mxu0 0.0
    %4233 = vmatprep.subr.mxu0 0.0
    %4234 = vmatpush1.msra.mxu0 0.0
    %4235 = vmatprep.subr.mxu0 0.0
    %4236 = vmatpush1.msra.mxu0 0.0
    %4237 = vmatprep.subr.mxu0 0.0
    %4238 = vmatpush1.msra.mxu0 0.0
    %4239 = vmatprep.subr.mxu0 0.0
    %4240 = vmatpush1.msra.mxu0 0.0
    %4241 = vmatprep.subr.mxu0 0.0
    %4242 = vmatpush1.msra.mxu0 0.0
    %4243 = vmatprep.subr.mxu0 0.0
    %4244 = vmatpush1.msra.mxu0 0.0
    %4245 = vmatprep.subr.mxu0 0.0
    %4246 = vmatpush1.msra.mxu0 0.0
    %4247 = vmatprep.subr.mxu0 0.0
    %4248 = vmatpush1.msra.mxu0 0.0
    %4249 = vmatprep.subr.mxu0 0.0
    %4250 = vmatpush1.msra.mxu0 0.0
    %4251 = vmatprep.subr.mxu0 0.0
    %4252 = vmatpush1.msra.mxu0 0.0
    %4253 = vmatprep.subr.mxu0 0.0
    %4254 = vmatpush1.msra.mxu0 0.0
    %4255 = vmatprep.subr.mxu0 0.0
    %4256 = vmatpush1.msra.mxu0 0.0
    %4257 = vmatprep.subr.mxu0 0.0
    %4258 = vmatpush1.msra.mxu0 0.0
    %4259 = vmatprep.subr.mxu0 0.0
    %4260 = vmatpush1.msra.mxu0 0.0
    %4261 = vmatprep.subr.mxu0 0.0
    %4262 = vmatpush1.msra.mxu0 0.0
    %4263 = vmatprep.subr.mxu0 0.0
    %4264 = vmatpush1.msra.mxu0 0.0
    %4265 = vmatprep.subr.mxu0 0.0
    %4266 = vmatpush1.msra.mxu0 0.0
    %4267 = vmatprep.subr.mxu0 0.0
    %4268 = vmatpush1.msra.mxu0 0.0
    %4269 = vmatprep.subr.mxu0 0.0
    %4270 = vmatpush1.msra.mxu0 0.0
    %4271 = vmatprep.subr.mxu0 0.0
    %4272 = vmatpush1.msra.mxu0 0.0
    %4273 = vmatprep.subr.mxu0 0.0
    %4274 = vmatpush1.msra.mxu0 0.0
    %4275 = vmatprep.subr.mxu0 0.0
    %4276 = vmatpush1.msra.mxu0 0.0
    %4277 = vmatprep.subr.mxu0 0.0
    %4278 = vmatpush1.msra.mxu0 0.0
    %4279 = vmatprep.subr.mxu0 0.0
    %4280 = vmatpush1.msra.mxu0 0.0
    %4281 = vmatprep.mubr.f32.mxu0 0.0
    %4282 = vmatmul.mubr.f32.gmra.mrb[0].mxu0 %v4215
    %v4283 = vpop.f32.mrb[0].mxu0
    %v4284 = vadd.f32 0.0, %v4283
    %v4285 = vpop.f32.mrb[0].mxu0
    %4286 = vdwg.mxu0
    %v4287 = vadd.f32 %v4211, %v4284
    %v4288 = vxor.u32 %v4287, 2147483648
    %v4289 = vmul.f32 %v4288, 1.442695
    %v4290 = vpow.pop %v4289
    %v4291 = vadd.f32 %v4290, 1.0
    %v4292 = vrcp.pop %v4291
    %v4293 = vmul.f32 1.0, %v4292
    %v4294 = vtanh.pop %v4287
    %v4295 = vmul.f32 %v4293, %v4204
    %4297 = vrot.lane.b32.xlu0 %v4294, 64
    %v4298 = vpop.permute.xlu0 %4297
    %v4300 = vmul.f32 %v4293, %v4298
    %4302 = vrot.lane.b32.xlu0 %v4300, 32
    %v4303 = vpop.permute.xlu0 %4302
    %v4305 = vadd.f32 %v4295, %v4303
    %v4306 = vtanh.pop %v4305
    %4308 = vrot.lane.b32.xlu0 %v4306, 64
    %v4309 = vpop.permute.xlu0 %4308
    %v4311 = vmul.f32 %v4293, %v4309
    %v4312 = vld [vmem:[%s519] sm:$0xff]
    %4314 = vrot.lane.b32.xlu0 %v4311, 32
    %v4315 = vpop.permute.xlu0 %4314
    %v4316 = vsel %vm310, %v4315, 0
    %4318 = vmatprep.subr.mxu0 0.0
    %4319 = vmatpush1.msra.mxu0 %v3879
    %4320 = vmatprep.subr.mxu0 0.0
    %4321 = vmatpush1.msra.mxu0 %v3880
    %4322 = vmatprep.subr.mxu0 0.0
    %4323 = vmatpush1.msra.mxu0 %v3881
    %4324 = vmatprep.subr.mxu0 0.0
    %4325 = vmatpush1.msra.mxu0 %v3882
    %4326 = vmatprep.subr.mxu0 0.0
    %4327 = vmatpush1.msra.mxu0 0.0
    %4328 = vmatprep.subr.mxu0 0.0
    %4329 = vmatpush1.msra.mxu0 0.0
    %4330 = vmatprep.subr.mxu0 0.0
    %4331 = vmatpush1.msra.mxu0 0.0
    %4332 = vmatprep.subr.mxu0 0.0
    %4333 = vmatpush1.msra.mxu0 0.0
    %4334 = vmatprep.subr.mxu0 0.0
    %4335 = vmatpush1.msra.mxu0 0.0
    %4336 = vmatprep.subr.mxu0 0.0
    %4337 = vmatpush1.msra.mxu0 0.0
    %4338 = vmatprep.subr.mxu0 0.0
    %4339 = vmatpush1.msra.mxu0 0.0
    %4340 = vmatprep.subr.mxu0 0.0
    %4341 = vmatpush1.msra.mxu0 0.0
    %4342 = vmatprep.subr.mxu0 0.0
    %4343 = vmatpush1.msra.mxu0 0.0
    %4344 = vmatprep.subr.mxu0 0.0
    %4345 = vmatpush1.msra.mxu0 0.0
    %4346 = vmatprep.subr.mxu0 0.0
    %4347 = vmatpush1.msra.mxu0 0.0
    %4348 = vmatprep.subr.mxu0 0.0
    %4349 = vmatpush1.msra.mxu0 0.0
    %4350 = vmatprep.subr.mxu0 0.0
    %4351 = vmatpush1.msra.mxu0 0.0
    %4352 = vmatprep.subr.mxu0 0.0
    %4353 = vmatpush1.msra.mxu0 0.0
    %4354 = vmatprep.subr.mxu0 0.0
    %4355 = vmatpush1.msra.mxu0 0.0
    %4356 = vmatprep.subr.mxu0 0.0
    %4357 = vmatpush1.msra.mxu0 0.0
    %4358 = vmatprep.subr.mxu0 0.0
    %4359 = vmatpush1.msra.mxu0 0.0
    %4360 = vmatprep.subr.mxu0 0.0
    %4361 = vmatpush1.msra.mxu0 0.0
    %4362 = vmatprep.subr.mxu0 0.0
    %4363 = vmatpush1.msra.mxu0 0.0
    %4364 = vmatprep.subr.mxu0 0.0
    %4365 = vmatpush1.msra.mxu0 0.0
    %4366 = vmatprep.subr.mxu0 0.0
    %4367 = vmatpush1.msra.mxu0 0.0
    %4368 = vmatprep.subr.mxu0 0.0
    %4369 = vmatpush1.msra.mxu0 0.0
    %4370 = vmatprep.subr.mxu0 0.0
    %4371 = vmatpush1.msra.mxu0 0.0
    %4372 = vmatprep.subr.mxu0 0.0
    %4373 = vmatpush1.msra.mxu0 0.0
    %4374 = vmatprep.subr.mxu0 0.0
    %4375 = vmatpush1.msra.mxu0 0.0
    %4376 = vmatprep.subr.mxu0 0.0
    %4377 = vmatpush1.msra.mxu0 0.0
    %4378 = vmatprep.subr.mxu0 0.0
    %4379 = vmatpush1.msra.mxu0 0.0
    %4380 = vmatprep.subr.mxu0 0.0
    %4381 = vmatpush1.msra.mxu0 0.0
    %4382 = vmatprep.mubr.f32.mxu0 0.0
    %4383 = vmatmul.mubr.f32.gmra.mrb[0].mxu0 %v4316
    %v4384 = vpop.f32.mrb[0].mxu0
    %v4385 = vadd.f32 0.0, %v4384
    %v4386 = vpop.f32.mrb[0].mxu0
    %4387 = vdwg.mxu0
    %v4388 = vadd.f32 %v4312, %v4385
    %v4389 = vxor.u32 %v4388, 2147483648
    %v4390 = vmul.f32 %v4389, 1.442695
    %v4391 = vpow.pop %v4390
    %v4392 = vadd.f32 %v4391, 1.0
    %v4393 = vrcp.pop %v4392
    %v4394 = vmul.f32 1.0, %v4393
    %v4395 = vtanh.pop %v4388
    %v4396 = vmul.f32 %v4394, %v4305
    %4398 = vrot.lane.b32.xlu0 %v4395, 64
    %v4399 = vpop.permute.xlu0 %4398
    %v4401 = vmul.f32 %v4394, %v4399
    %4403 = vrot.lane.b32.xlu0 %v4401, 32
    %v4404 = vpop.permute.xlu0 %4403
    %v4406 = vadd.f32 %v4396, %v4404
    %v4407 = vtanh.pop %v4406
    %4409 = vrot.lane.b32.xlu0 %v4407, 64
    %v4410 = vpop.permute.xlu0 %4409
    %v4412 = vmul.f32 %v4394, %v4410
    %v4413 = vld [vmem:[%s624] sm:$0xff]
    %4415 = vrot.lane.b32.xlu0 %v4412, 32
    %v4416 = vpop.permute.xlu0 %4415
    %v4417 = vsel %vm310, %v4416, 0
    %4419 = vmatprep.subr.mxu0 0.0
    %4420 = vmatpush1.msra.mxu0 %v3879
    %4421 = vmatprep.subr.mxu0 0.0
    %4422 = vmatpush1.msra.mxu0 %v3880
    %4423 = vmatprep.subr.mxu0 0.0
    %4424 = vmatpush1.msra.mxu0 %v3881
    %4425 = vmatprep.subr.mxu0 0.0
    %4426 = vmatpush1.msra.mxu0 %v3882
    %4427 = vmatprep.subr.mxu0 0.0
    %4428 = vmatpush1.msra.mxu0 0.0
    %4429 = vmatprep.subr.mxu0 0.0
    %4430 = vmatpush1.msra.mxu0 0.0
    %4431 = vmatprep.subr.mxu0 0.0
    %4432 = vmatpush1.msra.mxu0 0.0
    %4433 = vmatprep.subr.mxu0 0.0
    %4434 = vmatpush1.msra.mxu0 0.0
    %4435 = vmatprep.subr.mxu0 0.0
    %4436 = vmatpush1.msra.mxu0 0.0
    %4437 = vmatprep.subr.mxu0 0.0
    %4438 = vmatpush1.msra.mxu0 0.0
    %4439 = vmatprep.subr.mxu0 0.0
    %4440 = vmatpush1.msra.mxu0 0.0
    %4441 = vmatprep.subr.mxu0 0.0
    %4442 = vmatpush1.msra.mxu0 0.0
    %4443 = vmatprep.subr.mxu0 0.0
    %4444 = vmatpush1.msra.mxu0 0.0
    %4445 = vmatprep.subr.mxu0 0.0
    %4446 = vmatpush1.msra.mxu0 0.0
    %4447 = vmatprep.subr.mxu0 0.0
    %4448 = vmatpush1.msra.mxu0 0.0
    %4449 = vmatprep.subr.mxu0 0.0
    %4450 = vmatpush1.msra.mxu0 0.0
    %4451 = vmatprep.subr.mxu0 0.0
    %4452 = vmatpush1.msra.mxu0 0.0
    %4453 = vmatprep.subr.mxu0 0.0
    %4454 = vmatpush1.msra.mxu0 0.0
    %4455 = vmatprep.subr.mxu0 0.0
    %4456 = vmatpush1.msra.mxu0 0.0
    %4457 = vmatprep.subr.mxu0 0.0
    %4458 = vmatpush1.msra.mxu0 0.0
    %4459 = vmatprep.subr.mxu0 0.0
    %4460 = vmatpush1.msra.mxu0 0.0
    %4461 = vmatprep.subr.mxu0 0.0
    %4462 = vmatpush1.msra.mxu0 0.0
    %4463 = vmatprep.subr.mxu0 0.0
    %4464 = vmatpush1.msra.mxu0 0.0
    %4465 = vmatprep.subr.mxu0 0.0
    %4466 = vmatpush1.msra.mxu0 0.0
    %4467 = vmatprep.subr.mxu0 0.0
    %4468 = vmatpush1.msra.mxu0 0.0
    %4469 = vmatprep.subr.mxu0 0.0
    %4470 = vmatpush1.msra.mxu0 0.0
    %4471 = vmatprep.subr.mxu0 0.0
    %4472 = vmatpush1.msra.mxu0 0.0
    %4473 = vmatprep.subr.mxu0 0.0
    %4474 = vmatpush1.msra.mxu0 0.0
    %4475 = vmatprep.subr.mxu0 0.0
    %4476 = vmatpush1.msra.mxu0 0.0
    %4477 = vmatprep.subr.mxu0 0.0
    %4478 = vmatpush1.msra.mxu0 0.0
    %4479 = vmatprep.subr.mxu0 0.0
    %4480 = vmatpush1.msra.mxu0 0.0
    %4481 = vmatprep.subr.mxu0 0.0
    %4482 = vmatpush1.msra.mxu0 0.0
    %4483 = vmatprep.mubr.f32.mxu0 0.0
    %4484 = vmatmul.mubr.f32.gmra.mrb[0].mxu0 %v4417
    %v4485 = vpop.f32.mrb[0].mxu0
    %v4486 = vadd.f32 0.0, %v4485
    %v4487 = vpop.f32.mrb[0].mxu0
    %4488 = vdwg.mxu0
    %v4489 = vadd.f32 %v4413, %v4486
    %v4490 = vxor.u32 %v4489, 2147483648
    %v4491 = vmul.f32 %v4490, 1.442695
    %v4492 = vpow.pop %v4491
    %v4493 = vadd.f32 %v4492, 1.0
    %v4494 = vrcp.pop %v4493
    %v4495 = vmul.f32 1.0, %v4494
    %v4496 = vtanh.pop %v4489
    %v4497 = vmul.f32 %v4495, %v4406
    %4499 = vrot.lane.b32.xlu0 %v4496, 64
    %v4500 = vpop.permute.xlu0 %4499
    %v4502 = vmul.f32 %v4495, %v4500
    %4504 = vrot.lane.b32.xlu0 %v4502, 32
    %v4505 = vpop.permute.xlu0 %4504
    %v4507 = vadd.f32 %v4497, %v4505
    %v4508 = vtanh.pop %v4507
    %4510 = vrot.lane.b32.xlu0 %v4508, 64
    %v4511 = vpop.permute.xlu0 %4510
    %v4513 = vmul.f32 %v4495, %v4511
    %v4514 = vld [vmem:[%s729] sm:$0xff]
    %4516 = vrot.lane.b32.xlu0 %v4513, 32
    %v4517 = vpop.permute.xlu0 %4516
    %v4518 = vsel %vm310, %v4517, 0
    %4520 = vmatprep.subr.mxu0 0.0
    %4521 = vmatpush1.msra.mxu0 %v3879
    %4522 = vmatprep.subr.mxu0 0.0
    %4523 = vmatpush1.msra.mxu0 %v3880
    %4524 = vmatprep.subr.mxu0 0.0
    %4525 = vmatpush1.msra.mxu0 %v3881
    %4526 = vmatprep.subr.mxu0 0.0
    %4527 = vmatpush1.msra.mxu0 %v3882
    %4528 = vmatprep.subr.mxu0 0.0
    %4529 = vmatpush1.msra.mxu0 0.0
    %4530 = vmatprep.subr.mxu0 0.0
    %4531 = vmatpush1.msra.mxu0 0.0
    %4532 = vmatprep.subr.mxu0 0.0
    %4533 = vmatpush1.msra.mxu0 0.0
    %4534 = vmatprep.subr.mxu0 0.0
    %4535 = vmatpush1.msra.mxu0 0.0
    %4536 = vmatprep.subr.mxu0 0.0
    %4537 = vmatpush1.msra.mxu0 0.0
    %4538 = vmatprep.subr.mxu0 0.0
    %4539 = vmatpush1.msra.mxu0 0.0
    %4540 = vmatprep.subr.mxu0 0.0
    %4541 = vmatpush1.msra.mxu0 0.0
    %4542 = vmatprep.subr.mxu0 0.0
    %4543 = vmatpush1.msra.mxu0 0.0
    %4544 = vmatprep.subr.mxu0 0.0
    %4545 = vmatpush1.msra.mxu0 0.0
    %4546 = vmatprep.subr.mxu0 0.0
    %4547 = vmatpush1.msra.mxu0 0.0
    %4548 = vmatprep.subr.mxu0 0.0
    %4549 = vmatpush1.msra.mxu0 0.0
    %4550 = vmatprep.subr.mxu0 0.0
    %4551 = vmatpush1.msra.mxu0 0.0
    %4552 = vmatprep.subr.mxu0 0.0
    %4553 = vmatpush1.msra.mxu0 0.0
    %4554 = vmatprep.subr.mxu0 0.0
    %4555 = vmatpush1.msra.mxu0 0.0
    %4556 = vmatprep.subr.mxu0 0.0
    %4557 = vmatpush1.msra.mxu0 0.0
    %4558 = vmatprep.subr.mxu0 0.0
    %4559 = vmatpush1.msra.mxu0 0.0
    %4560 = vmatprep.subr.mxu0 0.0
    %4561 = vmatpush1.msra.mxu0 0.0
    %4562 = vmatprep.subr.mxu0 0.0
    %4563 = vmatpush1.msra.mxu0 0.0
    %4564 = vmatprep.subr.mxu0 0.0
    %4565 = vmatpush1.msra.mxu0 0.0
    %4566 = vmatprep.subr.mxu0 0.0
    %4567 = vmatpush1.msra.mxu0 0.0
    %4568 = vmatprep.subr.mxu0 0.0
    %4569 = vmatpush1.msra.mxu0 0.0
    %4570 = vmatprep.subr.mxu0 0.0
    %4571 = vmatpush1.msra.mxu0 0.0
    %4572 = vmatprep.subr.mxu0 0.0
    %4573 = vmatpush1.msra.mxu0 0.0
    %4574 = vmatprep.subr.mxu0 0.0
    %4575 = vmatpush1.msra.mxu0 0.0
    %4576 = vmatprep.subr.mxu0 0.0
    %4577 = vmatpush1.msra.mxu0 0.0
    %4578 = vmatprep.subr.mxu0 0.0
    %4579 = vmatpush1.msra.mxu0 0.0
    %4580 = vmatprep.subr.mxu0 0.0
    %4581 = vmatpush1.msra.mxu0 0.0
    %4582 = vmatprep.subr.mxu0 0.0
    %4583 = vmatpush1.msra.mxu0 0.0
    %4584 = vmatprep.mubr.f32.mxu0 0.0
    %4585 = vmatmul.mubr.f32.gmra.mrb[0].mxu0 %v4518
    %v4586 = vpop.f32.mrb[0].mxu0
    %v4587 = vadd.f32 0.0, %v4586
    %v4588 = vpop.f32.mrb[0].mxu0
    %4589 = vdwg.mxu0
    %v4590 = vadd.f32 %v4514, %v4587
    %v4591 = vxor.u32 %v4590, 2147483648
    %v4592 = vmul.f32 %v4591, 1.442695
    %v4593 = vpow.pop %v4592
    %v4594 = vadd.f32 %v4593, 1.0
    %v4595 = vrcp.pop %v4594
    %v4596 = vmul.f32 1.0, %v4595
    %v4597 = vtanh.pop %v4590
    %v4598 = vmul.f32 %v4596, %v4507
    %4600 = vrot.lane.b32.xlu0 %v4597, 64
    %v4601 = vpop.permute.xlu0 %4600
    %v4603 = vmul.f32 %v4596, %v4601
    %4605 = vrot.lane.b32.xlu0 %v4603, 32
    %v4606 = vpop.permute.xlu0 %4605
    %v4608 = vadd.f32 %v4598, %v4606
    %v4609 = vtanh.pop %v4608
    %4611 = vrot.lane.b32.xlu0 %v4609, 64
    %v4612 = vpop.permute.xlu0 %4611
    %v4614 = vmul.f32 %v4596, %v4612
    %v4615 = vld [vmem:[%s834] sm:$0xff]
    %4617 = vrot.lane.b32.xlu0 %v4614, 32
    %v4618 = vpop.permute.xlu0 %4617
    %v4619 = vsel %vm310, %v4618, 0
    %4621 = vmatprep.subr.mxu0 0.0
    %4622 = vmatpush1.msra.mxu0 %v3879
    %4623 = vmatprep.subr.mxu0 0.0
    %4624 = vmatpush1.msra.mxu0 %v3880
    %4625 = vmatprep.subr.mxu0 0.0
    %4626 = vmatpush1.msra.mxu0 %v3881
    %4627 = vmatprep.subr.mxu0 0.0
    %4628 = vmatpush1.msra.mxu0 %v3882
    %4629 = vmatprep.subr.mxu0 0.0
    %4630 = vmatpush1.msra.mxu0 0.0
    %4631 = vmatprep.subr.mxu0 0.0
    %4632 = vmatpush1.msra.mxu0 0.0
    %4633 = vmatprep.subr.mxu0 0.0
    %4634 = vmatpush1.msra.mxu0 0.0
    %4635 = vmatprep.subr.mxu0 0.0
    %4636 = vmatpush1.msra.mxu0 0.0
    %4637 = vmatprep.subr.mxu0 0.0
    %4638 = vmatpush1.msra.mxu0 0.0
    %4639 = vmatprep.subr.mxu0 0.0
    %4640 = vmatpush1.msra.mxu0 0.0
    %4641 = vmatprep.subr.mxu0 0.0
    %4642 = vmatpush1.msra.mxu0 0.0
    %4643 = vmatprep.subr.mxu0 0.0
    %4644 = vmatpush1.msra.mxu0 0.0
    %4645 = vmatprep.subr.mxu0 0.0
    %4646 = vmatpush1.msra.mxu0 0.0
    %4647 = vmatprep.subr.mxu0 0.0
    %4648 = vmatpush1.msra.mxu0 0.0
    %4649 = vmatprep.subr.mxu0 0.0
    %4650 = vmatpush1.msra.mxu0 0.0
    %4651 = vmatprep.subr.mxu0 0.0
    %4652 = vmatpush1.msra.mxu0 0.0
    %4653 = vmatprep.subr.mxu0 0.0
    %4654 = vmatpush1.msra.mxu0 0.0
    %4655 = vmatprep.subr.mxu0 0.0
    %4656 = vmatpush1.msra.mxu0 0.0
    %4657 = vmatprep.subr.mxu0 0.0
    %4658 = vmatpush1.msra.mxu0 0.0
    %4659 = vmatprep.subr.mxu0 0.0
    %4660 = vmatpush1.msra.mxu0 0.0
    %4661 = vmatprep.subr.mxu0 0.0
    %4662 = vmatpush1.msra.mxu0 0.0
    %4663 = vmatprep.subr.mxu0 0.0
    %4664 = vmatpush1.msra.mxu0 0.0
    %4665 = vmatprep.subr.mxu0 0.0
    %4666 = vmatpush1.msra.mxu0 0.0
    %4667 = vmatprep.subr.mxu0 0.0
    %4668 = vmatpush1.msra.mxu0 0.0
    %4669 = vmatprep.subr.mxu0 0.0
    %4670 = vmatpush1.msra.mxu0 0.0
    %4671 = vmatprep.subr.mxu0 0.0
    %4672 = vmatpush1.msra.mxu0 0.0
    %4673 = vmatprep.subr.mxu0 0.0
    %4674 = vmatpush1.msra.mxu0 0.0
    %4675 = vmatprep.subr.mxu0 0.0
    %4676 = vmatpush1.msra.mxu0 0.0
    %4677 = vmatprep.subr.mxu0 0.0
    %4678 = vmatpush1.msra.mxu0 0.0
    %4679 = vmatprep.subr.mxu0 0.0
    %4680 = vmatpush1.msra.mxu0 0.0
    %4681 = vmatprep.subr.mxu0 0.0
    %4682 = vmatpush1.msra.mxu0 0.0
    %4683 = vmatprep.subr.mxu0 0.0
    %4684 = vmatpush1.msra.mxu0 0.0
    %4685 = vmatprep.mubr.f32.mxu0 0.0
    %4686 = vmatmul.mubr.f32.gmra.mrb[0].mxu0 %v4619
    %v4687 = vpop.f32.mrb[0].mxu0
    %v4688 = vadd.f32 0.0, %v4687
    %v4689 = vpop.f32.mrb[0].mxu0
    %4690 = vdwg.mxu0
    %v4691 = vadd.f32 %v4615, %v4688
    %v4692 = vxor.u32 %v4691, 2147483648
    %v4693 = vmul.f32 %v4692, 1.442695
    %v4694 = vpow.pop %v4693
    %v4695 = vadd.f32 %v4694, 1.0
    %v4696 = vrcp.pop %v4695
    %v4697 = vmul.f32 1.0, %v4696
    %v4698 = vtanh.pop %v4691
    %v4699 = vmul.f32 %v4697, %v4608
    %4701 = vrot.lane.b32.xlu0 %v4698, 64
    %v4702 = vpop.permute.xlu0 %4701
    %v4704 = vmul.f32 %v4697, %v4702
    %4706 = vrot.lane.b32.xlu0 %v4704, 32
    %v4707 = vpop.permute.xlu0 %4706
    %v4709 = vadd.f32 %v4699, %v4707
    %v4710 = vtanh.pop %v4709
    %4712 = vrot.lane.b32.xlu0 %v4710, 64
    %v4713 = vpop.permute.xlu0 %4712
    %v4715 = vmul.f32 %v4697, %v4713
    %v4716 = vld [vmem:[%s939] sm:$0xff]
    %4718 = vrot.lane.b32.xlu0 %v4715, 32
    %v4719 = vpop.permute.xlu0 %4718
    %v4720 = vsel %vm310, %v4719, 0
    %4722 = vmatprep.subr.mxu0 0.0
    %4723 = vmatpush1.msra.mxu0 %v3879
    %4724 = vmatprep.subr.mxu0 0.0
    %4725 = vmatpush1.msra.mxu0 %v3880
    %4726 = vmatprep.subr.mxu0 0.0
    %4727 = vmatpush1.msra.mxu0 %v3881
    %4728 = vmatprep.subr.mxu0 0.0
    %4729 = vmatpush1.msra.mxu0 %v3882
    %4730 = vmatprep.subr.mxu0 0.0
    %4731 = vmatpush1.msra.mxu0 0.0
    %4732 = vmatprep.subr.mxu0 0.0
    %4733 = vmatpush1.msra.mxu0 0.0
    %4734 = vmatprep.subr.mxu0 0.0
    %4735 = vmatpush1.msra.mxu0 0.0
    %4736 = vmatprep.subr.mxu0 0.0
    %4737 = vmatpush1.msra.mxu0 0.0
    %4738 = vmatprep.subr.mxu0 0.0
    %4739 = vmatpush1.msra.mxu0 0.0
    %4740 = vmatprep.subr.mxu0 0.0
    %4741 = vmatpush1.msra.mxu0 0.0
    %4742 = vmatprep.subr.mxu0 0.0
    %4743 = vmatpush1.msra.mxu0 0.0
    %4744 = vmatprep.subr.mxu0 0.0
    %4745 = vmatpush1.msra.mxu0 0.0
    %4746 = vmatprep.subr.mxu0 0.0
    %4747 = vmatpush1.msra.mxu0 0.0
    %4748 = vmatprep.subr.mxu0 0.0
    %4749 = vmatpush1.msra.mxu0 0.0
    %4750 = vmatprep.subr.mxu0 0.0
    %4751 = vmatpush1.msra.mxu0 0.0
    %4752 = vmatprep.subr.mxu0 0.0
    %4753 = vmatpush1.msra.mxu0 0.0
    %4754 = vmatprep.subr.mxu0 0.0
    %4755 = vmatpush1.msra.mxu0 0.0
    %4756 = vmatprep.subr.mxu0 0.0
    %4757 = vmatpush1.msra.mxu0 0.0
    %4758 = vmatprep.subr.mxu0 0.0
    %4759 = vmatpush1.msra.mxu0 0.0
    %4760 = vmatprep.subr.mxu0 0.0
    %4761 = vmatpush1.msra.mxu0 0.0
    %4762 = vmatprep.subr.mxu0 0.0
    %4763 = vmatpush1.msra.mxu0 0.0
    %4764 = vmatprep.subr.mxu0 0.0
    %4765 = vmatpush1.msra.mxu0 0.0
    %4766 = vmatprep.subr.mxu0 0.0
    %4767 = vmatpush1.msra.mxu0 0.0
    %4768 = vmatprep.subr.mxu0 0.0
    %4769 = vmatpush1.msra.mxu0 0.0
    %4770 = vmatprep.subr.mxu0 0.0
    %4771 = vmatpush1.msra.mxu0 0.0
    %4772 = vmatprep.subr.mxu0 0.0
    %4773 = vmatpush1.msra.mxu0 0.0
    %4774 = vmatprep.subr.mxu0 0.0
    %4775 = vmatpush1.msra.mxu0 0.0
    %4776 = vmatprep.subr.mxu0 0.0
    %4777 = vmatpush1.msra.mxu0 0.0
    %4778 = vmatprep.subr.mxu0 0.0
    %4779 = vmatpush1.msra.mxu0 0.0
    %4780 = vmatprep.subr.mxu0 0.0
    %4781 = vmatpush1.msra.mxu0 0.0
    %4782 = vmatprep.subr.mxu0 0.0
    %4783 = vmatpush1.msra.mxu0 0.0
    %4784 = vmatprep.subr.mxu0 0.0
    %4785 = vmatpush1.msra.mxu0 0.0
    %4786 = vmatprep.mubr.f32.mxu0 0.0
    %4787 = vmatmul.mubr.f32.gmra.mrb[0].mxu0 %v4720
    %v4788 = vpop.f32.mrb[0].mxu0
    %v4789 = vadd.f32 0.0, %v4788
    %v4790 = vpop.f32.mrb[0].mxu0
    %4791 = vdwg.mxu0
    %v4792 = vadd.f32 %v4716, %v4789
    %v4793 = vxor.u32 %v4792, 2147483648
    %v4794 = vmul.f32 %v4793, 1.442695
    %v4795 = vpow.pop %v4794
    %v4796 = vadd.f32 %v4795, 1.0
    %v4797 = vrcp.pop %v4796
    %v4798 = vmul.f32 1.0, %v4797
    %v4799 = vtanh.pop %v4792
    %v4800 = vmul.f32 %v4798, %v4709
    %4802 = vrot.lane.b32.xlu0 %v4799, 64
    %v4803 = vpop.permute.xlu0 %4802
    %v4805 = vmul.f32 %v4798, %v4803
    %4807 = vrot.lane.b32.xlu0 %v4805, 32
    %v4808 = vpop.permute.xlu0 %4807
    %v4810 = vadd.f32 %v4800, %v4808
    %v4811 = vtanh.pop %v4810
    %4813 = vrot.lane.b32.xlu0 %v4811, 64
    %v4814 = vpop.permute.xlu0 %4813
    %v4816 = vmul.f32 %v4798, %v4814
    %v4817 = vld [vmem:[%s1044] sm:$0xff]
    %4819 = vrot.lane.b32.xlu0 %v4816, 32
    %v4820 = vpop.permute.xlu0 %4819
    %v4821 = vsel %vm310, %v4820, 0
    %4823 = vmatprep.subr.mxu0 0.0
    %4824 = vmatpush1.msra.mxu0 %v3879
    %4825 = vmatprep.subr.mxu0 0.0
    %4826 = vmatpush1.msra.mxu0 %v3880
    %4827 = vmatprep.subr.mxu0 0.0
    %4828 = vmatpush1.msra.mxu0 %v3881
    %4829 = vmatprep.subr.mxu0 0.0
    %4830 = vmatpush1.msra.mxu0 %v3882
    %4831 = vmatprep.subr.mxu0 0.0
    %4832 = vmatpush1.msra.mxu0 0.0
    %4833 = vmatprep.subr.mxu0 0.0
    %4834 = vmatpush1.msra.mxu0 0.0
    %4835 = vmatprep.subr.mxu0 0.0
    %4836 = vmatpush1.msra.mxu0 0.0
    %4837 = vmatprep.subr.mxu0 0.0
    %4838 = vmatpush1.msra.mxu0 0.0
    %4839 = vmatprep.subr.mxu0 0.0
    %4840 = vmatpush1.msra.mxu0 0.0
    %4841 = vmatprep.subr.mxu0 0.0
    %4842 = vmatpush1.msra.mxu0 0.0
    %4843 = vmatprep.subr.mxu0 0.0
    %4844 = vmatpush1.msra.mxu0 0.0
    %4845 = vmatprep.subr.mxu0 0.0
    %4846 = vmatpush1.msra.mxu0 0.0
    %4847 = vmatprep.subr.mxu0 0.0
    %4848 = vmatpush1.msra.mxu0 0.0
    %4849 = vmatprep.subr.mxu0 0.0
    %4850 = vmatpush1.msra.mxu0 0.0
    %4851 = vmatprep.subr.mxu0 0.0
    %4852 = vmatpush1.msra.mxu0 0.0
    %4853 = vmatprep.subr.mxu0 0.0
    %4854 = vmatpush1.msra.mxu0 0.0
    %4855 = vmatprep.subr.mxu0 0.0
    %4856 = vmatpush1.msra.mxu0 0.0
    %4857 = vmatprep.subr.mxu0 0.0
    %4858 = vmatpush1.msra.mxu0 0.0
    %4859 = vmatprep.subr.mxu0 0.0
    %4860 = vmatpush1.msra.mxu0 0.0
    %4861 = vmatprep.subr.mxu0 0.0
    %4862 = vmatpush1.msra.mxu0 0.0
    %4863 = vmatprep.subr.mxu0 0.0
    %4864 = vmatpush1.msra.mxu0 0.0
    %4865 = vmatprep.subr.mxu0 0.0
    %4866 = vmatpush1.msra.mxu0 0.0
    %4867 = vmatprep.subr.mxu0 0.0
    %4868 = vmatpush1.msra.mxu0 0.0
    %4869 = vmatprep.subr.mxu0 0.0
    %4870 = vmatpush1.msra.mxu0 0.0
    %4871 = vmatprep.subr.mxu0 0.0
    %4872 = vmatpush1.msra.mxu0 0.0
    %4873 = vmatprep.subr.mxu0 0.0
    %4874 = vmatpush1.msra.mxu0 0.0
    %4875 = vmatprep.subr.mxu0 0.0
    %4876 = vmatpush1.msra.mxu0 0.0
    %4877 = vmatprep.subr.mxu0 0.0
    %4878 = vmatpush1.msra.mxu0 0.0
    %4879 = vmatprep.subr.mxu0 0.0
    %4880 = vmatpush1.msra.mxu0 0.0
    %4881 = vmatprep.subr.mxu0 0.0
    %4882 = vmatpush1.msra.mxu0 0.0
    %4883 = vmatprep.subr.mxu0 0.0
    %4884 = vmatpush1.msra.mxu0 0.0
    %4885 = vmatprep.subr.mxu0 0.0
    %4886 = vmatpush1.msra.mxu0 0.0
    %4887 = vmatprep.mubr.f32.mxu0 0.0
    %4888 = vmatmul.mubr.f32.gmra.mrb[0].mxu0 %v4821
    %v4889 = vpop.f32.mrb[0].mxu0
    %v4890 = vadd.f32 0.0, %v4889
    %v4891 = vpop.f32.mrb[0].mxu0
    %4892 = vdwg.mxu0
    %v4893 = vadd.f32 %v4817, %v4890
    %v4894 = vxor.u32 %v4893, 2147483648
    %v4895 = vmul.f32 %v4894, 1.442695
    %v4896 = vpow.pop %v4895
    %v4897 = vadd.f32 %v4896, 1.0
    %v4898 = vrcp.pop %v4897
    %v4899 = vmul.f32 1.0, %v4898
    %v4900 = vtanh.pop %v4893
    %v4901 = vmul.f32 %v4899, %v4810
    %4903 = vrot.lane.b32.xlu0 %v4900, 64
    %v4904 = vpop.permute.xlu0 %4903
    %v4906 = vmul.f32 %v4899, %v4904
    %4908 = vrot.lane.b32.xlu0 %v4906, 32
    %v4909 = vpop.permute.xlu0 %4908
    %v4911 = vadd.f32 %v4901, %v4909
    %v4912 = vtanh.pop %v4911
    %4914 = vrot.lane.b32.xlu0 %v4912, 64
    %v4915 = vpop.permute.xlu0 %4914
    %v4917 = vmul.f32 %v4899, %v4915
    %v4918 = vld [vmem:[%s1149] sm:$0xff]
    %4920 = vrot.lane.b32.xlu0 %v4917, 32
    %v4921 = vpop.permute.xlu0 %4920
    %v4922 = vsel %vm310, %v4921, 0
    %4924 = vmatprep.subr.mxu0 0.0
    %4925 = vmatpush1.msra.mxu0 %v3879
    %4926 = vmatprep.subr.mxu0 0.0
    %4927 = vmatpush1.msra.mxu0 %v3880
    %4928 = vmatprep.subr.mxu0 0.0
    %4929 = vmatpush1.msra.mxu0 %v3881
    %4930 = vmatprep.subr.mxu0 0.0
    %4931 = vmatpush1.msra.mxu0 %v3882
    %4932 = vmatprep.subr.mxu0 0.0
    %4933 = vmatpush1.msra.mxu0 0.0
    %4934 = vmatprep.subr.mxu0 0.0
    %4935 = vmatpush1.msra.mxu0 0.0
    %4936 = vmatprep.subr.mxu0 0.0
    %4937 = vmatpush1.msra.mxu0 0.0
    %4938 = vmatprep.subr.mxu0 0.0
    %4939 = vmatpush1.msra.mxu0 0.0
    %4940 = vmatprep.subr.mxu0 0.0
    %4941 = vmatpush1.msra.mxu0 0.0
    %4942 = vmatprep.subr.mxu0 0.0
    %4943 = vmatpush1.msra.mxu0 0.0
    %4944 = vmatprep.subr.mxu0 0.0
    %4945 = vmatpush1.msra.mxu0 0.0
    %4946 = vmatprep.subr.mxu0 0.0
    %4947 = vmatpush1.msra.mxu0 0.0
    %4948 = vmatprep.subr.mxu0 0.0
    %4949 = vmatpush1.msra.mxu0 0.0
    %4950 = vmatprep.subr.mxu0 0.0
    %4951 = vmatpush1.msra.mxu0 0.0
    %4952 = vmatprep.subr.mxu0 0.0
    %4953 = vmatpush1.msra.mxu0 0.0
    %4954 = vmatprep.subr.mxu0 0.0
    %4955 = vmatpush1.msra.mxu0 0.0
    %4956 = vmatprep.subr.mxu0 0.0
    %4957 = vmatpush1.msra.mxu0 0.0
    %4958 = vmatprep.subr.mxu0 0.0
    %4959 = vmatpush1.msra.mxu0 0.0
    %4960 = vmatprep.subr.mxu0 0.0
    %4961 = vmatpush1.msra.mxu0 0.0
    %4962 = vmatprep.subr.mxu0 0.0
    %4963 = vmatpush1.msra.mxu0 0.0
    %4964 = vmatprep.subr.mxu0 0.0
    %4965 = vmatpush1.msra.mxu0 0.0
    %4966 = vmatprep.subr.mxu0 0.0
    %4967 = vmatpush1.msra.mxu0 0.0
    %4968 = vmatprep.subr.mxu0 0.0
    %4969 = vmatpush1.msra.mxu0 0.0
    %4970 = vmatprep.subr.mxu0 0.0
    %4971 = vmatpush1.msra.mxu0 0.0
    %4972 = vmatprep.subr.mxu0 0.0
    %4973 = vmatpush1.msra.mxu0 0.0
    %4974 = vmatprep.subr.mxu0 0.0
    %4975 = vmatpush1.msra.mxu0 0.0
    %4976 = vmatprep.subr.mxu0 0.0
    %4977 = vmatpush1.msra.mxu0 0.0
    %4978 = vmatprep.subr.mxu0 0.0
    %4979 = vmatpush1.msra.mxu0 0.0
    %4980 = vmatprep.subr.mxu0 0.0
    %4981 = vmatpush1.msra.mxu0 0.0
    %4982 = vmatprep.subr.mxu0 0.0
    %4983 = vmatpush1.msra.mxu0 0.0
    %4984 = vmatprep.subr.mxu0 0.0
    %4985 = vmatpush1.msra.mxu0 0.0
    %4986 = vmatprep.subr.mxu0 0.0
    %4987 = vmatpush1.msra.mxu0 0.0
    %4988 = vmatprep.mubr.f32.mxu0 0.0
    %4989 = vmatmul.mubr.f32.gmra.mrb[0].mxu0 %v4922
    %v4990 = vpop.f32.mrb[0].mxu0
    %v4991 = vadd.f32 0.0, %v4990
    %v4992 = vpop.f32.mrb[0].mxu0
    %4993 = vdwg.mxu0
    %v4994 = vadd.f32 %v4918, %v4991
    %v4995 = vxor.u32 %v4994, 2147483648
    %v4996 = vmul.f32 %v4995, 1.442695
    %v4997 = vpow.pop %v4996
    %v4998 = vadd.f32 %v4997, 1.0
    %v4999 = vrcp.pop %v4998
    %v5000 = vmul.f32 1.0, %v4999
    %v5001 = vtanh.pop %v4994
    %v5002 = vmul.f32 %v5000, %v4911
    %5004 = vrot.lane.b32.xlu0 %v5001, 64
    %v5005 = vpop.permute.xlu0 %5004
    %v5007 = vmul.f32 %v5000, %v5005
    %5009 = vrot.lane.b32.xlu0 %v5007, 32
    %v5010 = vpop.permute.xlu0 %5009
    %v5012 = vadd.f32 %v5002, %v5010
    %v5013 = vtanh.pop %v5012
    %5015 = vrot.lane.b32.xlu0 %v5013, 64
    %v5016 = vpop.permute.xlu0 %5015
    %v5018 = vmul.f32 %v5000, %v5016
    %v5019 = vld [vmem:[%s1254] sm:$0xff]
    %5021 = vrot.lane.b32.xlu0 %v5018, 32
    %v5022 = vpop.permute.xlu0 %5021
    %v5023 = vsel %vm310, %v5022, 0
    %5025 = vmatprep.subr.mxu0 0.0
    %5026 = vmatpush1.msra.mxu0 %v3879
    %5027 = vmatprep.subr.mxu0 0.0
    %5028 = vmatpush1.msra.mxu0 %v3880
    %5029 = vmatprep.subr.mxu0 0.0
    %5030 = vmatpush1.msra.mxu0 %v3881
    %5031 = vmatprep.subr.mxu0 0.0
    %5032 = vmatpush1.msra.mxu0 %v3882
    %5033 = vmatprep.subr.mxu0 0.0
    %5034 = vmatpush1.msra.mxu0 0.0
    %5035 = vmatprep.subr.mxu0 0.0
    %5036 = vmatpush1.msra.mxu0 0.0
    %5037 = vmatprep.subr.mxu0 0.0
    %5038 = vmatpush1.msra.mxu0 0.0
    %5039 = vmatprep.subr.mxu0 0.0
    %5040 = vmatpush1.msra.mxu0 0.0
    %5041 = vmatprep.subr.mxu0 0.0
    %5042 = vmatpush1.msra.mxu0 0.0
    %5043 = vmatprep.subr.mxu0 0.0
    %5044 = vmatpush1.msra.mxu0 0.0
    %5045 = vmatprep.subr.mxu0 0.0
    %5046 = vmatpush1.msra.mxu0 0.0
    %5047 = vmatprep.subr.mxu0 0.0
    %5048 = vmatpush1.msra.mxu0 0.0
    %5049 = vmatprep.subr.mxu0 0.0
    %5050 = vmatpush1.msra.mxu0 0.0
    %5051 = vmatprep.subr.mxu0 0.0
    %5052 = vmatpush1.msra.mxu0 0.0
    %5053 = vmatprep.subr.mxu0 0.0
    %5054 = vmatpush1.msra.mxu0 0.0
    %5055 = vmatprep.subr.mxu0 0.0
    %5056 = vmatpush1.msra.mxu0 0.0
    %5057 = vmatprep.subr.mxu0 0.0
    %5058 = vmatpush1.msra.mxu0 0.0
    %5059 = vmatprep.subr.mxu0 0.0
    %5060 = vmatpush1.msra.mxu0 0.0
    %5061 = vmatprep.subr.mxu0 0.0
    %5062 = vmatpush1.msra.mxu0 0.0
    %5063 = vmatprep.subr.mxu0 0.0
    %5064 = vmatpush1.msra.mxu0 0.0
    %5065 = vmatprep.subr.mxu0 0.0
    %5066 = vmatpush1.msra.mxu0 0.0
    %5067 = vmatprep.subr.mxu0 0.0
    %5068 = vmatpush1.msra.mxu0 0.0
    %5069 = vmatprep.subr.mxu0 0.0
    %5070 = vmatpush1.msra.mxu0 0.0
    %5071 = vmatprep.subr.mxu0 0.0
    %5072 = vmatpush1.msra.mxu0 0.0
    %5073 = vmatprep.subr.mxu0 0.0
    %5074 = vmatpush1.msra.mxu0 0.0
    %5075 = vmatprep.subr.mxu0 0.0
    %5076 = vmatpush1.msra.mxu0 0.0
    %5077 = vmatprep.subr.mxu0 0.0
    %5078 = vmatpush1.msra.mxu0 0.0
    %5079 = vmatprep.subr.mxu0 0.0
    %5080 = vmatpush1.msra.mxu0 0.0
    %5081 = vmatprep.subr.mxu0 0.0
    %5082 = vmatpush1.msra.mxu0 0.0
    %5083 = vmatprep.subr.mxu0 0.0
    %5084 = vmatpush1.msra.mxu0 0.0
    %5085 = vmatprep.subr.mxu0 0.0
    %5086 = vmatpush1.msra.mxu0 0.0
    %5087 = vmatprep.subr.mxu0 0.0
    %5088 = vmatpush1.msra.mxu0 0.0
    %5089 = vmatprep.mubr.f32.mxu0 0.0
    %5090 = vmatmul.mubr.f32.gmra.mrb[0].mxu0 %v5023
    %v5091 = vpop.f32.mrb[0].mxu0
    %v5092 = vadd.f32 0.0, %v5091
    %v5093 = vpop.f32.mrb[0].mxu0
    %5094 = vdwg.mxu0
    %v5095 = vadd.f32 %v5019, %v5092
    %v5096 = vxor.u32 %v5095, 2147483648
    %v5097 = vmul.f32 %v5096, 1.442695
    %v5098 = vpow.pop %v5097
    %v5099 = vadd.f32 %v5098, 1.0
    %v5100 = vrcp.pop %v5099
    %v5101 = vmul.f32 1.0, %v5100
    %v5102 = vtanh.pop %v5095
    %v5103 = vmul.f32 %v5101, %v5012
    %5105 = vrot.lane.b32.xlu0 %v5102, 64
    %v5106 = vpop.permute.xlu0 %5105
    %v5108 = vmul.f32 %v5101, %v5106
    %5110 = vrot.lane.b32.xlu0 %v5108, 32
    %v5111 = vpop.permute.xlu0 %5110
    %v5113 = vadd.f32 %v5103, %v5111
    %v5114 = vtanh.pop %v5113
    %5116 = vrot.lane.b32.xlu0 %v5114, 64
    %v5117 = vpop.permute.xlu0 %5116
    %v5119 = vmul.f32 %v5101, %v5117
    %v5120 = vld [vmem:[%s1359] sm:$0xff]
    %5122 = vrot.lane.b32.xlu0 %v5119, 32
    %v5123 = vpop.permute.xlu0 %5122
    %v5124 = vsel %vm310, %v5123, 0
    %5126 = vmatprep.subr.mxu0 0.0
    %5127 = vmatpush1.msra.mxu0 %v3879
    %5128 = vmatprep.subr.mxu0 0.0
    %5129 = vmatpush1.msra.mxu0 %v3880
    %5130 = vmatprep.subr.mxu0 0.0
    %5131 = vmatpush1.msra.mxu0 %v3881
    %5132 = vmatprep.subr.mxu0 0.0
    %5133 = vmatpush1.msra.mxu0 %v3882
    %5134 = vmatprep.subr.mxu0 0.0
    %5135 = vmatpush1.msra.mxu0 0.0
    %5136 = vmatprep.subr.mxu0 0.0
    %5137 = vmatpush1.msra.mxu0 0.0
    %5138 = vmatprep.subr.mxu0 0.0
    %5139 = vmatpush1.msra.mxu0 0.0
    %5140 = vmatprep.subr.mxu0 0.0
    %5141 = vmatpush1.msra.mxu0 0.0
    %5142 = vmatprep.subr.mxu0 0.0
    %5143 = vmatpush1.msra.mxu0 0.0
    %5144 = vmatprep.subr.mxu0 0.0
    %5145 = vmatpush1.msra.mxu0 0.0
    %5146 = vmatprep.subr.mxu0 0.0
    %5147 = vmatpush1.msra.mxu0 0.0
    %5148 = vmatprep.subr.mxu0 0.0
    %5149 = vmatpush1.msra.mxu0 0.0
    %5150 = vmatprep.subr.mxu0 0.0
    %5151 = vmatpush1.msra.mxu0 0.0
    %5152 = vmatprep.subr.mxu0 0.0
    %5153 = vmatpush1.msra.mxu0 0.0
    %5154 = vmatprep.subr.mxu0 0.0
    %5155 = vmatpush1.msra.mxu0 0.0
    %5156 = vmatprep.subr.mxu0 0.0
    %5157 = vmatpush1.msra.mxu0 0.0
    %5158 = vmatprep.subr.mxu0 0.0
    %5159 = vmatpush1.msra.mxu0 0.0
    %5160 = vmatprep.subr.mxu0 0.0
    %5161 = vmatpush1.msra.mxu0 0.0
    %5162 = vmatprep.subr.mxu0 0.0
    %5163 = vmatpush1.msra.mxu0 0.0
    %5164 = vmatprep.subr.mxu0 0.0
    %5165 = vmatpush1.msra.mxu0 0.0
    %5166 = vmatprep.subr.mxu0 0.0
    %5167 = vmatpush1.msra.mxu0 0.0
    %5168 = vmatprep.subr.mxu0 0.0
    %5169 = vmatpush1.msra.mxu0 0.0
    %5170 = vmatprep.subr.mxu0 0.0
    %5171 = vmatpush1.msra.mxu0 0.0
    %5172 = vmatprep.subr.mxu0 0.0
    %5173 = vmatpush1.msra.mxu0 0.0
    %5174 = vmatprep.subr.mxu0 0.0
    %5175 = vmatpush1.msra.mxu0 0.0
    %5176 = vmatprep.subr.mxu0 0.0
    %5177 = vmatpush1.msra.mxu0 0.0
    %5178 = vmatprep.subr.mxu0 0.0
    %5179 = vmatpush1.msra.mxu0 0.0
    %5180 = vmatprep.subr.mxu0 0.0
    %5181 = vmatpush1.msra.mxu0 0.0
    %5182 = vmatprep.subr.mxu0 0.0
    %5183 = vmatpush1.msra.mxu0 0.0
    %5184 = vmatprep.subr.mxu0 0.0
    %5185 = vmatpush1.msra.mxu0 0.0
    %5186 = vmatprep.subr.mxu0 0.0
    %5187 = vmatpush1.msra.mxu0 0.0
    %5188 = vmatprep.subr.mxu0 0.0
    %5189 = vmatpush1.msra.mxu0 0.0
    %5190 = vmatprep.mubr.f32.mxu0 0.0
    %5191 = vmatmul.mubr.f32.gmra.mrb[0].mxu0 %v5124
    %v5192 = vpop.f32.mrb[0].mxu0
    %v5193 = vadd.f32 0.0, %v5192
    %v5194 = vpop.f32.mrb[0].mxu0
    %5195 = vdwg.mxu0
    %v5196 = vadd.f32 %v5120, %v5193
    %v5197 = vxor.u32 %v5196, 2147483648
    %v5198 = vmul.f32 %v5197, 1.442695
    %v5199 = vpow.pop %v5198
    %v5200 = vadd.f32 %v5199, 1.0
    %v5201 = vrcp.pop %v5200
    %v5202 = vmul.f32 1.0, %v5201
    %v5203 = vtanh.pop %v5196
    %v5204 = vmul.f32 %v5202, %v5113
    %5206 = vrot.lane.b32.xlu0 %v5203, 64
    %v5207 = vpop.permute.xlu0 %5206
    %v5209 = vmul.f32 %v5202, %v5207
    %5211 = vrot.lane.b32.xlu0 %v5209, 32
    %v5212 = vpop.permute.xlu0 %5211
    %v5214 = vadd.f32 %v5204, %v5212
    %v5215 = vtanh.pop %v5214
    %5217 = vrot.lane.b32.xlu0 %v5215, 64
    %v5218 = vpop.permute.xlu0 %5217
    %v5220 = vmul.f32 %v5202, %v5218
    %v5221 = vld [vmem:[%s1464] sm:$0xff]
    %5223 = vrot.lane.b32.xlu0 %v5220, 32
    %v5224 = vpop.permute.xlu0 %5223
    %v5225 = vsel %vm310, %v5224, 0
    %5227 = vmatprep.subr.mxu0 0.0
    %5228 = vmatpush1.msra.mxu0 %v3879
    %5229 = vmatprep.subr.mxu0 0.0
    %5230 = vmatpush1.msra.mxu0 %v3880
    %5231 = vmatprep.subr.mxu0 0.0
    %5232 = vmatpush1.msra.mxu0 %v3881
    %5233 = vmatprep.subr.mxu0 0.0
    %5234 = vmatpush1.msra.mxu0 %v3882
    %5235 = vmatprep.subr.mxu0 0.0
    %5236 = vmatpush1.msra.mxu0 0.0
    %5237 = vmatprep.subr.mxu0 0.0
    %5238 = vmatpush1.msra.mxu0 0.0
    %5239 = vmatprep.subr.mxu0 0.0
    %5240 = vmatpush1.msra.mxu0 0.0
    %5241 = vmatprep.subr.mxu0 0.0
    %5242 = vmatpush1.msra.mxu0 0.0
    %5243 = vmatprep.subr.mxu0 0.0
    %5244 = vmatpush1.msra.mxu0 0.0
    %5245 = vmatprep.subr.mxu0 0.0
    %5246 = vmatpush1.msra.mxu0 0.0
    %5247 = vmatprep.subr.mxu0 0.0
    %5248 = vmatpush1.msra.mxu0 0.0
    %5249 = vmatprep.subr.mxu0 0.0
    %5250 = vmatpush1.msra.mxu0 0.0
    %5251 = vmatprep.subr.mxu0 0.0
    %5252 = vmatpush1.msra.mxu0 0.0
    %5253 = vmatprep.subr.mxu0 0.0
    %5254 = vmatpush1.msra.mxu0 0.0
    %5255 = vmatprep.subr.mxu0 0.0
    %5256 = vmatpush1.msra.mxu0 0.0
    %5257 = vmatprep.subr.mxu0 0.0
    %5258 = vmatpush1.msra.mxu0 0.0
    %5259 = vmatprep.subr.mxu0 0.0
    %5260 = vmatpush1.msra.mxu0 0.0
    %5261 = vmatprep.subr.mxu0 0.0
    %5262 = vmatpush1.msra.mxu0 0.0
    %5263 = vmatprep.subr.mxu0 0.0
    %5264 = vmatpush1.msra.mxu0 0.0
    %5265 = vmatprep.subr.mxu0 0.0
    %5266 = vmatpush1.msra.mxu0 0.0
    %5267 = vmatprep.subr.mxu0 0.0
    %5268 = vmatpush1.msra.mxu0 0.0
    %5269 = vmatprep.subr.mxu0 0.0
    %5270 = vmatpush1.msra.mxu0 0.0
    %5271 = vmatprep.subr.mxu0 0.0
    %5272 = vmatpush1.msra.mxu0 0.0
    %5273 = vmatprep.subr.mxu0 0.0
    %5274 = vmatpush1.msra.mxu0 0.0
    %5275 = vmatprep.subr.mxu0 0.0
    %5276 = vmatpush1.msra.mxu0 0.0
    %5277 = vmatprep.subr.mxu0 0.0
    %5278 = vmatpush1.msra.mxu0 0.0
    %5279 = vmatprep.subr.mxu0 0.0
    %5280 = vmatpush1.msra.mxu0 0.0
    %5281 = vmatprep.subr.mxu0 0.0
    %5282 = vmatpush1.msra.mxu0 0.0
    %5283 = vmatprep.subr.mxu0 0.0
    %5284 = vmatpush1.msra.mxu0 0.0
    %5285 = vmatprep.subr.mxu0 0.0
    %5286 = vmatpush1.msra.mxu0 0.0
    %5287 = vmatprep.subr.mxu0 0.0
    %5288 = vmatpush1.msra.mxu0 0.0
    %5289 = vmatprep.subr.mxu0 0.0
    %5290 = vmatpush1.msra.mxu0 0.0
    %5291 = vmatprep.mubr.f32.mxu0 0.0
    %5292 = vmatmul.mubr.f32.gmra.mrb[0].mxu0 %v5225
    %v5293 = vpop.f32.mrb[0].mxu0
    %v5294 = vadd.f32 0.0, %v5293
    %v5295 = vpop.f32.mrb[0].mxu0
    %5296 = vdwg.mxu0
    %v5297 = vadd.f32 %v5221, %v5294
    %v5298 = vxor.u32 %v5297, 2147483648
    %v5299 = vmul.f32 %v5298, 1.442695
    %v5300 = vpow.pop %v5299
    %v5301 = vadd.f32 %v5300, 1.0
    %v5302 = vrcp.pop %v5301
    %v5303 = vmul.f32 1.0, %v5302
    %v5304 = vtanh.pop %v5297
    %v5305 = vmul.f32 %v5303, %v5214
    %5307 = vrot.lane.b32.xlu0 %v5304, 64
    %v5308 = vpop.permute.xlu0 %5307
    %v5310 = vmul.f32 %v5303, %v5308
    %5312 = vrot.lane.b32.xlu0 %v5310, 32
    %v5313 = vpop.permute.xlu0 %5312
    %v5315 = vadd.f32 %v5305, %v5313
    %v5316 = vtanh.pop %v5315
    %5318 = vrot.lane.b32.xlu0 %v5316, 64
    %v5319 = vpop.permute.xlu0 %5318
    %v5321 = vmul.f32 %v5303, %v5319
    %v5322 = vld [vmem:[%s1569] sm:$0xff]
    %5324 = vrot.lane.b32.xlu0 %v5321, 32
    %v5325 = vpop.permute.xlu0 %5324
    %v5326 = vsel %vm310, %v5325, 0
    %5328 = vmatprep.subr.mxu0 0.0
    %5329 = vmatpush1.msra.mxu0 %v3879
    %5330 = vmatprep.subr.mxu0 0.0
    %5331 = vmatpush1.msra.mxu0 %v3880
    %5332 = vmatprep.subr.mxu0 0.0
    %5333 = vmatpush1.msra.mxu0 %v3881
    %5334 = vmatprep.subr.mxu0 0.0
    %5335 = vmatpush1.msra.mxu0 %v3882
    %5336 = vmatprep.subr.mxu0 0.0
    %5337 = vmatpush1.msra.mxu0 0.0
    %5338 = vmatprep.subr.mxu0 0.0
    %5339 = vmatpush1.msra.mxu0 0.0
    %5340 = vmatprep.subr.mxu0 0.0
    %5341 = vmatpush1.msra.mxu0 0.0
    %5342 = vmatprep.subr.mxu0 0.0
    %5343 = vmatpush1.msra.mxu0 0.0
    %5344 = vmatprep.subr.mxu0 0.0
    %5345 = vmatpush1.msra.mxu0 0.0
    %5346 = vmatprep.subr.mxu0 0.0
    %5347 = vmatpush1.msra.mxu0 0.0
    %5348 = vmatprep.subr.mxu0 0.0
    %5349 = vmatpush1.msra.mxu0 0.0
    %5350 = vmatprep.subr.mxu0 0.0
    %5351 = vmatpush1.msra.mxu0 0.0
    %5352 = vmatprep.subr.mxu0 0.0
    %5353 = vmatpush1.msra.mxu0 0.0
    %5354 = vmatprep.subr.mxu0 0.0
    %5355 = vmatpush1.msra.mxu0 0.0
    %5356 = vmatprep.subr.mxu0 0.0
    %5357 = vmatpush1.msra.mxu0 0.0
    %5358 = vmatprep.subr.mxu0 0.0
    %5359 = vmatpush1.msra.mxu0 0.0
    %5360 = vmatprep.subr.mxu0 0.0
    %5361 = vmatpush1.msra.mxu0 0.0
    %5362 = vmatprep.subr.mxu0 0.0
    %5363 = vmatpush1.msra.mxu0 0.0
    %5364 = vmatprep.subr.mxu0 0.0
    %5365 = vmatpush1.msra.mxu0 0.0
    %5366 = vmatprep.subr.mxu0 0.0
    %5367 = vmatpush1.msra.mxu0 0.0
    %5368 = vmatprep.subr.mxu0 0.0
    %5369 = vmatpush1.msra.mxu0 0.0
    %5370 = vmatprep.subr.mxu0 0.0
    %5371 = vmatpush1.msra.mxu0 0.0
    %5372 = vmatprep.subr.mxu0 0.0
    %5373 = vmatpush1.msra.mxu0 0.0
    %5374 = vmatprep.subr.mxu0 0.0
    %5375 = vmatpush1.msra.mxu0 0.0
    %5376 = vmatprep.subr.mxu0 0.0
    %5377 = vmatpush1.msra.mxu0 0.0
    %5378 = vmatprep.subr.mxu0 0.0
    %5379 = vmatpush1.msra.mxu0 0.0
    %5380 = vmatprep.subr.mxu0 0.0
    %5381 = vmatpush1.msra.mxu0 0.0
    %5382 = vmatprep.subr.mxu0 0.0
    %5383 = vmatpush1.msra.mxu0 0.0
    %5384 = vmatprep.subr.mxu0 0.0
    %5385 = vmatpush1.msra.mxu0 0.0
    %5386 = vmatprep.subr.mxu0 0.0
    %5387 = vmatpush1.msra.mxu0 0.0
    %5388 = vmatprep.subr.mxu0 0.0
    %5389 = vmatpush1.msra.mxu0 0.0
    %5390 = vmatprep.subr.mxu0 0.0
    %5391 = vmatpush1.msra.mxu0 0.0
    %5392 = vmatprep.mubr.f32.mxu0 0.0
    %5393 = vmatmul.mubr.f32.gmra.mrb[0].mxu0 %v5326
    %v5394 = vpop.f32.mrb[0].mxu0
    %v5395 = vadd.f32 0.0, %v5394
    %v5396 = vpop.f32.mrb[0].mxu0
    %5397 = vdwg.mxu0
    %v5398 = vadd.f32 %v5322, %v5395
    %v5399 = vxor.u32 %v5398, 2147483648
    %v5400 = vmul.f32 %v5399, 1.442695
    %v5401 = vpow.pop %v5400
    %v5402 = vadd.f32 %v5401, 1.0
    %v5403 = vrcp.pop %v5402
    %v5404 = vmul.f32 1.0, %v5403
    %v5405 = vtanh.pop %v5398
    %v5406 = vmul.f32 %v5404, %v5315
    %5408 = vrot.lane.b32.xlu0 %v5405, 64
    %v5409 = vpop.permute.xlu0 %5408
    %v5411 = vmul.f32 %v5404, %v5409
    %5413 = vrot.lane.b32.xlu0 %v5411, 32
    %v5414 = vpop.permute.xlu0 %5413
    %v5416 = vadd.f32 %v5406, %v5414
    %v5417 = vtanh.pop %v5416
    %5419 = vrot.lane.b32.xlu0 %v5417, 64
    %v5420 = vpop.permute.xlu0 %5419
    %v5422 = vmul.f32 %v5404, %v5420
    %v5423 = vld [vmem:[%s1674] sm:$0xff]
    %5425 = vrot.lane.b32.xlu0 %v5422, 32
    %v5426 = vpop.permute.xlu0 %5425
    %v5427 = vsel %vm310, %v5426, 0
    %5429 = vmatprep.subr.mxu0 0.0
    %5430 = vmatpush1.msra.mxu0 %v3879
    %5431 = vmatprep.subr.mxu0 0.0
    %5432 = vmatpush1.msra.mxu0 %v3880
    %5433 = vmatprep.subr.mxu0 0.0
    %5434 = vmatpush1.msra.mxu0 %v3881
    %5435 = vmatprep.subr.mxu0 0.0
    %5436 = vmatpush1.msra.mxu0 %v3882
    %5437 = vmatprep.subr.mxu0 0.0
    %5438 = vmatpush1.msra.mxu0 0.0
    %5439 = vmatprep.subr.mxu0 0.0
    %5440 = vmatpush1.msra.mxu0 0.0
    %5441 = vmatprep.subr.mxu0 0.0
    %5442 = vmatpush1.msra.mxu0 0.0
    %5443 = vmatprep.subr.mxu0 0.0
    %5444 = vmatpush1.msra.mxu0 0.0
    %5445 = vmatprep.subr.mxu0 0.0
    %5446 = vmatpush1.msra.mxu0 0.0
    %5447 = vmatprep.subr.mxu0 0.0
    %5448 = vmatpush1.msra.mxu0 0.0
    %5449 = vmatprep.subr.mxu0 0.0
    %5450 = vmatpush1.msra.mxu0 0.0
    %5451 = vmatprep.subr.mxu0 0.0
    %5452 = vmatpush1.msra.mxu0 0.0
    %5453 = vmatprep.subr.mxu0 0.0
    %5454 = vmatpush1.msra.mxu0 0.0
    %5455 = vmatprep.subr.mxu0 0.0
    %5456 = vmatpush1.msra.mxu0 0.0
    %5457 = vmatprep.subr.mxu0 0.0
    %5458 = vmatpush1.msra.mxu0 0.0
    %5459 = vmatprep.subr.mxu0 0.0
    %5460 = vmatpush1.msra.mxu0 0.0
    %5461 = vmatprep.subr.mxu0 0.0
    %5462 = vmatpush1.msra.mxu0 0.0
    %5463 = vmatprep.subr.mxu0 0.0
    %5464 = vmatpush1.msra.mxu0 0.0
    %5465 = vmatprep.subr.mxu0 0.0
    %5466 = vmatpush1.msra.mxu0 0.0
    %5467 = vmatprep.subr.mxu0 0.0
    %5468 = vmatpush1.msra.mxu0 0.0
    %5469 = vmatprep.subr.mxu0 0.0
    %5470 = vmatpush1.msra.mxu0 0.0
    %5471 = vmatprep.subr.mxu0 0.0
    %5472 = vmatpush1.msra.mxu0 0.0
    %5473 = vmatprep.subr.mxu0 0.0
    %5474 = vmatpush1.msra.mxu0 0.0
    %5475 = vmatprep.subr.mxu0 0.0
    %5476 = vmatpush1.msra.mxu0 0.0
    %5477 = vmatprep.subr.mxu0 0.0
    %5478 = vmatpush1.msra.mxu0 0.0
    %5479 = vmatprep.subr.mxu0 0.0
    %5480 = vmatpush1.msra.mxu0 0.0
    %5481 = vmatprep.subr.mxu0 0.0
    %5482 = vmatpush1.msra.mxu0 0.0
    %5483 = vmatprep.subr.mxu0 0.0
    %5484 = vmatpush1.msra.mxu0 0.0
    %5485 = vmatprep.subr.mxu0 0.0
    %5486 = vmatpush1.msra.mxu0 0.0
    %5487 = vmatprep.subr.mxu0 0.0
    %5488 = vmatpush1.msra.mxu0 0.0
    %5489 = vmatprep.subr.mxu0 0.0
    %5490 = vmatpush1.msra.mxu0 0.0
    %5491 = vmatprep.subr.mxu0 0.0
    %5492 = vmatpush1.msra.mxu0 0.0
    %5493 = vmatprep.mubr.f32.mxu0 0.0
    %5494 = vmatmul.mubr.f32.gmra.mrb[0].mxu0 %v5427
    %v5495 = vpop.f32.mrb[0].mxu0
    %v5496 = vadd.f32 0.0, %v5495
    %v5497 = vpop.f32.mrb[0].mxu0
    %5498 = vdwg.mxu0
    %v5499 = vadd.f32 %v5423, %v5496
    %v5500 = vxor.u32 %v5499, 2147483648
    %v5501 = vmul.f32 %v5500, 1.442695
    %v5502 = vpow.pop %v5501
    %v5503 = vadd.f32 %v5502, 1.0
    %v5504 = vrcp.pop %v5503
    %v5505 = vmul.f32 1.0, %v5504
    %v5506 = vtanh.pop %v5499
    %v5507 = vmul.f32 %v5505, %v5416
    %5509 = vrot.lane.b32.xlu0 %v5506, 64
    %v5510 = vpop.permute.xlu0 %5509
    %v5512 = vmul.f32 %v5505, %v5510
    %5514 = vrot.lane.b32.xlu0 %v5512, 32
    %v5515 = vpop.permute.xlu0 %5514
    %v5517 = vadd.f32 %v5507, %v5515
    %v5518 = vtanh.pop %v5517
    %5520 = vrot.lane.b32.xlu0 %v5518, 64
    %v5521 = vpop.permute.xlu0 %5520
    %v5523 = vmul.f32 %v5505, %v5521
    %v5524 = vld [vmem:[%s1779] sm:$0xff]
    %5526 = vrot.lane.b32.xlu0 %v5523, 32
    %v5527 = vpop.permute.xlu0 %5526
    %v5528 = vsel %vm310, %v5527, 0
    %5530 = vmatprep.subr.mxu0 0.0
    %5531 = vmatpush1.msra.mxu0 %v3879
    %5532 = vmatprep.subr.mxu0 0.0
    %5533 = vmatpush1.msra.mxu0 %v3880
    %5534 = vmatprep.subr.mxu0 0.0
    %5535 = vmatpush1.msra.mxu0 %v3881
    %5536 = vmatprep.subr.mxu0 0.0
    %5537 = vmatpush1.msra.mxu0 %v3882
    %5538 = vmatprep.subr.mxu0 0.0
    %5539 = vmatpush1.msra.mxu0 0.0
    %5540 = vmatprep.subr.mxu0 0.0
    %5541 = vmatpush1.msra.mxu0 0.0
    %5542 = vmatprep.subr.mxu0 0.0
    %5543 = vmatpush1.msra.mxu0 0.0
    %5544 = vmatprep.subr.mxu0 0.0
    %5545 = vmatpush1.msra.mxu0 0.0
    %5546 = vmatprep.subr.mxu0 0.0
    %5547 = vmatpush1.msra.mxu0 0.0
    %5548 = vmatprep.subr.mxu0 0.0
    %5549 = vmatpush1.msra.mxu0 0.0
    %5550 = vmatprep.subr.mxu0 0.0
    %5551 = vmatpush1.msra.mxu0 0.0
    %5552 = vmatprep.subr.mxu0 0.0
    %5553 = vmatpush1.msra.mxu0 0.0
    %5554 = vmatprep.subr.mxu0 0.0
    %5555 = vmatpush1.msra.mxu0 0.0
    %5556 = vmatprep.subr.mxu0 0.0
    %5557 = vmatpush1.msra.mxu0 0.0
    %5558 = vmatprep.subr.mxu0 0.0
    %5559 = vmatpush1.msra.mxu0 0.0
    %5560 = vmatprep.subr.mxu0 0.0
    %5561 = vmatpush1.msra.mxu0 0.0
    %5562 = vmatprep.subr.mxu0 0.0
    %5563 = vmatpush1.msra.mxu0 0.0
    %5564 = vmatprep.subr.mxu0 0.0
    %5565 = vmatpush1.msra.mxu0 0.0
    %5566 = vmatprep.subr.mxu0 0.0
    %5567 = vmatpush1.msra.mxu0 0.0
    %5568 = vmatprep.subr.mxu0 0.0
    %5569 = vmatpush1.msra.mxu0 0.0
    %5570 = vmatprep.subr.mxu0 0.0
    %5571 = vmatpush1.msra.mxu0 0.0
    %5572 = vmatprep.subr.mxu0 0.0
    %5573 = vmatpush1.msra.mxu0 0.0
    %5574 = vmatprep.subr.mxu0 0.0
    %5575 = vmatpush1.msra.mxu0 0.0
    %5576 = vmatprep.subr.mxu0 0.0
    %5577 = vmatpush1.msra.mxu0 0.0
    %5578 = vmatprep.subr.mxu0 0.0
    %5579 = vmatpush1.msra.mxu0 0.0
    %5580 = vmatprep.subr.mxu0 0.0
    %5581 = vmatpush1.msra.mxu0 0.0
    %5582 = vmatprep.subr.mxu0 0.0
    %5583 = vmatpush1.msra.mxu0 0.0
    %5584 = vmatprep.subr.mxu0 0.0
    %5585 = vmatpush1.msra.mxu0 0.0
    %5586 = vmatprep.subr.mxu0 0.0
    %5587 = vmatpush1.msra.mxu0 0.0
    %5588 = vmatprep.subr.mxu0 0.0
    %5589 = vmatpush1.msra.mxu0 0.0
    %5590 = vmatprep.subr.mxu0 0.0
    %5591 = vmatpush1.msra.mxu0 0.0
    %5592 = vmatprep.subr.mxu0 0.0
    %5593 = vmatpush1.msra.mxu0 0.0
    %5594 = vmatprep.mubr.f32.mxu0 0.0
    %5595 = vmatmul.mubr.f32.gmra.mrb[0].mxu0 %v5528
    %v5596 = vpop.f32.mrb[0].mxu0
    %v5597 = vadd.f32 0.0, %v5596
    %v5598 = vpop.f32.mrb[0].mxu0
    %5599 = vdwg.mxu0
    %v5600 = vadd.f32 %v5524, %v5597
    %v5601 = vxor.u32 %v5600, 2147483648
    %v5602 = vmul.f32 %v5601, 1.442695
    %v5603 = vpow.pop %v5602
    %v5604 = vadd.f32 %v5603, 1.0
    %v5605 = vrcp.pop %v5604
    %v5606 = vmul.f32 1.0, %v5605
    %v5607 = vtanh.pop %v5600
    %v5608 = vmul.f32 %v5606, %v5517
    %5610 = vrot.lane.b32.xlu0 %v5607, 64
    %v5611 = vpop.permute.xlu0 %5610
    %v5613 = vmul.f32 %v5606, %v5611
    %5615 = vrot.lane.b32.xlu0 %v5613, 32
    %v5616 = vpop.permute.xlu0 %5615
    %v5618 = vadd.f32 %v5608, %v5616
    %v5619 = vtanh.pop %v5618
    %5621 = vrot.lane.b32.xlu0 %v5619, 64
    %v5622 = vpop.permute.xlu0 %5621
    %v5624 = vmul.f32 %v5606, %v5622
    %v5625 = vld [vmem:[%s1884] sm:$0xff]
    %5627 = vrot.lane.b32.xlu0 %v5624, 32
    %v5628 = vpop.permute.xlu0 %5627
    %v5629 = vsel %vm310, %v5628, 0
    %5631 = vmatprep.subr.mxu0 0.0
    %5632 = vmatpush1.msra.mxu0 %v3879
    %5633 = vmatprep.subr.mxu0 0.0
    %5634 = vmatpush1.msra.mxu0 %v3880
    %5635 = vmatprep.subr.mxu0 0.0
    %5636 = vmatpush1.msra.mxu0 %v3881
    %5637 = vmatprep.subr.mxu0 0.0
    %5638 = vmatpush1.msra.mxu0 %v3882
    %5639 = vmatprep.subr.mxu0 0.0
    %5640 = vmatpush1.msra.mxu0 0.0
    %5641 = vmatprep.subr.mxu0 0.0
    %5642 = vmatpush1.msra.mxu0 0.0
    %5643 = vmatprep.subr.mxu0 0.0
    %5644 = vmatpush1.msra.mxu0 0.0
    %5645 = vmatprep.subr.mxu0 0.0
    %5646 = vmatpush1.msra.mxu0 0.0
    %5647 = vmatprep.subr.mxu0 0.0
    %5648 = vmatpush1.msra.mxu0 0.0
    %5649 = vmatprep.subr.mxu0 0.0
    %5650 = vmatpush1.msra.mxu0 0.0
    %5651 = vmatprep.subr.mxu0 0.0
    %5652 = vmatpush1.msra.mxu0 0.0
    %5653 = vmatprep.subr.mxu0 0.0
    %5654 = vmatpush1.msra.mxu0 0.0
    %5655 = vmatprep.subr.mxu0 0.0
    %5656 = vmatpush1.msra.mxu0 0.0
    %5657 = vmatprep.subr.mxu0 0.0
    %5658 = vmatpush1.msra.mxu0 0.0
    %5659 = vmatprep.subr.mxu0 0.0
    %5660 = vmatpush1.msra.mxu0 0.0
    %5661 = vmatprep.subr.mxu0 0.0
    %5662 = vmatpush1.msra.mxu0 0.0
    %5663 = vmatprep.subr.mxu0 0.0
    %5664 = vmatpush1.msra.mxu0 0.0
    %5665 = vmatprep.subr.mxu0 0.0
    %5666 = vmatpush1.msra.mxu0 0.0
    %5667 = vmatprep.subr.mxu0 0.0
    %5668 = vmatpush1.msra.mxu0 0.0
    %5669 = vmatprep.subr.mxu0 0.0
    %5670 = vmatpush1.msra.mxu0 0.0
    %5671 = vmatprep.subr.mxu0 0.0
    %5672 = vmatpush1.msra.mxu0 0.0
    %5673 = vmatprep.subr.mxu0 0.0
    %5674 = vmatpush1.msra.mxu0 0.0
    %5675 = vmatprep.subr.mxu0 0.0
    %5676 = vmatpush1.msra.mxu0 0.0
    %5677 = vmatprep.subr.mxu0 0.0
    %5678 = vmatpush1.msra.mxu0 0.0
    %5679 = vmatprep.subr.mxu0 0.0
    %5680 = vmatpush1.msra.mxu0 0.0
    %5681 = vmatprep.subr.mxu0 0.0
    %5682 = vmatpush1.msra.mxu0 0.0
    %5683 = vmatprep.subr.mxu0 0.0
    %5684 = vmatpush1.msra.mxu0 0.0
    %5685 = vmatprep.subr.mxu0 0.0
    %5686 = vmatpush1.msra.mxu0 0.0
    %5687 = vmatprep.subr.mxu0 0.0
    %5688 = vmatpush1.msra.mxu0 0.0
    %5689 = vmatprep.subr.mxu0 0.0
    %5690 = vmatpush1.msra.mxu0 0.0
    %5691 = vmatprep.subr.mxu0 0.0
    %5692 = vmatpush1.msra.mxu0 0.0
    %5693 = vmatprep.subr.mxu0 0.0
    %5694 = vmatpush1.msra.mxu0 0.0
    %5695 = vmatprep.mubr.f32.mxu0 0.0
    %5696 = vmatmul.mubr.f32.gmra.mrb[0].mxu0 %v5629
    %v5697 = vpop.f32.mrb[0].mxu0
    %v5698 = vadd.f32 0.0, %v5697
    %v5699 = vpop.f32.mrb[0].mxu0
    %5700 = vdwg.mxu0
    %v5701 = vadd.f32 %v5625, %v5698
    %v5702 = vxor.u32 %v5701, 2147483648
    %v5703 = vmul.f32 %v5702, 1.442695
    %v5704 = vpow.pop %v5703
    %v5705 = vadd.f32 %v5704, 1.0
    %v5706 = vrcp.pop %v5705
    %v5707 = vmul.f32 1.0, %v5706
    %v5708 = vtanh.pop %v5701
    %v5709 = vmul.f32 %v5707, %v5618
    %5711 = vrot.lane.b32.xlu0 %v5708, 64
    %v5712 = vpop.permute.xlu0 %5711
    %v5714 = vmul.f32 %v5707, %v5712
    %5716 = vrot.lane.b32.xlu0 %v5714, 32
    %v5717 = vpop.permute.xlu0 %5716
    %v5719 = vadd.f32 %v5709, %v5717
    %v5720 = vtanh.pop %v5719
    %5722 = vrot.lane.b32.xlu0 %v5720, 64
    %v5723 = vpop.permute.xlu0 %5722
    %v5725 = vmul.f32 %v5707, %v5723
    %v5726 = vld [vmem:[#allocation7] sm:$0xff]
    %v5727 = vld [vmem:[#allocation7 + $0x8] sm:$0xff]
    %v5728 = vld [vmem:[#allocation7 + $0x10] sm:$0xff]
    %v5729 = vld [vmem:[#allocation7 + $0x18] sm:$0xff]
    %v5730 = vld [vmem:[%s11] sm:$0x1]
    %v5732 = vlaneseq
    %v5733 = vshrl.u32 %v5732, 7
    %v5734 = vsub.s32 0, %v5733
    %v5735 = vrot.slane %v5730, %v5734
    %5738 = vrot.lane.b32.xlu0 %v5725, 32
    %v5739 = vpop.permute.xlu0 %5738
    %v5740 = vsel %vm310, %v5739, 0
    %5742 = vmatprep.subr.mxu0 0.0
    %5743 = vmatpush1.msra.mxu0 %v5726
    %5744 = vmatprep.subr.mxu0 0.0
    %5745 = vmatpush1.msra.mxu0 %v5727
    %5746 = vmatprep.subr.mxu0 0.0
    %5747 = vmatpush1.msra.mxu0 %v5728
    %5748 = vmatprep.subr.mxu0 0.0
    %5749 = vmatpush1.msra.mxu0 %v5729
    %5750 = vmatprep.subr.mxu0 0.0
    %5751 = vmatpush1.msra.mxu0 0.0
    %5752 = vmatprep.subr.mxu0 0.0
    %5753 = vmatpush1.msra.mxu0 0.0
    %5754 = vmatprep.subr.mxu0 0.0
    %5755 = vmatpush1.msra.mxu0 0.0
    %5756 = vmatprep.subr.mxu0 0.0
    %5757 = vmatpush1.msra.mxu0 0.0
    %5758 = vmatprep.subr.mxu0 0.0
    %5759 = vmatpush1.msra.mxu0 0.0
    %5760 = vmatprep.subr.mxu0 0.0
    %5761 = vmatpush1.msra.mxu0 0.0
    %5762 = vmatprep.subr.mxu0 0.0
    %5763 = vmatpush1.msra.mxu0 0.0
    %5764 = vmatprep.subr.mxu0 0.0
    %5765 = vmatpush1.msra.mxu0 0.0
    %5766 = vmatprep.subr.mxu0 0.0
    %5767 = vmatpush1.msra.mxu0 0.0
    %5768 = vmatprep.subr.mxu0 0.0
    %5769 = vmatpush1.msra.mxu0 0.0
    %5770 = vmatprep.subr.mxu0 0.0
    %5771 = vmatpush1.msra.mxu0 0.0
    %5772 = vmatprep.subr.mxu0 0.0
    %5773 = vmatpush1.msra.mxu0 0.0
    %5774 = vmatprep.subr.mxu0 0.0
    %5775 = vmatpush1.msra.mxu0 0.0
    %5776 = vmatprep.subr.mxu0 0.0
    %5777 = vmatpush1.msra.mxu0 0.0
    %5778 = vmatprep.subr.mxu0 0.0
    %5779 = vmatpush1.msra.mxu0 0.0
    %5780 = vmatprep.subr.mxu0 0.0
    %5781 = vmatpush1.msra.mxu0 0.0
    %5782 = vmatprep.subr.mxu0 0.0
    %5783 = vmatpush1.msra.mxu0 0.0
    %5784 = vmatprep.subr.mxu0 0.0
    %5785 = vmatpush1.msra.mxu0 0.0
    %5786 = vmatprep.subr.mxu0 0.0
    %5787 = vmatpush1.msra.mxu0 0.0
    %5788 = vmatprep.subr.mxu0 0.0
    %5789 = vmatpush1.msra.mxu0 0.0
    %5790 = vmatprep.subr.mxu0 0.0
    %5791 = vmatpush1.msra.mxu0 0.0
    %5792 = vmatprep.subr.mxu0 0.0
    %5793 = vmatpush1.msra.mxu0 0.0
    %5794 = vmatprep.subr.mxu0 0.0
    %5795 = vmatpush1.msra.mxu0 0.0
    %5796 = vmatprep.subr.mxu0 0.0
    %5797 = vmatpush1.msra.mxu0 0.0
    %5798 = vmatprep.subr.mxu0 0.0
    %5799 = vmatpush1.msra.mxu0 0.0
    %5800 = vmatprep.subr.mxu0 0.0
    %5801 = vmatpush1.msra.mxu0 0.0
    %5802 = vmatprep.subr.mxu0 0.0
    %5803 = vmatpush1.msra.mxu0 0.0
    %5804 = vmatprep.subr.mxu0 0.0
    %5805 = vmatpush1.msra.mxu0 0.0
    %5806 = vmatprep.mubr.f32.mxu0 0.0
    %5807 = vmatmul.mubr.f32.gmra.mrb[0].mxu0 %v5740
    %v5808 = vpop.f32.mrb[0].mxu0
    %v5809 = vadd.f32 %v5735, %v5808
    %v5810 = vpop.f32.mrb[0].mxu0
    %5811 = vdwg.mxu0
    %v5812 = vmul.f32 %v5809, %v5809
    %v5813 = vsel %vm310, %v5812, 0.0
    %5814 = vadd.xlane.f32.xlu0 %v5813
    %v5815 = vpop.xlane.xlu0 %5814
    %v5816 = vrsqrt.pop %v5815
    %v5817 = vmul.f32 %v5809, %v5816
    %v5818 = vlaneseq
    %v5819 = vshrl.u32 %v5818, 7
    %vm5820 = vcmp.lt.s32.totalorder %v5819, 4
    %v5821 = vsel %vm5820, 1, 0
    %vm5822 = vcmp.eq.s32.totalorder %v5821, 1
    %v5823 = vsel %vm5822, %v5817, 0.0
    %v5824 = vsel %vm310, %v5823, 0.0
    %v5825 = vrot.slane %v5824, 4
    %v5826 = vadd.f32 %v5824, %v5825
    %v5827 = vrot.slane %v5826, 2
    %v5828 = vadd.f32 %v5826, %v5827
    %v5829 = vrot.slane %v5828, 1
    %v5830 = vadd.f32 %v5828, %v5829
    %v5831 = vmul.f32 %v5830, 0.25
    %vm5832 = vcmask 253952
    %5833 = vst.msk [vmem:[#allocation9] sm:$0x1] %vm5832, %v5831
    // Predicated region
    $region58: #{tpu_custom_call.1} parent=1 // pred_check
      _
    $region59: #{tpu_custom_call.1} parent=1 // pred_check_branch
      %5835 = sbr.rel (0) target = $region61
    $region60: #{tpu_custom_call.1} parent=1 // pred_region
      %s5837 = ssub.s32 16, 16
      %5838 = vsyncadd [#allocation6], %s5837
      %s5840 = sshll.u32 [#allocation9], 4
      %s5841 = int_to_ptr.vmem [resolvable:$true] %s5840
      %5843 = dma.vmem_to_hbm [thread:$0]  %s5841, 16, %s12, [#allocation6]
    $region61: #{tpu_custom_call.1} parent=1 // pred_fallthru
      _
    // Predicated region
    $region62: #{tpu_custom_call.1} parent=1 // pred_check
      _
    $region63: #{tpu_custom_call.1} parent=1 // pred_check_branch
      %5845 = sbr.rel (0) target = $region65
    $region64: #{tpu_custom_call.1} parent=1 // pred_region
      %5846 = dma.done [#allocation6], 16
    $region65: #{tpu_custom_call.1} parent=1 // pred_fallthru
      _
    %5847 = vsyncpa [#allocation5], 1
    %5848 = vsyncpa [#allocation8], 1
    %5849 = vsyncpa [#allocation6], 1

</llo_original>
